<compile_context>
chip_gen: v7x
topology: tpu7x:2x2x1
jax: 0.10.0
libtpu: 0.0.40
codegen_flags: <defaults>
</compile_context>

<pallas_src>
import functools

import jax
import jax.numpy as jnp
from jax.experimental import pallas as pl
from jax.experimental.pallas import tpu as pltpu

EXPANSION = 4


# ---------------------------------------------------------------------------
# helpers
# ---------------------------------------------------------------------------
def _round_up(x, m):
    return (x + m - 1) // m * m


def _fold_bn(gamma, beta, mean, var, eps=1e-5):
    # TODO(synk): training-mode BatchNorm (batch statistics, running-stat
    # updates) is not implemented; BN is folded as inference-mode scale/shift.
    scale = gamma / jnp.sqrt(var + eps)
    shift = beta - mean * scale
    return scale, shift


def _vmem_limit_bytes():
    # ~3/4 of physical VMEM, capped at 100 MiB (v5e/v6e ~96 MiB, v7x ~48 MiB).
    try:
        cap = pltpu.get_tpu_info().vmem_capacity_bytes
        return int(min(cap * 3 // 4, 100 * 1024 * 1024))
    except Exception:
        return 48 * 1024 * 1024


# ---------------------------------------------------------------------------
# kernel 1: fused conv1 (1x1 + BN + ReLU) -> conv2 (3x3, stride, pad=1 + BN + ReLU)
# ---------------------------------------------------------------------------
def _head_kernel(x_ref, w1_ref, ss1_ref, w2_ref, ss2_ref, o_ref, x1p_ref, *,
                 stride, row_chunk, compute_dtype):
    _, h, w, cin = x_ref.shape
    _, ho, wo, planes = o_ref.shape

    # conv1 into a zero-bordered VMEM scratch. Re-zeroing the (small) scratch
    # every step keeps the kernel independent of grid scheduling (megacore-safe).
    x1p_ref[...] = jnp.zeros_like(x1p_ref)
    x2d = x_ref[...].reshape(h * w, cin).astype(compute_dtype)
    h1 = jnp.dot(x2d, w1_ref[...].astype(compute_dtype),
                 preferred_element_type=jnp.float32)
    h1 = jnp.maximum(h1 * ss1_ref[0:1, :] + ss1_ref[1:2, :], 0.0)
    x1p_ref[1:h + 1, 1:w + 1, :] = h1.reshape(h, w, planes).astype(x1p_ref.dtype)

    # conv2: 9 shifted MXU matmuls per output-row chunk; stride is applied
    # directly to the VMEM reads so only the needed rows/cols are computed.
    w2 = w2_ref[...].astype(compute_dtype)
    for r0 in range(0, ho, row_chunk):
        rows = min(row_chunk, ho - r0)
        acc = jnp.zeros((rows * wo, planes), jnp.float32)
        for dy in range(3):
            for dx in range(3):
                if stride == 1:
                    patch = x1p_ref[r0 + dy:r0 + dy + rows, dx:dx + wo, :]
                else:
                    patch = x1p_ref[pl.ds(stride * r0 + dy, rows, stride=stride),
                                    pl.ds(dx, wo, stride=stride), :]
                acc = acc + jnp.dot(
                    patch.reshape(rows * wo, planes).astype(compute_dtype),
                    w2[dy, dx], preferred_element_type=jnp.float32)
        y = jnp.maximum(acc * ss2_ref[0:1, :] + ss2_ref[1:2, :], 0.0)
        o_ref[0, r0:r0 + rows, :, :] = y.reshape(rows, wo, planes).astype(o_ref.dtype)


def _conv1_conv2(x, w1, ss1, w2, ss2, *, stride, row_chunk, compute_dtype):
    n, h, w, cin = x.shape
    planes = w1.shape[1]
    ho = (h - 1) // stride + 1
    wo = (w - 1) // stride + 1

    kernel = functools.partial(_head_kernel, stride=stride,
                               row_chunk=min(row_chunk, ho),
                               compute_dtype=compute_dtype)
    cost = pl.CostEstimate(
        flops=int(2 * n * h * w * cin * planes
                  + 2 * n * ho * wo * 9 * planes * planes),
        transcendentals=0,
        bytes_accessed=int(4 * (n * h * w * cin + cin * planes
                                + 9 * planes * planes + 4 * planes
                                + n * ho * wo * planes)),
    )
    # TODO(synk): for very large images the per-image grid could be extended
    # with a spatial (halo'd) grid axis; the in-kernel row chunking already
    # keeps the accumulator small.
    return pl.pallas_call(
        kernel,
        out_shape=jax.ShapeDtypeStruct((n, ho, wo, planes), compute_dtype),
        grid=(n,),
        in_specs=[
            pl.BlockSpec((1, h, w, cin), lambda i: (i, 0, 0, 0)),
            pl.BlockSpec((cin, planes), lambda i: (0, 0)),
            pl.BlockSpec((2, planes), lambda i: (0, 0)),
            pl.BlockSpec((3, 3, planes, planes), lambda i: (0, 0, 0, 0)),
            pl.BlockSpec((2, planes), lambda i: (0, 0)),
        ],
        out_specs=pl.BlockSpec((1, ho, wo, planes), lambda i: (i, 0, 0, 0)),
        scratch_shapes=[pltpu.VMEM((h + 2, w + 2, planes), jnp.float32)],
        compiler_params=pltpu.CompilerParams(
            dimension_semantics=("parallel",),
            vmem_limit_bytes=_vmem_limit_bytes()),
        cost_estimate=cost,
    )(x, w1, ss1, w2, ss2)


# ---------------------------------------------------------------------------
# kernel 2: fused conv3 (1x1 + BN) + shortcut (conv/identity) + add + ReLU
# ---------------------------------------------------------------------------
def _tail_conv_shortcut_kernel(h_ref, xs_ref, w3_ref, ss3_ref, wsc_ref, sssc_ref,
                               o_ref, *, compute_dtype):
    y = jnp.dot(h_ref[...].astype(compute_dtype), w3_ref[...].astype(compute_dtype),
                preferred_element_type=jnp.float32)
    y = y * ss3_ref[0:1, :] + ss3_ref[1:2, :]
    r = jnp.dot(xs_ref[...].astype(compute_dtype), wsc_ref[...].astype(compute_dtype),
                preferred_element_type=jnp.float32)
    r = r * sssc_ref[0:1, :] + sssc_ref[1:2, :]
    o_ref[...] = jnp.maximum(y + r, 0.0).astype(o_ref.dtype)


def _tail_identity_kernel(h_ref, xs_ref, w3_ref, ss3_ref, o_ref, *, compute_dtype):
    y = jnp.dot(h_ref[...].astype(compute_dtype), w3_ref[...].astype(compute_dtype),
                preferred_element_type=jnp.float32)
    y = y * ss3_ref[0:1, :] + ss3_ref[1:2, :] + xs_ref[...].astype(jnp.float32)
    o_ref[...] = jnp.maximum(y, 0.0).astype(o_ref.dtype)


def _conv3_shortcut(h2d, xs2d, w3, ss3, wsc, sssc, *, out_dtype, tile_r,
                    compute_dtype):
    rows, planes = h2d.shape
    cout = w3.shape[1]
    csc = xs2d.shape[1]

    tr = min(tile_r, _round_up(rows, 8))
    rows_p = _round_up(rows, tr)
    if rows_p != rows:
        h2d = jnp.pad(h2d, ((0, rows_p - rows), (0, 0)))
        xs2d = jnp.pad(xs2d, ((0, rows_p - rows), (0, 0)))

    if wsc is not None:
        kernel = functools.partial(_tail_conv_shortcut_kernel,
                                   compute_dtype=compute_dtype)
        extra_args = (wsc, sssc)
        extra_specs = [pl.BlockSpec((csc, cout), lambda i: (0, 0)),
                       pl.BlockSpec((2, cout), lambda i: (0, 0))]
        flops = 2 * rows_p * (planes + csc) * cout
    else:
        kernel = functools.partial(_tail_identity_kernel,
                                   compute_dtype=compute_dtype)
        extra_args = ()
        extra_specs = []
        flops = 2 * rows_p * planes * cout

    cost = pl.CostEstimate(
        flops=int(flops), transcendentals=0,
        bytes_accessed=int(4 * (rows_p * (planes + csc + cout)
                                + (planes + csc) * cout + 4 * cout)))
    out = pl.pallas_call(
        kernel,
        out_shape=jax.ShapeDtypeStruct((rows_p, cout), out_dtype),
        grid=(rows_p // tr,),
        in_specs=[
            pl.BlockSpec((tr, planes), lambda i: (i, 0)),
            pl.BlockSpec((tr, csc), lambda i: (i, 0)),
            pl.BlockSpec((planes, cout), lambda i: (0, 0)),
            pl.BlockSpec((2, cout), lambda i: (0, 0)),
        ] + extra_specs,
        out_specs=pl.BlockSpec((tr, cout), lambda i: (i, 0)),
        compiler_params=pltpu.CompilerParams(
            dimension_semantics=("parallel",),
            vmem_limit_bytes=_vmem_limit_bytes()),
        cost_estimate=cost,
    )(h2d, xs2d, w3, ss3, *extra_args)
    return out[:rows]


# ---------------------------------------------------------------------------
# parameter prep (hoisted out of the forward) and forward pass
# ---------------------------------------------------------------------------
def prepare_params(p, eps=1e-5):
    """Fold BN (inference mode) into stacked (scale, shift) rows. Run once."""
    def ss(bn):
        scale, shift = _fold_bn(eps=eps, **bn)
        return jnp.stack([scale, shift], axis=0)

    prep = dict(w1=p["w1"], ss1=ss(p["bn1"]),
                w2=p["w2"], ss2=ss(p["bn2"]),
                w3=p["w3"], ss3=ss(p["bn3"]))
    if "w_sc" in p:
        prep["w_sc"] = p["w_sc"]
        prep["ss_sc"] = ss(p["bn_sc"])
    return prep


def bottleneck_forward(x, prep, *, stride=1, tile_r=512, row_chunk=8,
                       compute_dtype=jnp.float32):
    """Bottleneck forward. x: (N, H, W, Cin) NHWC float32 (channels-last)."""
    n, h, w, cin = x.shape
    planes = prep["w1"].shape[1]
    cout = prep["w3"].shape[1]

    out2 = _conv1_conv2(x, prep["w1"], prep["ss1"], prep["w2"], prep["ss2"],
                        stride=stride, row_chunk=row_chunk,
                        compute_dtype=compute_dtype)
    _, ho, wo, _ = out2.shape
    rows = n * ho * wo

    has_conv_sc = (stride != 1) or (cin != cout)
    if stride > 1:
        # TODO(synk): this strided sample of the small Cin-channel input could
        # also be emitted by the head kernel to avoid one extra XLA pass.
        xs = x[:, ::stride, ::stride, :]
    else:
        xs = x
    if has_conv_sc:
        wsc, sssc = prep["w_sc"], prep["ss_sc"]
    else:
        assert cin == cout, "identity shortcut requires cin == expansion*planes"
        wsc, sssc = None, None

    out = _conv3_shortcut(out2.reshape(rows, planes), xs.reshape(rows, cin),
                          prep["w3"], prep["ss3"], wsc, sssc,
                          out_dtype=x.dtype, tile_r=tile_r,
                          compute_dtype=compute_dtype)
    return out.reshape(n, ho, wo, cout)


# ---------------------------------------------------------------------------
# pure-JAX reference
# ---------------------------------------------------------------------------
def bottleneck_reference(x, p, *, stride=1):
    hp = jax.lax.Precision.HIGHEST
    cin = x.shape[-1]
    cout = p["w3"].shape[1]

    s1, b1 = _fold_bn(**p["bn1"])
    out = jnp.einsum("nhwc,cd->nhwd", x, p["w1"], precision=hp) * s1 + b1
    out = jnp.maximum(out, 0.0)

    s2, b2 = _fold_bn(**p["bn2"])
    out = jax.lax.conv_general_dilated(
        out, p["w2"], window_strides=(stride, stride), padding=((1, 1), (1, 1)),
        dimension_numbers=("NHWC", "HWIO", "NHWC"), precision=hp)
    out = jnp.maximum(out * s2 + b2, 0.0)

    s3, b3 = _fold_bn(**p["bn3"])
    out = jnp.einsum("nhwc,cd->nhwd", out, p["w3"], precision=hp) * s3 + b3

    if stride != 1 or cin != cout:
        xs = x[:, ::stride, ::stride, :]
        s_sc, b_sc = _fold_bn(**p["bn_sc"])
        sc = jnp.einsum("nhwc,cd->nhwd", xs, p["w_sc"], precision=hp) * s_sc + b_sc
    else:
        sc = x
    return jnp.maximum(out + sc, 0.0)


# ---------------------------------------------------------------------------
if __name__ == "__main__":
    N, H, W = 2, 16, 16
    key = jax.random.PRNGKey(0)

    def bn_params(k, c):
        k1, k2, k3, k4 = jax.random.split(k, 4)
        return dict(
            gamma=jax.random.uniform(k1, (c,), minval=0.5, maxval=1.5,
                                     dtype=jnp.float32),
            beta=jax.random.normal(k2, (c,), dtype=jnp.float32) * 0.1,
            mean=jax.random.normal(k3, (c,), dtype=jnp.float32) * 0.1,
            var=jax.random.uniform(k4, (c,), minval=0.5, maxval=1.5,
                                   dtype=jnp.float32),
        )

    def make_params(k, in_planes, planes, conv_shortcut):
        cout = EXPANSION * planes
        ks = jax.random.split(k, 8)
        p = dict(
            w1=jax.random.normal(ks[0], (in_planes, planes), jnp.float32) * 0.1,
            bn1=bn_params(ks[1], planes),
            w2=jax.random.normal(ks[2], (3, 3, planes, planes), jnp.float32) * 0.1,
            bn2=bn_params(ks[3], planes),
            w3=jax.random.normal(ks[4], (planes, cout), jnp.float32) * 0.1,
            bn3=bn_params(ks[5], cout),
        )
        if conv_shortcut:
            p["w_sc"] = jax.random.normal(ks[6], (in_planes, cout), jnp.float32) * 0.1
            p["bn_sc"] = bn_params(ks[7], cout)
        return p

    configs = [
        (16, 8, 1),   # conv shortcut (cin != 4*planes), stride 1
        (16, 8, 2),   # conv shortcut, stride 2 handled in-kernel
        (32, 8, 1),   # identity shortcut (cin == 4*planes, stride 1)
    ]
    for idx, (in_planes, planes, stride) in enumerate(configs):
        cout = EXPANSION * planes
        kp, kx = jax.random.split(jax.random.fold_in(key, idx))
        conv_sc = (stride != 1) or (in_planes != cout)
        params = make_params(kp, in_planes, planes, conv_sc)
        prep = prepare_params(params)
        x = jax.random.normal(kx, (N, H, W, in_planes), jnp.float32)

        fwd = jax.jit(functools.partial(bottleneck_forward, stride=stride))
        out = jax.block_until_ready(fwd(x, prep))
        ref = bottleneck_reference(x, params, stride=stride)
        assert out.shape == ref.shape, (out.shape, ref.shape)
        err = float(jnp.max(jnp.abs(out - ref)))
        assert jnp.allclose(out, ref, atol=1e-2, rtol=1e-2), (
            f"mismatch (in_planes={in_planes}, stride={stride}): "
            f"max abs err {err}")

    print("KERNEL_OK")
</pallas_src>

<mosaic_0001>
module attributes {stable_mosaic.version = 11 : i64} {
  func.func @_tail_conv_shortcut_kernel(%arg0: i32, %arg1: memref<512x8xf32, #tpu.memory_space<vmem>>, %arg2: memref<512x16xf32, #tpu.memory_space<vmem>>, %arg3: memref<8x32xf32, #tpu.memory_space<vmem>>, %arg4: memref<2x32xf32, #tpu.memory_space<vmem>>, %arg5: memref<16x32xf32, #tpu.memory_space<vmem>>, %arg6: memref<2x32xf32, #tpu.memory_space<vmem>>, %arg7: memref<512x32xf32, #tpu.memory_space<vmem>>) attributes {dimension_semantics = [#tpu.dimension_semantics<parallel>], iteration_bounds = array<i64: 1>, scalar_prefetch = 0 : i64, scratch_operands = 0 : i64, tpu.core_type = #tpu.core_type<tc>, window_params = [{transform_indices = @transform_0, window_bounds = array<i64: 512, 8>}, {transform_indices = @transform_1, window_bounds = array<i64: 512, 16>}, {pipeline_mode = #tpu.pipeline_mode<synchronous>, transform_indices = @transform_2, window_bounds = array<i64: 8, 32>}, {pipeline_mode = #tpu.pipeline_mode<synchronous>, transform_indices = @transform_3, window_bounds = array<i64: 2, 32>}, {pipeline_mode = #tpu.pipeline_mode<synchronous>, transform_indices = @transform_4, window_bounds = array<i64: 16, 32>}, {pipeline_mode = #tpu.pipeline_mode<synchronous>, transform_indices = @transform_5, window_bounds = array<i64: 2, 32>}, {transform_indices = @transform_6, window_bounds = array<i64: 512, 32>}]} {
    %c0 = arith.constant 0 : index
    %c0_0 = arith.constant 0 : index
    %0 = vector.load %arg1[%c0, %c0_0] : memref<512x8xf32, #tpu.memory_space<vmem>>, vector<512x8xf32>
    %c0_1 = arith.constant 0 : index
    %c0_2 = arith.constant 0 : index
    %1 = vector.load %arg3[%c0_1, %c0_2] : memref<8x32xf32, #tpu.memory_space<vmem>>, vector<8x32xf32>
    %cst = arith.constant dense<0.000000e+00> : vector<512x32xf32>
    %2 = tpu.matmul %0, %1, %cst {dimension_numbers = #tpu.dot_dimension_numbers<[1], [0], [0], [1], [0, 0, 1, 1], [], []>} : vector<512x8xf32>, vector<8x32xf32>, vector<512x32xf32> -> vector<512x32xf32>
    %c0_3 = arith.constant 0 : index
    %c0_4 = arith.constant 0 : index
    %3 = vector.load %arg4[%c0_3, %c0_4] : memref<2x32xf32, #tpu.memory_space<vmem>>, vector<1x32xf32>
    %4 = vector.broadcast %3 : vector<1x32xf32> to vector<512x32xf32>
    %5 = arith.mulf %2, %4 : vector<512x32xf32>
    %c1 = arith.constant 1 : index
    %c0_5 = arith.constant 0 : index
    %6 = vector.load %arg4[%c1, %c0_5] : memref<2x32xf32, #tpu.memory_space<vmem>>, vector<1x32xf32>
    %7 = vector.broadcast %6 : vector<1x32xf32> to vector<512x32xf32>
    %8 = arith.addf %5, %7 : vector<512x32xf32>
    %c0_6 = arith.constant 0 : index
    %c0_7 = arith.constant 0 : index
    %9 = vector.load %arg2[%c0_6, %c0_7] : memref<512x16xf32, #tpu.memory_space<vmem>>, vector<512x16xf32>
    %c0_8 = arith.constant 0 : index
    %c0_9 = arith.constant 0 : index
    %10 = vector.load %arg5[%c0_8, %c0_9] : memref<16x32xf32, #tpu.memory_space<vmem>>, vector<16x32xf32>
    %cst_10 = arith.constant dense<0.000000e+00> : vector<512x32xf32>
    %11 = tpu.matmul %9, %10, %cst_10 {dimension_numbers = #tpu.dot_dimension_numbers<[1], [0], [0], [1], [0, 0, 1, 1], [], []>} : vector<512x16xf32>, vector<16x32xf32>, vector<512x32xf32> -> vector<512x32xf32>
    %c0_11 = arith.constant 0 : index
    %c0_12 = arith.constant 0 : index
    %12 = vector.load %arg6[%c0_11, %c0_12] : memref<2x32xf32, #tpu.memory_space<vmem>>, vector<1x32xf32>
    %13 = vector.broadcast %12 : vector<1x32xf32> to vector<512x32xf32>
    %14 = arith.mulf %11, %13 : vector<512x32xf32>
    %c1_13 = arith.constant 1 : index
    %c0_14 = arith.constant 0 : index
    %15 = vector.load %arg6[%c1_13, %c0_14] : memref<2x32xf32, #tpu.memory_space<vmem>>, vector<1x32xf32>
    %16 = vector.broadcast %15 : vector<1x32xf32> to vector<512x32xf32>
    %17 = arith.addf %14, %16 : vector<512x32xf32>
    %18 = arith.addf %8, %17 : vector<512x32xf32>
    %cst_15 = arith.constant 0.000000e+00 : f32
    %19 = vector.broadcast %cst_15 : f32 to vector<512x32xf32>
    %20 = arith.maximumf %18, %19 : vector<512x32xf32>
    %c0_16 = arith.constant 0 : index
    %c0_17 = arith.constant 0 : index
    %21 = vector.load %arg7[%c0_16, %c0_17] : memref<512x32xf32, #tpu.memory_space<vmem>>, vector<512x32xf32>
    tpu.vector_store %arg7[%c0_16, %c0_17], %20 {strides = array<i32>} : memref<512x32xf32, #tpu.memory_space<vmem>>, vector<512x32xf32>,
    return
  }
  func.func @transform_0(%arg0: i32) -> (i32, i32) {
    %c0_i32 = arith.constant 0 : i32
    %c0_i32_0 = arith.constant 0 : i32
    return %arg0, %c0_i32 : i32, i32
  }
  func.func @transform_1(%arg0: i32) -> (i32, i32) {
    %c0_i32 = arith.constant 0 : i32
    %c0_i32_0 = arith.constant 0 : i32
    return %arg0, %c0_i32 : i32, i32
  }
  func.func @transform_2(%arg0: i32) -> (i32, i32) {
    %c0_i32 = arith.constant 0 : i32
    %c0_i32_0 = arith.constant 0 : i32
    %c0_i32_1 = arith.constant 0 : i32
    return %c0_i32, %c0_i32_0 : i32, i32
  }
  func.func @transform_3(%arg0: i32) -> (i32, i32) {
    %c0_i32 = arith.constant 0 : i32
    %c0_i32_0 = arith.constant 0 : i32
    %c0_i32_1 = arith.constant 0 : i32
    return %c0_i32, %c0_i32_0 : i32, i32
  }
  func.func @transform_4(%arg0: i32) -> (i32, i32) {
    %c0_i32 = arith.constant 0 : i32
    %c0_i32_0 = arith.constant 0 : i32
    %c0_i32_1 = arith.constant 0 : i32
    return %c0_i32, %c0_i32_0 : i32, i32
  }
  func.func @transform_5(%arg0: i32) -> (i32, i32) {
    %c0_i32 = arith.constant 0 : i32
    %c0_i32_0 = arith.constant 0 : i32
    %c0_i32_1 = arith.constant 0 : i32
    return %c0_i32, %c0_i32_0 : i32, i32
  }
  func.func @transform_6(%arg0: i32) -> (i32, i32) {
    %c0_i32 = arith.constant 0 : i32
    %c0_i32_0 = arith.constant 0 : i32
    return %arg0, %c0_i32 : i32, i32
  }
}

module attributes {stable_mosaic.version = 11 : i64} {
  func.func @_head_kernel(%arg0: i32, %arg1: memref<1x16x16x16xf32, #tpu.memory_space<vmem>>, %arg2: memref<16x8xf32, #tpu.memory_space<vmem>>, %arg3: memref<2x8xf32, #tpu.memory_space<vmem>>, %arg4: memref<3x3x8x8xf32, #tpu.memory_space<vmem>>, %arg5: memref<2x8xf32, #tpu.memory_space<vmem>>, %arg6: memref<1x16x16x8xf32, #tpu.memory_space<vmem>>, %arg7: memref<18x18x8xf32, #tpu.memory_space<vmem>>) attributes {dimension_semantics = [#tpu.dimension_semantics<parallel>], iteration_bounds = array<i64: 2>, scalar_prefetch = 0 : i64, scratch_operands = 1 : i64, tpu.core_type = #tpu.core_type<tc>, window_params = [{transform_indices = @transform_0, window_bounds = array<i64: 1, 16, 16, 16>}, {pipeline_mode = #tpu.pipeline_mode<synchronous>, transform_indices = @transform_1, window_bounds = array<i64: 16, 8>}, {pipeline_mode = #tpu.pipeline_mode<synchronous>, transform_indices = @transform_2, window_bounds = array<i64: 2, 8>}, {pipeline_mode = #tpu.pipeline_mode<synchronous>, transform_indices = @transform_3, window_bounds = array<i64: 3, 3, 8, 8>}, {pipeline_mode = #tpu.pipeline_mode<synchronous>, transform_indices = @transform_4, window_bounds = array<i64: 2, 8>}, {transform_indices = @transform_5, window_bounds = array<i64: 1, 16, 16, 8>}]} {
    %cst = arith.constant 0.000000e+00 : f32
    %0 = vector.broadcast %cst : f32 to vector<18x18x8xf32>
    %c0 = arith.constant 0 : index
    %c0_0 = arith.constant 0 : index
    %c0_1 = arith.constant 0 : index
    %1 = vector.load %arg7[%c0, %c0_0, %c0_1] : memref<18x18x8xf32, #tpu.memory_space<vmem>>, vector<18x18x8xf32>
    tpu.vector_store %arg7[%c0, %c0_0, %c0_1], %0 {strides = array<i32>} : memref<18x18x8xf32, #tpu.memory_space<vmem>>, vector<18x18x8xf32>,
    %c0_2 = arith.constant 0 : index
    %c0_3 = arith.constant 0 : index
    %c0_4 = arith.constant 0 : index
    %c0_5 = arith.constant 0 : index
    %2 = vector.load %arg1[%c0_2, %c0_3, %c0_4, %c0_5] : memref<1x16x16x16xf32, #tpu.memory_space<vmem>>, vector<1x16x16x16xf32>
    %3 = vector.shape_cast %2 : vector<1x16x16x16xf32> to vector<256x16xf32>
    %c0_6 = arith.constant 0 : index
    %c0_7 = arith.constant 0 : index
    %4 = vector.load %arg2[%c0_6, %c0_7] : memref<16x8xf32, #tpu.memory_space<vmem>>, vector<16x8xf32>
    %cst_8 = arith.constant dense<0.000000e+00> : vector<256x8xf32>
    %5 = tpu.matmul %3, %4, %cst_8 {dimension_numbers = #tpu.dot_dimension_numbers<[1], [0], [0], [1], [0, 0, 1, 1], [], []>} : vector<256x16xf32>, vector<16x8xf32>, vector<256x8xf32> -> vector<256x8xf32>
    %c0_9 = arith.constant 0 : index
    %c0_10 = arith.constant 0 : index
    %6 = vector.load %arg3[%c0_9, %c0_10] : memref<2x8xf32, #tpu.memory_space<vmem>>, vector<1x8xf32>
    %7 = vector.broadcast %6 : vector<1x8xf32> to vector<256x8xf32>
    %8 = arith.mulf %5, %7 : vector<256x8xf32>
    %c1 = arith.constant 1 : index
    %c0_11 = arith.constant 0 : index
    %9 = vector.load %arg3[%c1, %c0_11] : memref<2x8xf32, #tpu.memory_space<vmem>>, vector<1x8xf32>
    %10 = vector.broadcast %9 : vector<1x8xf32> to vector<256x8xf32>
    %11 = arith.addf %8, %10 : vector<256x8xf32>
    %cst_12 = arith.constant 0.000000e+00 : f32
    %12 = vector.broadcast %cst_12 : f32 to vector<256x8xf32>
    %13 = arith.maximumf %11, %12 : vector<256x8xf32>
    %14 = vector.shape_cast %13 : vector<256x8xf32> to vector<16x16x8xf32>
    %c1_13 = arith.constant 1 : index
    %c1_14 = arith.constant 1 : index
    %c0_15 = arith.constant 0 : index
    %15 = vector.load %arg7[%c1_13, %c1_14, %c0_15] : memref<18x18x8xf32, #tpu.memory_space<vmem>>, vector<16x16x8xf32>
    tpu.vector_store %arg7[%c1_13, %c1_14, %c0_15], %14 {strides = array<i32>} : memref<18x18x8xf32, #tpu.memory_space<vmem>>, vector<16x16x8xf32>,
    %c0_16 = arith.constant 0 : index
    %c0_17 = arith.constant 0 : index
    %c0_18 = arith.constant 0 : index
    %c0_19 = arith.constant 0 : index
    %16 = vector.load %arg4[%c0_16, %c0_17, %c0_18, %c0_19] : memref<3x3x8x8xf32, #tpu.memory_space<vmem>>, vector<3x3x8x8xf32>
    %cst_20 = arith.constant 0.000000e+00 : f32
    %17 = vector.broadcast %cst_20 : f32 to vector<128x8xf32>
    %c0_21 = arith.constant 0 : index
    %c0_22 = arith.constant 0 : index
    %c0_23 = arith.constant 0 : index
    %18 = vector.load %arg7[%c0_21, %c0_22, %c0_23] : memref<18x18x8xf32, #tpu.memory_space<vmem>>, vector<8x16x8xf32>
    %19 = vector.shape_cast %18 : vector<8x16x8xf32> to vector<128x8xf32>
    %20 = vector.extract_strided_slice %16 {offsets = [0, 0, 0, 0], sizes = [1, 1, 8, 8], strides = [1, 1, 1, 1]} : vector<3x3x8x8xf32> to vector<1x1x8x8xf32>
    %21 = vector.shape_cast %20 : vector<1x1x8x8xf32> to vector<8x8xf32>
    %cst_24 = arith.constant dense<0.000000e+00> : vector<128x8xf32>
    %22 = tpu.matmul %19, %21, %cst_24 {dimension_numbers = #tpu.dot_dimension_numbers<[1], [0], [0], [1], [0, 0, 1, 1], [], []>} : vector<128x8xf32>, vector<8x8xf32>, vector<128x8xf32> -> vector<128x8xf32>
    %23 = arith.addf %17, %22 : vector<128x8xf32>
    %c0_25 = arith.constant 0 : index
    %c1_26 = arith.constant 1 : index
    %c0_27 = arith.constant 0 : index
    %24 = vector.load %arg7[%c0_25, %c1_26, %c0_27] : memref<18x18x8xf32, #tpu.memory_space<vmem>>, vector<8x16x8xf32>
    %25 = vector.shape_cast %24 : vector<8x16x8xf32> to vector<128x8xf32>
    %26 = vector.extract_strided_slice %16 {offsets = [0, 1, 0, 0], sizes = [1, 1, 8, 8], strides = [1, 1, 1, 1]} : vector<3x3x8x8xf32> to vector<1x1x8x8xf32>
    %27 = vector.shape_cast %26 : vector<1x1x8x8xf32> to vector<8x8xf32>
    %cst_28 = arith.constant dense<0.000000e+00> : vector<128x8xf32>
    %28 = tpu.matmul %25, %27, %cst_28 {dimension_numbers = #tpu.dot_dimension_numbers<[1], [0], [0], [1], [0, 0, 1, 1], [], []>} : vector<128x8xf32>, vector<8x8xf32>, vector<128x8xf32> -> vector<128x8xf32>
    %29 = arith.addf %23, %28 : vector<128x8xf32>
    %c0_29 = arith.constant 0 : index
    %c2 = arith.constant 2 : index
    %c0_30 = arith.constant 0 : index
    %30 = vector.load %arg7[%c0_29, %c2, %c0_30] : memref<18x18x8xf32, #tpu.memory_space<vmem>>, vector<8x16x8xf32>
    %31 = vector.shape_cast %30 : vector<8x16x8xf32> to vector<128x8xf32>
    %32 = vector.extract_strided_slice %16 {offsets = [0, 2, 0, 0], sizes = [1, 1, 8, 8], strides = [1, 1, 1, 1]} : vector<3x3x8x8xf32> to vector<1x1x8x8xf32>
    %33 = vector.shape_cast %32 : vector<1x1x8x8xf32> to vector<8x8xf32>
    %cst_31 = arith.constant dense<0.000000e+00> : vector<128x8xf32>
    %34 = tpu.matmul %31, %33, %cst_31 {dimension_numbers = #tpu.dot_dimension_numbers<[1], [0], [0], [1], [0, 0, 1, 1], [], []>} : vector<128x8xf32>, vector<8x8xf32>, vector<128x8xf32> -> vector<128x8xf32>
    %35 = arith.addf %29, %34 : vector<128x8xf32>
    %c1_32 = arith.constant 1 : index
    %c0_33 = arith.constant 0 : index
    %c0_34 = arith.constant 0 : index
    %36 = vector.load %arg7[%c1_32, %c0_33, %c0_34] : memref<18x18x8xf32, #tpu.memory_space<vmem>>, vector<8x16x8xf32>
    %37 = vector.shape_cast %36 : vector<8x16x8xf32> to vector<128x8xf32>
    %38 = vector.extract_strided_slice %16 {offsets = [1, 0, 0, 0], sizes = [1, 1, 8, 8], strides = [1, 1, 1, 1]} : vector<3x3x8x8xf32> to vector<1x1x8x8xf32>
    %39 = vector.shape_cast %38 : vector<1x1x8x8xf32> to vector<8x8xf32>
    %cst_35 = arith.constant dense<0.000000e+00> : vector<128x8xf32>
    %40 = tpu.matmul %37, %39, %cst_35 {dimension_numbers = #tpu.dot_dimension_numbers<[1], [0], [0], [1], [0, 0, 1, 1], [], []>} : vector<128x8xf32>, vector<8x8xf32>, vector<128x8xf32> -> vector<128x8xf32>
    %41 = arith.addf %35, %40 : vector<128x8xf32>
    %c1_36 = arith.constant 1 : index
    %c1_37 = arith.constant 1 : index
    %c0_38 = arith.constant 0 : index
    %42 = vector.load %arg7[%c1_36, %c1_37, %c0_38] : memref<18x18x8xf32, #tpu.memory_space<vmem>>, vector<8x16x8xf32>
    %43 = vector.shape_cast %42 : vector<8x16x8xf32> to vector<128x8xf32>
    %44 = vector.extract_strided_slice %16 {offsets = [1, 1, 0, 0], sizes = [1, 1, 8, 8], strides = [1, 1, 1, 1]} : vector<3x3x8x8xf32> to vector<1x1x8x8xf32>
    %45 = vector.shape_cast %44 : vector<1x1x8x8xf32> to vector<8x8xf32>
    %cst_39 = arith.constant dense<0.000000e+00> : vector<128x8xf32>
    %46 = tpu.matmul %43, %45, %cst_39 {dimension_numbers = #tpu.dot_dimension_numbers<[1], [0], [0], [1], [0, 0, 1, 1], [], []>} : vector<128x8xf32>, vector<8x8xf32>, vector<128x8xf32> -> vector<128x8xf32>
    %47 = arith.addf %41, %46 : vector<128x8xf32>
    %c1_40 = arith.constant 1 : index
    %c2_41 = arith.constant 2 : index
    %c0_42 = arith.constant 0 : index
    %48 = vector.load %arg7[%c1_40, %c2_41, %c0_42] : memref<18x18x8xf32, #tpu.memory_space<vmem>>, vector<8x16x8xf32>
    %49 = vector.shape_cast %48 : vector<8x16x8xf32> to vector<128x8xf32>
    %50 = vector.extract_strided_slice %16 {offsets = [1, 2, 0, 0], sizes = [1, 1, 8, 8], strides = [1, 1, 1, 1]} : vector<3x3x8x8xf32> to vector<1x1x8x8xf32>
    %51 = vector.shape_cast %50 : vector<1x1x8x8xf32> to vector<8x8xf32>
    %cst_43 = arith.constant dense<0.000000e+00> : vector<128x8xf32>
    %52 = tpu.matmul %49, %51, %cst_43 {dimension_numbers = #tpu.dot_dimension_numbers<[1], [0], [0], [1], [0, 0, 1, 1], [], []>} : vector<128x8xf32>, vector<8x8xf32>, vector<128x8xf32> -> vector<128x8xf32>
    %53 = arith.addf %47, %52 : vector<128x8xf32>
    %c2_44 = arith.constant 2 : index
    %c0_45 = arith.constant 0 : index
    %c0_46 = arith.constant 0 : index
    %54 = vector.load %arg7[%c2_44, %c0_45, %c0_46] : memref<18x18x8xf32, #tpu.memory_space<vmem>>, vector<8x16x8xf32>
    %55 = vector.shape_cast %54 : vector<8x16x8xf32> to vector<128x8xf32>
    %56 = vector.extract_strided_slice %16 {offsets = [2, 0, 0, 0], sizes = [1, 1, 8, 8], strides = [1, 1, 1, 1]} : vector<3x3x8x8xf32> to vector<1x1x8x8xf32>
    %57 = vector.shape_cast %56 : vector<1x1x8x8xf32> to vector<8x8xf32>
    %cst_47 = arith.constant dense<0.000000e+00> : vector<128x8xf32>
    %58 = tpu.matmul %55, %57, %cst_47 {dimension_numbers = #tpu.dot_dimension_numbers<[1], [0], [0], [1], [0, 0, 1, 1], [], []>} : vector<128x8xf32>, vector<8x8xf32>, vector<128x8xf32> -> vector<128x8xf32>
    %59 = arith.addf %53, %58 : vector<128x8xf32>
    %c2_48 = arith.constant 2 : index
    %c1_49 = arith.constant 1 : index
    %c0_50 = arith.constant 0 : index
    %60 = vector.load %arg7[%c2_48, %c1_49, %c0_50] : memref<18x18x8xf32, #tpu.memory_space<vmem>>, vector<8x16x8xf32>
    %61 = vector.shape_cast %60 : vector<8x16x8xf32> to vector<128x8xf32>
    %62 = vector.extract_strided_slice %16 {offsets = [2, 1, 0, 0], sizes = [1, 1, 8, 8], strides = [1, 1, 1, 1]} : vector<3x3x8x8xf32> to vector<1x1x8x8xf32>
    %63 = vector.shape_cast %62 : vector<1x1x8x8xf32> to vector<8x8xf32>
    %cst_51 = arith.constant dense<0.000000e+00> : vector<128x8xf32>
    %64 = tpu.matmul %61, %63, %cst_51 {dimension_numbers = #tpu.dot_dimension_numbers<[1], [0], [0], [1], [0, 0, 1, 1], [], []>} : vector<128x8xf32>, vector<8x8xf32>, vector<128x8xf32> -> vector<128x8xf32>
    %65 = arith.addf %59, %64 : vector<128x8xf32>
    %c2_52 = arith.constant 2 : index
    %c2_53 = arith.constant 2 : index
    %c0_54 = arith.constant 0 : index
    %66 = vector.load %arg7[%c2_52, %c2_53, %c0_54] : memref<18x18x8xf32, #tpu.memory_space<vmem>>, vector<8x16x8xf32>
    %67 = vector.shape_cast %66 : vector<8x16x8xf32> to vector<128x8xf32>
    %68 = vector.extract_strided_slice %16 {offsets = [2, 2, 0, 0], sizes = [1, 1, 8, 8], strides = [1, 1, 1, 1]} : vector<3x3x8x8xf32> to vector<1x1x8x8xf32>
    %69 = vector.shape_cast %68 : vector<1x1x8x8xf32> to vector<8x8xf32>
    %cst_55 = arith.constant dense<0.000000e+00> : vector<128x8xf32>
    %70 = tpu.matmul %67, %69, %cst_55 {dimension_numbers = #tpu.dot_dimension_numbers<[1], [0], [0], [1], [0, 0, 1, 1], [], []>} : vector<128x8xf32>, vector<8x8xf32>, vector<128x8xf32> -> vector<128x8xf32>
    %71 = arith.addf %65, %70 : vector<128x8xf32>
    %c0_56 = arith.constant 0 : index
    %c0_57 = arith.constant 0 : index
    %72 = vector.load %arg5[%c0_56, %c0_57] : memref<2x8xf32, #tpu.memory_space<vmem>>, vector<1x8xf32>
    %73 = vector.broadcast %72 : vector<1x8xf32> to vector<128x8xf32>
    %74 = arith.mulf %71, %73 : vector<128x8xf32>
    %c1_58 = arith.constant 1 : index
    %c0_59 = arith.constant 0 : index
    %75 = vector.load %arg5[%c1_58, %c0_59] : memref<2x8xf32, #tpu.memory_space<vmem>>, vector<1x8xf32>
    %76 = vector.broadcast %75 : vector<1x8xf32> to vector<128x8xf32>
    %77 = arith.addf %74, %76 : vector<128x8xf32>
    %cst_60 = arith.constant 0.000000e+00 : f32
    %78 = vector.broadcast %cst_60 : f32 to vector<128x8xf32>
    %79 = arith.maximumf %77, %78 : vector<128x8xf32>
    %80 = vector.shape_cast %79 : vector<128x8xf32> to vector<8x16x8xf32>
    %c0_61 = arith.constant 0 : index
    %c0_62 = arith.constant 0 : index
    %c0_63 = arith.constant 0 : index
    %c0_64 = arith.constant 0 : index
    %81 = vector.load %arg6[%c0_61, %c0_62, %c0_63, %c0_64] : memref<1x16x16x8xf32, #tpu.memory_space<vmem>>, vector<1x8x16x8xf32>
    %82 = vector.shape_cast %81 : vector<1x8x16x8xf32> to vector<8x16x8xf32>
    %83 = vector.shape_cast %80 : vector<8x16x8xf32> to vector<1x8x16x8xf32>
    tpu.vector_store %arg6[%c0_61, %c0_62, %c0_63, %c0_64], %83 {strides = array<i32>} : memref<1x16x16x8xf32, #tpu.memory_space<vmem>>, vector<1x8x16x8xf32>,
    %cst_65 = arith.constant 0.000000e+00 : f32
    %84 = vector.broadcast %cst_65 : f32 to vector<128x8xf32>
    %c8 = arith.constant 8 : index
    %c0_66 = arith.constant 0 : index
    %c0_67 = arith.constant 0 : index
    %85 = vector.load %arg7[%c8, %c0_66, %c0_67] : memref<18x18x8xf32, #tpu.memory_space<vmem>>, vector<8x16x8xf32>
    %86 = vector.shape_cast %85 : vector<8x16x8xf32> to vector<128x8xf32>
    %87 = vector.extract_strided_slice %16 {offsets = [0, 0, 0, 0], sizes = [1, 1, 8, 8], strides = [1, 1, 1, 1]} : vector<3x3x8x8xf32> to vector<1x1x8x8xf32>
    %88 = vector.shape_cast %87 : vector<1x1x8x8xf32> to vector<8x8xf32>
    %cst_68 = arith.constant dense<0.000000e+00> : vector<128x8xf32>
    %89 = tpu.matmul %86, %88, %cst_68 {dimension_numbers = #tpu.dot_dimension_numbers<[1], [0], [0], [1], [0, 0, 1, 1], [], []>} : vector<128x8xf32>, vector<8x8xf32>, vector<128x8xf32> -> vector<128x8xf32>
    %90 = arith.addf %84, %89 : vector<128x8xf32>
    %c8_69 = arith.constant 8 : index
    %c1_70 = arith.constant 1 : index
    %c0_71 = arith.constant 0 : index
    %91 = vector.load %arg7[%c8_69, %c1_70, %c0_71] : memref<18x18x8xf32, #tpu.memory_space<vmem>>, vector<8x16x8xf32>
    %92 = vector.shape_cast %91 : vector<8x16x8xf32> to vector<128x8xf32>
    %93 = vector.extract_strided_slice %16 {offsets = [0, 1, 0, 0], sizes = [1, 1, 8, 8], strides = [1, 1, 1, 1]} : vector<3x3x8x8xf32> to vector<1x1x8x8xf32>
    %94 = vector.shape_cast %93 : vector<1x1x8x8xf32> to vector<8x8xf32>
    %cst_72 = arith.constant dense<0.000000e+00> : vector<128x8xf32>
    %95 = tpu.matmul %92, %94, %cst_72 {dimension_numbers = #tpu.dot_dimension_numbers<[1], [0], [0], [1], [0, 0, 1, 1], [], []>} : vector<128x8xf32>, vector<8x8xf32>, vector<128x8xf32> -> vector<128x8xf32>
    %96 = arith.addf %90, %95 : vector<128x8xf32>
    %c8_73 = arith.constant 8 : index
    %c2_74 = arith.constant 2 : index
    %c0_75 = arith.constant 0 : index
    %97 = vector.load %arg7[%c8_73, %c2_74, %c0_75] : memref<18x18x8xf32, #tpu.memory_space<vmem>>, vector<8x16x8xf32>
    %98 = vector.shape_cast %97 : vector<8x16x8xf32> to vector<128x8xf32>
    %99 = vector.extract_strided_slice %16 {offsets = [0, 2, 0, 0], sizes = [1, 1, 8, 8], strides = [1, 1, 1, 1]} : vector<3x3x8x8xf32> to vector<1x1x8x8xf32>
    %100 = vector.shape_cast %99 : vector<1x1x8x8xf32> to vector<8x8xf32>
    %cst_76 = arith.constant dense<0.000000e+00> : vector<128x8xf32>
    %101 = tpu.matmul %98, %100, %cst_76 {dimension_numbers = #tpu.dot_dimension_numbers<[1], [0], [0], [1], [0, 0, 1, 1], [], []>} : vector<128x8xf32>, vector<8x8xf32>, vector<128x8xf32> -> vector<128x8xf32>
    %102 = arith.addf %96, %101 : vector<128x8xf32>
    %c9 = arith.constant 9 : index
    %c0_77 = arith.constant 0 : index
    %c0_78 = arith.constant 0 : index
    %103 = vector.load %arg7[%c9, %c0_77, %c0_78] : memref<18x18x8xf32, #tpu.memory_space<vmem>>, vector<8x16x8xf32>
    %104 = vector.shape_cast %103 : vector<8x16x8xf32> to vector<128x8xf32>
    %105 = vector.extract_strided_slice %16 {offsets = [1, 0, 0, 0], sizes = [1, 1, 8, 8], strides = [1, 1, 1, 1]} : vector<3x3x8x8xf32> to vector<1x1x8x8xf32>
    %106 = vector.shape_cast %105 : vector<1x1x8x8xf32> to vector<8x8xf32>
    %cst_79 = arith.constant dense<0.000000e+00> : vector<128x8xf32>
    %107 = tpu.matmul %104, %106, %cst_79 {dimension_numbers = #tpu.dot_dimension_numbers<[1], [0], [0], [1], [0, 0, 1, 1], [], []>} : vector<128x8xf32>, vector<8x8xf32>, vector<128x8xf32> -> vector<128x8xf32>
    %108 = arith.addf %102, %107 : vector<128x8xf32>
    %c9_80 = arith.constant 9 : index
    %c1_81 = arith.constant 1 : index
    %c0_82 = arith.constant 0 : index
    %109 = vector.load %arg7[%c9_80, %c1_81, %c0_82] : memref<18x18x8xf32, #tpu.memory_space<vmem>>, vector<8x16x8xf32>
    %110 = vector.shape_cast %109 : vector<8x16x8xf32> to vector<128x8xf32>
    %111 = vector.extract_strided_slice %16 {offsets = [1, 1, 0, 0], sizes = [1, 1, 8, 8], strides = [1, 1, 1, 1]} : vector<3x3x8x8xf32> to vector<1x1x8x8xf32>
    %112 = vector.shape_cast %111 : vector<1x1x8x8xf32> to vector<8x8xf32>
    %cst_83 = arith.constant dense<0.000000e+00> : vector<128x8xf32>
    %113 = tpu.matmul %110, %112, %cst_83 {dimension_numbers = #tpu.dot_dimension_numbers<[1], [0], [0], [1], [0, 0, 1, 1], [], []>} : vector<128x8xf32>, vector<8x8xf32>, vector<128x8xf32> -> vector<128x8xf32>
    %114 = arith.addf %108, %113 : vector<128x8xf32>
    %c9_84 = arith.constant 9 : index
    %c2_85 = arith.constant 2 : index
    %c0_86 = arith.constant 0 : index
    %115 = vector.load %arg7[%c9_84, %c2_85, %c0_86] : memref<18x18x8xf32, #tpu.memory_space<vmem>>, vector<8x16x8xf32>
    %116 = vector.shape_cast %115 : vector<8x16x8xf32> to vector<128x8xf32>
    %117 = vector.extract_strided_slice %16 {offsets = [1, 2, 0, 0], sizes = [1, 1, 8, 8], strides = [1, 1, 1, 1]} : vector<3x3x8x8xf32> to vector<1x1x8x8xf32>
    %118 = vector.shape_cast %117 : vector<1x1x8x8xf32> to vector<8x8xf32>
    %cst_87 = arith.constant dense<0.000000e+00> : vector<128x8xf32>
    %119 = tpu.matmul %116, %118, %cst_87 {dimension_numbers = #tpu.dot_dimension_numbers<[1], [0], [0], [1], [0, 0, 1, 1], [], []>} : vector<128x8xf32>, vector<8x8xf32>, vector<128x8xf32> -> vector<128x8xf32>
    %120 = arith.addf %114, %119 : vector<128x8xf32>
    %c10 = arith.constant 10 : index
    %c0_88 = arith.constant 0 : index
    %c0_89 = arith.constant 0 : index
    %121 = vector.load %arg7[%c10, %c0_88, %c0_89] : memref<18x18x8xf32, #tpu.memory_space<vmem>>, vector<8x16x8xf32>
    %122 = vector.shape_cast %121 : vector<8x16x8xf32> to vector<128x8xf32>
    %123 = vector.extract_strided_slice %16 {offsets = [2, 0, 0, 0], sizes = [1, 1, 8, 8], strides = [1, 1, 1, 1]} : vector<3x3x8x8xf32> to vector<1x1x8x8xf32>
    %124 = vector.shape_cast %123 : vector<1x1x8x8xf32> to vector<8x8xf32>
    %cst_90 = arith.constant dense<0.000000e+00> : vector<128x8xf32>
    %125 = tpu.matmul %122, %124, %cst_90 {dimension_numbers = #tpu.dot_dimension_numbers<[1], [0], [0], [1], [0, 0, 1, 1], [], []>} : vector<128x8xf32>, vector<8x8xf32>, vector<128x8xf32> -> vector<128x8xf32>
    %126 = arith.addf %120, %125 : vector<128x8xf32>
    %c10_91 = arith.constant 10 : index
    %c1_92 = arith.constant 1 : index
    %c0_93 = arith.constant 0 : index
    %127 = vector.load %arg7[%c10_91, %c1_92, %c0_93] : memref<18x18x8xf32, #tpu.memory_space<vmem>>, vector<8x16x8xf32>
    %128 = vector.shape_cast %127 : vector<8x16x8xf32> to vector<128x8xf32>
    %129 = vector.extract_strided_slice %16 {offsets = [2, 1, 0, 0], sizes = [1, 1, 8, 8], strides = [1, 1, 1, 1]} : vector<3x3x8x8xf32> to vector<1x1x8x8xf32>
    %130 = vector.shape_cast %129 : vector<1x1x8x8xf32> to vector<8x8xf32>
    %cst_94 = arith.constant dense<0.000000e+00> : vector<128x8xf32>
    %131 = tpu.matmul %128, %130, %cst_94 {dimension_numbers = #tpu.dot_dimension_numbers<[1], [0], [0], [1], [0, 0, 1, 1], [], []>} : vector<128x8xf32>, vector<8x8xf32>, vector<128x8xf32> -> vector<128x8xf32>
    %132 = arith.addf %126, %131 : vector<128x8xf32>
    %c10_95 = arith.constant 10 : index
    %c2_96 = arith.constant 2 : index
    %c0_97 = arith.constant 0 : index
    %133 = vector.load %arg7[%c10_95, %c2_96, %c0_97] : memref<18x18x8xf32, #tpu.memory_space<vmem>>, vector<8x16x8xf32>
    %134 = vector.shape_cast %133 : vector<8x16x8xf32> to vector<128x8xf32>
    %135 = vector.extract_strided_slice %16 {offsets = [2, 2, 0, 0], sizes = [1, 1, 8, 8], strides = [1, 1, 1, 1]} : vector<3x3x8x8xf32> to vector<1x1x8x8xf32>
    %136 = vector.shape_cast %135 : vector<1x1x8x8xf32> to vector<8x8xf32>
    %cst_98 = arith.constant dense<0.000000e+00> : vector<128x8xf32>
    %137 = tpu.matmul %134, %136, %cst_98 {dimension_numbers = #tpu.dot_dimension_numbers<[1], [0], [0], [1], [0, 0, 1, 1], [], []>} : vector<128x8xf32>, vector<8x8xf32>, vector<128x8xf32> -> vector<128x8xf32>
    %138 = arith.addf %132, %137 : vector<128x8xf32>
    %c0_99 = arith.constant 0 : index
    %c0_100 = arith.constant 0 : index
    %139 = vector.load %arg5[%c0_99, %c0_100] : memref<2x8xf32, #tpu.memory_space<vmem>>, vector<1x8xf32>
    %140 = vector.broadcast %139 : vector<1x8xf32> to vector<128x8xf32>
    %141 = arith.mulf %138, %140 : vector<128x8xf32>
    %c1_101 = arith.constant 1 : index
    %c0_102 = arith.constant 0 : index
    %142 = vector.load %arg5[%c1_101, %c0_102] : memref<2x8xf32, #tpu.memory_space<vmem>>, vector<1x8xf32>
    %143 = vector.broadcast %142 : vector<1x8xf32> to vector<128x8xf32>
    %144 = arith.addf %141, %143 : vector<128x8xf32>
    %cst_103 = arith.constant 0.000000e+00 : f32
    %145 = vector.broadcast %cst_103 : f32 to vector<128x8xf32>
    %146 = arith.maximumf %144, %145 : vector<128x8xf32>
    %147 = vector.shape_cast %146 : vector<128x8xf32> to vector<8x16x8xf32>
    %c0_104 = arith.constant 0 : index
    %c8_105 = arith.constant 8 : index
    %c0_106 = arith.constant 0 : index
    %c0_107 = arith.constant 0 : index
    %148 = vector.load %arg6[%c0_104, %c8_105, %c0_106, %c0_107] : memref<1x16x16x8xf32, #tpu.memory_space<vmem>>, vector<1x8x16x8xf32>
    %149 = vector.shape_cast %148 : vector<1x8x16x8xf32> to vector<8x16x8xf32>
    %150 = vector.shape_cast %147 : vector<8x16x8xf32> to vector<1x8x16x8xf32>
    tpu.vector_store %arg6[%c0_104, %c8_105, %c0_106, %c0_107], %150 {strides = array<i32>} : memref<1x16x16x8xf32, #tpu.memory_space<vmem>>, vector<1x8x16x8xf32>,
    return
  }
  func.func @transform_0(%arg0: i32) -> (i32, i32, i32, i32) {
    %c0_i32 = arith.constant 0 : i32
    %c0_i32_0 = arith.constant 0 : i32
    %c0_i32_1 = arith.constant 0 : i32
    %c0_i32_2 = arith.constant 0 : i32
    return %arg0, %c0_i32, %c0_i32_0, %c0_i32_1 : i32, i32, i32, i32
  }
  func.func @transform_1(%arg0: i32) -> (i32, i32) {
    %c0_i32 = arith.constant 0 : i32
    %c0_i32_0 = arith.constant 0 : i32
    %c0_i32_1 = arith.constant 0 : i32
    return %c0_i32, %c0_i32_0 : i32, i32
  }
  func.func @transform_2(%arg0: i32) -> (i32, i32) {
    %c0_i32 = arith.constant 0 : i32
    %c0_i32_0 = arith.constant 0 : i32
    %c0_i32_1 = arith.constant 0 : i32
    return %c0_i32, %c0_i32_0 : i32, i32
  }
  func.func @transform_3(%arg0: i32) -> (i32, i32, i32, i32) {
    %c0_i32 = arith.constant 0 : i32
    %c0_i32_0 = arith.constant 0 : i32
    %c0_i32_1 = arith.constant 0 : i32
    %c0_i32_2 = arith.constant 0 : i32
    %c0_i32_3 = arith.constant 0 : i32
    return %c0_i32, %c0_i32_0, %c0_i32_1, %c0_i32_2 : i32, i32, i32, i32
  }
  func.func @transform_4(%arg0: i32) -> (i32, i32) {
    %c0_i32 = arith.constant 0 : i32
    %c0_i32_0 = arith.constant 0 : i32
    %c0_i32_1 = arith.constant 0 : i32
    return %c0_i32, %c0_i32_0 : i32, i32
  }
  func.func @transform_5(%arg0: i32) -> (i32, i32, i32, i32) {
    %c0_i32 = arith.constant 0 : i32
    %c0_i32_0 = arith.constant 0 : i32
    %c0_i32_1 = arith.constant 0 : i32
    %c0_i32_2 = arith.constant 0 : i32
    return %arg0, %c0_i32, %c0_i32_0, %c0_i32_1 : i32, i32, i32, i32
  }
}

</mosaic_0001>

<llo_original>
// kernel: bottleneck_forward.3
$region0: #{bottleneck_forward.3}
  #allocation0 [shape = 'u32[]', space=smem, size = 0x4, offset = 0x4, fixed_abs, tag = 'smem constant byte address 0x4 - core index']
  #allocation1 [shape = 'u32[144,128]{1,0:T(1,128)}', space=vmem, size = 0x12000, scoped, tag = 'internal scratch']
  %s0 = inlined_call_operand.vmem [shape: f32[512,8], index: 0, kind: input, shape index: {}]
  %s1 = inlined_call_operand.vmem [shape: f32[512,16], index: 1, kind: input, shape index: {}]
  %s2 = inlined_call_operand.vmem [shape: f32[8,32], index: 2, kind: input, shape index: {}]
  %s3 = inlined_call_operand.vmem [shape: f32[2,32], index: 3, kind: input, shape index: {}]
  %s4 = inlined_call_operand.vmem [shape: f32[16,32], index: 4, kind: input, shape index: {}]
  %s5 = inlined_call_operand.vmem [shape: f32[2,32], index: 5, kind: input, shape index: {}]
  %s6 = inlined_call_operand.hbm [shape: f32[512,32], index: 6, kind: output, shape index: {}]
  %s7 = sld [smem:[#allocation0]]
  $region34: #{bottleneck_forward.3} parent=0
    _
  %s9 = ssub.s32 1, %s7
  %s10 = scalar_select 0, %s9, %s7
  $region1: #{bottleneck_forward.3} parent=0
    #allocation2 [shape = 'u8[262144]{0}', space=vmem, size = 0x40000, scoped, tag = 'output window, operand 0, single buffered']
    #allocation3 [shape = 's32[1]{0}', space=sflag, size = 0x4, scoped, tag = 'scoped memory for bottleneck_forward.3']
    %11 = vsyncpa [#allocation3], 0
    // Predicated region
    $region2: #{bottleneck_forward.3} parent=1 // pred_check
      _
    $region3: #{bottleneck_forward.3} parent=1 // pred_check_branch
      %13 = sbr.rel (0) target = $region5
    $region4: #{bottleneck_forward.3} parent=1 // pred_region
      _
    $region5: #{bottleneck_forward.3} parent=1 // pred_fallthru
      _
    // Predicated region
    $region6: #{bottleneck_forward.3} parent=1 // pred_check
      _
    $region7: #{bottleneck_forward.3} parent=1 // pred_check_branch
      %15 = sbr.rel (0) target = $region9
    $region8: #{bottleneck_forward.3} parent=1 // pred_region
      _
    $region9: #{bottleneck_forward.3} parent=1 // pred_fallthru
      _
    // Predicated region
    $region10: #{bottleneck_forward.3} parent=1 // pred_check
      _
    $region11: #{bottleneck_forward.3} parent=1 // pred_check_branch
      %17 = sbr.rel (0) target = $region13
    $region12: #{bottleneck_forward.3} parent=1 // pred_region
      _
    $region13: #{bottleneck_forward.3} parent=1 // pred_fallthru
      _
    // Predicated region
    $region14: #{bottleneck_forward.3} parent=1 // pred_check
      _
    $region15: #{bottleneck_forward.3} parent=1 // pred_check_branch
      %19 = sbr.rel (0) target = $region17
    $region16: #{bottleneck_forward.3} parent=1 // pred_region
      _
    $region17: #{bottleneck_forward.3} parent=1 // pred_fallthru
      _
    // Predicated region
    $region18: #{bottleneck_forward.3} parent=1 // pred_check
      _
    $region19: #{bottleneck_forward.3} parent=1 // pred_check_branch
      %21 = sbr.rel (0) target = $region21
    $region20: #{bottleneck_forward.3} parent=1 // pred_region
      _
    $region21: #{bottleneck_forward.3} parent=1 // pred_fallthru
      _
    // Predicated region
    $region22: #{bottleneck_forward.3} parent=1 // pred_check
      _
    $region23: #{bottleneck_forward.3} parent=1 // pred_check_branch
      %23 = sbr.rel (0) target = $region25
    $region24: #{bottleneck_forward.3} parent=1 // pred_region
      _
    $region25: #{bottleneck_forward.3} parent=1 // pred_fallthru
      _
    %v24 = vld [vmem:[%s0] sm:$0xff]
    %v25 = vld [vmem:[%s0 + $0x8] sm:$0xff]
    %v26 = vld [vmem:[%s0 + $0x10] sm:$0xff]
    %v27 = vld [vmem:[%s0 + $0x18] sm:$0xff]
    %v28 = vld [vmem:[%s0 + $0x20] sm:$0xff]
    %v29 = vld [vmem:[%s0 + $0x28] sm:$0xff]
    %v30 = vld [vmem:[%s0 + $0x30] sm:$0xff]
    %v31 = vld [vmem:[%s0 + $0x38] sm:$0xff]
    %v32 = vld [vmem:[%s0 + $0x40] sm:$0xff]
    %v33 = vld [vmem:[%s0 + $0x48] sm:$0xff]
    %v34 = vld [vmem:[%s0 + $0x50] sm:$0xff]
    %v35 = vld [vmem:[%s0 + $0x58] sm:$0xff]
    %v36 = vld [vmem:[%s0 + $0x60] sm:$0xff]
    %v37 = vld [vmem:[%s0 + $0x68] sm:$0xff]
    %v38 = vld [vmem:[%s0 + $0x70] sm:$0xff]
    %v39 = vld [vmem:[%s0 + $0x78] sm:$0xff]
    %v40 = vld [vmem:[%s0 + $0x80] sm:$0xff]
    %v41 = vld [vmem:[%s0 + $0x88] sm:$0xff]
    %v42 = vld [vmem:[%s0 + $0x90] sm:$0xff]
    %v43 = vld [vmem:[%s0 + $0x98] sm:$0xff]
    %v44 = vld [vmem:[%s0 + $0xa0] sm:$0xff]
    %v45 = vld [vmem:[%s0 + $0xa8] sm:$0xff]
    %v46 = vld [vmem:[%s0 + $0xb0] sm:$0xff]
    %v47 = vld [vmem:[%s0 + $0xb8] sm:$0xff]
    %v48 = vld [vmem:[%s0 + $0xc0] sm:$0xff]
    %v49 = vld [vmem:[%s0 + $0xc8] sm:$0xff]
    %v50 = vld [vmem:[%s0 + $0xd0] sm:$0xff]
    %v51 = vld [vmem:[%s0 + $0xd8] sm:$0xff]
    %v52 = vld [vmem:[%s0 + $0xe0] sm:$0xff]
    %v53 = vld [vmem:[%s0 + $0xe8] sm:$0xff]
    %v54 = vld [vmem:[%s0 + $0xf0] sm:$0xff]
    %v55 = vld [vmem:[%s0 + $0xf8] sm:$0xff]
    %v56 = vld [vmem:[%s0 + $0x100] sm:$0xff]
    %v57 = vld [vmem:[%s0 + $0x108] sm:$0xff]
    %v58 = vld [vmem:[%s0 + $0x110] sm:$0xff]
    %v59 = vld [vmem:[%s0 + $0x118] sm:$0xff]
    %v60 = vld [vmem:[%s0 + $0x120] sm:$0xff]
    %v61 = vld [vmem:[%s0 + $0x128] sm:$0xff]
    %v62 = vld [vmem:[%s0 + $0x130] sm:$0xff]
    %v63 = vld [vmem:[%s0 + $0x138] sm:$0xff]
    %v64 = vld [vmem:[%s0 + $0x140] sm:$0xff]
    %v65 = vld [vmem:[%s0 + $0x148] sm:$0xff]
    %v66 = vld [vmem:[%s0 + $0x150] sm:$0xff]
    %v67 = vld [vmem:[%s0 + $0x158] sm:$0xff]
    %v68 = vld [vmem:[%s0 + $0x160] sm:$0xff]
    %v69 = vld [vmem:[%s0 + $0x168] sm:$0xff]
    %v70 = vld [vmem:[%s0 + $0x170] sm:$0xff]
    %v71 = vld [vmem:[%s0 + $0x178] sm:$0xff]
    %v72 = vld [vmem:[%s0 + $0x180] sm:$0xff]
    %v73 = vld [vmem:[%s0 + $0x188] sm:$0xff]
    %v74 = vld [vmem:[%s0 + $0x190] sm:$0xff]
    %v75 = vld [vmem:[%s0 + $0x198] sm:$0xff]
    %v76 = vld [vmem:[%s0 + $0x1a0] sm:$0xff]
    %v77 = vld [vmem:[%s0 + $0x1a8] sm:$0xff]
    %v78 = vld [vmem:[%s0 + $0x1b0] sm:$0xff]
    %v79 = vld [vmem:[%s0 + $0x1b8] sm:$0xff]
    %v80 = vld [vmem:[%s0 + $0x1c0] sm:$0xff]
    %v81 = vld [vmem:[%s0 + $0x1c8] sm:$0xff]
    %v82 = vld [vmem:[%s0 + $0x1d0] sm:$0xff]
    %v83 = vld [vmem:[%s0 + $0x1d8] sm:$0xff]
    %v84 = vld [vmem:[%s0 + $0x1e0] sm:$0xff]
    %v85 = vld [vmem:[%s0 + $0x1e8] sm:$0xff]
    %v86 = vld [vmem:[%s0 + $0x1f0] sm:$0xff]
    %v87 = vld [vmem:[%s0 + $0x1f8] sm:$0xff]
    %v88 = vld [vmem:[%s2] sm:$0xff]
    %vm89 = vcmask 64512
    %v91 = vsel %vm89, %v24, 0
    %v94 = vsel %vm89, %v25, 0
    %v97 = vsel %vm89, %v26, 0
    %v100 = vsel %vm89, %v27, 0
    %v103 = vsel %vm89, %v28, 0
    %v106 = vsel %vm89, %v29, 0
    %v109 = vsel %vm89, %v30, 0
    %v112 = vsel %vm89, %v31, 0
    %v115 = vsel %vm89, %v32, 0
    %v118 = vsel %vm89, %v33, 0
    %v121 = vsel %vm89, %v34, 0
    %v124 = vsel %vm89, %v35, 0
    %v127 = vsel %vm89, %v36, 0
    %v130 = vsel %vm89, %v37, 0
    %v133 = vsel %vm89, %v38, 0
    %v136 = vsel %vm89, %v39, 0
    %v139 = vsel %vm89, %v40, 0
    %v142 = vsel %vm89, %v41, 0
    %v145 = vsel %vm89, %v42, 0
    %v148 = vsel %vm89, %v43, 0
    %v151 = vsel %vm89, %v44, 0
    %v154 = vsel %vm89, %v45, 0
    %v157 = vsel %vm89, %v46, 0
    %v160 = vsel %vm89, %v47, 0
    %v163 = vsel %vm89, %v48, 0
    %v166 = vsel %vm89, %v49, 0
    %v169 = vsel %vm89, %v50, 0
    %v172 = vsel %vm89, %v51, 0
    %v175 = vsel %vm89, %v52, 0
    %v178 = vsel %vm89, %v53, 0
    %v181 = vsel %vm89, %v54, 0
    %v184 = vsel %vm89, %v55, 0
    %v187 = vsel %vm89, %v56, 0
    %v190 = vsel %vm89, %v57, 0
    %v193 = vsel %vm89, %v58, 0
    %v196 = vsel %vm89, %v59, 0
    %v199 = vsel %vm89, %v60, 0
    %v202 = vsel %vm89, %v61, 0
    %v205 = vsel %vm89, %v62, 0
    %v208 = vsel %vm89, %v63, 0
    %v211 = vsel %vm89, %v64, 0
    %v214 = vsel %vm89, %v65, 0
    %v217 = vsel %vm89, %v66, 0
    %v220 = vsel %vm89, %v67, 0
    %v223 = vsel %vm89, %v68, 0
    %v226 = vsel %vm89, %v69, 0
    %v229 = vsel %vm89, %v70, 0
    %v232 = vsel %vm89, %v71, 0
    %v235 = vsel %vm89, %v72, 0
    %v238 = vsel %vm89, %v73, 0
    %v241 = vsel %vm89, %v74, 0
    %v244 = vsel %vm89, %v75, 0
    %v247 = vsel %vm89, %v76, 0
    %v250 = vsel %vm89, %v77, 0
    %v253 = vsel %vm89, %v78, 0
    %v256 = vsel %vm89, %v79, 0
    %v259 = vsel %vm89, %v80, 0
    %v262 = vsel %vm89, %v81, 0
    %v265 = vsel %vm89, %v82, 0
    %v268 = vsel %vm89, %v83, 0
    %v271 = vsel %vm89, %v84, 0
    %v274 = vsel %vm89, %v85, 0
    %v277 = vsel %vm89, %v86, 0
    %v280 = vsel %vm89, %v87, 0
    %282 = vmatprep.subr.mxu0 0.0
    %283 = vmatpush1.msra.mxu0 %v88
    %284 = vmatprep.subr.mxu0 0.0
    %285 = vmatpush1.msra.mxu0 0.0
    %286 = vmatprep.subr.mxu0 0.0
    %287 = vmatpush1.msra.mxu0 0.0
    %288 = vmatprep.subr.mxu0 0.0
    %289 = vmatpush1.msra.mxu0 0.0
    %290 = vmatprep.subr.mxu0 0.0
    %291 = vmatpush1.msra.mxu0 0.0
    %292 = vmatprep.subr.mxu0 0.0
    %293 = vmatpush1.msra.mxu0 0.0
    %294 = vmatprep.subr.mxu0 0.0
    %295 = vmatpush1.msra.mxu0 0.0
    %296 = vmatprep.subr.mxu0 0.0
    %297 = vmatpush1.msra.mxu0 0.0
    %298 = vmatprep.subr.mxu0 0.0
    %299 = vmatpush1.msra.mxu0 0.0
    %300 = vmatprep.subr.mxu0 0.0
    %301 = vmatpush1.msra.mxu0 0.0
    %302 = vmatprep.subr.mxu0 0.0
    %303 = vmatpush1.msra.mxu0 0.0
    %304 = vmatprep.subr.mxu0 0.0
    %305 = vmatpush1.msra.mxu0 0.0
    %306 = vmatprep.subr.mxu0 0.0
    %307 = vmatpush1.msra.mxu0 0.0
    %308 = vmatprep.subr.mxu0 0.0
    %309 = vmatpush1.msra.mxu0 0.0
    %310 = vmatprep.subr.mxu0 0.0
    %311 = vmatpush1.msra.mxu0 0.0
    %312 = vmatprep.subr.mxu0 0.0
    %313 = vmatpush1.msra.mxu0 0.0
    %314 = vmatprep.subr.mxu0 0.0
    %315 = vmatpush1.msra.mxu0 0.0
    %316 = vmatprep.subr.mxu0 0.0
    %317 = vmatpush1.msra.mxu0 0.0
    %318 = vmatprep.subr.mxu0 0.0
    %319 = vmatpush1.msra.mxu0 0.0
    %320 = vmatprep.subr.mxu0 0.0
    %321 = vmatpush1.msra.mxu0 0.0
    %322 = vmatprep.subr.mxu0 0.0
    %323 = vmatpush1.msra.mxu0 0.0
    %324 = vmatprep.subr.mxu0 0.0
    %325 = vmatpush1.msra.mxu0 0.0
    %326 = vmatprep.subr.mxu0 0.0
    %327 = vmatpush1.msra.mxu0 0.0
    %328 = vmatprep.subr.mxu0 0.0
    %329 = vmatpush1.msra.mxu0 0.0
    %330 = vmatprep.subr.mxu0 0.0
    %331 = vmatpush1.msra.mxu0 0.0
    %332 = vmatprep.subr.mxu0 0.0
    %333 = vmatpush1.msra.mxu0 0.0
    %334 = vmatprep.subr.mxu0 0.0
    %335 = vmatpush1.msra.mxu0 0.0
    %336 = vmatprep.subr.mxu0 0.0
    %337 = vmatpush1.msra.mxu0 0.0
    %338 = vmatprep.subr.mxu0 0.0
    %339 = vmatpush1.msra.mxu0 0.0
    %340 = vmatprep.subr.mxu0 0.0
    %341 = vmatpush1.msra.mxu0 0.0
    %342 = vmatprep.subr.mxu0 0.0
    %343 = vmatpush1.msra.mxu0 0.0
    %344 = vmatprep.subr.mxu0 0.0
    %345 = vmatpush1.msra.mxu0 0.0
    %346 = vmatprep.mubr.f32.mxu0 0.0
    %347 = vmatmul.mubr.f32.gmra.mrb[0].mxu0 %v91
    %v348 = vpop.f32.mrb[0].mxu0
    %v349 = vadd.f32 0.0, %v348
    %v350 = vpop.f32.mrb[0].mxu0
    %351 = vmatprep.mubr.f32.mxu0 0.0
    %352 = vmatmul.mubr.f32.gmra.mrb[0].mxu0 %v94
    %v353 = vpop.f32.mrb[0].mxu0
    %v354 = vadd.f32 0.0, %v353
    %v355 = vpop.f32.mrb[0].mxu0
    %356 = vmatprep.mubr.f32.mxu0 0.0
    %357 = vmatmul.mubr.f32.gmra.mrb[0].mxu0 %v97
    %v358 = vpop.f32.mrb[0].mxu0
    %v359 = vadd.f32 0.0, %v358
    %v360 = vpop.f32.mrb[0].mxu0
    %361 = vmatprep.mubr.f32.mxu0 0.0
    %362 = vmatmul.mubr.f32.gmra.mrb[0].mxu0 %v100
    %v363 = vpop.f32.mrb[0].mxu0
    %v364 = vadd.f32 0.0, %v363
    %v365 = vpop.f32.mrb[0].mxu0
    %366 = vmatprep.mubr.f32.mxu0 0.0
    %367 = vmatmul.mubr.f32.gmra.mrb[0].mxu0 %v103
    %v368 = vpop.f32.mrb[0].mxu0
    %v369 = vadd.f32 0.0, %v368
    %v370 = vpop.f32.mrb[0].mxu0
    %371 = vmatprep.mubr.f32.mxu0 0.0
    %372 = vmatmul.mubr.f32.gmra.mrb[0].mxu0 %v106
    %v373 = vpop.f32.mrb[0].mxu0
    %v374 = vadd.f32 0.0, %v373
    %v375 = vpop.f32.mrb[0].mxu0
    %376 = vmatprep.mubr.f32.mxu0 0.0
    %377 = vmatmul.mubr.f32.gmra.mrb[0].mxu0 %v109
    %v378 = vpop.f32.mrb[0].mxu0
    %v379 = vadd.f32 0.0, %v378
    %v380 = vpop.f32.mrb[0].mxu0
    %381 = vmatprep.mubr.f32.mxu0 0.0
    %382 = vmatmul.mubr.f32.gmra.mrb[0].mxu0 %v112
    %v383 = vpop.f32.mrb[0].mxu0
    %v384 = vadd.f32 0.0, %v383
    %v385 = vpop.f32.mrb[0].mxu0
    %386 = vmatprep.mubr.f32.mxu0 0.0
    %387 = vmatmul.mubr.f32.gmra.mrb[0].mxu0 %v115
    %v388 = vpop.f32.mrb[0].mxu0
    %v389 = vadd.f32 0.0, %v388
    %v390 = vpop.f32.mrb[0].mxu0
    %391 = vmatprep.mubr.f32.mxu0 0.0
    %392 = vmatmul.mubr.f32.gmra.mrb[0].mxu0 %v118
    %v393 = vpop.f32.mrb[0].mxu0
    %v394 = vadd.f32 0.0, %v393
    %v395 = vpop.f32.mrb[0].mxu0
    %396 = vmatprep.mubr.f32.mxu0 0.0
    %397 = vmatmul.mubr.f32.gmra.mrb[0].mxu0 %v121
    %v398 = vpop.f32.mrb[0].mxu0
    %v399 = vadd.f32 0.0, %v398
    %v400 = vpop.f32.mrb[0].mxu0
    %401 = vmatprep.mubr.f32.mxu0 0.0
    %402 = vmatmul.mubr.f32.gmra.mrb[0].mxu0 %v124
    %v403 = vpop.f32.mrb[0].mxu0
    %v404 = vadd.f32 0.0, %v403
    %v405 = vpop.f32.mrb[0].mxu0
    %406 = vmatprep.mubr.f32.mxu0 0.0
    %407 = vmatmul.mubr.f32.gmra.mrb[0].mxu0 %v127
    %v408 = vpop.f32.mrb[0].mxu0
    %v409 = vadd.f32 0.0, %v408
    %v410 = vpop.f32.mrb[0].mxu0
    %411 = vmatprep.mubr.f32.mxu0 0.0
    %412 = vmatmul.mubr.f32.gmra.mrb[0].mxu0 %v130
    %v413 = vpop.f32.mrb[0].mxu0
    %v414 = vadd.f32 0.0, %v413
    %v415 = vpop.f32.mrb[0].mxu0
    %416 = vmatprep.mubr.f32.mxu0 0.0
    %417 = vmatmul.mubr.f32.gmra.mrb[0].mxu0 %v133
    %v418 = vpop.f32.mrb[0].mxu0
    %v419 = vadd.f32 0.0, %v418
    %v420 = vpop.f32.mrb[0].mxu0
    %421 = vmatprep.mubr.f32.mxu0 0.0
    %422 = vmatmul.mubr.f32.gmra.mrb[0].mxu0 %v136
    %v423 = vpop.f32.mrb[0].mxu0
    %v424 = vadd.f32 0.0, %v423
    %v425 = vpop.f32.mrb[0].mxu0
    %426 = vmatprep.mubr.f32.mxu0 0.0
    %427 = vmatmul.mubr.f32.gmra.mrb[0].mxu0 %v139
    %v428 = vpop.f32.mrb[0].mxu0
    %v429 = vadd.f32 0.0, %v428
    %v430 = vpop.f32.mrb[0].mxu0
    %431 = vmatprep.mubr.f32.mxu0 0.0
    %432 = vmatmul.mubr.f32.gmra.mrb[0].mxu0 %v142
    %v433 = vpop.f32.mrb[0].mxu0
    %v434 = vadd.f32 0.0, %v433
    %v435 = vpop.f32.mrb[0].mxu0
    %436 = vmatprep.mubr.f32.mxu0 0.0
    %437 = vmatmul.mubr.f32.gmra.mrb[0].mxu0 %v145
    %v438 = vpop.f32.mrb[0].mxu0
    %v439 = vadd.f32 0.0, %v438
    %v440 = vpop.f32.mrb[0].mxu0
    %441 = vmatprep.mubr.f32.mxu0 0.0
    %442 = vmatmul.mubr.f32.gmra.mrb[0].mxu0 %v148
    %v443 = vpop.f32.mrb[0].mxu0
    %v444 = vadd.f32 0.0, %v443
    %v445 = vpop.f32.mrb[0].mxu0
    %446 = vmatprep.mubr.f32.mxu0 0.0
    %447 = vmatmul.mubr.f32.gmra.mrb[0].mxu0 %v151
    %v448 = vpop.f32.mrb[0].mxu0
    %v449 = vadd.f32 0.0, %v448
    %v450 = vpop.f32.mrb[0].mxu0
    %451 = vmatprep.mubr.f32.mxu0 0.0
    %452 = vmatmul.mubr.f32.gmra.mrb[0].mxu0 %v154
    %v453 = vpop.f32.mrb[0].mxu0
    %v454 = vadd.f32 0.0, %v453
    %v455 = vpop.f32.mrb[0].mxu0
    %456 = vmatprep.mubr.f32.mxu0 0.0
    %457 = vmatmul.mubr.f32.gmra.mrb[0].mxu0 %v157
    %v458 = vpop.f32.mrb[0].mxu0
    %v459 = vadd.f32 0.0, %v458
    %v460 = vpop.f32.mrb[0].mxu0
    %461 = vmatprep.mubr.f32.mxu0 0.0
    %462 = vmatmul.mubr.f32.gmra.mrb[0].mxu0 %v160
    %v463 = vpop.f32.mrb[0].mxu0
    %v464 = vadd.f32 0.0, %v463
    %v465 = vpop.f32.mrb[0].mxu0
    %466 = vmatprep.mubr.f32.mxu0 0.0
    %467 = vmatmul.mubr.f32.gmra.mrb[0].mxu0 %v163
    %v468 = vpop.f32.mrb[0].mxu0
    %v469 = vadd.f32 0.0, %v468
    %v470 = vpop.f32.mrb[0].mxu0
    %471 = vmatprep.mubr.f32.mxu0 0.0
    %472 = vmatmul.mubr.f32.gmra.mrb[0].mxu0 %v166
    %v473 = vpop.f32.mrb[0].mxu0
    %v474 = vadd.f32 0.0, %v473
    %v475 = vpop.f32.mrb[0].mxu0
    %476 = vmatprep.mubr.f32.mxu0 0.0
    %477 = vmatmul.mubr.f32.gmra.mrb[0].mxu0 %v169
    %v478 = vpop.f32.mrb[0].mxu0
    %v479 = vadd.f32 0.0, %v478
    %v480 = vpop.f32.mrb[0].mxu0
    %481 = vmatprep.mubr.f32.mxu0 0.0
    %482 = vmatmul.mubr.f32.gmra.mrb[0].mxu0 %v172
    %v483 = vpop.f32.mrb[0].mxu0
    %v484 = vadd.f32 0.0, %v483
    %v485 = vpop.f32.mrb[0].mxu0
    %486 = vmatprep.mubr.f32.mxu0 0.0
    %487 = vmatmul.mubr.f32.gmra.mrb[0].mxu0 %v175
    %v488 = vpop.f32.mrb[0].mxu0
    %v489 = vadd.f32 0.0, %v488
    %v490 = vpop.f32.mrb[0].mxu0
    %491 = vmatprep.mubr.f32.mxu0 0.0
    %492 = vmatmul.mubr.f32.gmra.mrb[0].mxu0 %v178
    %v493 = vpop.f32.mrb[0].mxu0
    %v494 = vadd.f32 0.0, %v493
    %v495 = vpop.f32.mrb[0].mxu0
    %496 = vmatprep.mubr.f32.mxu0 0.0
    %497 = vmatmul.mubr.f32.gmra.mrb[0].mxu0 %v181
    %v498 = vpop.f32.mrb[0].mxu0
    %v499 = vadd.f32 0.0, %v498
    %v500 = vpop.f32.mrb[0].mxu0
    %501 = vmatprep.mubr.f32.mxu0 0.0
    %502 = vmatmul.mubr.f32.gmra.mrb[0].mxu0 %v184
    %v503 = vpop.f32.mrb[0].mxu0
    %v504 = vadd.f32 0.0, %v503
    %v505 = vpop.f32.mrb[0].mxu0
    %506 = vmatprep.mubr.f32.mxu0 0.0
    %507 = vmatmul.mubr.f32.gmra.mrb[0].mxu0 %v187
    %v508 = vpop.f32.mrb[0].mxu0
    %v509 = vadd.f32 0.0, %v508
    %v510 = vpop.f32.mrb[0].mxu0
    %511 = vmatprep.mubr.f32.mxu0 0.0
    %512 = vmatmul.mubr.f32.gmra.mrb[0].mxu0 %v190
    %v513 = vpop.f32.mrb[0].mxu0
    %v514 = vadd.f32 0.0, %v513
    %v515 = vpop.f32.mrb[0].mxu0
    %516 = vmatprep.mubr.f32.mxu0 0.0
    %517 = vmatmul.mubr.f32.gmra.mrb[0].mxu0 %v193
    %v518 = vpop.f32.mrb[0].mxu0
    %v519 = vadd.f32 0.0, %v518
    %v520 = vpop.f32.mrb[0].mxu0
    %521 = vmatprep.mubr.f32.mxu0 0.0
    %522 = vmatmul.mubr.f32.gmra.mrb[0].mxu0 %v196
    %v523 = vpop.f32.mrb[0].mxu0
    %v524 = vadd.f32 0.0, %v523
    %v525 = vpop.f32.mrb[0].mxu0
    %526 = vmatprep.mubr.f32.mxu0 0.0
    %527 = vmatmul.mubr.f32.gmra.mrb[0].mxu0 %v199
    %v528 = vpop.f32.mrb[0].mxu0
    %v529 = vadd.f32 0.0, %v528
    %v530 = vpop.f32.mrb[0].mxu0
    %531 = vmatprep.mubr.f32.mxu0 0.0
    %532 = vmatmul.mubr.f32.gmra.mrb[0].mxu0 %v202
    %v533 = vpop.f32.mrb[0].mxu0
    %v534 = vadd.f32 0.0, %v533
    %v535 = vpop.f32.mrb[0].mxu0
    %536 = vmatprep.mubr.f32.mxu0 0.0
    %537 = vmatmul.mubr.f32.gmra.mrb[0].mxu0 %v205
    %v538 = vpop.f32.mrb[0].mxu0
    %v539 = vadd.f32 0.0, %v538
    %v540 = vpop.f32.mrb[0].mxu0
    %541 = vmatprep.mubr.f32.mxu0 0.0
    %542 = vmatmul.mubr.f32.gmra.mrb[0].mxu0 %v208
    %v543 = vpop.f32.mrb[0].mxu0
    %v544 = vadd.f32 0.0, %v543
    %v545 = vpop.f32.mrb[0].mxu0
    %546 = vmatprep.mubr.f32.mxu0 0.0
    %547 = vmatmul.mubr.f32.gmra.mrb[0].mxu0 %v211
    %v548 = vpop.f32.mrb[0].mxu0
    %v549 = vadd.f32 0.0, %v548
    %v550 = vpop.f32.mrb[0].mxu0
    %551 = vmatprep.mubr.f32.mxu0 0.0
    %552 = vmatmul.mubr.f32.gmra.mrb[0].mxu0 %v214
    %v553 = vpop.f32.mrb[0].mxu0
    %v554 = vadd.f32 0.0, %v553
    %v555 = vpop.f32.mrb[0].mxu0
    %556 = vmatprep.mubr.f32.mxu0 0.0
    %557 = vmatmul.mubr.f32.gmra.mrb[0].mxu0 %v217
    %v558 = vpop.f32.mrb[0].mxu0
    %v559 = vadd.f32 0.0, %v558
    %v560 = vpop.f32.mrb[0].mxu0
    %561 = vmatprep.mubr.f32.mxu0 0.0
    %562 = vmatmul.mubr.f32.gmra.mrb[0].mxu0 %v220
    %v563 = vpop.f32.mrb[0].mxu0
    %v564 = vadd.f32 0.0, %v563
    %v565 = vpop.f32.mrb[0].mxu0
    %566 = vmatprep.mubr.f32.mxu0 0.0
    %567 = vmatmul.mubr.f32.gmra.mrb[0].mxu0 %v223
    %v568 = vpop.f32.mrb[0].mxu0
    %v569 = vadd.f32 0.0, %v568
    %v570 = vpop.f32.mrb[0].mxu0
    %571 = vmatprep.mubr.f32.mxu0 0.0
    %572 = vmatmul.mubr.f32.gmra.mrb[0].mxu0 %v226
    %v573 = vpop.f32.mrb[0].mxu0
    %v574 = vadd.f32 0.0, %v573
    %v575 = vpop.f32.mrb[0].mxu0
    %576 = vmatprep.mubr.f32.mxu0 0.0
    %577 = vmatmul.mubr.f32.gmra.mrb[0].mxu0 %v229
    %v578 = vpop.f32.mrb[0].mxu0
    %v579 = vadd.f32 0.0, %v578
    %v580 = vpop.f32.mrb[0].mxu0
    %581 = vmatprep.mubr.f32.mxu0 0.0
    %582 = vmatmul.mubr.f32.gmra.mrb[0].mxu0 %v232
    %v583 = vpop.f32.mrb[0].mxu0
    %v584 = vadd.f32 0.0, %v583
    %v585 = vpop.f32.mrb[0].mxu0
    %586 = vmatprep.mubr.f32.mxu0 0.0
    %587 = vmatmul.mubr.f32.gmra.mrb[0].mxu0 %v235
    %v588 = vpop.f32.mrb[0].mxu0
    %v589 = vadd.f32 0.0, %v588
    %v590 = vpop.f32.mrb[0].mxu0
    %591 = vmatprep.mubr.f32.mxu0 0.0
    %592 = vmatmul.mubr.f32.gmra.mrb[0].mxu0 %v238
    %v593 = vpop.f32.mrb[0].mxu0
    %v594 = vadd.f32 0.0, %v593
    %v595 = vpop.f32.mrb[0].mxu0
    %596 = vmatprep.mubr.f32.mxu0 0.0
    %597 = vmatmul.mubr.f32.gmra.mrb[0].mxu0 %v241
    %v598 = vpop.f32.mrb[0].mxu0
    %v599 = vadd.f32 0.0, %v598
    %v600 = vpop.f32.mrb[0].mxu0
    %601 = vmatprep.mubr.f32.mxu0 0.0
    %602 = vmatmul.mubr.f32.gmra.mrb[0].mxu0 %v244
    %v603 = vpop.f32.mrb[0].mxu0
    %v604 = vadd.f32 0.0, %v603
    %v605 = vpop.f32.mrb[0].mxu0
    %606 = vmatprep.mubr.f32.mxu0 0.0
    %607 = vmatmul.mubr.f32.gmra.mrb[0].mxu0 %v247
    %v608 = vpop.f32.mrb[0].mxu0
    %v609 = vadd.f32 0.0, %v608
    %v610 = vpop.f32.mrb[0].mxu0
    %611 = vmatprep.mubr.f32.mxu0 0.0
    %612 = vmatmul.mubr.f32.gmra.mrb[0].mxu0 %v250
    %v613 = vpop.f32.mrb[0].mxu0
    %v614 = vadd.f32 0.0, %v613
    %v615 = vpop.f32.mrb[0].mxu0
    %616 = vmatprep.mubr.f32.mxu0 0.0
    %617 = vmatmul.mubr.f32.gmra.mrb[0].mxu0 %v253
    %v618 = vpop.f32.mrb[0].mxu0
    %v619 = vadd.f32 0.0, %v618
    %v620 = vpop.f32.mrb[0].mxu0
    %621 = vmatprep.mubr.f32.mxu0 0.0
    %622 = vmatmul.mubr.f32.gmra.mrb[0].mxu0 %v256
    %v623 = vpop.f32.mrb[0].mxu0
    %v624 = vadd.f32 0.0, %v623
    %v625 = vpop.f32.mrb[0].mxu0
    %626 = vmatprep.mubr.f32.mxu0 0.0
    %627 = vmatmul.mubr.f32.gmra.mrb[0].mxu0 %v259
    %v628 = vpop.f32.mrb[0].mxu0
    %v629 = vadd.f32 0.0, %v628
    %v630 = vpop.f32.mrb[0].mxu0
    %631 = vmatprep.mubr.f32.mxu0 0.0
    %632 = vmatmul.mubr.f32.gmra.mrb[0].mxu0 %v262
    %v633 = vpop.f32.mrb[0].mxu0
    %v634 = vadd.f32 0.0, %v633
    %v635 = vpop.f32.mrb[0].mxu0
    %636 = vmatprep.mubr.f32.mxu0 0.0
    %637 = vmatmul.mubr.f32.gmra.mrb[0].mxu0 %v265
    %v638 = vpop.f32.mrb[0].mxu0
    %v639 = vadd.f32 0.0, %v638
    %v640 = vpop.f32.mrb[0].mxu0
    %641 = vmatprep.mubr.f32.mxu0 0.0
    %642 = vmatmul.mubr.f32.gmra.mrb[0].mxu0 %v268
    %v643 = vpop.f32.mrb[0].mxu0
    %v644 = vadd.f32 0.0, %v643
    %v645 = vpop.f32.mrb[0].mxu0
    %646 = vmatprep.mubr.f32.mxu0 0.0
    %647 = vmatmul.mubr.f32.gmra.mrb[0].mxu0 %v271
    %v648 = vpop.f32.mrb[0].mxu0
    %v649 = vadd.f32 0.0, %v648
    %v650 = vpop.f32.mrb[0].mxu0
    %651 = vmatprep.mubr.f32.mxu0 0.0
    %652 = vmatmul.mubr.f32.gmra.mrb[0].mxu0 %v274
    %v653 = vpop.f32.mrb[0].mxu0
    %v654 = vadd.f32 0.0, %v653
    %v655 = vpop.f32.mrb[0].mxu0
    %656 = vmatprep.mubr.f32.mxu0 0.0
    %657 = vmatmul.mubr.f32.gmra.mrb[0].mxu0 %v277
    %v658 = vpop.f32.mrb[0].mxu0
    %v659 = vadd.f32 0.0, %v658
    %v660 = vpop.f32.mrb[0].mxu0
    %661 = vmatprep.mubr.f32.mxu0 0.0
    %662 = vmatmul.mubr.f32.gmra.mrb[0].mxu0 %v280
    %v663 = vpop.f32.mrb[0].mxu0
    %v664 = vadd.f32 0.0, %v663
    %v665 = vpop.f32.mrb[0].mxu0
    %666 = vdwg.mxu0
    %v667 = vld [vmem:[%s3] sm:$0x1]
    %v668 = vlaneseq
    %v669 = vshrl.u32 %v668, 7
    %v670 = vsub.s32 0, %v669
    %v671 = vrot.slane %v667, %v670
    %v672 = vmul.f32 %v349, %v671
    %v673 = vmul.f32 %v354, %v671
    %v674 = vmul.f32 %v359, %v671
    %v675 = vmul.f32 %v364, %v671
    %v676 = vmul.f32 %v369, %v671
    %v677 = vmul.f32 %v374, %v671
    %v678 = vmul.f32 %v379, %v671
    %v679 = vmul.f32 %v384, %v671
    %v680 = vmul.f32 %v389, %v671
    %v681 = vmul.f32 %v394, %v671
    %v682 = vmul.f32 %v399, %v671
    %v683 = vmul.f32 %v404, %v671
    %v684 = vmul.f32 %v409, %v671
    %v685 = vmul.f32 %v414, %v671
    %v686 = vmul.f32 %v419, %v671
    %v687 = vmul.f32 %v424, %v671
    %v688 = vmul.f32 %v429, %v671
    %v689 = vmul.f32 %v434, %v671
    %v690 = vmul.f32 %v439, %v671
    %v691 = vmul.f32 %v444, %v671
    %v692 = vmul.f32 %v449, %v671
    %v693 = vmul.f32 %v454, %v671
    %v694 = vmul.f32 %v459, %v671
    %v695 = vmul.f32 %v464, %v671
    %v696 = vmul.f32 %v469, %v671
    %v697 = vmul.f32 %v474, %v671
    %v698 = vmul.f32 %v479, %v671
    %v699 = vmul.f32 %v484, %v671
    %v700 = vmul.f32 %v489, %v671
    %v701 = vmul.f32 %v494, %v671
    %v702 = vmul.f32 %v499, %v671
    %v703 = vmul.f32 %v504, %v671
    %v704 = vmul.f32 %v509, %v671
    %v705 = vmul.f32 %v514, %v671
    %v706 = vmul.f32 %v519, %v671
    %v707 = vmul.f32 %v524, %v671
    %v708 = vmul.f32 %v529, %v671
    %v709 = vmul.f32 %v534, %v671
    %v710 = vmul.f32 %v539, %v671
    %v711 = vmul.f32 %v544, %v671
    %v712 = vmul.f32 %v549, %v671
    %v713 = vmul.f32 %v554, %v671
    %v714 = vmul.f32 %v559, %v671
    %v715 = vmul.f32 %v564, %v671
    %v716 = vmul.f32 %v569, %v671
    %v717 = vmul.f32 %v574, %v671
    %v718 = vmul.f32 %v579, %v671
    %v719 = vmul.f32 %v584, %v671
    %v720 = vmul.f32 %v589, %v671
    %v721 = vmul.f32 %v594, %v671
    %v722 = vmul.f32 %v599, %v671
    %v723 = vmul.f32 %v604, %v671
    %v724 = vmul.f32 %v609, %v671
    %v725 = vmul.f32 %v614, %v671
    %v726 = vmul.f32 %v619, %v671
    %v727 = vmul.f32 %v624, %v671
    %v728 = vmul.f32 %v629, %v671
    %v729 = vmul.f32 %v634, %v671
    %v730 = vmul.f32 %v639, %v671
    %v731 = vmul.f32 %v644, %v671
    %v732 = vmul.f32 %v649, %v671
    %v733 = vmul.f32 %v654, %v671
    %v734 = vmul.f32 %v659, %v671
    %v735 = vmul.f32 %v664, %v671
    %v736 = vld [vmem:[%s3 + $0x1] sm:$0x1]
    %v737 = vlaneseq
    %v738 = vshrl.u32 %v737, 7
    %v739 = vsub.s32 0, %v738
    %v740 = vrot.slane %v736, %v739
    %v741 = vadd.f32 %v672, %v740
    %v742 = vadd.f32 %v673, %v740
    %v743 = vadd.f32 %v674, %v740
    %v744 = vadd.f32 %v675, %v740
    %v745 = vadd.f32 %v676, %v740
    %v746 = vadd.f32 %v677, %v740
    %v747 = vadd.f32 %v678, %v740
    %v748 = vadd.f32 %v679, %v740
    %v749 = vadd.f32 %v680, %v740
    %v750 = vadd.f32 %v681, %v740
    %v751 = vadd.f32 %v682, %v740
    %v752 = vadd.f32 %v683, %v740
    %v753 = vadd.f32 %v684, %v740
    %v754 = vadd.f32 %v685, %v740
    %v755 = vadd.f32 %v686, %v740
    %v756 = vadd.f32 %v687, %v740
    %v757 = vadd.f32 %v688, %v740
    %v758 = vadd.f32 %v689, %v740
    %v759 = vadd.f32 %v690, %v740
    %v760 = vadd.f32 %v691, %v740
    %v761 = vadd.f32 %v692, %v740
    %v762 = vadd.f32 %v693, %v740
    %v763 = vadd.f32 %v694, %v740
    %v764 = vadd.f32 %v695, %v740
    %v765 = vadd.f32 %v696, %v740
    %v766 = vadd.f32 %v697, %v740
    %v767 = vadd.f32 %v698, %v740
    %v768 = vadd.f32 %v699, %v740
    %v769 = vadd.f32 %v700, %v740
    %v770 = vadd.f32 %v701, %v740
    %v771 = vadd.f32 %v702, %v740
    %v772 = vadd.f32 %v703, %v740
    %v773 = vadd.f32 %v704, %v740
    %v774 = vadd.f32 %v705, %v740
    %v775 = vadd.f32 %v706, %v740
    %v776 = vadd.f32 %v707, %v740
    %v777 = vadd.f32 %v708, %v740
    %v778 = vadd.f32 %v709, %v740
    %v779 = vadd.f32 %v710, %v740
    %v780 = vadd.f32 %v711, %v740
    %v781 = vadd.f32 %v712, %v740
    %v782 = vadd.f32 %v713, %v740
    %v783 = vadd.f32 %v714, %v740
    %v784 = vadd.f32 %v715, %v740
    %v785 = vadd.f32 %v716, %v740
    %v786 = vadd.f32 %v717, %v740
    %v787 = vadd.f32 %v718, %v740
    %v788 = vadd.f32 %v719, %v740
    %v789 = vadd.f32 %v720, %v740
    %v790 = vadd.f32 %v721, %v740
    %v791 = vadd.f32 %v722, %v740
    %v792 = vadd.f32 %v723, %v740
    %v793 = vadd.f32 %v724, %v740
    %v794 = vadd.f32 %v725, %v740
    %v795 = vadd.f32 %v726, %v740
    %v796 = vadd.f32 %v727, %v740
    %v797 = vadd.f32 %v728, %v740
    %v798 = vadd.f32 %v729, %v740
    %v799 = vadd.f32 %v730, %v740
    %v800 = vadd.f32 %v731, %v740
    %v801 = vadd.f32 %v732, %v740
    %v802 = vadd.f32 %v733, %v740
    %v803 = vadd.f32 %v734, %v740
    %v804 = vadd.f32 %v735, %v740
    %v805 = vld [vmem:[%s1] sm:$0xff]
    %v806 = vld [vmem:[%s1 + $0x8] sm:$0xff]
    %v807 = vld [vmem:[%s1 + $0x10] sm:$0xff]
    %v808 = vld [vmem:[%s1 + $0x18] sm:$0xff]
    %v809 = vld [vmem:[%s1 + $0x20] sm:$0xff]
    %v810 = vld [vmem:[%s1 + $0x28] sm:$0xff]
    %v811 = vld [vmem:[%s1 + $0x30] sm:$0xff]
    %v812 = vld [vmem:[%s1 + $0x38] sm:$0xff]
    %v813 = vld [vmem:[%s1 + $0x40] sm:$0xff]
    %v814 = vld [vmem:[%s1 + $0x48] sm:$0xff]
    %v815 = vld [vmem:[%s1 + $0x50] sm:$0xff]
    %v816 = vld [vmem:[%s1 + $0x58] sm:$0xff]
    %v817 = vld [vmem:[%s1 + $0x60] sm:$0xff]
    %v818 = vld [vmem:[%s1 + $0x68] sm:$0xff]
    %v819 = vld [vmem:[%s1 + $0x70] sm:$0xff]
    %v820 = vld [vmem:[%s1 + $0x78] sm:$0xff]
    %v821 = vld [vmem:[%s1 + $0x80] sm:$0xff]
    %v822 = vld [vmem:[%s1 + $0x88] sm:$0xff]
    %v823 = vld [vmem:[%s1 + $0x90] sm:$0xff]
    %v824 = vld [vmem:[%s1 + $0x98] sm:$0xff]
    %v825 = vld [vmem:[%s1 + $0xa0] sm:$0xff]
    %v826 = vld [vmem:[%s1 + $0xa8] sm:$0xff]
    %v827 = vld [vmem:[%s1 + $0xb0] sm:$0xff]
    %v828 = vld [vmem:[%s1 + $0xb8] sm:$0xff]
    %v829 = vld [vmem:[%s1 + $0xc0] sm:$0xff]
    %v830 = vld [vmem:[%s1 + $0xc8] sm:$0xff]
    %v831 = vld [vmem:[%s1 + $0xd0] sm:$0xff]
    %v832 = vld [vmem:[%s1 + $0xd8] sm:$0xff]
    %v833 = vld [vmem:[%s1 + $0xe0] sm:$0xff]
    %v834 = vld [vmem:[%s1 + $0xe8] sm:$0xff]
    %v835 = vld [vmem:[%s1 + $0xf0] sm:$0xff]
    %v836 = vld [vmem:[%s1 + $0xf8] sm:$0xff]
    %v837 = vld [vmem:[%s1 + $0x100] sm:$0xff]
    %v838 = vld [vmem:[%s1 + $0x108] sm:$0xff]
    %v839 = vld [vmem:[%s1 + $0x110] sm:$0xff]
    %v840 = vld [vmem:[%s1 + $0x118] sm:$0xff]
    %v841 = vld [vmem:[%s1 + $0x120] sm:$0xff]
    %v842 = vld [vmem:[%s1 + $0x128] sm:$0xff]
    %v843 = vld [vmem:[%s1 + $0x130] sm:$0xff]
    %v844 = vld [vmem:[%s1 + $0x138] sm:$0xff]
    %v845 = vld [vmem:[%s1 + $0x140] sm:$0xff]
    %v846 = vld [vmem:[%s1 + $0x148] sm:$0xff]
    %v847 = vld [vmem:[%s1 + $0x150] sm:$0xff]
    %v848 = vld [vmem:[%s1 + $0x158] sm:$0xff]
    %v849 = vld [vmem:[%s1 + $0x160] sm:$0xff]
    %v850 = vld [vmem:[%s1 + $0x168] sm:$0xff]
    %v851 = vld [vmem:[%s1 + $0x170] sm:$0xff]
    %v852 = vld [vmem:[%s1 + $0x178] sm:$0xff]
    %v853 = vld [vmem:[%s1 + $0x180] sm:$0xff]
    %v854 = vld [vmem:[%s1 + $0x188] sm:$0xff]
    %v855 = vld [vmem:[%s1 + $0x190] sm:$0xff]
    %v856 = vld [vmem:[%s1 + $0x198] sm:$0xff]
    %v857 = vld [vmem:[%s1 + $0x1a0] sm:$0xff]
    %v858 = vld [vmem:[%s1 + $0x1a8] sm:$0xff]
    %v859 = vld [vmem:[%s1 + $0x1b0] sm:$0xff]
    %v860 = vld [vmem:[%s1 + $0x1b8] sm:$0xff]
    %v861 = vld [vmem:[%s1 + $0x1c0] sm:$0xff]
    %v862 = vld [vmem:[%s1 + $0x1c8] sm:$0xff]
    %v863 = vld [vmem:[%s1 + $0x1d0] sm:$0xff]
    %v864 = vld [vmem:[%s1 + $0x1d8] sm:$0xff]
    %v865 = vld [vmem:[%s1 + $0x1e0] sm:$0xff]
    %v866 = vld [vmem:[%s1 + $0x1e8] sm:$0xff]
    %v867 = vld [vmem:[%s1 + $0x1f0] sm:$0xff]
    %v868 = vld [vmem:[%s1 + $0x1f8] sm:$0xff]
    %v869 = vld [vmem:[%s4] sm:$0xff]
    %v870 = vld [vmem:[%s4 + $0x8] sm:$0xff]
    %vm871 = vcmask 130048
    %v873 = vsel %vm871, %v805, 0
    %v876 = vsel %vm871, %v806, 0
    %v879 = vsel %vm871, %v807, 0
    %v882 = vsel %vm871, %v808, 0
    %v885 = vsel %vm871, %v809, 0
    %v888 = vsel %vm871, %v810, 0
    %v891 = vsel %vm871, %v811, 0
    %v894 = vsel %vm871, %v812, 0
    %v897 = vsel %vm871, %v813, 0
    %v900 = vsel %vm871, %v814, 0
    %v903 = vsel %vm871, %v815, 0
    %v906 = vsel %vm871, %v816, 0
    %v909 = vsel %vm871, %v817, 0
    %v912 = vsel %vm871, %v818, 0
    %v915 = vsel %vm871, %v819, 0
    %v918 = vsel %vm871, %v820, 0
    %v921 = vsel %vm871, %v821, 0
    %v924 = vsel %vm871, %v822, 0
    %v927 = vsel %vm871, %v823, 0
    %v930 = vsel %vm871, %v824, 0
    %v933 = vsel %vm871, %v825, 0
    %v936 = vsel %vm871, %v826, 0
    %v939 = vsel %vm871, %v827, 0
    %v942 = vsel %vm871, %v828, 0
    %v945 = vsel %vm871, %v829, 0
    %v948 = vsel %vm871, %v830, 0
    %v951 = vsel %vm871, %v831, 0
    %v954 = vsel %vm871, %v832, 0
    %v957 = vsel %vm871, %v833, 0
    %v960 = vsel %vm871, %v834, 0
    %v963 = vsel %vm871, %v835, 0
    %v966 = vsel %vm871, %v836, 0
    %v969 = vsel %vm871, %v837, 0
    %v972 = vsel %vm871, %v838, 0
    %v975 = vsel %vm871, %v839, 0
    %v978 = vsel %vm871, %v840, 0
    %v981 = vsel %vm871, %v841, 0
    %v984 = vsel %vm871, %v842, 0
    %v987 = vsel %vm871, %v843, 0
    %v990 = vsel %vm871, %v844, 0
    %v993 = vsel %vm871, %v845, 0
    %v996 = vsel %vm871, %v846, 0
    %v999 = vsel %vm871, %v847, 0
    %v1002 = vsel %vm871, %v848, 0
    %v1005 = vsel %vm871, %v849, 0
    %v1008 = vsel %vm871, %v850, 0
    %v1011 = vsel %vm871, %v851, 0
    %v1014 = vsel %vm871, %v852, 0
    %v1017 = vsel %vm871, %v853, 0
    %v1020 = vsel %vm871, %v854, 0
    %v1023 = vsel %vm871, %v855, 0
    %v1026 = vsel %vm871, %v856, 0
    %v1029 = vsel %vm871, %v857, 0
    %v1032 = vsel %vm871, %v858, 0
    %v1035 = vsel %vm871, %v859, 0
    %v1038 = vsel %vm871, %v860, 0
    %v1041 = vsel %vm871, %v861, 0
    %v1044 = vsel %vm871, %v862, 0
    %v1047 = vsel %vm871, %v863, 0
    %v1050 = vsel %vm871, %v864, 0
    %v1053 = vsel %vm871, %v865, 0
    %v1056 = vsel %vm871, %v866, 0
    %v1059 = vsel %vm871, %v867, 0
    %v1062 = vsel %vm871, %v868, 0
    %1064 = vmatprep.subr.mxu0 0.0
    %1065 = vmatpush1.msra.mxu0 %v869
    %1066 = vmatprep.subr.mxu0 0.0
    %1067 = vmatpush1.msra.mxu0 %v870
    %1068 = vmatprep.subr.mxu0 0.0
    %1069 = vmatpush1.msra.mxu0 0.0
    %1070 = vmatprep.subr.mxu0 0.0
    %1071 = vmatpush1.msra.mxu0 0.0
    %1072 = vmatprep.subr.mxu0 0.0
    %1073 = vmatpush1.msra.mxu0 0.0
    %1074 = vmatprep.subr.mxu0 0.0
    %1075 = vmatpush1.msra.mxu0 0.0
    %1076 = vmatprep.subr.mxu0 0.0
    %1077 = vmatpush1.msra.mxu0 0.0
    %1078 = vmatprep.subr.mxu0 0.0
    %1079 = vmatpush1.msra.mxu0 0.0
    %1080 = vmatprep.subr.mxu0 0.0
    %1081 = vmatpush1.msra.mxu0 0.0
    %1082 = vmatprep.subr.mxu0 0.0
    %1083 = vmatpush1.msra.mxu0 0.0
    %1084 = vmatprep.subr.mxu0 0.0
    %1085 = vmatpush1.msra.mxu0 0.0
    %1086 = vmatprep.subr.mxu0 0.0
    %1087 = vmatpush1.msra.mxu0 0.0
    %1088 = vmatprep.subr.mxu0 0.0
    %1089 = vmatpush1.msra.mxu0 0.0
    %1090 = vmatprep.subr.mxu0 0.0
    %1091 = vmatpush1.msra.mxu0 0.0
    %1092 = vmatprep.subr.mxu0 0.0
    %1093 = vmatpush1.msra.mxu0 0.0
    %1094 = vmatprep.subr.mxu0 0.0
    %1095 = vmatpush1.msra.mxu0 0.0
    %1096 = vmatprep.subr.mxu0 0.0
    %1097 = vmatpush1.msra.mxu0 0.0
    %1098 = vmatprep.subr.mxu0 0.0
    %1099 = vmatpush1.msra.mxu0 0.0
    %1100 = vmatprep.subr.mxu0 0.0
    %1101 = vmatpush1.msra.mxu0 0.0
    %1102 = vmatprep.subr.mxu0 0.0
    %1103 = vmatpush1.msra.mxu0 0.0
    %1104 = vmatprep.subr.mxu0 0.0
    %1105 = vmatpush1.msra.mxu0 0.0
    %1106 = vmatprep.subr.mxu0 0.0
    %1107 = vmatpush1.msra.mxu0 0.0
    %1108 = vmatprep.subr.mxu0 0.0
    %1109 = vmatpush1.msra.mxu0 0.0
    %1110 = vmatprep.subr.mxu0 0.0
    %1111 = vmatpush1.msra.mxu0 0.0
    %1112 = vmatprep.subr.mxu0 0.0
    %1113 = vmatpush1.msra.mxu0 0.0
    %1114 = vmatprep.subr.mxu0 0.0
    %1115 = vmatpush1.msra.mxu0 0.0
    %1116 = vmatprep.subr.mxu0 0.0
    %1117 = vmatpush1.msra.mxu0 0.0
    %1118 = vmatprep.subr.mxu0 0.0
    %1119 = vmatpush1.msra.mxu0 0.0
    %1120 = vmatprep.subr.mxu0 0.0
    %1121 = vmatpush1.msra.mxu0 0.0
    %1122 = vmatprep.subr.mxu0 0.0
    %1123 = vmatpush1.msra.mxu0 0.0
    %1124 = vmatprep.subr.mxu0 0.0
    %1125 = vmatpush1.msra.mxu0 0.0
    %1126 = vmatprep.subr.mxu0 0.0
    %1127 = vmatpush1.msra.mxu0 0.0
    %1128 = vmatprep.mubr.f32.mxu0 0.0
    %1129 = vmatmul.mubr.f32.gmra.mrb[0].mxu0 %v873
    %v1130 = vpop.f32.mrb[0].mxu0
    %v1131 = vadd.f32 0.0, %v1130
    %v1132 = vpop.f32.mrb[0].mxu0
    %1133 = vmatprep.mubr.f32.mxu0 0.0
    %1134 = vmatmul.mubr.f32.gmra.mrb[0].mxu0 %v876
    %v1135 = vpop.f32.mrb[0].mxu0
    %v1136 = vadd.f32 0.0, %v1135
    %v1137 = vpop.f32.mrb[0].mxu0
    %1138 = vmatprep.mubr.f32.mxu0 0.0
    %1139 = vmatmul.mubr.f32.gmra.mrb[0].mxu0 %v879
    %v1140 = vpop.f32.mrb[0].mxu0
    %v1141 = vadd.f32 0.0, %v1140
    %v1142 = vpop.f32.mrb[0].mxu0
    %1143 = vmatprep.mubr.f32.mxu0 0.0
    %1144 = vmatmul.mubr.f32.gmra.mrb[0].mxu0 %v882
    %v1145 = vpop.f32.mrb[0].mxu0
    %v1146 = vadd.f32 0.0, %v1145
    %v1147 = vpop.f32.mrb[0].mxu0
    %1148 = vmatprep.mubr.f32.mxu0 0.0
    %1149 = vmatmul.mubr.f32.gmra.mrb[0].mxu0 %v885
    %v1150 = vpop.f32.mrb[0].mxu0
    %v1151 = vadd.f32 0.0, %v1150
    %v1152 = vpop.f32.mrb[0].mxu0
    %1153 = vmatprep.mubr.f32.mxu0 0.0
    %1154 = vmatmul.mubr.f32.gmra.mrb[0].mxu0 %v888
    %v1155 = vpop.f32.mrb[0].mxu0
    %v1156 = vadd.f32 0.0, %v1155
    %v1157 = vpop.f32.mrb[0].mxu0
    %1158 = vmatprep.mubr.f32.mxu0 0.0
    %1159 = vmatmul.mubr.f32.gmra.mrb[0].mxu0 %v891
    %v1160 = vpop.f32.mrb[0].mxu0
    %v1161 = vadd.f32 0.0, %v1160
    %v1162 = vpop.f32.mrb[0].mxu0
    %1163 = vmatprep.mubr.f32.mxu0 0.0
    %1164 = vmatmul.mubr.f32.gmra.mrb[0].mxu0 %v894
    %v1165 = vpop.f32.mrb[0].mxu0
    %v1166 = vadd.f32 0.0, %v1165
    %v1167 = vpop.f32.mrb[0].mxu0
    %1168 = vmatprep.mubr.f32.mxu0 0.0
    %1169 = vmatmul.mubr.f32.gmra.mrb[0].mxu0 %v897
    %v1170 = vpop.f32.mrb[0].mxu0
    %v1171 = vadd.f32 0.0, %v1170
    %v1172 = vpop.f32.mrb[0].mxu0
    %1173 = vmatprep.mubr.f32.mxu0 0.0
    %1174 = vmatmul.mubr.f32.gmra.mrb[0].mxu0 %v900
    %v1175 = vpop.f32.mrb[0].mxu0
    %v1176 = vadd.f32 0.0, %v1175
    %v1177 = vpop.f32.mrb[0].mxu0
    %1178 = vmatprep.mubr.f32.mxu0 0.0
    %1179 = vmatmul.mubr.f32.gmra.mrb[0].mxu0 %v903
    %v1180 = vpop.f32.mrb[0].mxu0
    %v1181 = vadd.f32 0.0, %v1180
    %v1182 = vpop.f32.mrb[0].mxu0
    %1183 = vmatprep.mubr.f32.mxu0 0.0
    %1184 = vmatmul.mubr.f32.gmra.mrb[0].mxu0 %v906
    %v1185 = vpop.f32.mrb[0].mxu0
    %v1186 = vadd.f32 0.0, %v1185
    %v1187 = vpop.f32.mrb[0].mxu0
    %1188 = vmatprep.mubr.f32.mxu0 0.0
    %1189 = vmatmul.mubr.f32.gmra.mrb[0].mxu0 %v909
    %v1190 = vpop.f32.mrb[0].mxu0
    %v1191 = vadd.f32 0.0, %v1190
    %v1192 = vpop.f32.mrb[0].mxu0
    %1193 = vmatprep.mubr.f32.mxu0 0.0
    %1194 = vmatmul.mubr.f32.gmra.mrb[0].mxu0 %v912
    %v1195 = vpop.f32.mrb[0].mxu0
    %v1196 = vadd.f32 0.0, %v1195
    %v1197 = vpop.f32.mrb[0].mxu0
    %1198 = vmatprep.mubr.f32.mxu0 0.0
    %1199 = vmatmul.mubr.f32.gmra.mrb[0].mxu0 %v915
    %v1200 = vpop.f32.mrb[0].mxu0
    %v1201 = vadd.f32 0.0, %v1200
    %v1202 = vpop.f32.mrb[0].mxu0
    %1203 = vmatprep.mubr.f32.mxu0 0.0
    %1204 = vmatmul.mubr.f32.gmra.mrb[0].mxu0 %v918
    %v1205 = vpop.f32.mrb[0].mxu0
    %v1206 = vadd.f32 0.0, %v1205
    %v1207 = vpop.f32.mrb[0].mxu0
    %1208 = vmatprep.mubr.f32.mxu0 0.0
    %1209 = vmatmul.mubr.f32.gmra.mrb[0].mxu0 %v921
    %v1210 = vpop.f32.mrb[0].mxu0
    %v1211 = vadd.f32 0.0, %v1210
    %v1212 = vpop.f32.mrb[0].mxu0
    %1213 = vmatprep.mubr.f32.mxu0 0.0
    %1214 = vmatmul.mubr.f32.gmra.mrb[0].mxu0 %v924
    %v1215 = vpop.f32.mrb[0].mxu0
    %v1216 = vadd.f32 0.0, %v1215
    %v1217 = vpop.f32.mrb[0].mxu0
    %1218 = vmatprep.mubr.f32.mxu0 0.0
    %1219 = vmatmul.mubr.f32.gmra.mrb[0].mxu0 %v927
    %v1220 = vpop.f32.mrb[0].mxu0
    %v1221 = vadd.f32 0.0, %v1220
    %v1222 = vpop.f32.mrb[0].mxu0
    %1223 = vmatprep.mubr.f32.mxu0 0.0
    %1224 = vmatmul.mubr.f32.gmra.mrb[0].mxu0 %v930
    %v1225 = vpop.f32.mrb[0].mxu0
    %v1226 = vadd.f32 0.0, %v1225
    %v1227 = vpop.f32.mrb[0].mxu0
    %1228 = vmatprep.mubr.f32.mxu0 0.0
    %1229 = vmatmul.mubr.f32.gmra.mrb[0].mxu0 %v933
    %v1230 = vpop.f32.mrb[0].mxu0
    %v1231 = vadd.f32 0.0, %v1230
    %v1232 = vpop.f32.mrb[0].mxu0
    %1233 = vmatprep.mubr.f32.mxu0 0.0
    %1234 = vmatmul.mubr.f32.gmra.mrb[0].mxu0 %v936
    %v1235 = vpop.f32.mrb[0].mxu0
    %v1236 = vadd.f32 0.0, %v1235
    %v1237 = vpop.f32.mrb[0].mxu0
    %1238 = vmatprep.mubr.f32.mxu0 0.0
    %1239 = vmatmul.mubr.f32.gmra.mrb[0].mxu0 %v939
    %v1240 = vpop.f32.mrb[0].mxu0
    %v1241 = vadd.f32 0.0, %v1240
    %v1242 = vpop.f32.mrb[0].mxu0
    %1243 = vmatprep.mubr.f32.mxu0 0.0
    %1244 = vmatmul.mubr.f32.gmra.mrb[0].mxu0 %v942
    %v1245 = vpop.f32.mrb[0].mxu0
    %v1246 = vadd.f32 0.0, %v1245
    %v1247 = vpop.f32.mrb[0].mxu0
    %1248 = vmatprep.mubr.f32.mxu0 0.0
    %1249 = vmatmul.mubr.f32.gmra.mrb[0].mxu0 %v945
    %v1250 = vpop.f32.mrb[0].mxu0
    %v1251 = vadd.f32 0.0, %v1250
    %v1252 = vpop.f32.mrb[0].mxu0
    %1253 = vmatprep.mubr.f32.mxu0 0.0
    %1254 = vmatmul.mubr.f32.gmra.mrb[0].mxu0 %v948
    %v1255 = vpop.f32.mrb[0].mxu0
    %v1256 = vadd.f32 0.0, %v1255
    %v1257 = vpop.f32.mrb[0].mxu0
    %1258 = vmatprep.mubr.f32.mxu0 0.0
    %1259 = vmatmul.mubr.f32.gmra.mrb[0].mxu0 %v951
    %v1260 = vpop.f32.mrb[0].mxu0
    %v1261 = vadd.f32 0.0, %v1260
    %v1262 = vpop.f32.mrb[0].mxu0
    %1263 = vmatprep.mubr.f32.mxu0 0.0
    %1264 = vmatmul.mubr.f32.gmra.mrb[0].mxu0 %v954
    %v1265 = vpop.f32.mrb[0].mxu0
    %v1266 = vadd.f32 0.0, %v1265
    %v1267 = vpop.f32.mrb[0].mxu0
    %1268 = vmatprep.mubr.f32.mxu0 0.0
    %1269 = vmatmul.mubr.f32.gmra.mrb[0].mxu0 %v957
    %v1270 = vpop.f32.mrb[0].mxu0
    %v1271 = vadd.f32 0.0, %v1270
    %v1272 = vpop.f32.mrb[0].mxu0
    %1273 = vmatprep.mubr.f32.mxu0 0.0
    %1274 = vmatmul.mubr.f32.gmra.mrb[0].mxu0 %v960
    %v1275 = vpop.f32.mrb[0].mxu0
    %v1276 = vadd.f32 0.0, %v1275
    %v1277 = vpop.f32.mrb[0].mxu0
    %1278 = vmatprep.mubr.f32.mxu0 0.0
    %1279 = vmatmul.mubr.f32.gmra.mrb[0].mxu0 %v963
    %v1280 = vpop.f32.mrb[0].mxu0
    %v1281 = vadd.f32 0.0, %v1280
    %v1282 = vpop.f32.mrb[0].mxu0
    %1283 = vmatprep.mubr.f32.mxu0 0.0
    %1284 = vmatmul.mubr.f32.gmra.mrb[0].mxu0 %v966
    %v1285 = vpop.f32.mrb[0].mxu0
    %v1286 = vadd.f32 0.0, %v1285
    %v1287 = vpop.f32.mrb[0].mxu0
    %1288 = vmatprep.mubr.f32.mxu0 0.0
    %1289 = vmatmul.mubr.f32.gmra.mrb[0].mxu0 %v969
    %v1290 = vpop.f32.mrb[0].mxu0
    %v1291 = vadd.f32 0.0, %v1290
    %v1292 = vpop.f32.mrb[0].mxu0
    %1293 = vmatprep.mubr.f32.mxu0 0.0
    %1294 = vmatmul.mubr.f32.gmra.mrb[0].mxu0 %v972
    %v1295 = vpop.f32.mrb[0].mxu0
    %v1296 = vadd.f32 0.0, %v1295
    %v1297 = vpop.f32.mrb[0].mxu0
    %1298 = vmatprep.mubr.f32.mxu0 0.0
    %1299 = vmatmul.mubr.f32.gmra.mrb[0].mxu0 %v975
    %v1300 = vpop.f32.mrb[0].mxu0
    %v1301 = vadd.f32 0.0, %v1300
    %v1302 = vpop.f32.mrb[0].mxu0
    %1303 = vmatprep.mubr.f32.mxu0 0.0
    %1304 = vmatmul.mubr.f32.gmra.mrb[0].mxu0 %v978
    %v1305 = vpop.f32.mrb[0].mxu0
    %v1306 = vadd.f32 0.0, %v1305
    %v1307 = vpop.f32.mrb[0].mxu0
    %1308 = vmatprep.mubr.f32.mxu0 0.0
    %1309 = vmatmul.mubr.f32.gmra.mrb[0].mxu0 %v981
    %v1310 = vpop.f32.mrb[0].mxu0
    %v1311 = vadd.f32 0.0, %v1310
    %v1312 = vpop.f32.mrb[0].mxu0
    %1313 = vmatprep.mubr.f32.mxu0 0.0
    %1314 = vmatmul.mubr.f32.gmra.mrb[0].mxu0 %v984
    %v1315 = vpop.f32.mrb[0].mxu0
    %v1316 = vadd.f32 0.0, %v1315
    %v1317 = vpop.f32.mrb[0].mxu0
    %1318 = vmatprep.mubr.f32.mxu0 0.0
    %1319 = vmatmul.mubr.f32.gmra.mrb[0].mxu0 %v987
    %v1320 = vpop.f32.mrb[0].mxu0
    %v1321 = vadd.f32 0.0, %v1320
    %v1322 = vpop.f32.mrb[0].mxu0
    %1323 = vmatprep.mubr.f32.mxu0 0.0
    %1324 = vmatmul.mubr.f32.gmra.mrb[0].mxu0 %v990
    %v1325 = vpop.f32.mrb[0].mxu0
    %v1326 = vadd.f32 0.0, %v1325
    %v1327 = vpop.f32.mrb[0].mxu0
    %1328 = vmatprep.mubr.f32.mxu0 0.0
    %1329 = vmatmul.mubr.f32.gmra.mrb[0].mxu0 %v993
    %v1330 = vpop.f32.mrb[0].mxu0
    %v1331 = vadd.f32 0.0, %v1330
    %v1332 = vpop.f32.mrb[0].mxu0
    %1333 = vmatprep.mubr.f32.mxu0 0.0
    %1334 = vmatmul.mubr.f32.gmra.mrb[0].mxu0 %v996
    %v1335 = vpop.f32.mrb[0].mxu0
    %v1336 = vadd.f32 0.0, %v1335
    %v1337 = vpop.f32.mrb[0].mxu0
    %1338 = vmatprep.mubr.f32.mxu0 0.0
    %1339 = vmatmul.mubr.f32.gmra.mrb[0].mxu0 %v999
    %v1340 = vpop.f32.mrb[0].mxu0
    %v1341 = vadd.f32 0.0, %v1340
    %v1342 = vpop.f32.mrb[0].mxu0
    %1343 = vmatprep.mubr.f32.mxu0 0.0
    %1344 = vmatmul.mubr.f32.gmra.mrb[0].mxu0 %v1002
    %v1345 = vpop.f32.mrb[0].mxu0
    %v1346 = vadd.f32 0.0, %v1345
    %v1347 = vpop.f32.mrb[0].mxu0
    %1348 = vmatprep.mubr.f32.mxu0 0.0
    %1349 = vmatmul.mubr.f32.gmra.mrb[0].mxu0 %v1005
    %v1350 = vpop.f32.mrb[0].mxu0
    %v1351 = vadd.f32 0.0, %v1350
    %v1352 = vpop.f32.mrb[0].mxu0
    %1353 = vmatprep.mubr.f32.mxu0 0.0
    %1354 = vmatmul.mubr.f32.gmra.mrb[0].mxu0 %v1008
    %v1355 = vpop.f32.mrb[0].mxu0
    %v1356 = vadd.f32 0.0, %v1355
    %v1357 = vpop.f32.mrb[0].mxu0
    %1358 = vmatprep.mubr.f32.mxu0 0.0
    %1359 = vmatmul.mubr.f32.gmra.mrb[0].mxu0 %v1011
    %v1360 = vpop.f32.mrb[0].mxu0
    %v1361 = vadd.f32 0.0, %v1360
    %v1362 = vpop.f32.mrb[0].mxu0
    %1363 = vmatprep.mubr.f32.mxu0 0.0
    %1364 = vmatmul.mubr.f32.gmra.mrb[0].mxu0 %v1014
    %v1365 = vpop.f32.mrb[0].mxu0
    %v1366 = vadd.f32 0.0, %v1365
    %v1367 = vpop.f32.mrb[0].mxu0
    %1368 = vmatprep.mubr.f32.mxu0 0.0
    %1369 = vmatmul.mubr.f32.gmra.mrb[0].mxu0 %v1017
    %v1370 = vpop.f32.mrb[0].mxu0
    %v1371 = vadd.f32 0.0, %v1370
    %v1372 = vpop.f32.mrb[0].mxu0
    %1373 = vmatprep.mubr.f32.mxu0 0.0
    %1374 = vmatmul.mubr.f32.gmra.mrb[0].mxu0 %v1020
    %v1375 = vpop.f32.mrb[0].mxu0
    %v1376 = vadd.f32 0.0, %v1375
    %v1377 = vpop.f32.mrb[0].mxu0
    %1378 = vmatprep.mubr.f32.mxu0 0.0
    %1379 = vmatmul.mubr.f32.gmra.mrb[0].mxu0 %v1023
    %v1380 = vpop.f32.mrb[0].mxu0
    %v1381 = vadd.f32 0.0, %v1380
    %v1382 = vpop.f32.mrb[0].mxu0
    %1383 = vmatprep.mubr.f32.mxu0 0.0
    %1384 = vmatmul.mubr.f32.gmra.mrb[0].mxu0 %v1026
    %v1385 = vpop.f32.mrb[0].mxu0
    %v1386 = vadd.f32 0.0, %v1385
    %v1387 = vpop.f32.mrb[0].mxu0
    %1388 = vmatprep.mubr.f32.mxu0 0.0
    %1389 = vmatmul.mubr.f32.gmra.mrb[0].mxu0 %v1029
    %v1390 = vpop.f32.mrb[0].mxu0
    %v1391 = vadd.f32 0.0, %v1390
    %v1392 = vpop.f32.mrb[0].mxu0
    %1393 = vmatprep.mubr.f32.mxu0 0.0
    %1394 = vmatmul.mubr.f32.gmra.mrb[0].mxu0 %v1032
    %v1395 = vpop.f32.mrb[0].mxu0
    %v1396 = vadd.f32 0.0, %v1395
    %v1397 = vpop.f32.mrb[0].mxu0
    %1398 = vmatprep.mubr.f32.mxu0 0.0
    %1399 = vmatmul.mubr.f32.gmra.mrb[0].mxu0 %v1035
    %v1400 = vpop.f32.mrb[0].mxu0
    %v1401 = vadd.f32 0.0, %v1400
    %v1402 = vpop.f32.mrb[0].mxu0
    %1403 = vmatprep.mubr.f32.mxu0 0.0
    %1404 = vmatmul.mubr.f32.gmra.mrb[0].mxu0 %v1038
    %v1405 = vpop.f32.mrb[0].mxu0
    %v1406 = vadd.f32 0.0, %v1405
    %v1407 = vpop.f32.mrb[0].mxu0
    %1408 = vmatprep.mubr.f32.mxu0 0.0
    %1409 = vmatmul.mubr.f32.gmra.mrb[0].mxu0 %v1041
    %v1410 = vpop.f32.mrb[0].mxu0
    %v1411 = vadd.f32 0.0, %v1410
    %v1412 = vpop.f32.mrb[0].mxu0
    %1413 = vmatprep.mubr.f32.mxu0 0.0
    %1414 = vmatmul.mubr.f32.gmra.mrb[0].mxu0 %v1044
    %v1415 = vpop.f32.mrb[0].mxu0
    %v1416 = vadd.f32 0.0, %v1415
    %v1417 = vpop.f32.mrb[0].mxu0
    %1418 = vmatprep.mubr.f32.mxu0 0.0
    %1419 = vmatmul.mubr.f32.gmra.mrb[0].mxu0 %v1047
    %v1420 = vpop.f32.mrb[0].mxu0
    %v1421 = vadd.f32 0.0, %v1420
    %v1422 = vpop.f32.mrb[0].mxu0
    %1423 = vmatprep.mubr.f32.mxu0 0.0
    %1424 = vmatmul.mubr.f32.gmra.mrb[0].mxu0 %v1050
    %v1425 = vpop.f32.mrb[0].mxu0
    %v1426 = vadd.f32 0.0, %v1425
    %v1427 = vpop.f32.mrb[0].mxu0
    %1428 = vmatprep.mubr.f32.mxu0 0.0
    %1429 = vmatmul.mubr.f32.gmra.mrb[0].mxu0 %v1053
    %v1430 = vpop.f32.mrb[0].mxu0
    %v1431 = vadd.f32 0.0, %v1430
    %v1432 = vpop.f32.mrb[0].mxu0
    %1433 = vmatprep.mubr.f32.mxu0 0.0
    %1434 = vmatmul.mubr.f32.gmra.mrb[0].mxu0 %v1056
    %v1435 = vpop.f32.mrb[0].mxu0
    %v1436 = vadd.f32 0.0, %v1435
    %v1437 = vpop.f32.mrb[0].mxu0
    %1438 = vmatprep.mubr.f32.mxu0 0.0
    %1439 = vmatmul.mubr.f32.gmra.mrb[0].mxu0 %v1059
    %v1440 = vpop.f32.mrb[0].mxu0
    %v1441 = vadd.f32 0.0, %v1440
    %v1442 = vpop.f32.mrb[0].mxu0
    %1443 = vmatprep.mubr.f32.mxu0 0.0
    %1444 = vmatmul.mubr.f32.gmra.mrb[0].mxu0 %v1062
    %v1445 = vpop.f32.mrb[0].mxu0
    %v1446 = vadd.f32 0.0, %v1445
    %v1447 = vpop.f32.mrb[0].mxu0
    %1448 = vdwg.mxu0
    %v1449 = vld [vmem:[%s5] sm:$0x1]
    %v1450 = vlaneseq
    %v1451 = vshrl.u32 %v1450, 7
    %v1452 = vsub.s32 0, %v1451
    %v1453 = vrot.slane %v1449, %v1452
    %v1454 = vmul.f32 %v1131, %v1453
    %v1455 = vmul.f32 %v1136, %v1453
    %v1456 = vmul.f32 %v1141, %v1453
    %v1457 = vmul.f32 %v1146, %v1453
    %v1458 = vmul.f32 %v1151, %v1453
    %v1459 = vmul.f32 %v1156, %v1453
    %v1460 = vmul.f32 %v1161, %v1453
    %v1461 = vmul.f32 %v1166, %v1453
    %v1462 = vmul.f32 %v1171, %v1453
    %v1463 = vmul.f32 %v1176, %v1453
    %v1464 = vmul.f32 %v1181, %v1453
    %v1465 = vmul.f32 %v1186, %v1453
    %v1466 = vmul.f32 %v1191, %v1453
    %v1467 = vmul.f32 %v1196, %v1453
    %v1468 = vmul.f32 %v1201, %v1453
    %v1469 = vmul.f32 %v1206, %v1453
    %v1470 = vmul.f32 %v1211, %v1453
    %v1471 = vmul.f32 %v1216, %v1453
    %v1472 = vmul.f32 %v1221, %v1453
    %v1473 = vmul.f32 %v1226, %v1453
    %v1474 = vmul.f32 %v1231, %v1453
    %v1475 = vmul.f32 %v1236, %v1453
    %v1476 = vmul.f32 %v1241, %v1453
    %v1477 = vmul.f32 %v1246, %v1453
    %v1478 = vmul.f32 %v1251, %v1453
    %v1479 = vmul.f32 %v1256, %v1453
    %v1480 = vmul.f32 %v1261, %v1453
    %v1481 = vmul.f32 %v1266, %v1453
    %v1482 = vmul.f32 %v1271, %v1453
    %v1483 = vmul.f32 %v1276, %v1453
    %v1484 = vmul.f32 %v1281, %v1453
    %v1485 = vmul.f32 %v1286, %v1453
    %v1486 = vmul.f32 %v1291, %v1453
    %v1487 = vmul.f32 %v1296, %v1453
    %v1488 = vmul.f32 %v1301, %v1453
    %v1489 = vmul.f32 %v1306, %v1453
    %v1490 = vmul.f32 %v1311, %v1453
    %v1491 = vmul.f32 %v1316, %v1453
    %v1492 = vmul.f32 %v1321, %v1453
    %v1493 = vmul.f32 %v1326, %v1453
    %v1494 = vmul.f32 %v1331, %v1453
    %v1495 = vmul.f32 %v1336, %v1453
    %v1496 = vmul.f32 %v1341, %v1453
    %v1497 = vmul.f32 %v1346, %v1453
    %v1498 = vmul.f32 %v1351, %v1453
    %v1499 = vmul.f32 %v1356, %v1453
    %v1500 = vmul.f32 %v1361, %v1453
    %v1501 = vmul.f32 %v1366, %v1453
    %v1502 = vmul.f32 %v1371, %v1453
    %v1503 = vmul.f32 %v1376, %v1453
    %v1504 = vmul.f32 %v1381, %v1453
    %v1505 = vmul.f32 %v1386, %v1453
    %v1506 = vmul.f32 %v1391, %v1453
    %v1507 = vmul.f32 %v1396, %v1453
    %v1508 = vmul.f32 %v1401, %v1453
    %v1509 = vmul.f32 %v1406, %v1453
    %v1510 = vmul.f32 %v1411, %v1453
    %v1511 = vmul.f32 %v1416, %v1453
    %v1512 = vmul.f32 %v1421, %v1453
    %v1513 = vmul.f32 %v1426, %v1453
    %v1514 = vmul.f32 %v1431, %v1453
    %v1515 = vmul.f32 %v1436, %v1453
    %v1516 = vmul.f32 %v1441, %v1453
    %v1517 = vmul.f32 %v1446, %v1453
    %v1518 = vld [vmem:[%s5 + $0x1] sm:$0x1]
    %v1519 = vlaneseq
    %v1520 = vshrl.u32 %v1519, 7
    %v1521 = vsub.s32 0, %v1520
    %v1522 = vrot.slane %v1518, %v1521
    %v1523 = vadd.f32 %v1454, %v1522
    %v1524 = vadd.f32 %v1455, %v1522
    %v1525 = vadd.f32 %v1456, %v1522
    %v1526 = vadd.f32 %v1457, %v1522
    %v1527 = vadd.f32 %v1458, %v1522
    %v1528 = vadd.f32 %v1459, %v1522
    %v1529 = vadd.f32 %v1460, %v1522
    %v1530 = vadd.f32 %v1461, %v1522
    %v1531 = vadd.f32 %v1462, %v1522
    %v1532 = vadd.f32 %v1463, %v1522
    %v1533 = vadd.f32 %v1464, %v1522
    %v1534 = vadd.f32 %v1465, %v1522
    %v1535 = vadd.f32 %v1466, %v1522
    %v1536 = vadd.f32 %v1467, %v1522
    %v1537 = vadd.f32 %v1468, %v1522
    %v1538 = vadd.f32 %v1469, %v1522
    %v1539 = vadd.f32 %v1470, %v1522
    %v1540 = vadd.f32 %v1471, %v1522
    %v1541 = vadd.f32 %v1472, %v1522
    %v1542 = vadd.f32 %v1473, %v1522
    %v1543 = vadd.f32 %v1474, %v1522
    %v1544 = vadd.f32 %v1475, %v1522
    %v1545 = vadd.f32 %v1476, %v1522
    %v1546 = vadd.f32 %v1477, %v1522
    %v1547 = vadd.f32 %v1478, %v1522
    %v1548 = vadd.f32 %v1479, %v1522
    %v1549 = vadd.f32 %v1480, %v1522
    %v1550 = vadd.f32 %v1481, %v1522
    %v1551 = vadd.f32 %v1482, %v1522
    %v1552 = vadd.f32 %v1483, %v1522
    %v1553 = vadd.f32 %v1484, %v1522
    %v1554 = vadd.f32 %v1485, %v1522
    %v1555 = vadd.f32 %v1486, %v1522
    %v1556 = vadd.f32 %v1487, %v1522
    %v1557 = vadd.f32 %v1488, %v1522
    %v1558 = vadd.f32 %v1489, %v1522
    %v1559 = vadd.f32 %v1490, %v1522
    %v1560 = vadd.f32 %v1491, %v1522
    %v1561 = vadd.f32 %v1492, %v1522
    %v1562 = vadd.f32 %v1493, %v1522
    %v1563 = vadd.f32 %v1494, %v1522
    %v1564 = vadd.f32 %v1495, %v1522
    %v1565 = vadd.f32 %v1496, %v1522
    %v1566 = vadd.f32 %v1497, %v1522
    %v1567 = vadd.f32 %v1498, %v1522
    %v1568 = vadd.f32 %v1499, %v1522
    %v1569 = vadd.f32 %v1500, %v1522
    %v1570 = vadd.f32 %v1501, %v1522
    %v1571 = vadd.f32 %v1502, %v1522
    %v1572 = vadd.f32 %v1503, %v1522
    %v1573 = vadd.f32 %v1504, %v1522
    %v1574 = vadd.f32 %v1505, %v1522
    %v1575 = vadd.f32 %v1506, %v1522
    %v1576 = vadd.f32 %v1507, %v1522
    %v1577 = vadd.f32 %v1508, %v1522
    %v1578 = vadd.f32 %v1509, %v1522
    %v1579 = vadd.f32 %v1510, %v1522
    %v1580 = vadd.f32 %v1511, %v1522
    %v1581 = vadd.f32 %v1512, %v1522
    %v1582 = vadd.f32 %v1513, %v1522
    %v1583 = vadd.f32 %v1514, %v1522
    %v1584 = vadd.f32 %v1515, %v1522
    %v1585 = vadd.f32 %v1516, %v1522
    %v1586 = vadd.f32 %v1517, %v1522
    %v1587 = vadd.f32 %v741, %v1523
    %v1588 = vadd.f32 %v742, %v1524
    %v1589 = vadd.f32 %v743, %v1525
    %v1590 = vadd.f32 %v744, %v1526
    %v1591 = vadd.f32 %v745, %v1527
    %v1592 = vadd.f32 %v746, %v1528
    %v1593 = vadd.f32 %v747, %v1529
    %v1594 = vadd.f32 %v748, %v1530
    %v1595 = vadd.f32 %v749, %v1531
    %v1596 = vadd.f32 %v750, %v1532
    %v1597 = vadd.f32 %v751, %v1533
    %v1598 = vadd.f32 %v752, %v1534
    %v1599 = vadd.f32 %v753, %v1535
    %v1600 = vadd.f32 %v754, %v1536
    %v1601 = vadd.f32 %v755, %v1537
    %v1602 = vadd.f32 %v756, %v1538
    %v1603 = vadd.f32 %v757, %v1539
    %v1604 = vadd.f32 %v758, %v1540
    %v1605 = vadd.f32 %v759, %v1541
    %v1606 = vadd.f32 %v760, %v1542
    %v1607 = vadd.f32 %v761, %v1543
    %v1608 = vadd.f32 %v762, %v1544
    %v1609 = vadd.f32 %v763, %v1545
    %v1610 = vadd.f32 %v764, %v1546
    %v1611 = vadd.f32 %v765, %v1547
    %v1612 = vadd.f32 %v766, %v1548
    %v1613 = vadd.f32 %v767, %v1549
    %v1614 = vadd.f32 %v768, %v1550
    %v1615 = vadd.f32 %v769, %v1551
    %v1616 = vadd.f32 %v770, %v1552
    %v1617 = vadd.f32 %v771, %v1553
    %v1618 = vadd.f32 %v772, %v1554
    %v1619 = vadd.f32 %v773, %v1555
    %v1620 = vadd.f32 %v774, %v1556
    %v1621 = vadd.f32 %v775, %v1557
    %v1622 = vadd.f32 %v776, %v1558
    %v1623 = vadd.f32 %v777, %v1559
    %v1624 = vadd.f32 %v778, %v1560
    %v1625 = vadd.f32 %v779, %v1561
    %v1626 = vadd.f32 %v780, %v1562
    %v1627 = vadd.f32 %v781, %v1563
    %v1628 = vadd.f32 %v782, %v1564
    %v1629 = vadd.f32 %v783, %v1565
    %v1630 = vadd.f32 %v784, %v1566
    %v1631 = vadd.f32 %v785, %v1567
    %v1632 = vadd.f32 %v786, %v1568
    %v1633 = vadd.f32 %v787, %v1569
    %v1634 = vadd.f32 %v788, %v1570
    %v1635 = vadd.f32 %v789, %v1571
    %v1636 = vadd.f32 %v790, %v1572
    %v1637 = vadd.f32 %v791, %v1573
    %v1638 = vadd.f32 %v792, %v1574
    %v1639 = vadd.f32 %v793, %v1575
    %v1640 = vadd.f32 %v794, %v1576
    %v1641 = vadd.f32 %v795, %v1577
    %v1642 = vadd.f32 %v796, %v1578
    %v1643 = vadd.f32 %v797, %v1579
    %v1644 = vadd.f32 %v798, %v1580
    %v1645 = vadd.f32 %v799, %v1581
    %v1646 = vadd.f32 %v800, %v1582
    %v1647 = vadd.f32 %v801, %v1583
    %v1648 = vadd.f32 %v802, %v1584
    %v1649 = vadd.f32 %v803, %v1585
    %v1650 = vadd.f32 %v804, %v1586
    %v1651 = vmax.f32 %v1587, 0.0
    %v1652 = vmax.f32 %v1588, 0.0
    %v1653 = vmax.f32 %v1589, 0.0
    %v1654 = vmax.f32 %v1590, 0.0
    %v1655 = vmax.f32 %v1591, 0.0
    %v1656 = vmax.f32 %v1592, 0.0
    %v1657 = vmax.f32 %v1593, 0.0
    %v1658 = vmax.f32 %v1594, 0.0
    %v1659 = vmax.f32 %v1595, 0.0
    %v1660 = vmax.f32 %v1596, 0.0
    %v1661 = vmax.f32 %v1597, 0.0
    %v1662 = vmax.f32 %v1598, 0.0
    %v1663 = vmax.f32 %v1599, 0.0
    %v1664 = vmax.f32 %v1600, 0.0
    %v1665 = vmax.f32 %v1601, 0.0
    %v1666 = vmax.f32 %v1602, 0.0
    %v1667 = vmax.f32 %v1603, 0.0
    %v1668 = vmax.f32 %v1604, 0.0
    %v1669 = vmax.f32 %v1605, 0.0
    %v1670 = vmax.f32 %v1606, 0.0
    %v1671 = vmax.f32 %v1607, 0.0
    %v1672 = vmax.f32 %v1608, 0.0
    %v1673 = vmax.f32 %v1609, 0.0
    %v1674 = vmax.f32 %v1610, 0.0
    %v1675 = vmax.f32 %v1611, 0.0
    %v1676 = vmax.f32 %v1612, 0.0
    %v1677 = vmax.f32 %v1613, 0.0
    %v1678 = vmax.f32 %v1614, 0.0
    %v1679 = vmax.f32 %v1615, 0.0
    %v1680 = vmax.f32 %v1616, 0.0
    %v1681 = vmax.f32 %v1617, 0.0
    %v1682 = vmax.f32 %v1618, 0.0
    %v1683 = vmax.f32 %v1619, 0.0
    %v1684 = vmax.f32 %v1620, 0.0
    %v1685 = vmax.f32 %v1621, 0.0
    %v1686 = vmax.f32 %v1622, 0.0
    %v1687 = vmax.f32 %v1623, 0.0
    %v1688 = vmax.f32 %v1624, 0.0
    %v1689 = vmax.f32 %v1625, 0.0
    %v1690 = vmax.f32 %v1626, 0.0
    %v1691 = vmax.f32 %v1627, 0.0
    %v1692 = vmax.f32 %v1628, 0.0
    %v1693 = vmax.f32 %v1629, 0.0
    %v1694 = vmax.f32 %v1630, 0.0
    %v1695 = vmax.f32 %v1631, 0.0
    %v1696 = vmax.f32 %v1632, 0.0
    %v1697 = vmax.f32 %v1633, 0.0
    %v1698 = vmax.f32 %v1634, 0.0
    %v1699 = vmax.f32 %v1635, 0.0
    %v1700 = vmax.f32 %v1636, 0.0
    %v1701 = vmax.f32 %v1637, 0.0
    %v1702 = vmax.f32 %v1638, 0.0
    %v1703 = vmax.f32 %v1639, 0.0
    %v1704 = vmax.f32 %v1640, 0.0
    %v1705 = vmax.f32 %v1641, 0.0
    %v1706 = vmax.f32 %v1642, 0.0
    %v1707 = vmax.f32 %v1643, 0.0
    %v1708 = vmax.f32 %v1644, 0.0
    %v1709 = vmax.f32 %v1645, 0.0
    %v1710 = vmax.f32 %v1646, 0.0
    %v1711 = vmax.f32 %v1647, 0.0
    %v1712 = vmax.f32 %v1648, 0.0
    %v1713 = vmax.f32 %v1649, 0.0
    %v1714 = vmax.f32 %v1650, 0.0
    %vm1715 = vcmask 261120
    %1716 = vst.msk [vmem:[#allocation2] sm:$0xff] %vm1715, %v1651
    %1717 = vst.msk [vmem:[#allocation2 + $0x8] sm:$0xff] %vm1715, %v1652
    %1718 = vst.msk [vmem:[#allocation2 + $0x10] sm:$0xff] %vm1715, %v1653
    %1719 = vst.msk [vmem:[#allocation2 + $0x18] sm:$0xff] %vm1715, %v1654
    %1720 = vst.msk [vmem:[#allocation2 + $0x20] sm:$0xff] %vm1715, %v1655
    %1721 = vst.msk [vmem:[#allocation2 + $0x28] sm:$0xff] %vm1715, %v1656
    %1722 = vst.msk [vmem:[#allocation2 + $0x30] sm:$0xff] %vm1715, %v1657
    %1723 = vst.msk [vmem:[#allocation2 + $0x38] sm:$0xff] %vm1715, %v1658
    %1724 = vst.msk [vmem:[#allocation2 + $0x40] sm:$0xff] %vm1715, %v1659
    %1725 = vst.msk [vmem:[#allocation2 + $0x48] sm:$0xff] %vm1715, %v1660
    %1726 = vst.msk [vmem:[#allocation2 + $0x50] sm:$0xff] %vm1715, %v1661
    %1727 = vst.msk [vmem:[#allocation2 + $0x58] sm:$0xff] %vm1715, %v1662
    %1728 = vst.msk [vmem:[#allocation2 + $0x60] sm:$0xff] %vm1715, %v1663
    %1729 = vst.msk [vmem:[#allocation2 + $0x68] sm:$0xff] %vm1715, %v1664
    %1730 = vst.msk [vmem:[#allocation2 + $0x70] sm:$0xff] %vm1715, %v1665
    %1731 = vst.msk [vmem:[#allocation2 + $0x78] sm:$0xff] %vm1715, %v1666
    %1732 = vst.msk [vmem:[#allocation2 + $0x80] sm:$0xff] %vm1715, %v1667
    %1733 = vst.msk [vmem:[#allocation2 + $0x88] sm:$0xff] %vm1715, %v1668
    %1734 = vst.msk [vmem:[#allocation2 + $0x90] sm:$0xff] %vm1715, %v1669
    %1735 = vst.msk [vmem:[#allocation2 + $0x98] sm:$0xff] %vm1715, %v1670
    %1736 = vst.msk [vmem:[#allocation2 + $0xa0] sm:$0xff] %vm1715, %v1671
    %1737 = vst.msk [vmem:[#allocation2 + $0xa8] sm:$0xff] %vm1715, %v1672
    %1738 = vst.msk [vmem:[#allocation2 + $0xb0] sm:$0xff] %vm1715, %v1673
    %1739 = vst.msk [vmem:[#allocation2 + $0xb8] sm:$0xff] %vm1715, %v1674
    %1740 = vst.msk [vmem:[#allocation2 + $0xc0] sm:$0xff] %vm1715, %v1675
    %1741 = vst.msk [vmem:[#allocation2 + $0xc8] sm:$0xff] %vm1715, %v1676
    %1742 = vst.msk [vmem:[#allocation2 + $0xd0] sm:$0xff] %vm1715, %v1677
    %1743 = vst.msk [vmem:[#allocation2 + $0xd8] sm:$0xff] %vm1715, %v1678
    %1744 = vst.msk [vmem:[#allocation2 + $0xe0] sm:$0xff] %vm1715, %v1679
    %1745 = vst.msk [vmem:[#allocation2 + $0xe8] sm:$0xff] %vm1715, %v1680
    %1746 = vst.msk [vmem:[#allocation2 + $0xf0] sm:$0xff] %vm1715, %v1681
    %1747 = vst.msk [vmem:[#allocation2 + $0xf8] sm:$0xff] %vm1715, %v1682
    %1748 = vst.msk [vmem:[#allocation2 + $0x100] sm:$0xff] %vm1715, %v1683
    %1749 = vst.msk [vmem:[#allocation2 + $0x108] sm:$0xff] %vm1715, %v1684
    %1750 = vst.msk [vmem:[#allocation2 + $0x110] sm:$0xff] %vm1715, %v1685
    %1751 = vst.msk [vmem:[#allocation2 + $0x118] sm:$0xff] %vm1715, %v1686
    %1752 = vst.msk [vmem:[#allocation2 + $0x120] sm:$0xff] %vm1715, %v1687
    %1753 = vst.msk [vmem:[#allocation2 + $0x128] sm:$0xff] %vm1715, %v1688
    %1754 = vst.msk [vmem:[#allocation2 + $0x130] sm:$0xff] %vm1715, %v1689
    %1755 = vst.msk [vmem:[#allocation2 + $0x138] sm:$0xff] %vm1715, %v1690
    %1756 = vst.msk [vmem:[#allocation2 + $0x140] sm:$0xff] %vm1715, %v1691
    %1757 = vst.msk [vmem:[#allocation2 + $0x148] sm:$0xff] %vm1715, %v1692
    %1758 = vst.msk [vmem:[#allocation2 + $0x150] sm:$0xff] %vm1715, %v1693
    %1759 = vst.msk [vmem:[#allocation2 + $0x158] sm:$0xff] %vm1715, %v1694
    %1760 = vst.msk [vmem:[#allocation2 + $0x160] sm:$0xff] %vm1715, %v1695
    %1761 = vst.msk [vmem:[#allocation2 + $0x168] sm:$0xff] %vm1715, %v1696
    %1762 = vst.msk [vmem:[#allocation2 + $0x170] sm:$0xff] %vm1715, %v1697
    %1763 = vst.msk [vmem:[#allocation2 + $0x178] sm:$0xff] %vm1715, %v1698
    %1764 = vst.msk [vmem:[#allocation2 + $0x180] sm:$0xff] %vm1715, %v1699
    %1765 = vst.msk [vmem:[#allocation2 + $0x188] sm:$0xff] %vm1715, %v1700
    %1766 = vst.msk [vmem:[#allocation2 + $0x190] sm:$0xff] %vm1715, %v1701
    %1767 = vst.msk [vmem:[#allocation2 + $0x198] sm:$0xff] %vm1715, %v1702
    %1768 = vst.msk [vmem:[#allocation2 + $0x1a0] sm:$0xff] %vm1715, %v1703
    %1769 = vst.msk [vmem:[#allocation2 + $0x1a8] sm:$0xff] %vm1715, %v1704
    %1770 = vst.msk [vmem:[#allocation2 + $0x1b0] sm:$0xff] %vm1715, %v1705
    %1771 = vst.msk [vmem:[#allocation2 + $0x1b8] sm:$0xff] %vm1715, %v1706
    %1772 = vst.msk [vmem:[#allocation2 + $0x1c0] sm:$0xff] %vm1715, %v1707
    %1773 = vst.msk [vmem:[#allocation2 + $0x1c8] sm:$0xff] %vm1715, %v1708
    %1774 = vst.msk [vmem:[#allocation2 + $0x1d0] sm:$0xff] %vm1715, %v1709
    %1775 = vst.msk [vmem:[#allocation2 + $0x1d8] sm:$0xff] %vm1715, %v1710
    %1776 = vst.msk [vmem:[#allocation2 + $0x1e0] sm:$0xff] %vm1715, %v1711
    %1777 = vst.msk [vmem:[#allocation2 + $0x1e8] sm:$0xff] %vm1715, %v1712
    %1778 = vst.msk [vmem:[#allocation2 + $0x1f0] sm:$0xff] %vm1715, %v1713
    %1779 = vst.msk [vmem:[#allocation2 + $0x1f8] sm:$0xff] %vm1715, %v1714
    // Predicated region
    $region26: #{bottleneck_forward.3} parent=1 // pred_check
      _
    $region27: #{bottleneck_forward.3} parent=1 // pred_check_branch
      %1781 = sbr.rel (0) target = $region29
    $region28: #{bottleneck_forward.3} parent=1 // pred_region
      %s1783 = ssub.s32 8192, 8192
      %1784 = vsyncadd [#allocation3], %s1783
      %s1785 = sshll.u32 [#allocation2], 4
      %s1786 = int_to_ptr.vmem [resolvable:$true] %s1785
      %1791 = dma.vmem_to_hbm [thread:$0]  %s1786, 8192, %s6, [#allocation3], 128, 128, 8
    $region29: #{bottleneck_forward.3} parent=1 // pred_fallthru
      _
    // Predicated region
    $region30: #{bottleneck_forward.3} parent=1 // pred_check
      _
    $region31: #{bottleneck_forward.3} parent=1 // pred_check_branch
      %1793 = sbr.rel (0) target = $region33
    $region32: #{bottleneck_forward.3} parent=1 // pred_region
      %1794 = dma.done [#allocation3], 8192
    $region33: #{bottleneck_forward.3} parent=1 // pred_fallthru
      _
    %1795 = vsyncpa [#allocation3], 1

// kernel: bottleneck_forward.2
$region0: #{bottleneck_forward.2}
  #allocation0 [shape = 'u32[]', space=smem, size = 0x4, offset = 0x4, fixed_abs, tag = 'smem constant byte address 0x4 - core index']
  #allocation1 [shape = 'u32[144,128]{1,0:T(1,128)}', space=vmem, size = 0x12000, scoped, tag = 'internal scratch']
  #allocation2 [shape = 'f32[18,18,8]{2,1,0:T(8,128)}', space=vmem, size = 0x36000, scoped, tag = 'scratch operand']
  %s0 = inlined_call_operand.hbm [shape: f32[2,16,16,16], index: 0, kind: input, shape index: {}]
  %s1 = inlined_call_operand.vmem [shape: f32[16,8], index: 1, kind: input, shape index: {}]
  %s2 = inlined_call_operand.vmem [shape: f32[2,8], index: 2, kind: input, shape index: {}]
  %s3 = inlined_call_operand.hbm [shape: f32[3,3,8,8], index: 3, kind: input, shape index: {}]
  %s4 = inlined_call_operand.vmem [shape: f32[2,8], index: 4, kind: input, shape index: {}]
  %s5 = inlined_call_operand.vmem [shape: f32[2,16,16,8], index: 5, kind: output, shape index: {}]
  %s6 = sld [smem:[#allocation0]]
  $region61: #{bottleneck_forward.2} parent=0
    _
  %s8 = ssub.s32 1, %s6
  %s9 = scalar_select 0, %s8, %s6
  $region1: #{bottleneck_forward.2} parent=0
    #allocation3 [shape = 'u8[262144]{0}', space=vmem, size = 0x40000, scoped, tag = 'input window, operand 0']
    #allocation4 [shape = 's32[2]{0}', space=sflag, size = 0x8, scoped, tag = 'scoped memory for bottleneck_forward.2']
    #allocation5 [shape = 'u8[36864]{0}', space=vmem, size = 0x9000, scoped, tag = 'input window, operand 3, single buffered']
    #allocation6 [shape = 's32[1]{0}', space=sflag, size = 0x4, scoped, tag = 'scoped memory for bottleneck_forward.2']
    %10 = vsyncpa [#allocation4], 0
    %s11 = scalar_lea.sflag [#allocation4], 1
    %12 = vsyncpa %s11, 0
    %13 = vsyncpa [#allocation6], 0
    loop: start=0, step=1, limit=4
    $region2: #{bottleneck_forward.2} parent=1 // loop_pre_header
      _
    $region3: #{bottleneck_forward.2} parent=1 // loop_header
      %s15 = sphi 0, %s19
      %p16 = scmp.ge.s32.totalorder %s15, 4
      %s25 = sphi 0, %s27
      %s28 = sphi 0, %s25
      %s29 = sphi 0, %s28
      %s45 = sphi 0, %s29
      %s49 = sphi 0, %s49
      %s51 = sphi 0, %s49
      %s52 = sphi 0, %s51
      %s66 = sphi 0, %s52
      %s70 = sphi 0, %s70
      %s72 = sphi 0, %s70
      %s73 = sphi 0, %s72
      %s87 = sphi 0, %s73
      %s91 = sphi 0, %s91
      %s93 = sphi 0, %s91
      %s94 = sphi 0, %s93
      %s108 = sphi 0, %s94
      %s112 = sphi 0, %s112
      %s114 = sphi 0, %s112
      %s115 = sphi 0, %s114
      %s129 = sphi 0, %s115
      %s135 = sphi 0, %s137
      %s138 = sphi 0, %s135
      %s139 = sphi 0, %s138
      %s155 = sphi 0, %s139
    $region4: #{bottleneck_forward.2} parent=1 // loop_header_branch
      %18 = sbr.rel (%p16) target = $region8
    $region5: #{bottleneck_forward.2} parent=1 // loop_body
      %s20 = ssub.s32 %s15, 1
      %s21 = ssub.s32 %s15, 2
      %s22 = sadd.s32 %s15, 1
      %s23 = ssub.s32 %s15, %s22
      %p24 = scmp.eq.s32.totalorder %s23, 0
      %s26 = sadd.s32 %s25, 1
      %s27 = scalar_select %p24, %s25, %s26
      %p30 = pneg %p24
      %p31 = scmp.eq.s32.totalorder %s15, 1
      %p32 = por %p30, %p31
      %p33 = scmp.ne.s32.totalorder %s25, %s28
      %p34 = scmp.eq.s32.totalorder %s15, 0
      %p35 = por %p33, %p34
      %p36 = scmp.ne.s32.totalorder %s25, %s28
      %p37 = scmp.eq.s32.totalorder %s20, 1
      %p38 = por %p36, %p37
      %p39 = scmp.ne.s32.totalorder %s28, %s29
      %p40 = scmp.eq.s32.totalorder %s20, 0
      %p41 = por %p39, %p40
      %p42 = scmp.ne.s32.totalorder %s28, %s29
      %p43 = scmp.eq.s32.totalorder %s21, 1
      %p44 = por %p42, %p43
      %p46 = scmp.ne.s32.totalorder %s29, %s45
      %p47 = scmp.eq.s32.totalorder %s21, 0
      %p48 = por %p46, %p47
      %s50 = sadd.s32 %s49, 1
      %p53 = scmp.eq.s32.totalorder %s15, 1
      %p54 = scmp.ne.s32.totalorder %s49, %s51
      %p55 = scmp.eq.s32.totalorder %s15, 0
      %p56 = por %p54, %p55
      %p57 = scmp.ne.s32.totalorder %s49, %s51
      %p58 = scmp.eq.s32.totalorder %s20, 1
      %p59 = por %p57, %p58
      %p60 = scmp.ne.s32.totalorder %s51, %s52
      %p61 = scmp.eq.s32.totalorder %s20, 0
      %p62 = por %p60, %p61
      %p63 = scmp.ne.s32.totalorder %s51, %s52
      %p64 = scmp.eq.s32.totalorder %s21, 1
      %p65 = por %p63, %p64
      %p67 = scmp.ne.s32.totalorder %s52, %s66
      %p68 = scmp.eq.s32.totalorder %s21, 0
      %p69 = por %p67, %p68
      %s71 = sadd.s32 %s70, 1
      %p74 = scmp.eq.s32.totalorder %s15, 1
      %p75 = scmp.ne.s32.totalorder %s70, %s72
      %p76 = scmp.eq.s32.totalorder %s15, 0
      %p77 = por %p75, %p76
      %p78 = scmp.ne.s32.totalorder %s70, %s72
      %p79 = scmp.eq.s32.totalorder %s20, 1
      %p80 = por %p78, %p79
      %p81 = scmp.ne.s32.totalorder %s72, %s73
      %p82 = scmp.eq.s32.totalorder %s20, 0
      %p83 = por %p81, %p82
      %p84 = scmp.ne.s32.totalorder %s72, %s73
      %p85 = scmp.eq.s32.totalorder %s21, 1
      %p86 = por %p84, %p85
      %p88 = scmp.ne.s32.totalorder %s73, %s87
      %p89 = scmp.eq.s32.totalorder %s21, 0
      %p90 = por %p88, %p89
      %s92 = sadd.s32 %s91, 1
      %p95 = scmp.eq.s32.totalorder %s15, 1
      %p96 = scmp.ne.s32.totalorder %s91, %s93
      %p97 = scmp.eq.s32.totalorder %s15, 0
      %p98 = por %p96, %p97
      %p99 = scmp.ne.s32.totalorder %s91, %s93
      %p100 = scmp.eq.s32.totalorder %s20, 1
      %p101 = por %p99, %p100
      %p102 = scmp.ne.s32.totalorder %s93, %s94
      %p103 = scmp.eq.s32.totalorder %s20, 0
      %p104 = por %p102, %p103
      %p105 = scmp.ne.s32.totalorder %s93, %s94
      %p106 = scmp.eq.s32.totalorder %s21, 1
      %p107 = por %p105, %p106
      %p109 = scmp.ne.s32.totalorder %s94, %s108
      %p110 = scmp.eq.s32.totalorder %s21, 0
      %p111 = por %p109, %p110
      %s113 = sadd.s32 %s112, 1
      %p116 = scmp.eq.s32.totalorder %s15, 1
      %p117 = scmp.ne.s32.totalorder %s112, %s114
      %p118 = scmp.eq.s32.totalorder %s15, 0
      %p119 = por %p117, %p118
      %p120 = scmp.ne.s32.totalorder %s112, %s114
      %p121 = scmp.eq.s32.totalorder %s20, 1
      %p122 = por %p120, %p121
      %p123 = scmp.ne.s32.totalorder %s114, %s115
      %p124 = scmp.eq.s32.totalorder %s20, 0
      %p125 = por %p123, %p124
      %p126 = scmp.ne.s32.totalorder %s114, %s115
      %p127 = scmp.eq.s32.totalorder %s21, 1
      %p128 = por %p126, %p127
      %p130 = scmp.ne.s32.totalorder %s115, %s129
      %p131 = scmp.eq.s32.totalorder %s21, 0
      %p132 = por %p130, %p131
      %s133 = ssub.s32 %s15, %s22
      %p134 = scmp.eq.s32.totalorder %s133, 0
      %s136 = sadd.s32 %s135, 1
      %s137 = scalar_select %p134, %s135, %s136
      %p140 = pneg %p134
      %p141 = scmp.eq.s32.totalorder %s15, 1
      %p142 = por %p140, %p141
      %p143 = scmp.ne.s32.totalorder %s135, %s138
      %p144 = scmp.eq.s32.totalorder %s15, 0
      %p145 = por %p143, %p144
      %p146 = scmp.ne.s32.totalorder %s135, %s138
      %p147 = scmp.eq.s32.totalorder %s20, 1
      %p148 = por %p146, %p147
      %p149 = scmp.ne.s32.totalorder %s138, %s139
      %p150 = scmp.eq.s32.totalorder %s20, 0
      %p151 = por %p149, %p150
      %p152 = scmp.ne.s32.totalorder %s138, %s139
      %p153 = scmp.eq.s32.totalorder %s21, 1
      %p154 = por %p152, %p153
      %p156 = scmp.ne.s32.totalorder %s139, %s155
      %p157 = scmp.eq.s32.totalorder %s21, 0
      %p158 = por %p156, %p157
      %p159 = scmp.le.s32.totalorder 1, %s15
      %p160 = scmp.lt.s32.totalorder %s15, 3
      %p161 = pnand %p159, %p160
      %p162 = pneg %p161
      // Predicated region
      $region9: #{bottleneck_forward.2} parent=5 // pred_check
        _
      $region10: #{bottleneck_forward.2} parent=5 // pred_check_branch
        %164 = sbr.rel (%p161) target = $region12
      $region11: #{bottleneck_forward.2} parent=5 // pred_region
        %s165 = ssub.s32 %s15, 1
        // Predicated region
        $region13: #{bottleneck_forward.2} parent=11 // pred_check
          %p166 = pneg %p62
        $region14: #{bottleneck_forward.2} parent=11 // pred_check_branch
          %168 = sbr.rel (%p166) target = $region16
        $region15: #{bottleneck_forward.2} parent=11 // pred_region
          _
        $region16: #{bottleneck_forward.2} parent=11 // pred_fallthru
          _
        // Predicated region
        $region17: #{bottleneck_forward.2} parent=11 // pred_check
          %p169 = pneg %p83
        $region18: #{bottleneck_forward.2} parent=11 // pred_check_branch
          %171 = sbr.rel (%p169) target = $region20
        $region19: #{bottleneck_forward.2} parent=11 // pred_region
          _
        $region20: #{bottleneck_forward.2} parent=11 // pred_fallthru
          _
        // Predicated region
        $region21: #{bottleneck_forward.2} parent=11 // pred_check
          %p172 = pneg %p104
        $region22: #{bottleneck_forward.2} parent=11 // pred_check_branch
          %174 = sbr.rel (%p172) target = $region24
        $region23: #{bottleneck_forward.2} parent=11 // pred_region
          %s176 = ssub.s32 1152, 1152
          %177 = vsyncadd [#allocation6], %s176
          %s178 = sshll.u32 [#allocation5], 4
          %s179 = int_to_ptr.vmem [resolvable:$true] %s178
          %184 = dma.hbm_to_vmem [thread:$0]  %s3, 1152, %s179, [#allocation6], 128, 128, 8
        $region24: #{bottleneck_forward.2} parent=11 // pred_fallthru
          _
        // Predicated region
        $region25: #{bottleneck_forward.2} parent=11 // pred_check
          %p185 = pneg %p125
        $region26: #{bottleneck_forward.2} parent=11 // pred_check_branch
          %187 = sbr.rel (%p185) target = $region28
        $region27: #{bottleneck_forward.2} parent=11 // pred_region
          _
        $region28: #{bottleneck_forward.2} parent=11 // pred_fallthru
          _
      $region12: #{bottleneck_forward.2} parent=5 // pred_fallthru
        _
      %p188 = scmp.lt.s32.totalorder %s15, 2
      // Predicated region
      $region29: #{bottleneck_forward.2} parent=5 // pred_check
        %p189 = pneg %p188
      $region30: #{bottleneck_forward.2} parent=5 // pred_check_branch
        %191 = sbr.rel (%p189) target = $region32
      $region31: #{bottleneck_forward.2} parent=5 // pred_region
        // Predicated region
        $region33: #{bottleneck_forward.2} parent=31 // pred_check
          %p192 = pneg %p35
        $region34: #{bottleneck_forward.2} parent=31 // pred_check_branch
          %194 = sbr.rel (%p192) target = $region36
        $region35: #{bottleneck_forward.2} parent=31 // pred_region
          %s195 = sand.u32 %s25, 1
          %s196 = scalar_lea.sflag [#allocation4], %s195
          %s197 = sand.u32 %s25, 1
          %s198 = smul.addr %s197, 256
          %s199 = scalar_lea.vmem [#allocation3], %s198
          %s201 = ssub.s32 4096, 4096
          %202 = vsyncadd %s196, %s201
          %s203 = smul.addr %s15, 32
          %s204 = smul.addr %s203, 128
          %s205 = scalar_lea.hbm %s0, %s204
          %s206 = sshll.u32 %s199, 4
          %s207 = int_to_ptr.vmem [resolvable:$true] %s206
          %212 = dma.hbm_to_vmem [thread:$0]  %s205, 4096, %s207, %s196, 128, 128, 8
        $region36: #{bottleneck_forward.2} parent=31 // pred_fallthru
          _
      $region32: #{bottleneck_forward.2} parent=5 // pred_fallthru
        _
      %p213 = scmp.le.s32.totalorder 1, %s15
      %p214 = scmp.lt.s32.totalorder %s15, 3
      %p215 = pnand %p213, %p214
      %p216 = pneg %p215
      // Predicated region
      $region37: #{bottleneck_forward.2} parent=5 // pred_check
        _
      $region38: #{bottleneck_forward.2} parent=5 // pred_check_branch
        %218 = sbr.rel (%p215) target = $region40
      $region39: #{bottleneck_forward.2} parent=5 // pred_region
        %s219 = ssub.s32 %s15, 1
        %s220 = sand.u32 %s28, 1
        %s221 = scalar_lea.sflag [#allocation4], %s220
        %s222 = sand.u32 %s28, 1
        %s223 = smul.addr %s222, 256
        %s224 = scalar_lea.vmem [#allocation3], %s223
        // Predicated region
        $region41: #{bottleneck_forward.2} parent=39 // pred_check
          %p225 = pneg %p41
        $region42: #{bottleneck_forward.2} parent=39 // pred_check_branch
          %227 = sbr.rel (%p225) target = $region44
        $region43: #{bottleneck_forward.2} parent=39 // pred_region
          %228 = dma.done %s221, 4096
        $region44: #{bottleneck_forward.2} parent=39 // pred_fallthru
          _
        // Predicated region
        $region45: #{bottleneck_forward.2} parent=39 // pred_check
          %p229 = pneg %p104
        $region46: #{bottleneck_forward.2} parent=39 // pred_check_branch
          %231 = sbr.rel (%p229) target = $region48
        $region47: #{bottleneck_forward.2} parent=39 // pred_region
          %232 = dma.done [#allocation6], 1152
        $region48: #{bottleneck_forward.2} parent=39 // pred_fallthru
          _
        %s233 = sand.u32 %s28, 1
        %s234 = scalar_lea.sflag [#allocation4], %s233
        %s235 = sand.u32 %s28, 1
        %s236 = smul.addr %s235, 256
        %s237 = scalar_lea.vmem [#allocation3], %s236
        %p238 = pneg %p41
        %p239 = pneg %p38
        %p240 = pneg %p62
        %p241 = pneg %p59
        %p242 = pneg %p83
        %p243 = pneg %p80
        %p244 = pneg %p104
        %p245 = pneg %p101
        %p246 = pneg %p125
        %p247 = pneg %p122
        %p248 = pneg %p151
        %p249 = pneg %p148
        %p250 = scmp.lt.s32.totalorder %s20, 1
        %s251 = scalar_select %p250, %s20, 1
        %s252 = smul.addr %s251, 32
        %s253 = smul.addr %s252, 8
        %s254 = scalar_lea.vmem %s5, %s253
        %p255 = scmp.lt.s32.totalorder %s20, 1
        %s256 = scalar_select %p255, %s20, 1
        %s257 = smul.addr %s256, 32
        %s258 = smul.addr %s257, 8
        %s259 = scalar_lea.vmem %s5, %s258
        %vm260 = vcmask 64512
        %261 = vst.msk [vmem:[#allocation2] sm:$0xff] %vm260, 0.0
        %262 = vst.msk [vmem:[#allocation2 + $0x8] sm:$0xff] %vm260, 0.0
        %vm263 = vcmask 58368
        %264 = vst.msk [vmem:[#allocation2 + $0x10] sm:$0x3] %vm263, 0.0
        %265 = vst.msk [vmem:[#allocation2 + $0x18] sm:$0xff] %vm260, 0.0
        %266 = vst.msk [vmem:[#allocation2 + $0x20] sm:$0xff] %vm260, 0.0
        %267 = vst.msk [vmem:[#allocation2 + $0x28] sm:$0x3] %vm263, 0.0
        %268 = vst.msk [vmem:[#allocation2 + $0x30] sm:$0xff] %vm260, 0.0
        %269 = vst.msk [vmem:[#allocation2 + $0x38] sm:$0xff] %vm260, 0.0
        %270 = vst.msk [vmem:[#allocation2 + $0x40] sm:$0x3] %vm263, 0.0
        %271 = vst.msk [vmem:[#allocation2 + $0x48] sm:$0xff] %vm260, 0.0
        %272 = vst.msk [vmem:[#allocation2 + $0x50] sm:$0xff] %vm260, 0.0
        %273 = vst.msk [vmem:[#allocation2 + $0x58] sm:$0x3] %vm263, 0.0
        %274 = vst.msk [vmem:[#allocation2 + $0x60] sm:$0xff] %vm260, 0.0
        %275 = vst.msk [vmem:[#allocation2 + $0x68] sm:$0xff] %vm260, 0.0
        %276 = vst.msk [vmem:[#allocation2 + $0x70] sm:$0x3] %vm263, 0.0
        %277 = vst.msk [vmem:[#allocation2 + $0x78] sm:$0xff] %vm260, 0.0
        %278 = vst.msk [vmem:[#allocation2 + $0x80] sm:$0xff] %vm260, 0.0
        %279 = vst.msk [vmem:[#allocation2 + $0x88] sm:$0x3] %vm263, 0.0
        %280 = vst.msk [vmem:[#allocation2 + $0x90] sm:$0xff] %vm260, 0.0
        %281 = vst.msk [vmem:[#allocation2 + $0x98] sm:$0xff] %vm260, 0.0
        %282 = vst.msk [vmem:[#allocation2 + $0xa0] sm:$0x3] %vm263, 0.0
        %283 = vst.msk [vmem:[#allocation2 + $0xa8] sm:$0xff] %vm260, 0.0
        %284 = vst.msk [vmem:[#allocation2 + $0xb0] sm:$0xff] %vm260, 0.0
        %285 = vst.msk [vmem:[#allocation2 + $0xb8] sm:$0x3] %vm263, 0.0
        %286 = vst.msk [vmem:[#allocation2 + $0xc0] sm:$0xff] %vm260, 0.0
        %287 = vst.msk [vmem:[#allocation2 + $0xc8] sm:$0xff] %vm260, 0.0
        %288 = vst.msk [vmem:[#allocation2 + $0xd0] sm:$0x3] %vm263, 0.0
        %289 = vst.msk [vmem:[#allocation2 + $0xd8] sm:$0xff] %vm260, 0.0
        %290 = vst.msk [vmem:[#allocation2 + $0xe0] sm:$0xff] %vm260, 0.0
        %291 = vst.msk [vmem:[#allocation2 + $0xe8] sm:$0x3] %vm263, 0.0
        %292 = vst.msk [vmem:[#allocation2 + $0xf0] sm:$0xff] %vm260, 0.0
        %293 = vst.msk [vmem:[#allocation2 + $0xf8] sm:$0xff] %vm260, 0.0
        %294 = vst.msk [vmem:[#allocation2 + $0x100] sm:$0x3] %vm263, 0.0
        %295 = vst.msk [vmem:[#allocation2 + $0x108] sm:$0xff] %vm260, 0.0
        %296 = vst.msk [vmem:[#allocation2 + $0x110] sm:$0xff] %vm260, 0.0
        %297 = vst.msk [vmem:[#allocation2 + $0x118] sm:$0x3] %vm263, 0.0
        %298 = vst.msk [vmem:[#allocation2 + $0x120] sm:$0xff] %vm260, 0.0
        %299 = vst.msk [vmem:[#allocation2 + $0x128] sm:$0xff] %vm260, 0.0
        %300 = vst.msk [vmem:[#allocation2 + $0x130] sm:$0x3] %vm263, 0.0
        %301 = vst.msk [vmem:[#allocation2 + $0x138] sm:$0xff] %vm260, 0.0
        %302 = vst.msk [vmem:[#allocation2 + $0x140] sm:$0xff] %vm260, 0.0
        %303 = vst.msk [vmem:[#allocation2 + $0x148] sm:$0x3] %vm263, 0.0
        %304 = vst.msk [vmem:[#allocation2 + $0x150] sm:$0xff] %vm260, 0.0
        %305 = vst.msk [vmem:[#allocation2 + $0x158] sm:$0xff] %vm260, 0.0
        %306 = vst.msk [vmem:[#allocation2 + $0x160] sm:$0x3] %vm263, 0.0
        %307 = vst.msk [vmem:[#allocation2 + $0x168] sm:$0xff] %vm260, 0.0
        %308 = vst.msk [vmem:[#allocation2 + $0x170] sm:$0xff] %vm260, 0.0
        %309 = vst.msk [vmem:[#allocation2 + $0x178] sm:$0x3] %vm263, 0.0
        %310 = vst.msk [vmem:[#allocation2 + $0x180] sm:$0xff] %vm260, 0.0
        %311 = vst.msk [vmem:[#allocation2 + $0x188] sm:$0xff] %vm260, 0.0
        %312 = vst.msk [vmem:[#allocation2 + $0x190] sm:$0x3] %vm263, 0.0
        %313 = vst.msk [vmem:[#allocation2 + $0x198] sm:$0xff] %vm260, 0.0
        %314 = vst.msk [vmem:[#allocation2 + $0x1a0] sm:$0xff] %vm260, 0.0
        %315 = vst.msk [vmem:[#allocation2 + $0x1a8] sm:$0x3] %vm263, 0.0
        %v316 = vld [vmem:[%s224] sm:$0xff]
        %v317 = vld [vmem:[%s224 + $0x8] sm:$0xff]
        %v318 = vld [vmem:[%s224 + $0x10] sm:$0xff]
        %v319 = vld [vmem:[%s224 + $0x18] sm:$0xff]
        %v320 = vld [vmem:[%s224 + $0x20] sm:$0xff]
        %v321 = vld [vmem:[%s224 + $0x28] sm:$0xff]
        %v322 = vld [vmem:[%s224 + $0x30] sm:$0xff]
        %v323 = vld [vmem:[%s224 + $0x38] sm:$0xff]
        %v324 = vld [vmem:[%s224 + $0x40] sm:$0xff]
        %v325 = vld [vmem:[%s224 + $0x48] sm:$0xff]
        %v326 = vld [vmem:[%s224 + $0x50] sm:$0xff]
        %v327 = vld [vmem:[%s224 + $0x58] sm:$0xff]
        %v328 = vld [vmem:[%s224 + $0x60] sm:$0xff]
        %v329 = vld [vmem:[%s224 + $0x68] sm:$0xff]
        %v330 = vld [vmem:[%s224 + $0x70] sm:$0xff]
        %v331 = vld [vmem:[%s224 + $0x78] sm:$0xff]
        %v332 = vld [vmem:[%s224 + $0x80] sm:$0xff]
        %v333 = vld [vmem:[%s224 + $0x88] sm:$0xff]
        %v334 = vld [vmem:[%s224 + $0x90] sm:$0xff]
        %v335 = vld [vmem:[%s224 + $0x98] sm:$0xff]
        %v336 = vld [vmem:[%s224 + $0xa0] sm:$0xff]
        %v337 = vld [vmem:[%s224 + $0xa8] sm:$0xff]
        %v338 = vld [vmem:[%s224 + $0xb0] sm:$0xff]
        %v339 = vld [vmem:[%s224 + $0xb8] sm:$0xff]
        %v340 = vld [vmem:[%s224 + $0xc0] sm:$0xff]
        %v341 = vld [vmem:[%s224 + $0xc8] sm:$0xff]
        %v342 = vld [vmem:[%s224 + $0xd0] sm:$0xff]
        %v343 = vld [vmem:[%s224 + $0xd8] sm:$0xff]
        %v344 = vld [vmem:[%s224 + $0xe0] sm:$0xff]
        %v345 = vld [vmem:[%s224 + $0xe8] sm:$0xff]
        %v346 = vld [vmem:[%s224 + $0xf0] sm:$0xff]
        %v347 = vld [vmem:[%s224 + $0xf8] sm:$0xff]
        %v348 = vld [vmem:[%s1] sm:$0xff]
        %v349 = vld [vmem:[%s1 + $0x8] sm:$0xff]
        %vm350 = vcmask 130048
        %v352 = vsel %vm350, %v316, 0
        %v355 = vsel %vm350, %v317, 0
        %v358 = vsel %vm350, %v318, 0
        %v361 = vsel %vm350, %v319, 0
        %v364 = vsel %vm350, %v320, 0
        %v367 = vsel %vm350, %v321, 0
        %v370 = vsel %vm350, %v322, 0
        %v373 = vsel %vm350, %v323, 0
        %v376 = vsel %vm350, %v324, 0
        %v379 = vsel %vm350, %v325, 0
        %v382 = vsel %vm350, %v326, 0
        %v385 = vsel %vm350, %v327, 0
        %v388 = vsel %vm350, %v328, 0
        %v391 = vsel %vm350, %v329, 0
        %v394 = vsel %vm350, %v330, 0
        %v397 = vsel %vm350, %v331, 0
        %v400 = vsel %vm350, %v332, 0
        %v403 = vsel %vm350, %v333, 0
        %v406 = vsel %vm350, %v334, 0
        %v409 = vsel %vm350, %v335, 0
        %v412 = vsel %vm350, %v336, 0
        %v415 = vsel %vm350, %v337, 0
        %v418 = vsel %vm350, %v338, 0
        %v421 = vsel %vm350, %v339, 0
        %v424 = vsel %vm350, %v340, 0
        %v427 = vsel %vm350, %v341, 0
        %v430 = vsel %vm350, %v342, 0
        %v433 = vsel %vm350, %v343, 0
        %v436 = vsel %vm350, %v344, 0
        %v439 = vsel %vm350, %v345, 0
        %v442 = vsel %vm350, %v346, 0
        %v445 = vsel %vm350, %v347, 0
        %447 = vmatprep.subr.mxu0 0.0
        %448 = vmatpush1.msra.mxu0 %v348
        %449 = vmatprep.subr.mxu0 0.0
        %450 = vmatpush1.msra.mxu0 %v349
        %451 = vmatprep.subr.mxu0 0.0
        %452 = vmatpush1.msra.mxu0 0.0
        %453 = vmatprep.subr.mxu0 0.0
        %454 = vmatpush1.msra.mxu0 0.0
        %455 = vmatprep.subr.mxu0 0.0
        %456 = vmatpush1.msra.mxu0 0.0
        %457 = vmatprep.subr.mxu0 0.0
        %458 = vmatpush1.msra.mxu0 0.0
        %459 = vmatprep.subr.mxu0 0.0
        %460 = vmatpush1.msra.mxu0 0.0
        %461 = vmatprep.subr.mxu0 0.0
        %462 = vmatpush1.msra.mxu0 0.0
        %463 = vmatprep.subr.mxu0 0.0
        %464 = vmatpush1.msra.mxu0 0.0
        %465 = vmatprep.subr.mxu0 0.0
        %466 = vmatpush1.msra.mxu0 0.0
        %467 = vmatprep.subr.mxu0 0.0
        %468 = vmatpush1.msra.mxu0 0.0
        %469 = vmatprep.subr.mxu0 0.0
        %470 = vmatpush1.msra.mxu0 0.0
        %471 = vmatprep.subr.mxu0 0.0
        %472 = vmatpush1.msra.mxu0 0.0
        %473 = vmatprep.subr.mxu0 0.0
        %474 = vmatpush1.msra.mxu0 0.0
        %475 = vmatprep.subr.mxu0 0.0
        %476 = vmatpush1.msra.mxu0 0.0
        %477 = vmatprep.subr.mxu0 0.0
        %478 = vmatpush1.msra.mxu0 0.0
        %479 = vmatprep.subr.mxu0 0.0
        %480 = vmatpush1.msra.mxu0 0.0
        %481 = vmatprep.subr.mxu0 0.0
        %482 = vmatpush1.msra.mxu0 0.0
        %483 = vmatprep.subr.mxu0 0.0
        %484 = vmatpush1.msra.mxu0 0.0
        %485 = vmatprep.subr.mxu0 0.0
        %486 = vmatpush1.msra.mxu0 0.0
        %487 = vmatprep.subr.mxu0 0.0
        %488 = vmatpush1.msra.mxu0 0.0
        %489 = vmatprep.subr.mxu0 0.0
        %490 = vmatpush1.msra.mxu0 0.0
        %491 = vmatprep.subr.mxu0 0.0
        %492 = vmatpush1.msra.mxu0 0.0
        %493 = vmatprep.subr.mxu0 0.0
        %494 = vmatpush1.msra.mxu0 0.0
        %495 = vmatprep.subr.mxu0 0.0
        %496 = vmatpush1.msra.mxu0 0.0
        %497 = vmatprep.subr.mxu0 0.0
        %498 = vmatpush1.msra.mxu0 0.0
        %499 = vmatprep.subr.mxu0 0.0
        %500 = vmatpush1.msra.mxu0 0.0
        %501 = vmatprep.subr.mxu0 0.0
        %502 = vmatpush1.msra.mxu0 0.0
        %503 = vmatprep.subr.mxu0 0.0
        %504 = vmatpush1.msra.mxu0 0.0
        %505 = vmatprep.subr.mxu0 0.0
        %506 = vmatpush1.msra.mxu0 0.0
        %507 = vmatprep.subr.mxu0 0.0
        %508 = vmatpush1.msra.mxu0 0.0
        %509 = vmatprep.subr.mxu0 0.0
        %510 = vmatpush1.msra.mxu0 0.0
        %511 = vmatprep.mubr.f32.mxu0 0.0
        %512 = vmatmul.mubr.f32.gmra.mrb[0].mxu0 %v352
        %v513 = vpop.f32.mrb[0].mxu0
        %v514 = vadd.f32 0.0, %v513
        %v515 = vpop.f32.mrb[0].mxu0
        %516 = vmatprep.mubr.f32.mxu0 0.0
        %517 = vmatmul.mubr.f32.gmra.mrb[0].mxu0 %v355
        %v518 = vpop.f32.mrb[0].mxu0
        %v519 = vadd.f32 0.0, %v518
        %v520 = vpop.f32.mrb[0].mxu0
        %521 = vmatprep.mubr.f32.mxu0 0.0
        %522 = vmatmul.mubr.f32.gmra.mrb[0].mxu0 %v358
        %v523 = vpop.f32.mrb[0].mxu0
        %v524 = vadd.f32 0.0, %v523
        %v525 = vpop.f32.mrb[0].mxu0
        %526 = vmatprep.mubr.f32.mxu0 0.0
        %527 = vmatmul.mubr.f32.gmra.mrb[0].mxu0 %v361
        %v528 = vpop.f32.mrb[0].mxu0
        %v529 = vadd.f32 0.0, %v528
        %v530 = vpop.f32.mrb[0].mxu0
        %531 = vmatprep.mubr.f32.mxu0 0.0
        %532 = vmatmul.mubr.f32.gmra.mrb[0].mxu0 %v364
        %v533 = vpop.f32.mrb[0].mxu0
        %v534 = vadd.f32 0.0, %v533
        %v535 = vpop.f32.mrb[0].mxu0
        %536 = vmatprep.mubr.f32.mxu0 0.0
        %537 = vmatmul.mubr.f32.gmra.mrb[0].mxu0 %v367
        %v538 = vpop.f32.mrb[0].mxu0
        %v539 = vadd.f32 0.0, %v538
        %v540 = vpop.f32.mrb[0].mxu0
        %541 = vmatprep.mubr.f32.mxu0 0.0
        %542 = vmatmul.mubr.f32.gmra.mrb[0].mxu0 %v370
        %v543 = vpop.f32.mrb[0].mxu0
        %v544 = vadd.f32 0.0, %v543
        %v545 = vpop.f32.mrb[0].mxu0
        %546 = vmatprep.mubr.f32.mxu0 0.0
        %547 = vmatmul.mubr.f32.gmra.mrb[0].mxu0 %v373
        %v548 = vpop.f32.mrb[0].mxu0
        %v549 = vadd.f32 0.0, %v548
        %v550 = vpop.f32.mrb[0].mxu0
        %551 = vmatprep.mubr.f32.mxu0 0.0
        %552 = vmatmul.mubr.f32.gmra.mrb[0].mxu0 %v376
        %v553 = vpop.f32.mrb[0].mxu0
        %v554 = vadd.f32 0.0, %v553
        %v555 = vpop.f32.mrb[0].mxu0
        %556 = vmatprep.mubr.f32.mxu0 0.0
        %557 = vmatmul.mubr.f32.gmra.mrb[0].mxu0 %v379
        %v558 = vpop.f32.mrb[0].mxu0
        %v559 = vadd.f32 0.0, %v558
        %v560 = vpop.f32.mrb[0].mxu0
        %561 = vmatprep.mubr.f32.mxu0 0.0
        %562 = vmatmul.mubr.f32.gmra.mrb[0].mxu0 %v382
        %v563 = vpop.f32.mrb[0].mxu0
        %v564 = vadd.f32 0.0, %v563
        %v565 = vpop.f32.mrb[0].mxu0
        %566 = vmatprep.mubr.f32.mxu0 0.0
        %567 = vmatmul.mubr.f32.gmra.mrb[0].mxu0 %v385
        %v568 = vpop.f32.mrb[0].mxu0
        %v569 = vadd.f32 0.0, %v568
        %v570 = vpop.f32.mrb[0].mxu0
        %571 = vmatprep.mubr.f32.mxu0 0.0
        %572 = vmatmul.mubr.f32.gmra.mrb[0].mxu0 %v388
        %v573 = vpop.f32.mrb[0].mxu0
        %v574 = vadd.f32 0.0, %v573
        %v575 = vpop.f32.mrb[0].mxu0
        %576 = vmatprep.mubr.f32.mxu0 0.0
        %577 = vmatmul.mubr.f32.gmra.mrb[0].mxu0 %v391
        %v578 = vpop.f32.mrb[0].mxu0
        %v579 = vadd.f32 0.0, %v578
        %v580 = vpop.f32.mrb[0].mxu0
        %581 = vmatprep.mubr.f32.mxu0 0.0
        %582 = vmatmul.mubr.f32.gmra.mrb[0].mxu0 %v394
        %v583 = vpop.f32.mrb[0].mxu0
        %v584 = vadd.f32 0.0, %v583
        %v585 = vpop.f32.mrb[0].mxu0
        %586 = vmatprep.mubr.f32.mxu0 0.0
        %587 = vmatmul.mubr.f32.gmra.mrb[0].mxu0 %v397
        %v588 = vpop.f32.mrb[0].mxu0
        %v589 = vadd.f32 0.0, %v588
        %v590 = vpop.f32.mrb[0].mxu0
        %591 = vmatprep.mubr.f32.mxu0 0.0
        %592 = vmatmul.mubr.f32.gmra.mrb[0].mxu0 %v400
        %v593 = vpop.f32.mrb[0].mxu0
        %v594 = vadd.f32 0.0, %v593
        %v595 = vpop.f32.mrb[0].mxu0
        %596 = vmatprep.mubr.f32.mxu0 0.0
        %597 = vmatmul.mubr.f32.gmra.mrb[0].mxu0 %v403
        %v598 = vpop.f32.mrb[0].mxu0
        %v599 = vadd.f32 0.0, %v598
        %v600 = vpop.f32.mrb[0].mxu0
        %601 = vmatprep.mubr.f32.mxu0 0.0
        %602 = vmatmul.mubr.f32.gmra.mrb[0].mxu0 %v406
        %v603 = vpop.f32.mrb[0].mxu0
        %v604 = vadd.f32 0.0, %v603
        %v605 = vpop.f32.mrb[0].mxu0
        %606 = vmatprep.mubr.f32.mxu0 0.0
        %607 = vmatmul.mubr.f32.gmra.mrb[0].mxu0 %v409
        %v608 = vpop.f32.mrb[0].mxu0
        %v609 = vadd.f32 0.0, %v608
        %v610 = vpop.f32.mrb[0].mxu0
        %611 = vmatprep.mubr.f32.mxu0 0.0
        %612 = vmatmul.mubr.f32.gmra.mrb[0].mxu0 %v412
        %v613 = vpop.f32.mrb[0].mxu0
        %v614 = vadd.f32 0.0, %v613
        %v615 = vpop.f32.mrb[0].mxu0
        %616 = vmatprep.mubr.f32.mxu0 0.0
        %617 = vmatmul.mubr.f32.gmra.mrb[0].mxu0 %v415
        %v618 = vpop.f32.mrb[0].mxu0
        %v619 = vadd.f32 0.0, %v618
        %v620 = vpop.f32.mrb[0].mxu0
        %621 = vmatprep.mubr.f32.mxu0 0.0
        %622 = vmatmul.mubr.f32.gmra.mrb[0].mxu0 %v418
        %v623 = vpop.f32.mrb[0].mxu0
        %v624 = vadd.f32 0.0, %v623
        %v625 = vpop.f32.mrb[0].mxu0
        %626 = vmatprep.mubr.f32.mxu0 0.0
        %627 = vmatmul.mubr.f32.gmra.mrb[0].mxu0 %v421
        %v628 = vpop.f32.mrb[0].mxu0
        %v629 = vadd.f32 0.0, %v628
        %v630 = vpop.f32.mrb[0].mxu0
        %631 = vmatprep.mubr.f32.mxu0 0.0
        %632 = vmatmul.mubr.f32.gmra.mrb[0].mxu0 %v424
        %v633 = vpop.f32.mrb[0].mxu0
        %v634 = vadd.f32 0.0, %v633
        %v635 = vpop.f32.mrb[0].mxu0
        %636 = vmatprep.mubr.f32.mxu0 0.0
        %637 = vmatmul.mubr.f32.gmra.mrb[0].mxu0 %v427
        %v638 = vpop.f32.mrb[0].mxu0
        %v639 = vadd.f32 0.0, %v638
        %v640 = vpop.f32.mrb[0].mxu0
        %641 = vmatprep.mubr.f32.mxu0 0.0
        %642 = vmatmul.mubr.f32.gmra.mrb[0].mxu0 %v430
        %v643 = vpop.f32.mrb[0].mxu0
        %v644 = vadd.f32 0.0, %v643
        %v645 = vpop.f32.mrb[0].mxu0
        %646 = vmatprep.mubr.f32.mxu0 0.0
        %647 = vmatmul.mubr.f32.gmra.mrb[0].mxu0 %v433
        %v648 = vpop.f32.mrb[0].mxu0
        %v649 = vadd.f32 0.0, %v648
        %v650 = vpop.f32.mrb[0].mxu0
        %651 = vmatprep.mubr.f32.mxu0 0.0
        %652 = vmatmul.mubr.f32.gmra.mrb[0].mxu0 %v436
        %v653 = vpop.f32.mrb[0].mxu0
        %v654 = vadd.f32 0.0, %v653
        %v655 = vpop.f32.mrb[0].mxu0
        %656 = vmatprep.mubr.f32.mxu0 0.0
        %657 = vmatmul.mubr.f32.gmra.mrb[0].mxu0 %v439
        %v658 = vpop.f32.mrb[0].mxu0
        %v659 = vadd.f32 0.0, %v658
        %v660 = vpop.f32.mrb[0].mxu0
        %661 = vmatprep.mubr.f32.mxu0 0.0
        %662 = vmatmul.mubr.f32.gmra.mrb[0].mxu0 %v442
        %v663 = vpop.f32.mrb[0].mxu0
        %v664 = vadd.f32 0.0, %v663
        %v665 = vpop.f32.mrb[0].mxu0
        %666 = vmatprep.mubr.f32.mxu0 0.0
        %667 = vmatmul.mubr.f32.gmra.mrb[0].mxu0 %v445
        %v668 = vpop.f32.mrb[0].mxu0
        %v669 = vadd.f32 0.0, %v668
        %v670 = vpop.f32.mrb[0].mxu0
        %671 = vdwg.mxu0
        %v672 = vld [vmem:[%s2] sm:$0x1]
        %v673 = vlaneseq
        %v674 = vshrl.u32 %v673, 7
        %v675 = vsub.s32 0, %v674
        %v676 = vrot.slane %v672, %v675
        %v677 = vmul.f32 %v514, %v676
        %v678 = vmul.f32 %v519, %v676
        %v679 = vmul.f32 %v524, %v676
        %v680 = vmul.f32 %v529, %v676
        %v681 = vmul.f32 %v534, %v676
        %v682 = vmul.f32 %v539, %v676
        %v683 = vmul.f32 %v544, %v676
        %v684 = vmul.f32 %v549, %v676
        %v685 = vmul.f32 %v554, %v676
        %v686 = vmul.f32 %v559, %v676
        %v687 = vmul.f32 %v564, %v676
        %v688 = vmul.f32 %v569, %v676
        %v689 = vmul.f32 %v574, %v676
        %v690 = vmul.f32 %v579, %v676
        %v691 = vmul.f32 %v584, %v676
        %v692 = vmul.f32 %v589, %v676
        %v693 = vmul.f32 %v594, %v676
        %v694 = vmul.f32 %v599, %v676
        %v695 = vmul.f32 %v604, %v676
        %v696 = vmul.f32 %v609, %v676
        %v697 = vmul.f32 %v614, %v676
        %v698 = vmul.f32 %v619, %v676
        %v699 = vmul.f32 %v624, %v676
        %v700 = vmul.f32 %v629, %v676
        %v701 = vmul.f32 %v634, %v676
        %v702 = vmul.f32 %v639, %v676
        %v703 = vmul.f32 %v644, %v676
        %v704 = vmul.f32 %v649, %v676
        %v705 = vmul.f32 %v654, %v676
        %v706 = vmul.f32 %v659, %v676
        %v707 = vmul.f32 %v664, %v676
        %v708 = vmul.f32 %v669, %v676
        %v709 = vld [vmem:[%s2 + $0x1] sm:$0x1]
        %v710 = vlaneseq
        %v711 = vshrl.u32 %v710, 7
        %v712 = vsub.s32 0, %v711
        %v713 = vrot.slane %v709, %v712
        %v714 = vadd.f32 %v677, %v713
        %v715 = vadd.f32 %v678, %v713
        %v716 = vadd.f32 %v679, %v713
        %v717 = vadd.f32 %v680, %v713
        %v718 = vadd.f32 %v681, %v713
        %v719 = vadd.f32 %v682, %v713
        %v720 = vadd.f32 %v683, %v713
        %v721 = vadd.f32 %v684, %v713
        %v722 = vadd.f32 %v685, %v713
        %v723 = vadd.f32 %v686, %v713
        %v724 = vadd.f32 %v687, %v713
        %v725 = vadd.f32 %v688, %v713
        %v726 = vadd.f32 %v689, %v713
        %v727 = vadd.f32 %v690, %v713
        %v728 = vadd.f32 %v691, %v713
        %v729 = vadd.f32 %v692, %v713
        %v730 = vadd.f32 %v693, %v713
        %v731 = vadd.f32 %v694, %v713
        %v732 = vadd.f32 %v695, %v713
        %v733 = vadd.f32 %v696, %v713
        %v734 = vadd.f32 %v697, %v713
        %v735 = vadd.f32 %v698, %v713
        %v736 = vadd.f32 %v699, %v713
        %v737 = vadd.f32 %v700, %v713
        %v738 = vadd.f32 %v701, %v713
        %v739 = vadd.f32 %v702, %v713
        %v740 = vadd.f32 %v703, %v713
        %v741 = vadd.f32 %v704, %v713
        %v742 = vadd.f32 %v705, %v713
        %v743 = vadd.f32 %v706, %v713
        %v744 = vadd.f32 %v707, %v713
        %v745 = vadd.f32 %v708, %v713
        %v746 = vmax.f32 %v714, 0.0
        %v747 = vmax.f32 %v715, 0.0
        %v748 = vmax.f32 %v716, 0.0
        %v749 = vmax.f32 %v717, 0.0
        %v750 = vmax.f32 %v718, 0.0
        %v751 = vmax.f32 %v719, 0.0
        %v752 = vmax.f32 %v720, 0.0
        %v753 = vmax.f32 %v721, 0.0
        %v754 = vmax.f32 %v722, 0.0
        %v755 = vmax.f32 %v723, 0.0
        %v756 = vmax.f32 %v724, 0.0
        %v757 = vmax.f32 %v725, 0.0
        %v758 = vmax.f32 %v726, 0.0
        %v759 = vmax.f32 %v727, 0.0
        %v760 = vmax.f32 %v728, 0.0
        %v761 = vmax.f32 %v729, 0.0
        %v762 = vmax.f32 %v730, 0.0
        %v763 = vmax.f32 %v731, 0.0
        %v764 = vmax.f32 %v732, 0.0
        %v765 = vmax.f32 %v733, 0.0
        %v766 = vmax.f32 %v734, 0.0
        %v767 = vmax.f32 %v735, 0.0
        %v768 = vmax.f32 %v736, 0.0
        %v769 = vmax.f32 %v737, 0.0
        %v770 = vmax.f32 %v738, 0.0
        %v771 = vmax.f32 %v739, 0.0
        %v772 = vmax.f32 %v740, 0.0
        %v773 = vmax.f32 %v741, 0.0
        %v774 = vmax.f32 %v742, 0.0
        %v775 = vmax.f32 %v743, 0.0
        %v776 = vmax.f32 %v744, 0.0
        %v777 = vmax.f32 %v745, 0.0
        %s778 = scalar_lea.vmem [#allocation2], 24
        %779 = vst.msk [vmem:[%s778 + $0x1] sm:$0xff] %vm260, %v746
        %780 = vst.msk [vmem:[%s778 + $0x9] sm:$0xff] %vm260, %v747
        %781 = vst.msk [vmem:[%s778 + $0x19] sm:$0xff] %vm260, %v748
        %782 = vst.msk [vmem:[%s778 + $0x21] sm:$0xff] %vm260, %v749
        %783 = vst.msk [vmem:[%s778 + $0x31] sm:$0xff] %vm260, %v750
        %784 = vst.msk [vmem:[%s778 + $0x39] sm:$0xff] %vm260, %v751
        %785 = vst.msk [vmem:[%s778 + $0x49] sm:$0xff] %vm260, %v752
        %786 = vst.msk [vmem:[%s778 + $0x51] sm:$0xff] %vm260, %v753
        %787 = vst.msk [vmem:[%s778 + $0x61] sm:$0xff] %vm260, %v754
        %788 = vst.msk [vmem:[%s778 + $0x69] sm:$0xff] %vm260, %v755
        %789 = vst.msk [vmem:[%s778 + $0x79] sm:$0xff] %vm260, %v756
        %790 = vst.msk [vmem:[%s778 + $0x81] sm:$0xff] %vm260, %v757
        %791 = vst.msk [vmem:[%s778 + $0x91] sm:$0xff] %vm260, %v758
        %792 = vst.msk [vmem:[%s778 + $0x99] sm:$0xff] %vm260, %v759
        %793 = vst.msk [vmem:[%s778 + $0xa9] sm:$0xff] %vm260, %v760
        %794 = vst.msk [vmem:[%s778 + $0xb1] sm:$0xff] %vm260, %v761
        %795 = vst.msk [vmem:[%s778 + $0xc1] sm:$0xff] %vm260, %v762
        %796 = vst.msk [vmem:[%s778 + $0xc9] sm:$0xff] %vm260, %v763
        %797 = vst.msk [vmem:[%s778 + $0xd9] sm:$0xff] %vm260, %v764
        %798 = vst.msk [vmem:[%s778 + $0xe1] sm:$0xff] %vm260, %v765
        %799 = vst.msk [vmem:[%s778 + $0xf1] sm:$0xff] %vm260, %v766
        %800 = vst.msk [vmem:[%s778 + $0xf9] sm:$0xff] %vm260, %v767
        %801 = vst.msk [vmem:[%s778 + $0x109] sm:$0xff] %vm260, %v768
        %802 = vst.msk [vmem:[%s778 + $0x111] sm:$0xff] %vm260, %v769
        %803 = vst.msk [vmem:[%s778 + $0x121] sm:$0xff] %vm260, %v770
        %804 = vst.msk [vmem:[%s778 + $0x129] sm:$0xff] %vm260, %v771
        %805 = vst.msk [vmem:[%s778 + $0x139] sm:$0xff] %vm260, %v772
        %806 = vst.msk [vmem:[%s778 + $0x141] sm:$0xff] %vm260, %v773
        %807 = vst.msk [vmem:[%s778 + $0x151] sm:$0xff] %vm260, %v774
        %808 = vst.msk [vmem:[%s778 + $0x159] sm:$0xff] %vm260, %v775
        %809 = vst.msk [vmem:[%s778 + $0x169] sm:$0xff] %vm260, %v776
        %810 = vst.msk [vmem:[%s778 + $0x171] sm:$0xff] %vm260, %v777
        %v811 = vld [vmem:[#allocation5] sm:$0xff]
        %v812 = vld [vmem:[#allocation5 + $0x8] sm:$0xff]
        %v813 = vld [vmem:[#allocation5 + $0x10] sm:$0xff]
        %v814 = vld [vmem:[#allocation5 + $0x18] sm:$0xff]
        %v815 = vld [vmem:[#allocation5 + $0x20] sm:$0xff]
        %v816 = vld [vmem:[#allocation5 + $0x28] sm:$0xff]
        %v817 = vld [vmem:[#allocation5 + $0x30] sm:$0xff]
        %v818 = vld [vmem:[#allocation5 + $0x38] sm:$0xff]
        %v819 = vld [vmem:[#allocation5 + $0x40] sm:$0xff]
        %v820 = vld [vmem:[#allocation2] sm:$0xff]
        %v821 = vld [vmem:[#allocation2 + $0x8] sm:$0xff]
        %v822 = vld [vmem:[#allocation2 + $0x18] sm:$0xff]
        %v823 = vld [vmem:[#allocation2 + $0x20] sm:$0xff]
        %v824 = vld [vmem:[#allocation2 + $0x30] sm:$0xff]
        %v825 = vld [vmem:[#allocation2 + $0x38] sm:$0xff]
        %v826 = vld [vmem:[#allocation2 + $0x48] sm:$0xff]
        %v827 = vld [vmem:[#allocation2 + $0x50] sm:$0xff]
        %v828 = vld [vmem:[#allocation2 + $0x60] sm:$0xff]
        %v829 = vld [vmem:[#allocation2 + $0x68] sm:$0xff]
        %v830 = vld [vmem:[#allocation2 + $0x78] sm:$0xff]
        %v831 = vld [vmem:[#allocation2 + $0x80] sm:$0xff]
        %v832 = vld [vmem:[#allocation2 + $0x90] sm:$0xff]
        %v833 = vld [vmem:[#allocation2 + $0x98] sm:$0xff]
        %v834 = vld [vmem:[#allocation2 + $0xa8] sm:$0xff]
        %v835 = vld [vmem:[#allocation2 + $0xb0] sm:$0xff]
        %v836 = vld [vmem:[#allocation2 + $0x1] sm:$0xff]
        %v837 = vld [vmem:[#allocation2 + $0x9] sm:$0xff]
        %v838 = vld [vmem:[#allocation2 + $0x19] sm:$0xff]
        %v839 = vld [vmem:[#allocation2 + $0x21] sm:$0xff]
        %v840 = vld [vmem:[#allocation2 + $0x31] sm:$0xff]
        %v841 = vld [vmem:[#allocation2 + $0x39] sm:$0xff]
        %v842 = vld [vmem:[#allocation2 + $0x49] sm:$0xff]
        %v843 = vld [vmem:[#allocation2 + $0x51] sm:$0xff]
        %v844 = vld [vmem:[#allocation2 + $0x61] sm:$0xff]
        %v845 = vld [vmem:[#allocation2 + $0x69] sm:$0xff]
        %v846 = vld [vmem:[#allocation2 + $0x79] sm:$0xff]
        %v847 = vld [vmem:[#allocation2 + $0x81] sm:$0xff]
        %v848 = vld [vmem:[#allocation2 + $0x91] sm:$0xff]
        %v849 = vld [vmem:[#allocation2 + $0x99] sm:$0xff]
        %v850 = vld [vmem:[#allocation2 + $0xa9] sm:$0xff]
        %v851 = vld [vmem:[#allocation2 + $0xb1] sm:$0xff]
        %v853 = vsel %vm260, %v836, 0
        %v856 = vsel %vm260, %v837, 0
        %v859 = vsel %vm260, %v838, 0
        %v862 = vsel %vm260, %v839, 0
        %v865 = vsel %vm260, %v840, 0
        %v868 = vsel %vm260, %v841, 0
        %v871 = vsel %vm260, %v842, 0
        %v874 = vsel %vm260, %v843, 0
        %v877 = vsel %vm260, %v844, 0
        %v880 = vsel %vm260, %v845, 0
        %v883 = vsel %vm260, %v846, 0
        %v886 = vsel %vm260, %v847, 0
        %v889 = vsel %vm260, %v848, 0
        %v892 = vsel %vm260, %v849, 0
        %v895 = vsel %vm260, %v850, 0
        %v898 = vsel %vm260, %v851, 0
        %900 = vmatprep.subr.mxu0 0.0
        %901 = vmatpush1.msra.mxu0 %v812
        %902 = vmatprep.subr.mxu0 0.0
        %903 = vmatpush1.msra.mxu0 0.0
        %904 = vmatprep.subr.mxu0 0.0
        %905 = vmatpush1.msra.mxu0 0.0
        %906 = vmatprep.subr.mxu0 0.0
        %907 = vmatpush1.msra.mxu0 0.0
        %908 = vmatprep.subr.mxu0 0.0
        %909 = vmatpush1.msra.mxu0 0.0
        %910 = vmatprep.subr.mxu0 0.0
        %911 = vmatpush1.msra.mxu0 0.0
        %912 = vmatprep.subr.mxu0 0.0
        %913 = vmatpush1.msra.mxu0 0.0
        %914 = vmatprep.subr.mxu0 0.0
        %915 = vmatpush1.msra.mxu0 0.0
        %916 = vmatprep.subr.mxu0 0.0
        %917 = vmatpush1.msra.mxu0 0.0
        %918 = vmatprep.subr.mxu0 0.0
        %919 = vmatpush1.msra.mxu0 0.0
        %920 = vmatprep.subr.mxu0 0.0
        %921 = vmatpush1.msra.mxu0 0.0
        %922 = vmatprep.subr.mxu0 0.0
        %923 = vmatpush1.msra.mxu0 0.0
        %924 = vmatprep.subr.mxu0 0.0
        %925 = vmatpush1.msra.mxu0 0.0
        %926 = vmatprep.subr.mxu0 0.0
        %927 = vmatpush1.msra.mxu0 0.0
        %928 = vmatprep.subr.mxu0 0.0
        %929 = vmatpush1.msra.mxu0 0.0
        %930 = vmatprep.subr.mxu0 0.0
        %931 = vmatpush1.msra.mxu0 0.0
        %932 = vmatprep.subr.mxu0 0.0
        %933 = vmatpush1.msra.mxu0 0.0
        %934 = vmatprep.subr.mxu0 0.0
        %935 = vmatpush1.msra.mxu0 0.0
        %936 = vmatprep.subr.mxu0 0.0
        %937 = vmatpush1.msra.mxu0 0.0
        %938 = vmatprep.subr.mxu0 0.0
        %939 = vmatpush1.msra.mxu0 0.0
        %940 = vmatprep.subr.mxu0 0.0
        %941 = vmatpush1.msra.mxu0 0.0
        %942 = vmatprep.subr.mxu0 0.0
        %943 = vmatpush1.msra.mxu0 0.0
        %944 = vmatprep.subr.mxu0 0.0
        %945 = vmatpush1.msra.mxu0 0.0
        %946 = vmatprep.subr.mxu0 0.0
        %947 = vmatpush1.msra.mxu0 0.0
        %948 = vmatprep.subr.mxu0 0.0
        %949 = vmatpush1.msra.mxu0 0.0
        %950 = vmatprep.subr.mxu0 0.0
        %951 = vmatpush1.msra.mxu0 0.0
        %952 = vmatprep.subr.mxu0 0.0
        %953 = vmatpush1.msra.mxu0 0.0
        %954 = vmatprep.subr.mxu0 0.0
        %955 = vmatpush1.msra.mxu0 0.0
        %956 = vmatprep.subr.mxu0 0.0
        %957 = vmatpush1.msra.mxu0 0.0
        %958 = vmatprep.subr.mxu0 0.0
        %959 = vmatpush1.msra.mxu0 0.0
        %960 = vmatprep.subr.mxu0 0.0
        %961 = vmatpush1.msra.mxu0 0.0
        %962 = vmatprep.subr.mxu0 0.0
        %963 = vmatpush1.msra.mxu0 0.0
        %964 = vmatprep.mubr.f32.mxu0 0.0
        %965 = vmatmul.mubr.f32.gmra.mrb[0].mxu0 %v853
        %v966 = vpop.f32.mrb[0].mxu0
        %v967 = vadd.f32 0.0, %v966
        %v968 = vpop.f32.mrb[0].mxu0
        %969 = vmatprep.mubr.f32.mxu0 0.0
        %970 = vmatmul.mubr.f32.gmra.mrb[0].mxu0 %v856
        %v971 = vpop.f32.mrb[0].mxu0
        %v972 = vadd.f32 0.0, %v971
        %v973 = vpop.f32.mrb[0].mxu0
        %974 = vmatprep.mubr.f32.mxu0 0.0
        %975 = vmatmul.mubr.f32.gmra.mrb[0].mxu0 %v859
        %v976 = vpop.f32.mrb[0].mxu0
        %v977 = vadd.f32 0.0, %v976
        %v978 = vpop.f32.mrb[0].mxu0
        %979 = vmatprep.mubr.f32.mxu0 0.0
        %980 = vmatmul.mubr.f32.gmra.mrb[0].mxu0 %v862
        %v981 = vpop.f32.mrb[0].mxu0
        %v982 = vadd.f32 0.0, %v981
        %v983 = vpop.f32.mrb[0].mxu0
        %984 = vmatprep.mubr.f32.mxu0 0.0
        %985 = vmatmul.mubr.f32.gmra.mrb[0].mxu0 %v865
        %v986 = vpop.f32.mrb[0].mxu0
        %v987 = vadd.f32 0.0, %v986
        %v988 = vpop.f32.mrb[0].mxu0
        %989 = vmatprep.mubr.f32.mxu0 0.0
        %990 = vmatmul.mubr.f32.gmra.mrb[0].mxu0 %v868
        %v991 = vpop.f32.mrb[0].mxu0
        %v992 = vadd.f32 0.0, %v991
        %v993 = vpop.f32.mrb[0].mxu0
        %994 = vmatprep.mubr.f32.mxu0 0.0
        %995 = vmatmul.mubr.f32.gmra.mrb[0].mxu0 %v871
        %v996 = vpop.f32.mrb[0].mxu0
        %v997 = vadd.f32 0.0, %v996
        %v998 = vpop.f32.mrb[0].mxu0
        %999 = vmatprep.mubr.f32.mxu0 0.0
        %1000 = vmatmul.mubr.f32.gmra.mrb[0].mxu0 %v874
        %v1001 = vpop.f32.mrb[0].mxu0
        %v1002 = vadd.f32 0.0, %v1001
        %v1003 = vpop.f32.mrb[0].mxu0
        %1004 = vmatprep.mubr.f32.mxu0 0.0
        %1005 = vmatmul.mubr.f32.gmra.mrb[0].mxu0 %v877
        %v1006 = vpop.f32.mrb[0].mxu0
        %v1007 = vadd.f32 0.0, %v1006
        %v1008 = vpop.f32.mrb[0].mxu0
        %1009 = vmatprep.mubr.f32.mxu0 0.0
        %1010 = vmatmul.mubr.f32.gmra.mrb[0].mxu0 %v880
        %v1011 = vpop.f32.mrb[0].mxu0
        %v1012 = vadd.f32 0.0, %v1011
        %v1013 = vpop.f32.mrb[0].mxu0
        %1014 = vmatprep.mubr.f32.mxu0 0.0
        %1015 = vmatmul.mubr.f32.gmra.mrb[0].mxu0 %v883
        %v1016 = vpop.f32.mrb[0].mxu0
        %v1017 = vadd.f32 0.0, %v1016
        %v1018 = vpop.f32.mrb[0].mxu0
        %1019 = vmatprep.mubr.f32.mxu0 0.0
        %1020 = vmatmul.mubr.f32.gmra.mrb[0].mxu0 %v886
        %v1021 = vpop.f32.mrb[0].mxu0
        %v1022 = vadd.f32 0.0, %v1021
        %v1023 = vpop.f32.mrb[0].mxu0
        %1024 = vmatprep.mubr.f32.mxu0 0.0
        %1025 = vmatmul.mubr.f32.gmra.mrb[0].mxu0 %v889
        %v1026 = vpop.f32.mrb[0].mxu0
        %v1027 = vadd.f32 0.0, %v1026
        %v1028 = vpop.f32.mrb[0].mxu0
        %1029 = vmatprep.mubr.f32.mxu0 0.0
        %1030 = vmatmul.mubr.f32.gmra.mrb[0].mxu0 %v892
        %v1031 = vpop.f32.mrb[0].mxu0
        %v1032 = vadd.f32 0.0, %v1031
        %v1033 = vpop.f32.mrb[0].mxu0
        %1034 = vmatprep.mubr.f32.mxu0 0.0
        %1035 = vmatmul.mubr.f32.gmra.mrb[0].mxu0 %v895
        %v1036 = vpop.f32.mrb[0].mxu0
        %v1037 = vadd.f32 0.0, %v1036
        %v1038 = vpop.f32.mrb[0].mxu0
        %1039 = vmatprep.mubr.f32.mxu0 0.0
        %1040 = vmatmul.mubr.f32.gmra.mrb[0].mxu0 %v898
        %v1041 = vpop.f32.mrb[0].mxu0
        %v1042 = vadd.f32 0.0, %v1041
        %v1043 = vpop.f32.mrb[0].mxu0
        %1044 = vdwg.mxu0
        %v1046 = vsel %vm260, %v820, 0
        %v1049 = vsel %vm260, %v821, 0
        %v1052 = vsel %vm260, %v822, 0
        %v1055 = vsel %vm260, %v823, 0
        %v1058 = vsel %vm260, %v824, 0
        %v1061 = vsel %vm260, %v825, 0
        %v1064 = vsel %vm260, %v826, 0
        %v1067 = vsel %vm260, %v827, 0
        %v1070 = vsel %vm260, %v828, 0
        %v1073 = vsel %vm260, %v829, 0
        %v1076 = vsel %vm260, %v830, 0
        %v1079 = vsel %vm260, %v831, 0
        %v1082 = vsel %vm260, %v832, 0
        %v1085 = vsel %vm260, %v833, 0
        %v1088 = vsel %vm260, %v834, 0
        %v1091 = vsel %vm260, %v835, 0
        %1093 = vmatprep.subr.mxu0 0.0
        %1094 = vmatpush1.msra.mxu0 %v811
        %1095 = vmatprep.subr.mxu0 0.0
        %1096 = vmatpush1.msra.mxu0 0.0
        %1097 = vmatprep.subr.mxu0 0.0
        %1098 = vmatpush1.msra.mxu0 0.0
        %1099 = vmatprep.subr.mxu0 0.0
        %1100 = vmatpush1.msra.mxu0 0.0
        %1101 = vmatprep.subr.mxu0 0.0
        %1102 = vmatpush1.msra.mxu0 0.0
        %1103 = vmatprep.subr.mxu0 0.0
        %1104 = vmatpush1.msra.mxu0 0.0
        %1105 = vmatprep.subr.mxu0 0.0
        %1106 = vmatpush1.msra.mxu0 0.0
        %1107 = vmatprep.subr.mxu0 0.0
        %1108 = vmatpush1.msra.mxu0 0.0
        %1109 = vmatprep.subr.mxu0 0.0
        %1110 = vmatpush1.msra.mxu0 0.0
        %1111 = vmatprep.subr.mxu0 0.0
        %1112 = vmatpush1.msra.mxu0 0.0
        %1113 = vmatprep.subr.mxu0 0.0
        %1114 = vmatpush1.msra.mxu0 0.0
        %1115 = vmatprep.subr.mxu0 0.0
        %1116 = vmatpush1.msra.mxu0 0.0
        %1117 = vmatprep.subr.mxu0 0.0
        %1118 = vmatpush1.msra.mxu0 0.0
        %1119 = vmatprep.subr.mxu0 0.0
        %1120 = vmatpush1.msra.mxu0 0.0
        %1121 = vmatprep.subr.mxu0 0.0
        %1122 = vmatpush1.msra.mxu0 0.0
        %1123 = vmatprep.subr.mxu0 0.0
        %1124 = vmatpush1.msra.mxu0 0.0
        %1125 = vmatprep.subr.mxu0 0.0
        %1126 = vmatpush1.msra.mxu0 0.0
        %1127 = vmatprep.subr.mxu0 0.0
        %1128 = vmatpush1.msra.mxu0 0.0
        %1129 = vmatprep.subr.mxu0 0.0
        %1130 = vmatpush1.msra.mxu0 0.0
        %1131 = vmatprep.subr.mxu0 0.0
        %1132 = vmatpush1.msra.mxu0 0.0
        %1133 = vmatprep.subr.mxu0 0.0
        %1134 = vmatpush1.msra.mxu0 0.0
        %1135 = vmatprep.subr.mxu0 0.0
        %1136 = vmatpush1.msra.mxu0 0.0
        %1137 = vmatprep.subr.mxu0 0.0
        %1138 = vmatpush1.msra.mxu0 0.0
        %1139 = vmatprep.subr.mxu0 0.0
        %1140 = vmatpush1.msra.mxu0 0.0
        %1141 = vmatprep.subr.mxu0 0.0
        %1142 = vmatpush1.msra.mxu0 0.0
        %1143 = vmatprep.subr.mxu0 0.0
        %1144 = vmatpush1.msra.mxu0 0.0
        %1145 = vmatprep.subr.mxu0 0.0
        %1146 = vmatpush1.msra.mxu0 0.0
        %1147 = vmatprep.subr.mxu0 0.0
        %1148 = vmatpush1.msra.mxu0 0.0
        %1149 = vmatprep.subr.mxu0 0.0
        %1150 = vmatpush1.msra.mxu0 0.0
        %1151 = vmatprep.subr.mxu0 0.0
        %1152 = vmatpush1.msra.mxu0 0.0
        %1153 = vmatprep.subr.mxu0 0.0
        %1154 = vmatpush1.msra.mxu0 0.0
        %1155 = vmatprep.subr.mxu0 0.0
        %1156 = vmatpush1.msra.mxu0 0.0
        %1157 = vmatprep.mubr.f32.mxu0 0.0
        %1158 = vmatmul.mubr.f32.gmra.mrb[0].mxu0 %v1046
        %v1159 = vpop.f32.mrb[0].mxu0
        %v1160 = vadd.f32 %v967, %v1159
        %v1161 = vpop.f32.mrb[0].mxu0
        %1162 = vmatprep.mubr.f32.mxu0 0.0
        %1163 = vmatmul.mubr.f32.gmra.mrb[0].mxu0 %v1049
        %v1164 = vpop.f32.mrb[0].mxu0
        %v1165 = vadd.f32 %v972, %v1164
        %v1166 = vpop.f32.mrb[0].mxu0
        %1167 = vmatprep.mubr.f32.mxu0 0.0
        %1168 = vmatmul.mubr.f32.gmra.mrb[0].mxu0 %v1052
        %v1169 = vpop.f32.mrb[0].mxu0
        %v1170 = vadd.f32 %v977, %v1169
        %v1171 = vpop.f32.mrb[0].mxu0
        %1172 = vmatprep.mubr.f32.mxu0 0.0
        %1173 = vmatmul.mubr.f32.gmra.mrb[0].mxu0 %v1055
        %v1174 = vpop.f32.mrb[0].mxu0
        %v1175 = vadd.f32 %v982, %v1174
        %v1176 = vpop.f32.mrb[0].mxu0
        %1177 = vmatprep.mubr.f32.mxu0 0.0
        %1178 = vmatmul.mubr.f32.gmra.mrb[0].mxu0 %v1058
        %v1179 = vpop.f32.mrb[0].mxu0
        %v1180 = vadd.f32 %v987, %v1179
        %v1181 = vpop.f32.mrb[0].mxu0
        %1182 = vmatprep.mubr.f32.mxu0 0.0
        %1183 = vmatmul.mubr.f32.gmra.mrb[0].mxu0 %v1061
        %v1184 = vpop.f32.mrb[0].mxu0
        %v1185 = vadd.f32 %v992, %v1184
        %v1186 = vpop.f32.mrb[0].mxu0
        %1187 = vmatprep.mubr.f32.mxu0 0.0
        %1188 = vmatmul.mubr.f32.gmra.mrb[0].mxu0 %v1064
        %v1189 = vpop.f32.mrb[0].mxu0
        %v1190 = vadd.f32 %v997, %v1189
        %v1191 = vpop.f32.mrb[0].mxu0
        %1192 = vmatprep.mubr.f32.mxu0 0.0
        %1193 = vmatmul.mubr.f32.gmra.mrb[0].mxu0 %v1067
        %v1194 = vpop.f32.mrb[0].mxu0
        %v1195 = vadd.f32 %v1002, %v1194
        %v1196 = vpop.f32.mrb[0].mxu0
        %1197 = vmatprep.mubr.f32.mxu0 0.0
        %1198 = vmatmul.mubr.f32.gmra.mrb[0].mxu0 %v1070
        %v1199 = vpop.f32.mrb[0].mxu0
        %v1200 = vadd.f32 %v1007, %v1199
        %v1201 = vpop.f32.mrb[0].mxu0
        %1202 = vmatprep.mubr.f32.mxu0 0.0
        %1203 = vmatmul.mubr.f32.gmra.mrb[0].mxu0 %v1073
        %v1204 = vpop.f32.mrb[0].mxu0
        %v1205 = vadd.f32 %v1012, %v1204
        %v1206 = vpop.f32.mrb[0].mxu0
        %1207 = vmatprep.mubr.f32.mxu0 0.0
        %1208 = vmatmul.mubr.f32.gmra.mrb[0].mxu0 %v1076
        %v1209 = vpop.f32.mrb[0].mxu0
        %v1210 = vadd.f32 %v1017, %v1209
        %v1211 = vpop.f32.mrb[0].mxu0
        %1212 = vmatprep.mubr.f32.mxu0 0.0
        %1213 = vmatmul.mubr.f32.gmra.mrb[0].mxu0 %v1079
        %v1214 = vpop.f32.mrb[0].mxu0
        %v1215 = vadd.f32 %v1022, %v1214
        %v1216 = vpop.f32.mrb[0].mxu0
        %1217 = vmatprep.mubr.f32.mxu0 0.0
        %1218 = vmatmul.mubr.f32.gmra.mrb[0].mxu0 %v1082
        %v1219 = vpop.f32.mrb[0].mxu0
        %v1220 = vadd.f32 %v1027, %v1219
        %v1221 = vpop.f32.mrb[0].mxu0
        %1222 = vmatprep.mubr.f32.mxu0 0.0
        %1223 = vmatmul.mubr.f32.gmra.mrb[0].mxu0 %v1085
        %v1224 = vpop.f32.mrb[0].mxu0
        %v1225 = vadd.f32 %v1032, %v1224
        %v1226 = vpop.f32.mrb[0].mxu0
        %1227 = vmatprep.mubr.f32.mxu0 0.0
        %1228 = vmatmul.mubr.f32.gmra.mrb[0].mxu0 %v1088
        %v1229 = vpop.f32.mrb[0].mxu0
        %v1230 = vadd.f32 %v1037, %v1229
        %v1231 = vpop.f32.mrb[0].mxu0
        %1232 = vmatprep.mubr.f32.mxu0 0.0
        %1233 = vmatmul.mubr.f32.gmra.mrb[0].mxu0 %v1091
        %v1234 = vpop.f32.mrb[0].mxu0
        %v1235 = vadd.f32 %v1042, %v1234
        %v1236 = vpop.f32.mrb[0].mxu0
        %1237 = vdwg.mxu0
        %v1238 = vld [vmem:[#allocation2 + $0x2] sm:$0xff]
        %v1239 = vld [vmem:[#allocation2 + $0xa] sm:$0xff]
        %v1240 = vld [vmem:[#allocation2 + $0x1a] sm:$0xff]
        %v1241 = vld [vmem:[#allocation2 + $0x22] sm:$0xff]
        %v1242 = vld [vmem:[#allocation2 + $0x32] sm:$0xff]
        %v1243 = vld [vmem:[#allocation2 + $0x3a] sm:$0xff]
        %v1244 = vld [vmem:[#allocation2 + $0x4a] sm:$0xff]
        %v1245 = vld [vmem:[#allocation2 + $0x52] sm:$0xff]
        %v1246 = vld [vmem:[#allocation2 + $0x62] sm:$0xff]
        %v1247 = vld [vmem:[#allocation2 + $0x6a] sm:$0xff]
        %v1248 = vld [vmem:[#allocation2 + $0x7a] sm:$0xff]
        %v1249 = vld [vmem:[#allocation2 + $0x82] sm:$0xff]
        %v1250 = vld [vmem:[#allocation2 + $0x92] sm:$0xff]
        %v1251 = vld [vmem:[#allocation2 + $0x9a] sm:$0xff]
        %v1252 = vld [vmem:[#allocation2 + $0xaa] sm:$0xff]
        %v1253 = vld [vmem:[#allocation2 + $0xb2] sm:$0xff]
        %v1255 = vsel %vm260, %v1238, 0
        %v1258 = vsel %vm260, %v1239, 0
        %v1261 = vsel %vm260, %v1240, 0
        %v1264 = vsel %vm260, %v1241, 0
        %v1267 = vsel %vm260, %v1242, 0
        %v1270 = vsel %vm260, %v1243, 0
        %v1273 = vsel %vm260, %v1244, 0
        %v1276 = vsel %vm260, %v1245, 0
        %v1279 = vsel %vm260, %v1246, 0
        %v1282 = vsel %vm260, %v1247, 0
        %v1285 = vsel %vm260, %v1248, 0
        %v1288 = vsel %vm260, %v1249, 0
        %v1291 = vsel %vm260, %v1250, 0
        %v1294 = vsel %vm260, %v1251, 0
        %v1297 = vsel %vm260, %v1252, 0
        %v1300 = vsel %vm260, %v1253, 0
        %1302 = vmatprep.subr.mxu0 0.0
        %1303 = vmatpush1.msra.mxu0 %v813
        %1304 = vmatprep.subr.mxu0 0.0
        %1305 = vmatpush1.msra.mxu0 0.0
        %1306 = vmatprep.subr.mxu0 0.0
        %1307 = vmatpush1.msra.mxu0 0.0
        %1308 = vmatprep.subr.mxu0 0.0
        %1309 = vmatpush1.msra.mxu0 0.0
        %1310 = vmatprep.subr.mxu0 0.0
        %1311 = vmatpush1.msra.mxu0 0.0
        %1312 = vmatprep.subr.mxu0 0.0
        %1313 = vmatpush1.msra.mxu0 0.0
        %1314 = vmatprep.subr.mxu0 0.0
        %1315 = vmatpush1.msra.mxu0 0.0
        %1316 = vmatprep.subr.mxu0 0.0
        %1317 = vmatpush1.msra.mxu0 0.0
        %1318 = vmatprep.subr.mxu0 0.0
        %1319 = vmatpush1.msra.mxu0 0.0
        %1320 = vmatprep.subr.mxu0 0.0
        %1321 = vmatpush1.msra.mxu0 0.0
        %1322 = vmatprep.subr.mxu0 0.0
        %1323 = vmatpush1.msra.mxu0 0.0
        %1324 = vmatprep.subr.mxu0 0.0
        %1325 = vmatpush1.msra.mxu0 0.0
        %1326 = vmatprep.subr.mxu0 0.0
        %1327 = vmatpush1.msra.mxu0 0.0
        %1328 = vmatprep.subr.mxu0 0.0
        %1329 = vmatpush1.msra.mxu0 0.0
        %1330 = vmatprep.subr.mxu0 0.0
        %1331 = vmatpush1.msra.mxu0 0.0
        %1332 = vmatprep.subr.mxu0 0.0
        %1333 = vmatpush1.msra.mxu0 0.0
        %1334 = vmatprep.subr.mxu0 0.0
        %1335 = vmatpush1.msra.mxu0 0.0
        %1336 = vmatprep.subr.mxu0 0.0
        %1337 = vmatpush1.msra.mxu0 0.0
        %1338 = vmatprep.subr.mxu0 0.0
        %1339 = vmatpush1.msra.mxu0 0.0
        %1340 = vmatprep.subr.mxu0 0.0
        %1341 = vmatpush1.msra.mxu0 0.0
        %1342 = vmatprep.subr.mxu0 0.0
        %1343 = vmatpush1.msra.mxu0 0.0
        %1344 = vmatprep.subr.mxu0 0.0
        %1345 = vmatpush1.msra.mxu0 0.0
        %1346 = vmatprep.subr.mxu0 0.0
        %1347 = vmatpush1.msra.mxu0 0.0
        %1348 = vmatprep.subr.mxu0 0.0
        %1349 = vmatpush1.msra.mxu0 0.0
        %1350 = vmatprep.subr.mxu0 0.0
        %1351 = vmatpush1.msra.mxu0 0.0
        %1352 = vmatprep.subr.mxu0 0.0
        %1353 = vmatpush1.msra.mxu0 0.0
        %1354 = vmatprep.subr.mxu0 0.0
        %1355 = vmatpush1.msra.mxu0 0.0
        %1356 = vmatprep.subr.mxu0 0.0
        %1357 = vmatpush1.msra.mxu0 0.0
        %1358 = vmatprep.subr.mxu0 0.0
        %1359 = vmatpush1.msra.mxu0 0.0
        %1360 = vmatprep.subr.mxu0 0.0
        %1361 = vmatpush1.msra.mxu0 0.0
        %1362 = vmatprep.subr.mxu0 0.0
        %1363 = vmatpush1.msra.mxu0 0.0
        %1364 = vmatprep.subr.mxu0 0.0
        %1365 = vmatpush1.msra.mxu0 0.0
        %1366 = vmatprep.mubr.f32.mxu0 0.0
        %1367 = vmatmul.mubr.f32.gmra.mrb[0].mxu0 %v1255
        %v1368 = vpop.f32.mrb[0].mxu0
        %v1369 = vadd.f32 0.0, %v1368
        %v1370 = vpop.f32.mrb[0].mxu0
        %1371 = vmatprep.mubr.f32.mxu0 0.0
        %1372 = vmatmul.mubr.f32.gmra.mrb[0].mxu0 %v1258
        %v1373 = vpop.f32.mrb[0].mxu0
        %v1374 = vadd.f32 0.0, %v1373
        %v1375 = vpop.f32.mrb[0].mxu0
        %1376 = vmatprep.mubr.f32.mxu0 0.0
        %1377 = vmatmul.mubr.f32.gmra.mrb[0].mxu0 %v1261
        %v1378 = vpop.f32.mrb[0].mxu0
        %v1379 = vadd.f32 0.0, %v1378
        %v1380 = vpop.f32.mrb[0].mxu0
        %1381 = vmatprep.mubr.f32.mxu0 0.0
        %1382 = vmatmul.mubr.f32.gmra.mrb[0].mxu0 %v1264
        %v1383 = vpop.f32.mrb[0].mxu0
        %v1384 = vadd.f32 0.0, %v1383
        %v1385 = vpop.f32.mrb[0].mxu0
        %1386 = vmatprep.mubr.f32.mxu0 0.0
        %1387 = vmatmul.mubr.f32.gmra.mrb[0].mxu0 %v1267
        %v1388 = vpop.f32.mrb[0].mxu0
        %v1389 = vadd.f32 0.0, %v1388
        %v1390 = vpop.f32.mrb[0].mxu0
        %1391 = vmatprep.mubr.f32.mxu0 0.0
        %1392 = vmatmul.mubr.f32.gmra.mrb[0].mxu0 %v1270
        %v1393 = vpop.f32.mrb[0].mxu0
        %v1394 = vadd.f32 0.0, %v1393
        %v1395 = vpop.f32.mrb[0].mxu0
        %1396 = vmatprep.mubr.f32.mxu0 0.0
        %1397 = vmatmul.mubr.f32.gmra.mrb[0].mxu0 %v1273
        %v1398 = vpop.f32.mrb[0].mxu0
        %v1399 = vadd.f32 0.0, %v1398
        %v1400 = vpop.f32.mrb[0].mxu0
        %1401 = vmatprep.mubr.f32.mxu0 0.0
        %1402 = vmatmul.mubr.f32.gmra.mrb[0].mxu0 %v1276
        %v1403 = vpop.f32.mrb[0].mxu0
        %v1404 = vadd.f32 0.0, %v1403
        %v1405 = vpop.f32.mrb[0].mxu0
        %1406 = vmatprep.mubr.f32.mxu0 0.0
        %1407 = vmatmul.mubr.f32.gmra.mrb[0].mxu0 %v1279
        %v1408 = vpop.f32.mrb[0].mxu0
        %v1409 = vadd.f32 0.0, %v1408
        %v1410 = vpop.f32.mrb[0].mxu0
        %1411 = vmatprep.mubr.f32.mxu0 0.0
        %1412 = vmatmul.mubr.f32.gmra.mrb[0].mxu0 %v1282
        %v1413 = vpop.f32.mrb[0].mxu0
        %v1414 = vadd.f32 0.0, %v1413
        %v1415 = vpop.f32.mrb[0].mxu0
        %1416 = vmatprep.mubr.f32.mxu0 0.0
        %1417 = vmatmul.mubr.f32.gmra.mrb[0].mxu0 %v1285
        %v1418 = vpop.f32.mrb[0].mxu0
        %v1419 = vadd.f32 0.0, %v1418
        %v1420 = vpop.f32.mrb[0].mxu0
        %1421 = vmatprep.mubr.f32.mxu0 0.0
        %1422 = vmatmul.mubr.f32.gmra.mrb[0].mxu0 %v1288
        %v1423 = vpop.f32.mrb[0].mxu0
        %v1424 = vadd.f32 0.0, %v1423
        %v1425 = vpop.f32.mrb[0].mxu0
        %1426 = vmatprep.mubr.f32.mxu0 0.0
        %1427 = vmatmul.mubr.f32.gmra.mrb[0].mxu0 %v1291
        %v1428 = vpop.f32.mrb[0].mxu0
        %v1429 = vadd.f32 0.0, %v1428
        %v1430 = vpop.f32.mrb[0].mxu0
        %1431 = vmatprep.mubr.f32.mxu0 0.0
        %1432 = vmatmul.mubr.f32.gmra.mrb[0].mxu0 %v1294
        %v1433 = vpop.f32.mrb[0].mxu0
        %v1434 = vadd.f32 0.0, %v1433
        %v1435 = vpop.f32.mrb[0].mxu0
        %1436 = vmatprep.mubr.f32.mxu0 0.0
        %1437 = vmatmul.mubr.f32.gmra.mrb[0].mxu0 %v1297
        %v1438 = vpop.f32.mrb[0].mxu0
        %v1439 = vadd.f32 0.0, %v1438
        %v1440 = vpop.f32.mrb[0].mxu0
        %1441 = vmatprep.mubr.f32.mxu0 0.0
        %1442 = vmatmul.mubr.f32.gmra.mrb[0].mxu0 %v1300
        %v1443 = vpop.f32.mrb[0].mxu0
        %v1444 = vadd.f32 0.0, %v1443
        %v1445 = vpop.f32.mrb[0].mxu0
        %1446 = vdwg.mxu0
        %v1447 = vadd.f32 %v1160, %v1369
        %v1448 = vadd.f32 %v1165, %v1374
        %v1449 = vadd.f32 %v1170, %v1379
        %v1450 = vadd.f32 %v1175, %v1384
        %v1451 = vadd.f32 %v1180, %v1389
        %v1452 = vadd.f32 %v1185, %v1394
        %v1453 = vadd.f32 %v1190, %v1399
        %v1454 = vadd.f32 %v1195, %v1404
        %v1455 = vadd.f32 %v1200, %v1409
        %v1456 = vadd.f32 %v1205, %v1414
        %v1457 = vadd.f32 %v1210, %v1419
        %v1458 = vadd.f32 %v1215, %v1424
        %v1459 = vadd.f32 %v1220, %v1429
        %v1460 = vadd.f32 %v1225, %v1434
        %v1461 = vadd.f32 %v1230, %v1439
        %v1462 = vadd.f32 %v1235, %v1444
        %v1463 = vld [vmem:[%s778] sm:$0xff]
        %v1464 = vld [vmem:[%s778 + $0x8] sm:$0xff]
        %v1465 = vld [vmem:[%s778 + $0x18] sm:$0xff]
        %v1466 = vld [vmem:[%s778 + $0x20] sm:$0xff]
        %v1467 = vld [vmem:[%s778 + $0x30] sm:$0xff]
        %v1468 = vld [vmem:[%s778 + $0x38] sm:$0xff]
        %v1469 = vld [vmem:[%s778 + $0x48] sm:$0xff]
        %v1470 = vld [vmem:[%s778 + $0x50] sm:$0xff]
        %v1471 = vld [vmem:[%s778 + $0x60] sm:$0xff]
        %v1472 = vld [vmem:[%s778 + $0x68] sm:$0xff]
        %v1473 = vld [vmem:[%s778 + $0x78] sm:$0xff]
        %v1474 = vld [vmem:[%s778 + $0x80] sm:$0xff]
        %v1475 = vld [vmem:[%s778 + $0x90] sm:$0xff]
        %v1476 = vld [vmem:[%s778 + $0x98] sm:$0xff]
        %v1477 = vld [vmem:[%s778 + $0xa8] sm:$0xff]
        %v1478 = vld [vmem:[%s778 + $0xb0] sm:$0xff]
        %v1480 = vsel %vm260, %v1463, 0
        %v1483 = vsel %vm260, %v1464, 0
        %v1486 = vsel %vm260, %v1465, 0
        %v1489 = vsel %vm260, %v1466, 0
        %v1492 = vsel %vm260, %v1467, 0
        %v1495 = vsel %vm260, %v1468, 0
        %v1498 = vsel %vm260, %v1469, 0
        %v1501 = vsel %vm260, %v1470, 0
        %v1504 = vsel %vm260, %v1471, 0
        %v1507 = vsel %vm260, %v1472, 0
        %v1510 = vsel %vm260, %v1473, 0
        %v1513 = vsel %vm260, %v1474, 0
        %v1516 = vsel %vm260, %v1475, 0
        %v1519 = vsel %vm260, %v1476, 0
        %v1522 = vsel %vm260, %v1477, 0
        %v1525 = vsel %vm260, %v1478, 0
        %1527 = vmatprep.subr.mxu0 0.0
        %1528 = vmatpush1.msra.mxu0 %v814
        %1529 = vmatprep.subr.mxu0 0.0
        %1530 = vmatpush1.msra.mxu0 0.0
        %1531 = vmatprep.subr.mxu0 0.0
        %1532 = vmatpush1.msra.mxu0 0.0
        %1533 = vmatprep.subr.mxu0 0.0
        %1534 = vmatpush1.msra.mxu0 0.0
        %1535 = vmatprep.subr.mxu0 0.0
        %1536 = vmatpush1.msra.mxu0 0.0
        %1537 = vmatprep.subr.mxu0 0.0
        %1538 = vmatpush1.msra.mxu0 0.0
        %1539 = vmatprep.subr.mxu0 0.0
        %1540 = vmatpush1.msra.mxu0 0.0
        %1541 = vmatprep.subr.mxu0 0.0
        %1542 = vmatpush1.msra.mxu0 0.0
        %1543 = vmatprep.subr.mxu0 0.0
        %1544 = vmatpush1.msra.mxu0 0.0
        %1545 = vmatprep.subr.mxu0 0.0
        %1546 = vmatpush1.msra.mxu0 0.0
        %1547 = vmatprep.subr.mxu0 0.0
        %1548 = vmatpush1.msra.mxu0 0.0
        %1549 = vmatprep.subr.mxu0 0.0
        %1550 = vmatpush1.msra.mxu0 0.0
        %1551 = vmatprep.subr.mxu0 0.0
        %1552 = vmatpush1.msra.mxu0 0.0
        %1553 = vmatprep.subr.mxu0 0.0
        %1554 = vmatpush1.msra.mxu0 0.0
        %1555 = vmatprep.subr.mxu0 0.0
        %1556 = vmatpush1.msra.mxu0 0.0
        %1557 = vmatprep.subr.mxu0 0.0
        %1558 = vmatpush1.msra.mxu0 0.0
        %1559 = vmatprep.subr.mxu0 0.0
        %1560 = vmatpush1.msra.mxu0 0.0
        %1561 = vmatprep.subr.mxu0 0.0
        %1562 = vmatpush1.msra.mxu0 0.0
        %1563 = vmatprep.subr.mxu0 0.0
        %1564 = vmatpush1.msra.mxu0 0.0
        %1565 = vmatprep.subr.mxu0 0.0
        %1566 = vmatpush1.msra.mxu0 0.0
        %1567 = vmatprep.subr.mxu0 0.0
        %1568 = vmatpush1.msra.mxu0 0.0
        %1569 = vmatprep.subr.mxu0 0.0
        %1570 = vmatpush1.msra.mxu0 0.0
        %1571 = vmatprep.subr.mxu0 0.0
        %1572 = vmatpush1.msra.mxu0 0.0
        %1573 = vmatprep.subr.mxu0 0.0
        %1574 = vmatpush1.msra.mxu0 0.0
        %1575 = vmatprep.subr.mxu0 0.0
        %1576 = vmatpush1.msra.mxu0 0.0
        %1577 = vmatprep.subr.mxu0 0.0
        %1578 = vmatpush1.msra.mxu0 0.0
        %1579 = vmatprep.subr.mxu0 0.0
        %1580 = vmatpush1.msra.mxu0 0.0
        %1581 = vmatprep.subr.mxu0 0.0
        %1582 = vmatpush1.msra.mxu0 0.0
        %1583 = vmatprep.subr.mxu0 0.0
        %1584 = vmatpush1.msra.mxu0 0.0
        %1585 = vmatprep.subr.mxu0 0.0
        %1586 = vmatpush1.msra.mxu0 0.0
        %1587 = vmatprep.subr.mxu0 0.0
        %1588 = vmatpush1.msra.mxu0 0.0
        %1589 = vmatprep.subr.mxu0 0.0
        %1590 = vmatpush1.msra.mxu0 0.0
        %1591 = vmatprep.mubr.f32.mxu0 0.0
        %1592 = vmatmul.mubr.f32.gmra.mrb[0].mxu0 %v1480
        %v1593 = vpop.f32.mrb[0].mxu0
        %v1594 = vadd.f32 0.0, %v1593
        %v1595 = vpop.f32.mrb[0].mxu0
        %1596 = vmatprep.mubr.f32.mxu0 0.0
        %1597 = vmatmul.mubr.f32.gmra.mrb[0].mxu0 %v1483
        %v1598 = vpop.f32.mrb[0].mxu0
        %v1599 = vadd.f32 0.0, %v1598
        %v1600 = vpop.f32.mrb[0].mxu0
        %1601 = vmatprep.mubr.f32.mxu0 0.0
        %1602 = vmatmul.mubr.f32.gmra.mrb[0].mxu0 %v1486
        %v1603 = vpop.f32.mrb[0].mxu0
        %v1604 = vadd.f32 0.0, %v1603
        %v1605 = vpop.f32.mrb[0].mxu0
        %1606 = vmatprep.mubr.f32.mxu0 0.0
        %1607 = vmatmul.mubr.f32.gmra.mrb[0].mxu0 %v1489
        %v1608 = vpop.f32.mrb[0].mxu0
        %v1609 = vadd.f32 0.0, %v1608
        %v1610 = vpop.f32.mrb[0].mxu0
        %1611 = vmatprep.mubr.f32.mxu0 0.0
        %1612 = vmatmul.mubr.f32.gmra.mrb[0].mxu0 %v1492
        %v1613 = vpop.f32.mrb[0].mxu0
        %v1614 = vadd.f32 0.0, %v1613
        %v1615 = vpop.f32.mrb[0].mxu0
        %1616 = vmatprep.mubr.f32.mxu0 0.0
        %1617 = vmatmul.mubr.f32.gmra.mrb[0].mxu0 %v1495
        %v1618 = vpop.f32.mrb[0].mxu0
        %v1619 = vadd.f32 0.0, %v1618
        %v1620 = vpop.f32.mrb[0].mxu0
        %1621 = vmatprep.mubr.f32.mxu0 0.0
        %1622 = vmatmul.mubr.f32.gmra.mrb[0].mxu0 %v1498
        %v1623 = vpop.f32.mrb[0].mxu0
        %v1624 = vadd.f32 0.0, %v1623
        %v1625 = vpop.f32.mrb[0].mxu0
        %1626 = vmatprep.mubr.f32.mxu0 0.0
        %1627 = vmatmul.mubr.f32.gmra.mrb[0].mxu0 %v1501
        %v1628 = vpop.f32.mrb[0].mxu0
        %v1629 = vadd.f32 0.0, %v1628
        %v1630 = vpop.f32.mrb[0].mxu0
        %1631 = vmatprep.mubr.f32.mxu0 0.0
        %1632 = vmatmul.mubr.f32.gmra.mrb[0].mxu0 %v1504
        %v1633 = vpop.f32.mrb[0].mxu0
        %v1634 = vadd.f32 0.0, %v1633
        %v1635 = vpop.f32.mrb[0].mxu0
        %1636 = vmatprep.mubr.f32.mxu0 0.0
        %1637 = vmatmul.mubr.f32.gmra.mrb[0].mxu0 %v1507
        %v1638 = vpop.f32.mrb[0].mxu0
        %v1639 = vadd.f32 0.0, %v1638
        %v1640 = vpop.f32.mrb[0].mxu0
        %1641 = vmatprep.mubr.f32.mxu0 0.0
        %1642 = vmatmul.mubr.f32.gmra.mrb[0].mxu0 %v1510
        %v1643 = vpop.f32.mrb[0].mxu0
        %v1644 = vadd.f32 0.0, %v1643
        %v1645 = vpop.f32.mrb[0].mxu0
        %1646 = vmatprep.mubr.f32.mxu0 0.0
        %1647 = vmatmul.mubr.f32.gmra.mrb[0].mxu0 %v1513
        %v1648 = vpop.f32.mrb[0].mxu0
        %v1649 = vadd.f32 0.0, %v1648
        %v1650 = vpop.f32.mrb[0].mxu0
        %1651 = vmatprep.mubr.f32.mxu0 0.0
        %1652 = vmatmul.mubr.f32.gmra.mrb[0].mxu0 %v1516
        %v1653 = vpop.f32.mrb[0].mxu0
        %v1654 = vadd.f32 0.0, %v1653
        %v1655 = vpop.f32.mrb[0].mxu0
        %1656 = vmatprep.mubr.f32.mxu0 0.0
        %1657 = vmatmul.mubr.f32.gmra.mrb[0].mxu0 %v1519
        %v1658 = vpop.f32.mrb[0].mxu0
        %v1659 = vadd.f32 0.0, %v1658
        %v1660 = vpop.f32.mrb[0].mxu0
        %1661 = vmatprep.mubr.f32.mxu0 0.0
        %1662 = vmatmul.mubr.f32.gmra.mrb[0].mxu0 %v1522
        %v1663 = vpop.f32.mrb[0].mxu0
        %v1664 = vadd.f32 0.0, %v1663
        %v1665 = vpop.f32.mrb[0].mxu0
        %1666 = vmatprep.mubr.f32.mxu0 0.0
        %1667 = vmatmul.mubr.f32.gmra.mrb[0].mxu0 %v1525
        %v1668 = vpop.f32.mrb[0].mxu0
        %v1669 = vadd.f32 0.0, %v1668
        %v1670 = vpop.f32.mrb[0].mxu0
        %1671 = vdwg.mxu0
        %v1672 = vadd.f32 %v1447, %v1594
        %v1673 = vadd.f32 %v1448, %v1599
        %v1674 = vadd.f32 %v1449, %v1604
        %v1675 = vadd.f32 %v1450, %v1609
        %v1676 = vadd.f32 %v1451, %v1614
        %v1677 = vadd.f32 %v1452, %v1619
        %v1678 = vadd.f32 %v1453, %v1624
        %v1679 = vadd.f32 %v1454, %v1629
        %v1680 = vadd.f32 %v1455, %v1634
        %v1681 = vadd.f32 %v1456, %v1639
        %v1682 = vadd.f32 %v1457, %v1644
        %v1683 = vadd.f32 %v1458, %v1649
        %v1684 = vadd.f32 %v1459, %v1654
        %v1685 = vadd.f32 %v1460, %v1659
        %v1686 = vadd.f32 %v1461, %v1664
        %v1687 = vadd.f32 %v1462, %v1669
        %v1688 = vld [vmem:[%s778 + $0x1] sm:$0xff]
        %v1689 = vld [vmem:[%s778 + $0x9] sm:$0xff]
        %v1690 = vld [vmem:[%s778 + $0x19] sm:$0xff]
        %v1691 = vld [vmem:[%s778 + $0x21] sm:$0xff]
        %v1692 = vld [vmem:[%s778 + $0x31] sm:$0xff]
        %v1693 = vld [vmem:[%s778 + $0x39] sm:$0xff]
        %v1694 = vld [vmem:[%s778 + $0x49] sm:$0xff]
        %v1695 = vld [vmem:[%s778 + $0x51] sm:$0xff]
        %v1696 = vld [vmem:[%s778 + $0x61] sm:$0xff]
        %v1697 = vld [vmem:[%s778 + $0x69] sm:$0xff]
        %v1698 = vld [vmem:[%s778 + $0x79] sm:$0xff]
        %v1699 = vld [vmem:[%s778 + $0x81] sm:$0xff]
        %v1700 = vld [vmem:[%s778 + $0x91] sm:$0xff]
        %v1701 = vld [vmem:[%s778 + $0x99] sm:$0xff]
        %v1702 = vld [vmem:[%s778 + $0xa9] sm:$0xff]
        %v1703 = vld [vmem:[%s778 + $0xb1] sm:$0xff]
        %v1705 = vsel %vm260, %v1688, 0
        %v1708 = vsel %vm260, %v1689, 0
        %v1711 = vsel %vm260, %v1690, 0
        %v1714 = vsel %vm260, %v1691, 0
        %v1717 = vsel %vm260, %v1692, 0
        %v1720 = vsel %vm260, %v1693, 0
        %v1723 = vsel %vm260, %v1694, 0
        %v1726 = vsel %vm260, %v1695, 0
        %v1729 = vsel %vm260, %v1696, 0
        %v1732 = vsel %vm260, %v1697, 0
        %v1735 = vsel %vm260, %v1698, 0
        %v1738 = vsel %vm260, %v1699, 0
        %v1741 = vsel %vm260, %v1700, 0
        %v1744 = vsel %vm260, %v1701, 0
        %v1747 = vsel %vm260, %v1702, 0
        %v1750 = vsel %vm260, %v1703, 0
        %1752 = vmatprep.subr.mxu0 0.0
        %1753 = vmatpush1.msra.mxu0 %v815
        %1754 = vmatprep.subr.mxu0 0.0
        %1755 = vmatpush1.msra.mxu0 0.0
        %1756 = vmatprep.subr.mxu0 0.0
        %1757 = vmatpush1.msra.mxu0 0.0
        %1758 = vmatprep.subr.mxu0 0.0
        %1759 = vmatpush1.msra.mxu0 0.0
        %1760 = vmatprep.subr.mxu0 0.0
        %1761 = vmatpush1.msra.mxu0 0.0
        %1762 = vmatprep.subr.mxu0 0.0
        %1763 = vmatpush1.msra.mxu0 0.0
        %1764 = vmatprep.subr.mxu0 0.0
        %1765 = vmatpush1.msra.mxu0 0.0
        %1766 = vmatprep.subr.mxu0 0.0
        %1767 = vmatpush1.msra.mxu0 0.0
        %1768 = vmatprep.subr.mxu0 0.0
        %1769 = vmatpush1.msra.mxu0 0.0
        %1770 = vmatprep.subr.mxu0 0.0
        %1771 = vmatpush1.msra.mxu0 0.0
        %1772 = vmatprep.subr.mxu0 0.0
        %1773 = vmatpush1.msra.mxu0 0.0
        %1774 = vmatprep.subr.mxu0 0.0
        %1775 = vmatpush1.msra.mxu0 0.0
        %1776 = vmatprep.subr.mxu0 0.0
        %1777 = vmatpush1.msra.mxu0 0.0
        %1778 = vmatprep.subr.mxu0 0.0
        %1779 = vmatpush1.msra.mxu0 0.0
        %1780 = vmatprep.subr.mxu0 0.0
        %1781 = vmatpush1.msra.mxu0 0.0
        %1782 = vmatprep.subr.mxu0 0.0
        %1783 = vmatpush1.msra.mxu0 0.0
        %1784 = vmatprep.subr.mxu0 0.0
        %1785 = vmatpush1.msra.mxu0 0.0
        %1786 = vmatprep.subr.mxu0 0.0
        %1787 = vmatpush1.msra.mxu0 0.0
        %1788 = vmatprep.subr.mxu0 0.0
        %1789 = vmatpush1.msra.mxu0 0.0
        %1790 = vmatprep.subr.mxu0 0.0
        %1791 = vmatpush1.msra.mxu0 0.0
        %1792 = vmatprep.subr.mxu0 0.0
        %1793 = vmatpush1.msra.mxu0 0.0
        %1794 = vmatprep.subr.mxu0 0.0
        %1795 = vmatpush1.msra.mxu0 0.0
        %1796 = vmatprep.subr.mxu0 0.0
        %1797 = vmatpush1.msra.mxu0 0.0
        %1798 = vmatprep.subr.mxu0 0.0
        %1799 = vmatpush1.msra.mxu0 0.0
        %1800 = vmatprep.subr.mxu0 0.0
        %1801 = vmatpush1.msra.mxu0 0.0
        %1802 = vmatprep.subr.mxu0 0.0
        %1803 = vmatpush1.msra.mxu0 0.0
        %1804 = vmatprep.subr.mxu0 0.0
        %1805 = vmatpush1.msra.mxu0 0.0
        %1806 = vmatprep.subr.mxu0 0.0
        %1807 = vmatpush1.msra.mxu0 0.0
        %1808 = vmatprep.subr.mxu0 0.0
        %1809 = vmatpush1.msra.mxu0 0.0
        %1810 = vmatprep.subr.mxu0 0.0
        %1811 = vmatpush1.msra.mxu0 0.0
        %1812 = vmatprep.subr.mxu0 0.0
        %1813 = vmatpush1.msra.mxu0 0.0
        %1814 = vmatprep.subr.mxu0 0.0
        %1815 = vmatpush1.msra.mxu0 0.0
        %1816 = vmatprep.mubr.f32.mxu0 0.0
        %1817 = vmatmul.mubr.f32.gmra.mrb[0].mxu0 %v1705
        %v1818 = vpop.f32.mrb[0].mxu0
        %v1819 = vadd.f32 0.0, %v1818
        %v1820 = vpop.f32.mrb[0].mxu0
        %1821 = vmatprep.mubr.f32.mxu0 0.0
        %1822 = vmatmul.mubr.f32.gmra.mrb[0].mxu0 %v1708
        %v1823 = vpop.f32.mrb[0].mxu0
        %v1824 = vadd.f32 0.0, %v1823
        %v1825 = vpop.f32.mrb[0].mxu0
        %1826 = vmatprep.mubr.f32.mxu0 0.0
        %1827 = vmatmul.mubr.f32.gmra.mrb[0].mxu0 %v1711
        %v1828 = vpop.f32.mrb[0].mxu0
        %v1829 = vadd.f32 0.0, %v1828
        %v1830 = vpop.f32.mrb[0].mxu0
        %1831 = vmatprep.mubr.f32.mxu0 0.0
        %1832 = vmatmul.mubr.f32.gmra.mrb[0].mxu0 %v1714
        %v1833 = vpop.f32.mrb[0].mxu0
        %v1834 = vadd.f32 0.0, %v1833
        %v1835 = vpop.f32.mrb[0].mxu0
        %1836 = vmatprep.mubr.f32.mxu0 0.0
        %1837 = vmatmul.mubr.f32.gmra.mrb[0].mxu0 %v1717
        %v1838 = vpop.f32.mrb[0].mxu0
        %v1839 = vadd.f32 0.0, %v1838
        %v1840 = vpop.f32.mrb[0].mxu0
        %1841 = vmatprep.mubr.f32.mxu0 0.0
        %1842 = vmatmul.mubr.f32.gmra.mrb[0].mxu0 %v1720
        %v1843 = vpop.f32.mrb[0].mxu0
        %v1844 = vadd.f32 0.0, %v1843
        %v1845 = vpop.f32.mrb[0].mxu0
        %1846 = vmatprep.mubr.f32.mxu0 0.0
        %1847 = vmatmul.mubr.f32.gmra.mrb[0].mxu0 %v1723
        %v1848 = vpop.f32.mrb[0].mxu0
        %v1849 = vadd.f32 0.0, %v1848
        %v1850 = vpop.f32.mrb[0].mxu0
        %1851 = vmatprep.mubr.f32.mxu0 0.0
        %1852 = vmatmul.mubr.f32.gmra.mrb[0].mxu0 %v1726
        %v1853 = vpop.f32.mrb[0].mxu0
        %v1854 = vadd.f32 0.0, %v1853
        %v1855 = vpop.f32.mrb[0].mxu0
        %1856 = vmatprep.mubr.f32.mxu0 0.0
        %1857 = vmatmul.mubr.f32.gmra.mrb[0].mxu0 %v1729
        %v1858 = vpop.f32.mrb[0].mxu0
        %v1859 = vadd.f32 0.0, %v1858
        %v1860 = vpop.f32.mrb[0].mxu0
        %1861 = vmatprep.mubr.f32.mxu0 0.0
        %1862 = vmatmul.mubr.f32.gmra.mrb[0].mxu0 %v1732
        %v1863 = vpop.f32.mrb[0].mxu0
        %v1864 = vadd.f32 0.0, %v1863
        %v1865 = vpop.f32.mrb[0].mxu0
        %1866 = vmatprep.mubr.f32.mxu0 0.0
        %1867 = vmatmul.mubr.f32.gmra.mrb[0].mxu0 %v1735
        %v1868 = vpop.f32.mrb[0].mxu0
        %v1869 = vadd.f32 0.0, %v1868
        %v1870 = vpop.f32.mrb[0].mxu0
        %1871 = vmatprep.mubr.f32.mxu0 0.0
        %1872 = vmatmul.mubr.f32.gmra.mrb[0].mxu0 %v1738
        %v1873 = vpop.f32.mrb[0].mxu0
        %v1874 = vadd.f32 0.0, %v1873
        %v1875 = vpop.f32.mrb[0].mxu0
        %1876 = vmatprep.mubr.f32.mxu0 0.0
        %1877 = vmatmul.mubr.f32.gmra.mrb[0].mxu0 %v1741
        %v1878 = vpop.f32.mrb[0].mxu0
        %v1879 = vadd.f32 0.0, %v1878
        %v1880 = vpop.f32.mrb[0].mxu0
        %1881 = vmatprep.mubr.f32.mxu0 0.0
        %1882 = vmatmul.mubr.f32.gmra.mrb[0].mxu0 %v1744
        %v1883 = vpop.f32.mrb[0].mxu0
        %v1884 = vadd.f32 0.0, %v1883
        %v1885 = vpop.f32.mrb[0].mxu0
        %1886 = vmatprep.mubr.f32.mxu0 0.0
        %1887 = vmatmul.mubr.f32.gmra.mrb[0].mxu0 %v1747
        %v1888 = vpop.f32.mrb[0].mxu0
        %v1889 = vadd.f32 0.0, %v1888
        %v1890 = vpop.f32.mrb[0].mxu0
        %1891 = vmatprep.mubr.f32.mxu0 0.0
        %1892 = vmatmul.mubr.f32.gmra.mrb[0].mxu0 %v1750
        %v1893 = vpop.f32.mrb[0].mxu0
        %v1894 = vadd.f32 0.0, %v1893
        %v1895 = vpop.f32.mrb[0].mxu0
        %1896 = vdwg.mxu0
        %v1897 = vadd.f32 %v1672, %v1819
        %v1898 = vadd.f32 %v1673, %v1824
        %v1899 = vadd.f32 %v1674, %v1829
        %v1900 = vadd.f32 %v1675, %v1834
        %v1901 = vadd.f32 %v1676, %v1839
        %v1902 = vadd.f32 %v1677, %v1844
        %v1903 = vadd.f32 %v1678, %v1849
        %v1904 = vadd.f32 %v1679, %v1854
        %v1905 = vadd.f32 %v1680, %v1859
        %v1906 = vadd.f32 %v1681, %v1864
        %v1907 = vadd.f32 %v1682, %v1869
        %v1908 = vadd.f32 %v1683, %v1874
        %v1909 = vadd.f32 %v1684, %v1879
        %v1910 = vadd.f32 %v1685, %v1884
        %v1911 = vadd.f32 %v1686, %v1889
        %v1912 = vadd.f32 %v1687, %v1894
        %v1913 = vld [vmem:[%s778 + $0x2] sm:$0xff]
        %v1914 = vld [vmem:[%s778 + $0xa] sm:$0xff]
        %v1915 = vld [vmem:[%s778 + $0x1a] sm:$0xff]
        %v1916 = vld [vmem:[%s778 + $0x22] sm:$0xff]
        %v1917 = vld [vmem:[%s778 + $0x32] sm:$0xff]
        %v1918 = vld [vmem:[%s778 + $0x3a] sm:$0xff]
        %v1919 = vld [vmem:[%s778 + $0x4a] sm:$0xff]
        %v1920 = vld [vmem:[%s778 + $0x52] sm:$0xff]
        %v1921 = vld [vmem:[%s778 + $0x62] sm:$0xff]
        %v1922 = vld [vmem:[%s778 + $0x6a] sm:$0xff]
        %v1923 = vld [vmem:[%s778 + $0x7a] sm:$0xff]
        %v1924 = vld [vmem:[%s778 + $0x82] sm:$0xff]
        %v1925 = vld [vmem:[%s778 + $0x92] sm:$0xff]
        %v1926 = vld [vmem:[%s778 + $0x9a] sm:$0xff]
        %v1927 = vld [vmem:[%s778 + $0xaa] sm:$0xff]
        %v1928 = vld [vmem:[%s778 + $0xb2] sm:$0xff]
        %v1930 = vsel %vm260, %v1913, 0
        %v1933 = vsel %vm260, %v1914, 0
        %v1936 = vsel %vm260, %v1915, 0
        %v1939 = vsel %vm260, %v1916, 0
        %v1942 = vsel %vm260, %v1917, 0
        %v1945 = vsel %vm260, %v1918, 0
        %v1948 = vsel %vm260, %v1919, 0
        %v1951 = vsel %vm260, %v1920, 0
        %v1954 = vsel %vm260, %v1921, 0
        %v1957 = vsel %vm260, %v1922, 0
        %v1960 = vsel %vm260, %v1923, 0
        %v1963 = vsel %vm260, %v1924, 0
        %v1966 = vsel %vm260, %v1925, 0
        %v1969 = vsel %vm260, %v1926, 0
        %v1972 = vsel %vm260, %v1927, 0
        %v1975 = vsel %vm260, %v1928, 0
        %1977 = vmatprep.subr.mxu0 0.0
        %1978 = vmatpush1.msra.mxu0 %v816
        %1979 = vmatprep.subr.mxu0 0.0
        %1980 = vmatpush1.msra.mxu0 0.0
        %1981 = vmatprep.subr.mxu0 0.0
        %1982 = vmatpush1.msra.mxu0 0.0
        %1983 = vmatprep.subr.mxu0 0.0
        %1984 = vmatpush1.msra.mxu0 0.0
        %1985 = vmatprep.subr.mxu0 0.0
        %1986 = vmatpush1.msra.mxu0 0.0
        %1987 = vmatprep.subr.mxu0 0.0
        %1988 = vmatpush1.msra.mxu0 0.0
        %1989 = vmatprep.subr.mxu0 0.0
        %1990 = vmatpush1.msra.mxu0 0.0
        %1991 = vmatprep.subr.mxu0 0.0
        %1992 = vmatpush1.msra.mxu0 0.0
        %1993 = vmatprep.subr.mxu0 0.0
        %1994 = vmatpush1.msra.mxu0 0.0
        %1995 = vmatprep.subr.mxu0 0.0
        %1996 = vmatpush1.msra.mxu0 0.0
        %1997 = vmatprep.subr.mxu0 0.0
        %1998 = vmatpush1.msra.mxu0 0.0
        %1999 = vmatprep.subr.mxu0 0.0
        %2000 = vmatpush1.msra.mxu0 0.0
        %2001 = vmatprep.subr.mxu0 0.0
        %2002 = vmatpush1.msra.mxu0 0.0
        %2003 = vmatprep.subr.mxu0 0.0
        %2004 = vmatpush1.msra.mxu0 0.0
        %2005 = vmatprep.subr.mxu0 0.0
        %2006 = vmatpush1.msra.mxu0 0.0
        %2007 = vmatprep.subr.mxu0 0.0
        %2008 = vmatpush1.msra.mxu0 0.0
        %2009 = vmatprep.subr.mxu0 0.0
        %2010 = vmatpush1.msra.mxu0 0.0
        %2011 = vmatprep.subr.mxu0 0.0
        %2012 = vmatpush1.msra.mxu0 0.0
        %2013 = vmatprep.subr.mxu0 0.0
        %2014 = vmatpush1.msra.mxu0 0.0
        %2015 = vmatprep.subr.mxu0 0.0
        %2016 = vmatpush1.msra.mxu0 0.0
        %2017 = vmatprep.subr.mxu0 0.0
        %2018 = vmatpush1.msra.mxu0 0.0
        %2019 = vmatprep.subr.mxu0 0.0
        %2020 = vmatpush1.msra.mxu0 0.0
        %2021 = vmatprep.subr.mxu0 0.0
        %2022 = vmatpush1.msra.mxu0 0.0
        %2023 = vmatprep.subr.mxu0 0.0
        %2024 = vmatpush1.msra.mxu0 0.0
        %2025 = vmatprep.subr.mxu0 0.0
        %2026 = vmatpush1.msra.mxu0 0.0
        %2027 = vmatprep.subr.mxu0 0.0
        %2028 = vmatpush1.msra.mxu0 0.0
        %2029 = vmatprep.subr.mxu0 0.0
        %2030 = vmatpush1.msra.mxu0 0.0
        %2031 = vmatprep.subr.mxu0 0.0
        %2032 = vmatpush1.msra.mxu0 0.0
        %2033 = vmatprep.subr.mxu0 0.0
        %2034 = vmatpush1.msra.mxu0 0.0
        %2035 = vmatprep.subr.mxu0 0.0
        %2036 = vmatpush1.msra.mxu0 0.0
        %2037 = vmatprep.subr.mxu0 0.0
        %2038 = vmatpush1.msra.mxu0 0.0
        %2039 = vmatprep.subr.mxu0 0.0
        %2040 = vmatpush1.msra.mxu0 0.0
        %2041 = vmatprep.mubr.f32.mxu0 0.0
        %2042 = vmatmul.mubr.f32.gmra.mrb[0].mxu0 %v1930
        %v2043 = vpop.f32.mrb[0].mxu0
        %v2044 = vadd.f32 0.0, %v2043
        %v2045 = vpop.f32.mrb[0].mxu0
        %2046 = vmatprep.mubr.f32.mxu0 0.0
        %2047 = vmatmul.mubr.f32.gmra.mrb[0].mxu0 %v1933
        %v2048 = vpop.f32.mrb[0].mxu0
        %v2049 = vadd.f32 0.0, %v2048
        %v2050 = vpop.f32.mrb[0].mxu0
        %2051 = vmatprep.mubr.f32.mxu0 0.0
        %2052 = vmatmul.mubr.f32.gmra.mrb[0].mxu0 %v1936
        %v2053 = vpop.f32.mrb[0].mxu0
        %v2054 = vadd.f32 0.0, %v2053
        %v2055 = vpop.f32.mrb[0].mxu0
        %2056 = vmatprep.mubr.f32.mxu0 0.0
        %2057 = vmatmul.mubr.f32.gmra.mrb[0].mxu0 %v1939
        %v2058 = vpop.f32.mrb[0].mxu0
        %v2059 = vadd.f32 0.0, %v2058
        %v2060 = vpop.f32.mrb[0].mxu0
        %2061 = vmatprep.mubr.f32.mxu0 0.0
        %2062 = vmatmul.mubr.f32.gmra.mrb[0].mxu0 %v1942
        %v2063 = vpop.f32.mrb[0].mxu0
        %v2064 = vadd.f32 0.0, %v2063
        %v2065 = vpop.f32.mrb[0].mxu0
        %2066 = vmatprep.mubr.f32.mxu0 0.0
        %2067 = vmatmul.mubr.f32.gmra.mrb[0].mxu0 %v1945
        %v2068 = vpop.f32.mrb[0].mxu0
        %v2069 = vadd.f32 0.0, %v2068
        %v2070 = vpop.f32.mrb[0].mxu0
        %2071 = vmatprep.mubr.f32.mxu0 0.0
        %2072 = vmatmul.mubr.f32.gmra.mrb[0].mxu0 %v1948
        %v2073 = vpop.f32.mrb[0].mxu0
        %v2074 = vadd.f32 0.0, %v2073
        %v2075 = vpop.f32.mrb[0].mxu0
        %2076 = vmatprep.mubr.f32.mxu0 0.0
        %2077 = vmatmul.mubr.f32.gmra.mrb[0].mxu0 %v1951
        %v2078 = vpop.f32.mrb[0].mxu0
        %v2079 = vadd.f32 0.0, %v2078
        %v2080 = vpop.f32.mrb[0].mxu0
        %2081 = vmatprep.mubr.f32.mxu0 0.0
        %2082 = vmatmul.mubr.f32.gmra.mrb[0].mxu0 %v1954
        %v2083 = vpop.f32.mrb[0].mxu0
        %v2084 = vadd.f32 0.0, %v2083
        %v2085 = vpop.f32.mrb[0].mxu0
        %2086 = vmatprep.mubr.f32.mxu0 0.0
        %2087 = vmatmul.mubr.f32.gmra.mrb[0].mxu0 %v1957
        %v2088 = vpop.f32.mrb[0].mxu0
        %v2089 = vadd.f32 0.0, %v2088
        %v2090 = vpop.f32.mrb[0].mxu0
        %2091 = vmatprep.mubr.f32.mxu0 0.0
        %2092 = vmatmul.mubr.f32.gmra.mrb[0].mxu0 %v1960
        %v2093 = vpop.f32.mrb[0].mxu0
        %v2094 = vadd.f32 0.0, %v2093
        %v2095 = vpop.f32.mrb[0].mxu0
        %2096 = vmatprep.mubr.f32.mxu0 0.0
        %2097 = vmatmul.mubr.f32.gmra.mrb[0].mxu0 %v1963
        %v2098 = vpop.f32.mrb[0].mxu0
        %v2099 = vadd.f32 0.0, %v2098
        %v2100 = vpop.f32.mrb[0].mxu0
        %2101 = vmatprep.mubr.f32.mxu0 0.0
        %2102 = vmatmul.mubr.f32.gmra.mrb[0].mxu0 %v1966
        %v2103 = vpop.f32.mrb[0].mxu0
        %v2104 = vadd.f32 0.0, %v2103
        %v2105 = vpop.f32.mrb[0].mxu0
        %2106 = vmatprep.mubr.f32.mxu0 0.0
        %2107 = vmatmul.mubr.f32.gmra.mrb[0].mxu0 %v1969
        %v2108 = vpop.f32.mrb[0].mxu0
        %v2109 = vadd.f32 0.0, %v2108
        %v2110 = vpop.f32.mrb[0].mxu0
        %2111 = vmatprep.mubr.f32.mxu0 0.0
        %2112 = vmatmul.mubr.f32.gmra.mrb[0].mxu0 %v1972
        %v2113 = vpop.f32.mrb[0].mxu0
        %v2114 = vadd.f32 0.0, %v2113
        %v2115 = vpop.f32.mrb[0].mxu0
        %2116 = vmatprep.mubr.f32.mxu0 0.0
        %2117 = vmatmul.mubr.f32.gmra.mrb[0].mxu0 %v1975
        %v2118 = vpop.f32.mrb[0].mxu0
        %v2119 = vadd.f32 0.0, %v2118
        %v2120 = vpop.f32.mrb[0].mxu0
        %2121 = vdwg.mxu0
        %v2122 = vadd.f32 %v1897, %v2044
        %v2123 = vadd.f32 %v1898, %v2049
        %v2124 = vadd.f32 %v1899, %v2054
        %v2125 = vadd.f32 %v1900, %v2059
        %v2126 = vadd.f32 %v1901, %v2064
        %v2127 = vadd.f32 %v1902, %v2069
        %v2128 = vadd.f32 %v1903, %v2074
        %v2129 = vadd.f32 %v1904, %v2079
        %v2130 = vadd.f32 %v1905, %v2084
        %v2131 = vadd.f32 %v1906, %v2089
        %v2132 = vadd.f32 %v1907, %v2094
        %v2133 = vadd.f32 %v1908, %v2099
        %v2134 = vadd.f32 %v1909, %v2104
        %v2135 = vadd.f32 %v1910, %v2109
        %v2136 = vadd.f32 %v1911, %v2114
        %v2137 = vadd.f32 %v1912, %v2119
        %s2138 = scalar_lea.vmem [#allocation2], 48
        %v2139 = vld [vmem:[%s2138] sm:$0xff]
        %v2140 = vld [vmem:[%s2138 + $0x8] sm:$0xff]
        %v2141 = vld [vmem:[%s2138 + $0x18] sm:$0xff]
        %v2142 = vld [vmem:[%s2138 + $0x20] sm:$0xff]
        %v2143 = vld [vmem:[%s2138 + $0x30] sm:$0xff]
        %v2144 = vld [vmem:[%s2138 + $0x38] sm:$0xff]
        %v2145 = vld [vmem:[%s2138 + $0x48] sm:$0xff]
        %v2146 = vld [vmem:[%s2138 + $0x50] sm:$0xff]
        %v2147 = vld [vmem:[%s2138 + $0x60] sm:$0xff]
        %v2148 = vld [vmem:[%s2138 + $0x68] sm:$0xff]
        %v2149 = vld [vmem:[%s2138 + $0x78] sm:$0xff]
        %v2150 = vld [vmem:[%s2138 + $0x80] sm:$0xff]
        %v2151 = vld [vmem:[%s2138 + $0x90] sm:$0xff]
        %v2152 = vld [vmem:[%s2138 + $0x98] sm:$0xff]
        %v2153 = vld [vmem:[%s2138 + $0xa8] sm:$0xff]
        %v2154 = vld [vmem:[%s2138 + $0xb0] sm:$0xff]
        %v2156 = vsel %vm260, %v2139, 0
        %v2159 = vsel %vm260, %v2140, 0
        %v2162 = vsel %vm260, %v2141, 0
        %v2165 = vsel %vm260, %v2142, 0
        %v2168 = vsel %vm260, %v2143, 0
        %v2171 = vsel %vm260, %v2144, 0
        %v2174 = vsel %vm260, %v2145, 0
        %v2177 = vsel %vm260, %v2146, 0
        %v2180 = vsel %vm260, %v2147, 0
        %v2183 = vsel %vm260, %v2148, 0
        %v2186 = vsel %vm260, %v2149, 0
        %v2189 = vsel %vm260, %v2150, 0
        %v2192 = vsel %vm260, %v2151, 0
        %v2195 = vsel %vm260, %v2152, 0
        %v2198 = vsel %vm260, %v2153, 0
        %v2201 = vsel %vm260, %v2154, 0
        %2203 = vmatprep.subr.mxu0 0.0
        %2204 = vmatpush1.msra.mxu0 %v817
        %2205 = vmatprep.subr.mxu0 0.0
        %2206 = vmatpush1.msra.mxu0 0.0
        %2207 = vmatprep.subr.mxu0 0.0
        %2208 = vmatpush1.msra.mxu0 0.0
        %2209 = vmatprep.subr.mxu0 0.0
        %2210 = vmatpush1.msra.mxu0 0.0
        %2211 = vmatprep.subr.mxu0 0.0
        %2212 = vmatpush1.msra.mxu0 0.0
        %2213 = vmatprep.subr.mxu0 0.0
        %2214 = vmatpush1.msra.mxu0 0.0
        %2215 = vmatprep.subr.mxu0 0.0
        %2216 = vmatpush1.msra.mxu0 0.0
        %2217 = vmatprep.subr.mxu0 0.0
        %2218 = vmatpush1.msra.mxu0 0.0
        %2219 = vmatprep.subr.mxu0 0.0
        %2220 = vmatpush1.msra.mxu0 0.0
        %2221 = vmatprep.subr.mxu0 0.0
        %2222 = vmatpush1.msra.mxu0 0.0
        %2223 = vmatprep.subr.mxu0 0.0
        %2224 = vmatpush1.msra.mxu0 0.0
        %2225 = vmatprep.subr.mxu0 0.0
        %2226 = vmatpush1.msra.mxu0 0.0
        %2227 = vmatprep.subr.mxu0 0.0
        %2228 = vmatpush1.msra.mxu0 0.0
        %2229 = vmatprep.subr.mxu0 0.0
        %2230 = vmatpush1.msra.mxu0 0.0
        %2231 = vmatprep.subr.mxu0 0.0
        %2232 = vmatpush1.msra.mxu0 0.0
        %2233 = vmatprep.subr.mxu0 0.0
        %2234 = vmatpush1.msra.mxu0 0.0
        %2235 = vmatprep.subr.mxu0 0.0
        %2236 = vmatpush1.msra.mxu0 0.0
        %2237 = vmatprep.subr.mxu0 0.0
        %2238 = vmatpush1.msra.mxu0 0.0
        %2239 = vmatprep.subr.mxu0 0.0
        %2240 = vmatpush1.msra.mxu0 0.0
        %2241 = vmatprep.subr.mxu0 0.0
        %2242 = vmatpush1.msra.mxu0 0.0
        %2243 = vmatprep.subr.mxu0 0.0
        %2244 = vmatpush1.msra.mxu0 0.0
        %2245 = vmatprep.subr.mxu0 0.0
        %2246 = vmatpush1.msra.mxu0 0.0
        %2247 = vmatprep.subr.mxu0 0.0
        %2248 = vmatpush1.msra.mxu0 0.0
        %2249 = vmatprep.subr.mxu0 0.0
        %2250 = vmatpush1.msra.mxu0 0.0
        %2251 = vmatprep.subr.mxu0 0.0
        %2252 = vmatpush1.msra.mxu0 0.0
        %2253 = vmatprep.subr.mxu0 0.0
        %2254 = vmatpush1.msra.mxu0 0.0
        %2255 = vmatprep.subr.mxu0 0.0
        %2256 = vmatpush1.msra.mxu0 0.0
        %2257 = vmatprep.subr.mxu0 0.0
        %2258 = vmatpush1.msra.mxu0 0.0
        %2259 = vmatprep.subr.mxu0 0.0
        %2260 = vmatpush1.msra.mxu0 0.0
        %2261 = vmatprep.subr.mxu0 0.0
        %2262 = vmatpush1.msra.mxu0 0.0
        %2263 = vmatprep.subr.mxu0 0.0
        %2264 = vmatpush1.msra.mxu0 0.0
        %2265 = vmatprep.subr.mxu0 0.0
        %2266 = vmatpush1.msra.mxu0 0.0
        %2267 = vmatprep.mubr.f32.mxu0 0.0
        %2268 = vmatmul.mubr.f32.gmra.mrb[0].mxu0 %v2156
        %v2269 = vpop.f32.mrb[0].mxu0
        %v2270 = vadd.f32 0.0, %v2269
        %v2271 = vpop.f32.mrb[0].mxu0
        %2272 = vmatprep.mubr.f32.mxu0 0.0
        %2273 = vmatmul.mubr.f32.gmra.mrb[0].mxu0 %v2159
        %v2274 = vpop.f32.mrb[0].mxu0
        %v2275 = vadd.f32 0.0, %v2274
        %v2276 = vpop.f32.mrb[0].mxu0
        %2277 = vmatprep.mubr.f32.mxu0 0.0
        %2278 = vmatmul.mubr.f32.gmra.mrb[0].mxu0 %v2162
        %v2279 = vpop.f32.mrb[0].mxu0
        %v2280 = vadd.f32 0.0, %v2279
        %v2281 = vpop.f32.mrb[0].mxu0
        %2282 = vmatprep.mubr.f32.mxu0 0.0
        %2283 = vmatmul.mubr.f32.gmra.mrb[0].mxu0 %v2165
        %v2284 = vpop.f32.mrb[0].mxu0
        %v2285 = vadd.f32 0.0, %v2284
        %v2286 = vpop.f32.mrb[0].mxu0
        %2287 = vmatprep.mubr.f32.mxu0 0.0
        %2288 = vmatmul.mubr.f32.gmra.mrb[0].mxu0 %v2168
        %v2289 = vpop.f32.mrb[0].mxu0
        %v2290 = vadd.f32 0.0, %v2289
        %v2291 = vpop.f32.mrb[0].mxu0
        %2292 = vmatprep.mubr.f32.mxu0 0.0
        %2293 = vmatmul.mubr.f32.gmra.mrb[0].mxu0 %v2171
        %v2294 = vpop.f32.mrb[0].mxu0
        %v2295 = vadd.f32 0.0, %v2294
        %v2296 = vpop.f32.mrb[0].mxu0
        %2297 = vmatprep.mubr.f32.mxu0 0.0
        %2298 = vmatmul.mubr.f32.gmra.mrb[0].mxu0 %v2174
        %v2299 = vpop.f32.mrb[0].mxu0
        %v2300 = vadd.f32 0.0, %v2299
        %v2301 = vpop.f32.mrb[0].mxu0
        %2302 = vmatprep.mubr.f32.mxu0 0.0
        %2303 = vmatmul.mubr.f32.gmra.mrb[0].mxu0 %v2177
        %v2304 = vpop.f32.mrb[0].mxu0
        %v2305 = vadd.f32 0.0, %v2304
        %v2306 = vpop.f32.mrb[0].mxu0
        %2307 = vmatprep.mubr.f32.mxu0 0.0
        %2308 = vmatmul.mubr.f32.gmra.mrb[0].mxu0 %v2180
        %v2309 = vpop.f32.mrb[0].mxu0
        %v2310 = vadd.f32 0.0, %v2309
        %v2311 = vpop.f32.mrb[0].mxu0
        %2312 = vmatprep.mubr.f32.mxu0 0.0
        %2313 = vmatmul.mubr.f32.gmra.mrb[0].mxu0 %v2183
        %v2314 = vpop.f32.mrb[0].mxu0
        %v2315 = vadd.f32 0.0, %v2314
        %v2316 = vpop.f32.mrb[0].mxu0
        %2317 = vmatprep.mubr.f32.mxu0 0.0
        %2318 = vmatmul.mubr.f32.gmra.mrb[0].mxu0 %v2186
        %v2319 = vpop.f32.mrb[0].mxu0
        %v2320 = vadd.f32 0.0, %v2319
        %v2321 = vpop.f32.mrb[0].mxu0
        %2322 = vmatprep.mubr.f32.mxu0 0.0
        %2323 = vmatmul.mubr.f32.gmra.mrb[0].mxu0 %v2189
        %v2324 = vpop.f32.mrb[0].mxu0
        %v2325 = vadd.f32 0.0, %v2324
        %v2326 = vpop.f32.mrb[0].mxu0
        %2327 = vmatprep.mubr.f32.mxu0 0.0
        %2328 = vmatmul.mubr.f32.gmra.mrb[0].mxu0 %v2192
        %v2329 = vpop.f32.mrb[0].mxu0
        %v2330 = vadd.f32 0.0, %v2329
        %v2331 = vpop.f32.mrb[0].mxu0
        %2332 = vmatprep.mubr.f32.mxu0 0.0
        %2333 = vmatmul.mubr.f32.gmra.mrb[0].mxu0 %v2195
        %v2334 = vpop.f32.mrb[0].mxu0
        %v2335 = vadd.f32 0.0, %v2334
        %v2336 = vpop.f32.mrb[0].mxu0
        %2337 = vmatprep.mubr.f32.mxu0 0.0
        %2338 = vmatmul.mubr.f32.gmra.mrb[0].mxu0 %v2198
        %v2339 = vpop.f32.mrb[0].mxu0
        %v2340 = vadd.f32 0.0, %v2339
        %v2341 = vpop.f32.mrb[0].mxu0
        %2342 = vmatprep.mubr.f32.mxu0 0.0
        %2343 = vmatmul.mubr.f32.gmra.mrb[0].mxu0 %v2201
        %v2344 = vpop.f32.mrb[0].mxu0
        %v2345 = vadd.f32 0.0, %v2344
        %v2346 = vpop.f32.mrb[0].mxu0
        %2347 = vdwg.mxu0
        %v2348 = vadd.f32 %v2122, %v2270
        %v2349 = vadd.f32 %v2123, %v2275
        %v2350 = vadd.f32 %v2124, %v2280
        %v2351 = vadd.f32 %v2125, %v2285
        %v2352 = vadd.f32 %v2126, %v2290
        %v2353 = vadd.f32 %v2127, %v2295
        %v2354 = vadd.f32 %v2128, %v2300
        %v2355 = vadd.f32 %v2129, %v2305
        %v2356 = vadd.f32 %v2130, %v2310
        %v2357 = vadd.f32 %v2131, %v2315
        %v2358 = vadd.f32 %v2132, %v2320
        %v2359 = vadd.f32 %v2133, %v2325
        %v2360 = vadd.f32 %v2134, %v2330
        %v2361 = vadd.f32 %v2135, %v2335
        %v2362 = vadd.f32 %v2136, %v2340
        %v2363 = vadd.f32 %v2137, %v2345
        %v2364 = vld [vmem:[%s2138 + $0x1] sm:$0xff]
        %v2365 = vld [vmem:[%s2138 + $0x9] sm:$0xff]
        %v2366 = vld [vmem:[%s2138 + $0x19] sm:$0xff]
        %v2367 = vld [vmem:[%s2138 + $0x21] sm:$0xff]
        %v2368 = vld [vmem:[%s2138 + $0x31] sm:$0xff]
        %v2369 = vld [vmem:[%s2138 + $0x39] sm:$0xff]
        %v2370 = vld [vmem:[%s2138 + $0x49] sm:$0xff]
        %v2371 = vld [vmem:[%s2138 + $0x51] sm:$0xff]
        %v2372 = vld [vmem:[%s2138 + $0x61] sm:$0xff]
        %v2373 = vld [vmem:[%s2138 + $0x69] sm:$0xff]
        %v2374 = vld [vmem:[%s2138 + $0x79] sm:$0xff]
        %v2375 = vld [vmem:[%s2138 + $0x81] sm:$0xff]
        %v2376 = vld [vmem:[%s2138 + $0x91] sm:$0xff]
        %v2377 = vld [vmem:[%s2138 + $0x99] sm:$0xff]
        %v2378 = vld [vmem:[%s2138 + $0xa9] sm:$0xff]
        %v2379 = vld [vmem:[%s2138 + $0xb1] sm:$0xff]
        %v2381 = vsel %vm260, %v2364, 0
        %v2384 = vsel %vm260, %v2365, 0
        %v2387 = vsel %vm260, %v2366, 0
        %v2390 = vsel %vm260, %v2367, 0
        %v2393 = vsel %vm260, %v2368, 0
        %v2396 = vsel %vm260, %v2369, 0
        %v2399 = vsel %vm260, %v2370, 0
        %v2402 = vsel %vm260, %v2371, 0
        %v2405 = vsel %vm260, %v2372, 0
        %v2408 = vsel %vm260, %v2373, 0
        %v2411 = vsel %vm260, %v2374, 0
        %v2414 = vsel %vm260, %v2375, 0
        %v2417 = vsel %vm260, %v2376, 0
        %v2420 = vsel %vm260, %v2377, 0
        %v2423 = vsel %vm260, %v2378, 0
        %v2426 = vsel %vm260, %v2379, 0
        %2428 = vmatprep.subr.mxu0 0.0
        %2429 = vmatpush1.msra.mxu0 %v818
        %2430 = vmatprep.subr.mxu0 0.0
        %2431 = vmatpush1.msra.mxu0 0.0
        %2432 = vmatprep.subr.mxu0 0.0
        %2433 = vmatpush1.msra.mxu0 0.0
        %2434 = vmatprep.subr.mxu0 0.0
        %2435 = vmatpush1.msra.mxu0 0.0
        %2436 = vmatprep.subr.mxu0 0.0
        %2437 = vmatpush1.msra.mxu0 0.0
        %2438 = vmatprep.subr.mxu0 0.0
        %2439 = vmatpush1.msra.mxu0 0.0
        %2440 = vmatprep.subr.mxu0 0.0
        %2441 = vmatpush1.msra.mxu0 0.0
        %2442 = vmatprep.subr.mxu0 0.0
        %2443 = vmatpush1.msra.mxu0 0.0
        %2444 = vmatprep.subr.mxu0 0.0
        %2445 = vmatpush1.msra.mxu0 0.0
        %2446 = vmatprep.subr.mxu0 0.0
        %2447 = vmatpush1.msra.mxu0 0.0
        %2448 = vmatprep.subr.mxu0 0.0
        %2449 = vmatpush1.msra.mxu0 0.0
        %2450 = vmatprep.subr.mxu0 0.0
        %2451 = vmatpush1.msra.mxu0 0.0
        %2452 = vmatprep.subr.mxu0 0.0
        %2453 = vmatpush1.msra.mxu0 0.0
        %2454 = vmatprep.subr.mxu0 0.0
        %2455 = vmatpush1.msra.mxu0 0.0
        %2456 = vmatprep.subr.mxu0 0.0
        %2457 = vmatpush1.msra.mxu0 0.0
        %2458 = vmatprep.subr.mxu0 0.0
        %2459 = vmatpush1.msra.mxu0 0.0
        %2460 = vmatprep.subr.mxu0 0.0
        %2461 = vmatpush1.msra.mxu0 0.0
        %2462 = vmatprep.subr.mxu0 0.0
        %2463 = vmatpush1.msra.mxu0 0.0
        %2464 = vmatprep.subr.mxu0 0.0
        %2465 = vmatpush1.msra.mxu0 0.0
        %2466 = vmatprep.subr.mxu0 0.0
        %2467 = vmatpush1.msra.mxu0 0.0
        %2468 = vmatprep.subr.mxu0 0.0
        %2469 = vmatpush1.msra.mxu0 0.0
        %2470 = vmatprep.subr.mxu0 0.0
        %2471 = vmatpush1.msra.mxu0 0.0
        %2472 = vmatprep.subr.mxu0 0.0
        %2473 = vmatpush1.msra.mxu0 0.0
        %2474 = vmatprep.subr.mxu0 0.0
        %2475 = vmatpush1.msra.mxu0 0.0
        %2476 = vmatprep.subr.mxu0 0.0
        %2477 = vmatpush1.msra.mxu0 0.0
        %2478 = vmatprep.subr.mxu0 0.0
        %2479 = vmatpush1.msra.mxu0 0.0
        %2480 = vmatprep.subr.mxu0 0.0
        %2481 = vmatpush1.msra.mxu0 0.0
        %2482 = vmatprep.subr.mxu0 0.0
        %2483 = vmatpush1.msra.mxu0 0.0
        %2484 = vmatprep.subr.mxu0 0.0
        %2485 = vmatpush1.msra.mxu0 0.0
        %2486 = vmatprep.subr.mxu0 0.0
        %2487 = vmatpush1.msra.mxu0 0.0
        %2488 = vmatprep.subr.mxu0 0.0
        %2489 = vmatpush1.msra.mxu0 0.0
        %2490 = vmatprep.subr.mxu0 0.0
        %2491 = vmatpush1.msra.mxu0 0.0
        %2492 = vmatprep.mubr.f32.mxu0 0.0
        %2493 = vmatmul.mubr.f32.gmra.mrb[0].mxu0 %v2381
        %v2494 = vpop.f32.mrb[0].mxu0
        %v2495 = vadd.f32 0.0, %v2494
        %v2496 = vpop.f32.mrb[0].mxu0
        %2497 = vmatprep.mubr.f32.mxu0 0.0
        %2498 = vmatmul.mubr.f32.gmra.mrb[0].mxu0 %v2384
        %v2499 = vpop.f32.mrb[0].mxu0
        %v2500 = vadd.f32 0.0, %v2499
        %v2501 = vpop.f32.mrb[0].mxu0
        %2502 = vmatprep.mubr.f32.mxu0 0.0
        %2503 = vmatmul.mubr.f32.gmra.mrb[0].mxu0 %v2387
        %v2504 = vpop.f32.mrb[0].mxu0
        %v2505 = vadd.f32 0.0, %v2504
        %v2506 = vpop.f32.mrb[0].mxu0
        %2507 = vmatprep.mubr.f32.mxu0 0.0
        %2508 = vmatmul.mubr.f32.gmra.mrb[0].mxu0 %v2390
        %v2509 = vpop.f32.mrb[0].mxu0
        %v2510 = vadd.f32 0.0, %v2509
        %v2511 = vpop.f32.mrb[0].mxu0
        %2512 = vmatprep.mubr.f32.mxu0 0.0
        %2513 = vmatmul.mubr.f32.gmra.mrb[0].mxu0 %v2393
        %v2514 = vpop.f32.mrb[0].mxu0
        %v2515 = vadd.f32 0.0, %v2514
        %v2516 = vpop.f32.mrb[0].mxu0
        %2517 = vmatprep.mubr.f32.mxu0 0.0
        %2518 = vmatmul.mubr.f32.gmra.mrb[0].mxu0 %v2396
        %v2519 = vpop.f32.mrb[0].mxu0
        %v2520 = vadd.f32 0.0, %v2519
        %v2521 = vpop.f32.mrb[0].mxu0
        %2522 = vmatprep.mubr.f32.mxu0 0.0
        %2523 = vmatmul.mubr.f32.gmra.mrb[0].mxu0 %v2399
        %v2524 = vpop.f32.mrb[0].mxu0
        %v2525 = vadd.f32 0.0, %v2524
        %v2526 = vpop.f32.mrb[0].mxu0
        %2527 = vmatprep.mubr.f32.mxu0 0.0
        %2528 = vmatmul.mubr.f32.gmra.mrb[0].mxu0 %v2402
        %v2529 = vpop.f32.mrb[0].mxu0
        %v2530 = vadd.f32 0.0, %v2529
        %v2531 = vpop.f32.mrb[0].mxu0
        %2532 = vmatprep.mubr.f32.mxu0 0.0
        %2533 = vmatmul.mubr.f32.gmra.mrb[0].mxu0 %v2405
        %v2534 = vpop.f32.mrb[0].mxu0
        %v2535 = vadd.f32 0.0, %v2534
        %v2536 = vpop.f32.mrb[0].mxu0
        %2537 = vmatprep.mubr.f32.mxu0 0.0
        %2538 = vmatmul.mubr.f32.gmra.mrb[0].mxu0 %v2408
        %v2539 = vpop.f32.mrb[0].mxu0
        %v2540 = vadd.f32 0.0, %v2539
        %v2541 = vpop.f32.mrb[0].mxu0
        %2542 = vmatprep.mubr.f32.mxu0 0.0
        %2543 = vmatmul.mubr.f32.gmra.mrb[0].mxu0 %v2411
        %v2544 = vpop.f32.mrb[0].mxu0
        %v2545 = vadd.f32 0.0, %v2544
        %v2546 = vpop.f32.mrb[0].mxu0
        %2547 = vmatprep.mubr.f32.mxu0 0.0
        %2548 = vmatmul.mubr.f32.gmra.mrb[0].mxu0 %v2414
        %v2549 = vpop.f32.mrb[0].mxu0
        %v2550 = vadd.f32 0.0, %v2549
        %v2551 = vpop.f32.mrb[0].mxu0
        %2552 = vmatprep.mubr.f32.mxu0 0.0
        %2553 = vmatmul.mubr.f32.gmra.mrb[0].mxu0 %v2417
        %v2554 = vpop.f32.mrb[0].mxu0
        %v2555 = vadd.f32 0.0, %v2554
        %v2556 = vpop.f32.mrb[0].mxu0
        %2557 = vmatprep.mubr.f32.mxu0 0.0
        %2558 = vmatmul.mubr.f32.gmra.mrb[0].mxu0 %v2420
        %v2559 = vpop.f32.mrb[0].mxu0
        %v2560 = vadd.f32 0.0, %v2559
        %v2561 = vpop.f32.mrb[0].mxu0
        %2562 = vmatprep.mubr.f32.mxu0 0.0
        %2563 = vmatmul.mubr.f32.gmra.mrb[0].mxu0 %v2423
        %v2564 = vpop.f32.mrb[0].mxu0
        %v2565 = vadd.f32 0.0, %v2564
        %v2566 = vpop.f32.mrb[0].mxu0
        %2567 = vmatprep.mubr.f32.mxu0 0.0
        %2568 = vmatmul.mubr.f32.gmra.mrb[0].mxu0 %v2426
        %v2569 = vpop.f32.mrb[0].mxu0
        %v2570 = vadd.f32 0.0, %v2569
        %v2571 = vpop.f32.mrb[0].mxu0
        %2572 = vdwg.mxu0
        %v2573 = vadd.f32 %v2348, %v2495
        %v2574 = vadd.f32 %v2349, %v2500
        %v2575 = vadd.f32 %v2350, %v2505
        %v2576 = vadd.f32 %v2351, %v2510
        %v2577 = vadd.f32 %v2352, %v2515
        %v2578 = vadd.f32 %v2353, %v2520
        %v2579 = vadd.f32 %v2354, %v2525
        %v2580 = vadd.f32 %v2355, %v2530
        %v2581 = vadd.f32 %v2356, %v2535
        %v2582 = vadd.f32 %v2357, %v2540
        %v2583 = vadd.f32 %v2358, %v2545
        %v2584 = vadd.f32 %v2359, %v2550
        %v2585 = vadd.f32 %v2360, %v2555
        %v2586 = vadd.f32 %v2361, %v2560
        %v2587 = vadd.f32 %v2362, %v2565
        %v2588 = vadd.f32 %v2363, %v2570
        %v2589 = vld [vmem:[%s2138 + $0x2] sm:$0xff]
        %v2590 = vld [vmem:[%s2138 + $0xa] sm:$0xff]
        %v2591 = vld [vmem:[%s2138 + $0x1a] sm:$0xff]
        %v2592 = vld [vmem:[%s2138 + $0x22] sm:$0xff]
        %v2593 = vld [vmem:[%s2138 + $0x32] sm:$0xff]
        %v2594 = vld [vmem:[%s2138 + $0x3a] sm:$0xff]
        %v2595 = vld [vmem:[%s2138 + $0x4a] sm:$0xff]
        %v2596 = vld [vmem:[%s2138 + $0x52] sm:$0xff]
        %v2597 = vld [vmem:[%s2138 + $0x62] sm:$0xff]
        %v2598 = vld [vmem:[%s2138 + $0x6a] sm:$0xff]
        %v2599 = vld [vmem:[%s2138 + $0x7a] sm:$0xff]
        %v2600 = vld [vmem:[%s2138 + $0x82] sm:$0xff]
        %v2601 = vld [vmem:[%s2138 + $0x92] sm:$0xff]
        %v2602 = vld [vmem:[%s2138 + $0x9a] sm:$0xff]
        %v2603 = vld [vmem:[%s2138 + $0xaa] sm:$0xff]
        %v2604 = vld [vmem:[%s2138 + $0xb2] sm:$0xff]
        %v2606 = vsel %vm260, %v2589, 0
        %v2609 = vsel %vm260, %v2590, 0
        %v2612 = vsel %vm260, %v2591, 0
        %v2615 = vsel %vm260, %v2592, 0
        %v2618 = vsel %vm260, %v2593, 0
        %v2621 = vsel %vm260, %v2594, 0
        %v2624 = vsel %vm260, %v2595, 0
        %v2627 = vsel %vm260, %v2596, 0
        %v2630 = vsel %vm260, %v2597, 0
        %v2633 = vsel %vm260, %v2598, 0
        %v2636 = vsel %vm260, %v2599, 0
        %v2639 = vsel %vm260, %v2600, 0
        %v2642 = vsel %vm260, %v2601, 0
        %v2645 = vsel %vm260, %v2602, 0
        %v2648 = vsel %vm260, %v2603, 0
        %v2651 = vsel %vm260, %v2604, 0
        %2653 = vmatprep.subr.mxu0 0.0
        %2654 = vmatpush1.msra.mxu0 %v819
        %2655 = vmatprep.subr.mxu0 0.0
        %2656 = vmatpush1.msra.mxu0 0.0
        %2657 = vmatprep.subr.mxu0 0.0
        %2658 = vmatpush1.msra.mxu0 0.0
        %2659 = vmatprep.subr.mxu0 0.0
        %2660 = vmatpush1.msra.mxu0 0.0
        %2661 = vmatprep.subr.mxu0 0.0
        %2662 = vmatpush1.msra.mxu0 0.0
        %2663 = vmatprep.subr.mxu0 0.0
        %2664 = vmatpush1.msra.mxu0 0.0
        %2665 = vmatprep.subr.mxu0 0.0
        %2666 = vmatpush1.msra.mxu0 0.0
        %2667 = vmatprep.subr.mxu0 0.0
        %2668 = vmatpush1.msra.mxu0 0.0
        %2669 = vmatprep.subr.mxu0 0.0
        %2670 = vmatpush1.msra.mxu0 0.0
        %2671 = vmatprep.subr.mxu0 0.0
        %2672 = vmatpush1.msra.mxu0 0.0
        %2673 = vmatprep.subr.mxu0 0.0
        %2674 = vmatpush1.msra.mxu0 0.0
        %2675 = vmatprep.subr.mxu0 0.0
        %2676 = vmatpush1.msra.mxu0 0.0
        %2677 = vmatprep.subr.mxu0 0.0
        %2678 = vmatpush1.msra.mxu0 0.0
        %2679 = vmatprep.subr.mxu0 0.0
        %2680 = vmatpush1.msra.mxu0 0.0
        %2681 = vmatprep.subr.mxu0 0.0
        %2682 = vmatpush1.msra.mxu0 0.0
        %2683 = vmatprep.subr.mxu0 0.0
        %2684 = vmatpush1.msra.mxu0 0.0
        %2685 = vmatprep.subr.mxu0 0.0
        %2686 = vmatpush1.msra.mxu0 0.0
        %2687 = vmatprep.subr.mxu0 0.0
        %2688 = vmatpush1.msra.mxu0 0.0
        %2689 = vmatprep.subr.mxu0 0.0
        %2690 = vmatpush1.msra.mxu0 0.0
        %2691 = vmatprep.subr.mxu0 0.0
        %2692 = vmatpush1.msra.mxu0 0.0
        %2693 = vmatprep.subr.mxu0 0.0
        %2694 = vmatpush1.msra.mxu0 0.0
        %2695 = vmatprep.subr.mxu0 0.0
        %2696 = vmatpush1.msra.mxu0 0.0
        %2697 = vmatprep.subr.mxu0 0.0
        %2698 = vmatpush1.msra.mxu0 0.0
        %2699 = vmatprep.subr.mxu0 0.0
        %2700 = vmatpush1.msra.mxu0 0.0
        %2701 = vmatprep.subr.mxu0 0.0
        %2702 = vmatpush1.msra.mxu0 0.0
        %2703 = vmatprep.subr.mxu0 0.0
        %2704 = vmatpush1.msra.mxu0 0.0
        %2705 = vmatprep.subr.mxu0 0.0
        %2706 = vmatpush1.msra.mxu0 0.0
        %2707 = vmatprep.subr.mxu0 0.0
        %2708 = vmatpush1.msra.mxu0 0.0
        %2709 = vmatprep.subr.mxu0 0.0
        %2710 = vmatpush1.msra.mxu0 0.0
        %2711 = vmatprep.subr.mxu0 0.0
        %2712 = vmatpush1.msra.mxu0 0.0
        %2713 = vmatprep.subr.mxu0 0.0
        %2714 = vmatpush1.msra.mxu0 0.0
        %2715 = vmatprep.subr.mxu0 0.0
        %2716 = vmatpush1.msra.mxu0 0.0
        %2717 = vmatprep.mubr.f32.mxu0 0.0
        %2718 = vmatmul.mubr.f32.gmra.mrb[0].mxu0 %v2606
        %v2719 = vpop.f32.mrb[0].mxu0
        %v2720 = vadd.f32 0.0, %v2719
        %v2721 = vpop.f32.mrb[0].mxu0
        %2722 = vmatprep.mubr.f32.mxu0 0.0
        %2723 = vmatmul.mubr.f32.gmra.mrb[0].mxu0 %v2609
        %v2724 = vpop.f32.mrb[0].mxu0
        %v2725 = vadd.f32 0.0, %v2724
        %v2726 = vpop.f32.mrb[0].mxu0
        %2727 = vmatprep.mubr.f32.mxu0 0.0
        %2728 = vmatmul.mubr.f32.gmra.mrb[0].mxu0 %v2612
        %v2729 = vpop.f32.mrb[0].mxu0
        %v2730 = vadd.f32 0.0, %v2729
        %v2731 = vpop.f32.mrb[0].mxu0
        %2732 = vmatprep.mubr.f32.mxu0 0.0
        %2733 = vmatmul.mubr.f32.gmra.mrb[0].mxu0 %v2615
        %v2734 = vpop.f32.mrb[0].mxu0
        %v2735 = vadd.f32 0.0, %v2734
        %v2736 = vpop.f32.mrb[0].mxu0
        %2737 = vmatprep.mubr.f32.mxu0 0.0
        %2738 = vmatmul.mubr.f32.gmra.mrb[0].mxu0 %v2618
        %v2739 = vpop.f32.mrb[0].mxu0
        %v2740 = vadd.f32 0.0, %v2739
        %v2741 = vpop.f32.mrb[0].mxu0
        %2742 = vmatprep.mubr.f32.mxu0 0.0
        %2743 = vmatmul.mubr.f32.gmra.mrb[0].mxu0 %v2621
        %v2744 = vpop.f32.mrb[0].mxu0
        %v2745 = vadd.f32 0.0, %v2744
        %v2746 = vpop.f32.mrb[0].mxu0
        %2747 = vmatprep.mubr.f32.mxu0 0.0
        %2748 = vmatmul.mubr.f32.gmra.mrb[0].mxu0 %v2624
        %v2749 = vpop.f32.mrb[0].mxu0
        %v2750 = vadd.f32 0.0, %v2749
        %v2751 = vpop.f32.mrb[0].mxu0
        %2752 = vmatprep.mubr.f32.mxu0 0.0
        %2753 = vmatmul.mubr.f32.gmra.mrb[0].mxu0 %v2627
        %v2754 = vpop.f32.mrb[0].mxu0
        %v2755 = vadd.f32 0.0, %v2754
        %v2756 = vpop.f32.mrb[0].mxu0
        %2757 = vmatprep.mubr.f32.mxu0 0.0
        %2758 = vmatmul.mubr.f32.gmra.mrb[0].mxu0 %v2630
        %v2759 = vpop.f32.mrb[0].mxu0
        %v2760 = vadd.f32 0.0, %v2759
        %v2761 = vpop.f32.mrb[0].mxu0
        %2762 = vmatprep.mubr.f32.mxu0 0.0
        %2763 = vmatmul.mubr.f32.gmra.mrb[0].mxu0 %v2633
        %v2764 = vpop.f32.mrb[0].mxu0
        %v2765 = vadd.f32 0.0, %v2764
        %v2766 = vpop.f32.mrb[0].mxu0
        %2767 = vmatprep.mubr.f32.mxu0 0.0
        %2768 = vmatmul.mubr.f32.gmra.mrb[0].mxu0 %v2636
        %v2769 = vpop.f32.mrb[0].mxu0
        %v2770 = vadd.f32 0.0, %v2769
        %v2771 = vpop.f32.mrb[0].mxu0
        %2772 = vmatprep.mubr.f32.mxu0 0.0
        %2773 = vmatmul.mubr.f32.gmra.mrb[0].mxu0 %v2639
        %v2774 = vpop.f32.mrb[0].mxu0
        %v2775 = vadd.f32 0.0, %v2774
        %v2776 = vpop.f32.mrb[0].mxu0
        %2777 = vmatprep.mubr.f32.mxu0 0.0
        %2778 = vmatmul.mubr.f32.gmra.mrb[0].mxu0 %v2642
        %v2779 = vpop.f32.mrb[0].mxu0
        %v2780 = vadd.f32 0.0, %v2779
        %v2781 = vpop.f32.mrb[0].mxu0
        %2782 = vmatprep.mubr.f32.mxu0 0.0
        %2783 = vmatmul.mubr.f32.gmra.mrb[0].mxu0 %v2645
        %v2784 = vpop.f32.mrb[0].mxu0
        %v2785 = vadd.f32 0.0, %v2784
        %v2786 = vpop.f32.mrb[0].mxu0
        %2787 = vmatprep.mubr.f32.mxu0 0.0
        %2788 = vmatmul.mubr.f32.gmra.mrb[0].mxu0 %v2648
        %v2789 = vpop.f32.mrb[0].mxu0
        %v2790 = vadd.f32 0.0, %v2789
        %v2791 = vpop.f32.mrb[0].mxu0
        %2792 = vmatprep.mubr.f32.mxu0 0.0
        %2793 = vmatmul.mubr.f32.gmra.mrb[0].mxu0 %v2651
        %v2794 = vpop.f32.mrb[0].mxu0
        %v2795 = vadd.f32 0.0, %v2794
        %v2796 = vpop.f32.mrb[0].mxu0
        %2797 = vdwg.mxu0
        %v2798 = vadd.f32 %v2573, %v2720
        %v2799 = vadd.f32 %v2574, %v2725
        %v2800 = vadd.f32 %v2575, %v2730
        %v2801 = vadd.f32 %v2576, %v2735
        %v2802 = vadd.f32 %v2577, %v2740
        %v2803 = vadd.f32 %v2578, %v2745
        %v2804 = vadd.f32 %v2579, %v2750
        %v2805 = vadd.f32 %v2580, %v2755
        %v2806 = vadd.f32 %v2581, %v2760
        %v2807 = vadd.f32 %v2582, %v2765
        %v2808 = vadd.f32 %v2583, %v2770
        %v2809 = vadd.f32 %v2584, %v2775
        %v2810 = vadd.f32 %v2585, %v2780
        %v2811 = vadd.f32 %v2586, %v2785
        %v2812 = vadd.f32 %v2587, %v2790
        %v2813 = vadd.f32 %v2588, %v2795
        %v2814 = vld [vmem:[%s4] sm:$0x1]
        %v2815 = vlaneseq
        %v2816 = vshrl.u32 %v2815, 7
        %v2817 = vsub.s32 0, %v2816
        %v2818 = vrot.slane %v2814, %v2817
        %v2819 = vmul.f32 %v2798, %v2818
        %v2820 = vmul.f32 %v2799, %v2818
        %v2821 = vmul.f32 %v2800, %v2818
        %v2822 = vmul.f32 %v2801, %v2818
        %v2823 = vmul.f32 %v2802, %v2818
        %v2824 = vmul.f32 %v2803, %v2818
        %v2825 = vmul.f32 %v2804, %v2818
        %v2826 = vmul.f32 %v2805, %v2818
        %v2827 = vmul.f32 %v2806, %v2818
        %v2828 = vmul.f32 %v2807, %v2818
        %v2829 = vmul.f32 %v2808, %v2818
        %v2830 = vmul.f32 %v2809, %v2818
        %v2831 = vmul.f32 %v2810, %v2818
        %v2832 = vmul.f32 %v2811, %v2818
        %v2833 = vmul.f32 %v2812, %v2818
        %v2834 = vmul.f32 %v2813, %v2818
        %v2835 = vld [vmem:[%s4 + $0x1] sm:$0x1]
        %v2836 = vlaneseq
        %v2837 = vshrl.u32 %v2836, 7
        %v2838 = vsub.s32 0, %v2837
        %v2839 = vrot.slane %v2835, %v2838
        %v2840 = vadd.f32 %v2819, %v2839
        %v2841 = vadd.f32 %v2820, %v2839
        %v2842 = vadd.f32 %v2821, %v2839
        %v2843 = vadd.f32 %v2822, %v2839
        %v2844 = vadd.f32 %v2823, %v2839
        %v2845 = vadd.f32 %v2824, %v2839
        %v2846 = vadd.f32 %v2825, %v2839
        %v2847 = vadd.f32 %v2826, %v2839
        %v2848 = vadd.f32 %v2827, %v2839
        %v2849 = vadd.f32 %v2828, %v2839
        %v2850 = vadd.f32 %v2829, %v2839
        %v2851 = vadd.f32 %v2830, %v2839
        %v2852 = vadd.f32 %v2831, %v2839
        %v2853 = vadd.f32 %v2832, %v2839
        %v2854 = vadd.f32 %v2833, %v2839
        %v2855 = vadd.f32 %v2834, %v2839
        %v2856 = vmax.f32 %v2840, 0.0
        %v2857 = vmax.f32 %v2841, 0.0
        %v2858 = vmax.f32 %v2842, 0.0
        %v2859 = vmax.f32 %v2843, 0.0
        %v2860 = vmax.f32 %v2844, 0.0
        %v2861 = vmax.f32 %v2845, 0.0
        %v2862 = vmax.f32 %v2846, 0.0
        %v2863 = vmax.f32 %v2847, 0.0
        %v2864 = vmax.f32 %v2848, 0.0
        %v2865 = vmax.f32 %v2849, 0.0
        %v2866 = vmax.f32 %v2850, 0.0
        %v2867 = vmax.f32 %v2851, 0.0
        %v2868 = vmax.f32 %v2852, 0.0
        %v2869 = vmax.f32 %v2853, 0.0
        %v2870 = vmax.f32 %v2854, 0.0
        %v2871 = vmax.f32 %v2855, 0.0
        %2872 = vst.msk [vmem:[%s259] sm:$0xff] %vm260, %v2856
        %2873 = vst.msk [vmem:[%s259 + $0x8] sm:$0xff] %vm260, %v2857
        %2874 = vst.msk [vmem:[%s259 + $0x10] sm:$0xff] %vm260, %v2858
        %2875 = vst.msk [vmem:[%s259 + $0x18] sm:$0xff] %vm260, %v2859
        %2876 = vst.msk [vmem:[%s259 + $0x20] sm:$0xff] %vm260, %v2860
        %2877 = vst.msk [vmem:[%s259 + $0x28] sm:$0xff] %vm260, %v2861
        %2878 = vst.msk [vmem:[%s259 + $0x30] sm:$0xff] %vm260, %v2862
        %2879 = vst.msk [vmem:[%s259 + $0x38] sm:$0xff] %vm260, %v2863
        %2880 = vst.msk [vmem:[%s259 + $0x40] sm:$0xff] %vm260, %v2864
        %2881 = vst.msk [vmem:[%s259 + $0x48] sm:$0xff] %vm260, %v2865
        %2882 = vst.msk [vmem:[%s259 + $0x50] sm:$0xff] %vm260, %v2866
        %2883 = vst.msk [vmem:[%s259 + $0x58] sm:$0xff] %vm260, %v2867
        %2884 = vst.msk [vmem:[%s259 + $0x60] sm:$0xff] %vm260, %v2868
        %2885 = vst.msk [vmem:[%s259 + $0x68] sm:$0xff] %vm260, %v2869
        %2886 = vst.msk [vmem:[%s259 + $0x70] sm:$0xff] %vm260, %v2870
        %2887 = vst.msk [vmem:[%s259 + $0x78] sm:$0xff] %vm260, %v2871
        %s2888 = scalar_lea.vmem [#allocation2], 192
        %v2889 = vld [vmem:[%s2888] sm:$0xff]
        %v2890 = vld [vmem:[%s2888 + $0x8] sm:$0xff]
        %v2891 = vld [vmem:[%s2888 + $0x18] sm:$0xff]
        %v2892 = vld [vmem:[%s2888 + $0x20] sm:$0xff]
        %v2893 = vld [vmem:[%s2888 + $0x30] sm:$0xff]
        %v2894 = vld [vmem:[%s2888 + $0x38] sm:$0xff]
        %v2895 = vld [vmem:[%s2888 + $0x48] sm:$0xff]
        %v2896 = vld [vmem:[%s2888 + $0x50] sm:$0xff]
        %v2897 = vld [vmem:[%s2888 + $0x60] sm:$0xff]
        %v2898 = vld [vmem:[%s2888 + $0x68] sm:$0xff]
        %v2899 = vld [vmem:[%s2888 + $0x78] sm:$0xff]
        %v2900 = vld [vmem:[%s2888 + $0x80] sm:$0xff]
        %v2901 = vld [vmem:[%s2888 + $0x90] sm:$0xff]
        %v2902 = vld [vmem:[%s2888 + $0x98] sm:$0xff]
        %v2903 = vld [vmem:[%s2888 + $0xa8] sm:$0xff]
        %v2904 = vld [vmem:[%s2888 + $0xb0] sm:$0xff]
        %v2905 = vld [vmem:[%s2888 + $0x1] sm:$0xff]
        %v2906 = vld [vmem:[%s2888 + $0x9] sm:$0xff]
        %v2907 = vld [vmem:[%s2888 + $0x19] sm:$0xff]
        %v2908 = vld [vmem:[%s2888 + $0x21] sm:$0xff]
        %v2909 = vld [vmem:[%s2888 + $0x31] sm:$0xff]
        %v2910 = vld [vmem:[%s2888 + $0x39] sm:$0xff]
        %v2911 = vld [vmem:[%s2888 + $0x49] sm:$0xff]
        %v2912 = vld [vmem:[%s2888 + $0x51] sm:$0xff]
        %v2913 = vld [vmem:[%s2888 + $0x61] sm:$0xff]
        %v2914 = vld [vmem:[%s2888 + $0x69] sm:$0xff]
        %v2915 = vld [vmem:[%s2888 + $0x79] sm:$0xff]
        %v2916 = vld [vmem:[%s2888 + $0x81] sm:$0xff]
        %v2917 = vld [vmem:[%s2888 + $0x91] sm:$0xff]
        %v2918 = vld [vmem:[%s2888 + $0x99] sm:$0xff]
        %v2919 = vld [vmem:[%s2888 + $0xa9] sm:$0xff]
        %v2920 = vld [vmem:[%s2888 + $0xb1] sm:$0xff]
        %v2922 = vsel %vm260, %v2905, 0
        %v2925 = vsel %vm260, %v2906, 0
        %v2928 = vsel %vm260, %v2907, 0
        %v2931 = vsel %vm260, %v2908, 0
        %v2934 = vsel %vm260, %v2909, 0
        %v2937 = vsel %vm260, %v2910, 0
        %v2940 = vsel %vm260, %v2911, 0
        %v2943 = vsel %vm260, %v2912, 0
        %v2946 = vsel %vm260, %v2913, 0
        %v2949 = vsel %vm260, %v2914, 0
        %v2952 = vsel %vm260, %v2915, 0
        %v2955 = vsel %vm260, %v2916, 0
        %v2958 = vsel %vm260, %v2917, 0
        %v2961 = vsel %vm260, %v2918, 0
        %v2964 = vsel %vm260, %v2919, 0
        %v2967 = vsel %vm260, %v2920, 0
        %2969 = vmatprep.subr.mxu0 0.0
        %2970 = vmatpush1.msra.mxu0 %v812
        %2971 = vmatprep.subr.mxu0 0.0
        %2972 = vmatpush1.msra.mxu0 0.0
        %2973 = vmatprep.subr.mxu0 0.0
        %2974 = vmatpush1.msra.mxu0 0.0
        %2975 = vmatprep.subr.mxu0 0.0
        %2976 = vmatpush1.msra.mxu0 0.0
        %2977 = vmatprep.subr.mxu0 0.0
        %2978 = vmatpush1.msra.mxu0 0.0
        %2979 = vmatprep.subr.mxu0 0.0
        %2980 = vmatpush1.msra.mxu0 0.0
        %2981 = vmatprep.subr.mxu0 0.0
        %2982 = vmatpush1.msra.mxu0 0.0
        %2983 = vmatprep.subr.mxu0 0.0
        %2984 = vmatpush1.msra.mxu0 0.0
        %2985 = vmatprep.subr.mxu0 0.0
        %2986 = vmatpush1.msra.mxu0 0.0
        %2987 = vmatprep.subr.mxu0 0.0
        %2988 = vmatpush1.msra.mxu0 0.0
        %2989 = vmatprep.subr.mxu0 0.0
        %2990 = vmatpush1.msra.mxu0 0.0
        %2991 = vmatprep.subr.mxu0 0.0
        %2992 = vmatpush1.msra.mxu0 0.0
        %2993 = vmatprep.subr.mxu0 0.0
        %2994 = vmatpush1.msra.mxu0 0.0
        %2995 = vmatprep.subr.mxu0 0.0
        %2996 = vmatpush1.msra.mxu0 0.0
        %2997 = vmatprep.subr.mxu0 0.0
        %2998 = vmatpush1.msra.mxu0 0.0
        %2999 = vmatprep.subr.mxu0 0.0
        %3000 = vmatpush1.msra.mxu0 0.0
        %3001 = vmatprep.subr.mxu0 0.0
        %3002 = vmatpush1.msra.mxu0 0.0
        %3003 = vmatprep.subr.mxu0 0.0
        %3004 = vmatpush1.msra.mxu0 0.0
        %3005 = vmatprep.subr.mxu0 0.0
        %3006 = vmatpush1.msra.mxu0 0.0
        %3007 = vmatprep.subr.mxu0 0.0
        %3008 = vmatpush1.msra.mxu0 0.0
        %3009 = vmatprep.subr.mxu0 0.0
        %3010 = vmatpush1.msra.mxu0 0.0
        %3011 = vmatprep.subr.mxu0 0.0
        %3012 = vmatpush1.msra.mxu0 0.0
        %3013 = vmatprep.subr.mxu0 0.0
        %3014 = vmatpush1.msra.mxu0 0.0
        %3015 = vmatprep.subr.mxu0 0.0
        %3016 = vmatpush1.msra.mxu0 0.0
        %3017 = vmatprep.subr.mxu0 0.0
        %3018 = vmatpush1.msra.mxu0 0.0
        %3019 = vmatprep.subr.mxu0 0.0
        %3020 = vmatpush1.msra.mxu0 0.0
        %3021 = vmatprep.subr.mxu0 0.0
        %3022 = vmatpush1.msra.mxu0 0.0
        %3023 = vmatprep.subr.mxu0 0.0
        %3024 = vmatpush1.msra.mxu0 0.0
        %3025 = vmatprep.subr.mxu0 0.0
        %3026 = vmatpush1.msra.mxu0 0.0
        %3027 = vmatprep.subr.mxu0 0.0
        %3028 = vmatpush1.msra.mxu0 0.0
        %3029 = vmatprep.subr.mxu0 0.0
        %3030 = vmatpush1.msra.mxu0 0.0
        %3031 = vmatprep.subr.mxu0 0.0
        %3032 = vmatpush1.msra.mxu0 0.0
        %3033 = vmatprep.mubr.f32.mxu0 0.0
        %3034 = vmatmul.mubr.f32.gmra.mrb[0].mxu0 %v2922
        %v3035 = vpop.f32.mrb[0].mxu0
        %v3036 = vadd.f32 0.0, %v3035
        %v3037 = vpop.f32.mrb[0].mxu0
        %3038 = vmatprep.mubr.f32.mxu0 0.0
        %3039 = vmatmul.mubr.f32.gmra.mrb[0].mxu0 %v2925
        %v3040 = vpop.f32.mrb[0].mxu0
        %v3041 = vadd.f32 0.0, %v3040
        %v3042 = vpop.f32.mrb[0].mxu0
        %3043 = vmatprep.mubr.f32.mxu0 0.0
        %3044 = vmatmul.mubr.f32.gmra.mrb[0].mxu0 %v2928
        %v3045 = vpop.f32.mrb[0].mxu0
        %v3046 = vadd.f32 0.0, %v3045
        %v3047 = vpop.f32.mrb[0].mxu0
        %3048 = vmatprep.mubr.f32.mxu0 0.0
        %3049 = vmatmul.mubr.f32.gmra.mrb[0].mxu0 %v2931
        %v3050 = vpop.f32.mrb[0].mxu0
        %v3051 = vadd.f32 0.0, %v3050
        %v3052 = vpop.f32.mrb[0].mxu0
        %3053 = vmatprep.mubr.f32.mxu0 0.0
        %3054 = vmatmul.mubr.f32.gmra.mrb[0].mxu0 %v2934
        %v3055 = vpop.f32.mrb[0].mxu0
        %v3056 = vadd.f32 0.0, %v3055
        %v3057 = vpop.f32.mrb[0].mxu0
        %3058 = vmatprep.mubr.f32.mxu0 0.0
        %3059 = vmatmul.mubr.f32.gmra.mrb[0].mxu0 %v2937
        %v3060 = vpop.f32.mrb[0].mxu0
        %v3061 = vadd.f32 0.0, %v3060
        %v3062 = vpop.f32.mrb[0].mxu0
        %3063 = vmatprep.mubr.f32.mxu0 0.0
        %3064 = vmatmul.mubr.f32.gmra.mrb[0].mxu0 %v2940
        %v3065 = vpop.f32.mrb[0].mxu0
        %v3066 = vadd.f32 0.0, %v3065
        %v3067 = vpop.f32.mrb[0].mxu0
        %3068 = vmatprep.mubr.f32.mxu0 0.0
        %3069 = vmatmul.mubr.f32.gmra.mrb[0].mxu0 %v2943
        %v3070 = vpop.f32.mrb[0].mxu0
        %v3071 = vadd.f32 0.0, %v3070
        %v3072 = vpop.f32.mrb[0].mxu0
        %3073 = vmatprep.mubr.f32.mxu0 0.0
        %3074 = vmatmul.mubr.f32.gmra.mrb[0].mxu0 %v2946
        %v3075 = vpop.f32.mrb[0].mxu0
        %v3076 = vadd.f32 0.0, %v3075
        %v3077 = vpop.f32.mrb[0].mxu0
        %3078 = vmatprep.mubr.f32.mxu0 0.0
        %3079 = vmatmul.mubr.f32.gmra.mrb[0].mxu0 %v2949
        %v3080 = vpop.f32.mrb[0].mxu0
        %v3081 = vadd.f32 0.0, %v3080
        %v3082 = vpop.f32.mrb[0].mxu0
        %3083 = vmatprep.mubr.f32.mxu0 0.0
        %3084 = vmatmul.mubr.f32.gmra.mrb[0].mxu0 %v2952
        %v3085 = vpop.f32.mrb[0].mxu0
        %v3086 = vadd.f32 0.0, %v3085
        %v3087 = vpop.f32.mrb[0].mxu0
        %3088 = vmatprep.mubr.f32.mxu0 0.0
        %3089 = vmatmul.mubr.f32.gmra.mrb[0].mxu0 %v2955
        %v3090 = vpop.f32.mrb[0].mxu0
        %v3091 = vadd.f32 0.0, %v3090
        %v3092 = vpop.f32.mrb[0].mxu0
        %3093 = vmatprep.mubr.f32.mxu0 0.0
        %3094 = vmatmul.mubr.f32.gmra.mrb[0].mxu0 %v2958
        %v3095 = vpop.f32.mrb[0].mxu0
        %v3096 = vadd.f32 0.0, %v3095
        %v3097 = vpop.f32.mrb[0].mxu0
        %3098 = vmatprep.mubr.f32.mxu0 0.0
        %3099 = vmatmul.mubr.f32.gmra.mrb[0].mxu0 %v2961
        %v3100 = vpop.f32.mrb[0].mxu0
        %v3101 = vadd.f32 0.0, %v3100
        %v3102 = vpop.f32.mrb[0].mxu0
        %3103 = vmatprep.mubr.f32.mxu0 0.0
        %3104 = vmatmul.mubr.f32.gmra.mrb[0].mxu0 %v2964
        %v3105 = vpop.f32.mrb[0].mxu0
        %v3106 = vadd.f32 0.0, %v3105
        %v3107 = vpop.f32.mrb[0].mxu0
        %3108 = vmatprep.mubr.f32.mxu0 0.0
        %3109 = vmatmul.mubr.f32.gmra.mrb[0].mxu0 %v2967
        %v3110 = vpop.f32.mrb[0].mxu0
        %v3111 = vadd.f32 0.0, %v3110
        %v3112 = vpop.f32.mrb[0].mxu0
        %3113 = vdwg.mxu0
        %v3115 = vsel %vm260, %v2889, 0
        %v3118 = vsel %vm260, %v2890, 0
        %v3121 = vsel %vm260, %v2891, 0
        %v3124 = vsel %vm260, %v2892, 0
        %v3127 = vsel %vm260, %v2893, 0
        %v3130 = vsel %vm260, %v2894, 0
        %v3133 = vsel %vm260, %v2895, 0
        %v3136 = vsel %vm260, %v2896, 0
        %v3139 = vsel %vm260, %v2897, 0
        %v3142 = vsel %vm260, %v2898, 0
        %v3145 = vsel %vm260, %v2899, 0
        %v3148 = vsel %vm260, %v2900, 0
        %v3151 = vsel %vm260, %v2901, 0
        %v3154 = vsel %vm260, %v2902, 0
        %v3157 = vsel %vm260, %v2903, 0
        %v3160 = vsel %vm260, %v2904, 0
        %3162 = vmatprep.subr.mxu0 0.0
        %3163 = vmatpush1.msra.mxu0 %v811
        %3164 = vmatprep.subr.mxu0 0.0
        %3165 = vmatpush1.msra.mxu0 0.0
        %3166 = vmatprep.subr.mxu0 0.0
        %3167 = vmatpush1.msra.mxu0 0.0
        %3168 = vmatprep.subr.mxu0 0.0
        %3169 = vmatpush1.msra.mxu0 0.0
        %3170 = vmatprep.subr.mxu0 0.0
        %3171 = vmatpush1.msra.mxu0 0.0
        %3172 = vmatprep.subr.mxu0 0.0
        %3173 = vmatpush1.msra.mxu0 0.0
        %3174 = vmatprep.subr.mxu0 0.0
        %3175 = vmatpush1.msra.mxu0 0.0
        %3176 = vmatprep.subr.mxu0 0.0
        %3177 = vmatpush1.msra.mxu0 0.0
        %3178 = vmatprep.subr.mxu0 0.0
        %3179 = vmatpush1.msra.mxu0 0.0
        %3180 = vmatprep.subr.mxu0 0.0
        %3181 = vmatpush1.msra.mxu0 0.0
        %3182 = vmatprep.subr.mxu0 0.0
        %3183 = vmatpush1.msra.mxu0 0.0
        %3184 = vmatprep.subr.mxu0 0.0
        %3185 = vmatpush1.msra.mxu0 0.0
        %3186 = vmatprep.subr.mxu0 0.0
        %3187 = vmatpush1.msra.mxu0 0.0
        %3188 = vmatprep.subr.mxu0 0.0
        %3189 = vmatpush1.msra.mxu0 0.0
        %3190 = vmatprep.subr.mxu0 0.0
        %3191 = vmatpush1.msra.mxu0 0.0
        %3192 = vmatprep.subr.mxu0 0.0
        %3193 = vmatpush1.msra.mxu0 0.0
        %3194 = vmatprep.subr.mxu0 0.0
        %3195 = vmatpush1.msra.mxu0 0.0
        %3196 = vmatprep.subr.mxu0 0.0
        %3197 = vmatpush1.msra.mxu0 0.0
        %3198 = vmatprep.subr.mxu0 0.0
        %3199 = vmatpush1.msra.mxu0 0.0
        %3200 = vmatprep.subr.mxu0 0.0
        %3201 = vmatpush1.msra.mxu0 0.0
        %3202 = vmatprep.subr.mxu0 0.0
        %3203 = vmatpush1.msra.mxu0 0.0
        %3204 = vmatprep.subr.mxu0 0.0
        %3205 = vmatpush1.msra.mxu0 0.0
        %3206 = vmatprep.subr.mxu0 0.0
        %3207 = vmatpush1.msra.mxu0 0.0
        %3208 = vmatprep.subr.mxu0 0.0
        %3209 = vmatpush1.msra.mxu0 0.0
        %3210 = vmatprep.subr.mxu0 0.0
        %3211 = vmatpush1.msra.mxu0 0.0
        %3212 = vmatprep.subr.mxu0 0.0
        %3213 = vmatpush1.msra.mxu0 0.0
        %3214 = vmatprep.subr.mxu0 0.0
        %3215 = vmatpush1.msra.mxu0 0.0
        %3216 = vmatprep.subr.mxu0 0.0
        %3217 = vmatpush1.msra.mxu0 0.0
        %3218 = vmatprep.subr.mxu0 0.0
        %3219 = vmatpush1.msra.mxu0 0.0
        %3220 = vmatprep.subr.mxu0 0.0
        %3221 = vmatpush1.msra.mxu0 0.0
        %3222 = vmatprep.subr.mxu0 0.0
        %3223 = vmatpush1.msra.mxu0 0.0
        %3224 = vmatprep.subr.mxu0 0.0
        %3225 = vmatpush1.msra.mxu0 0.0
        %3226 = vmatprep.mubr.f32.mxu0 0.0
        %3227 = vmatmul.mubr.f32.gmra.mrb[0].mxu0 %v3115
        %v3228 = vpop.f32.mrb[0].mxu0
        %v3229 = vadd.f32 %v3036, %v3228
        %v3230 = vpop.f32.mrb[0].mxu0
        %3231 = vmatprep.mubr.f32.mxu0 0.0
        %3232 = vmatmul.mubr.f32.gmra.mrb[0].mxu0 %v3118
        %v3233 = vpop.f32.mrb[0].mxu0
        %v3234 = vadd.f32 %v3041, %v3233
        %v3235 = vpop.f32.mrb[0].mxu0
        %3236 = vmatprep.mubr.f32.mxu0 0.0
        %3237 = vmatmul.mubr.f32.gmra.mrb[0].mxu0 %v3121
        %v3238 = vpop.f32.mrb[0].mxu0
        %v3239 = vadd.f32 %v3046, %v3238
        %v3240 = vpop.f32.mrb[0].mxu0
        %3241 = vmatprep.mubr.f32.mxu0 0.0
        %3242 = vmatmul.mubr.f32.gmra.mrb[0].mxu0 %v3124
        %v3243 = vpop.f32.mrb[0].mxu0
        %v3244 = vadd.f32 %v3051, %v3243
        %v3245 = vpop.f32.mrb[0].mxu0
        %3246 = vmatprep.mubr.f32.mxu0 0.0
        %3247 = vmatmul.mubr.f32.gmra.mrb[0].mxu0 %v3127
        %v3248 = vpop.f32.mrb[0].mxu0
        %v3249 = vadd.f32 %v3056, %v3248
        %v3250 = vpop.f32.mrb[0].mxu0
        %3251 = vmatprep.mubr.f32.mxu0 0.0
        %3252 = vmatmul.mubr.f32.gmra.mrb[0].mxu0 %v3130
        %v3253 = vpop.f32.mrb[0].mxu0
        %v3254 = vadd.f32 %v3061, %v3253
        %v3255 = vpop.f32.mrb[0].mxu0
        %3256 = vmatprep.mubr.f32.mxu0 0.0
        %3257 = vmatmul.mubr.f32.gmra.mrb[0].mxu0 %v3133
        %v3258 = vpop.f32.mrb[0].mxu0
        %v3259 = vadd.f32 %v3066, %v3258
        %v3260 = vpop.f32.mrb[0].mxu0
        %3261 = vmatprep.mubr.f32.mxu0 0.0
        %3262 = vmatmul.mubr.f32.gmra.mrb[0].mxu0 %v3136
        %v3263 = vpop.f32.mrb[0].mxu0
        %v3264 = vadd.f32 %v3071, %v3263
        %v3265 = vpop.f32.mrb[0].mxu0
        %3266 = vmatprep.mubr.f32.mxu0 0.0
        %3267 = vmatmul.mubr.f32.gmra.mrb[0].mxu0 %v3139
        %v3268 = vpop.f32.mrb[0].mxu0
        %v3269 = vadd.f32 %v3076, %v3268
        %v3270 = vpop.f32.mrb[0].mxu0
        %3271 = vmatprep.mubr.f32.mxu0 0.0
        %3272 = vmatmul.mubr.f32.gmra.mrb[0].mxu0 %v3142
        %v3273 = vpop.f32.mrb[0].mxu0
        %v3274 = vadd.f32 %v3081, %v3273
        %v3275 = vpop.f32.mrb[0].mxu0
        %3276 = vmatprep.mubr.f32.mxu0 0.0
        %3277 = vmatmul.mubr.f32.gmra.mrb[0].mxu0 %v3145
        %v3278 = vpop.f32.mrb[0].mxu0
        %v3279 = vadd.f32 %v3086, %v3278
        %v3280 = vpop.f32.mrb[0].mxu0
        %3281 = vmatprep.mubr.f32.mxu0 0.0
        %3282 = vmatmul.mubr.f32.gmra.mrb[0].mxu0 %v3148
        %v3283 = vpop.f32.mrb[0].mxu0
        %v3284 = vadd.f32 %v3091, %v3283
        %v3285 = vpop.f32.mrb[0].mxu0
        %3286 = vmatprep.mubr.f32.mxu0 0.0
        %3287 = vmatmul.mubr.f32.gmra.mrb[0].mxu0 %v3151
        %v3288 = vpop.f32.mrb[0].mxu0
        %v3289 = vadd.f32 %v3096, %v3288
        %v3290 = vpop.f32.mrb[0].mxu0
        %3291 = vmatprep.mubr.f32.mxu0 0.0
        %3292 = vmatmul.mubr.f32.gmra.mrb[0].mxu0 %v3154
        %v3293 = vpop.f32.mrb[0].mxu0
        %v3294 = vadd.f32 %v3101, %v3293
        %v3295 = vpop.f32.mrb[0].mxu0
        %3296 = vmatprep.mubr.f32.mxu0 0.0
        %3297 = vmatmul.mubr.f32.gmra.mrb[0].mxu0 %v3157
        %v3298 = vpop.f32.mrb[0].mxu0
        %v3299 = vadd.f32 %v3106, %v3298
        %v3300 = vpop.f32.mrb[0].mxu0
        %3301 = vmatprep.mubr.f32.mxu0 0.0
        %3302 = vmatmul.mubr.f32.gmra.mrb[0].mxu0 %v3160
        %v3303 = vpop.f32.mrb[0].mxu0
        %v3304 = vadd.f32 %v3111, %v3303
        %v3305 = vpop.f32.mrb[0].mxu0
        %3306 = vdwg.mxu0
        %v3307 = vld [vmem:[%s2888 + $0x2] sm:$0xff]
        %v3308 = vld [vmem:[%s2888 + $0xa] sm:$0xff]
        %v3309 = vld [vmem:[%s2888 + $0x1a] sm:$0xff]
        %v3310 = vld [vmem:[%s2888 + $0x22] sm:$0xff]
        %v3311 = vld [vmem:[%s2888 + $0x32] sm:$0xff]
        %v3312 = vld [vmem:[%s2888 + $0x3a] sm:$0xff]
        %v3313 = vld [vmem:[%s2888 + $0x4a] sm:$0xff]
        %v3314 = vld [vmem:[%s2888 + $0x52] sm:$0xff]
        %v3315 = vld [vmem:[%s2888 + $0x62] sm:$0xff]
        %v3316 = vld [vmem:[%s2888 + $0x6a] sm:$0xff]
        %v3317 = vld [vmem:[%s2888 + $0x7a] sm:$0xff]
        %v3318 = vld [vmem:[%s2888 + $0x82] sm:$0xff]
        %v3319 = vld [vmem:[%s2888 + $0x92] sm:$0xff]
        %v3320 = vld [vmem:[%s2888 + $0x9a] sm:$0xff]
        %v3321 = vld [vmem:[%s2888 + $0xaa] sm:$0xff]
        %v3322 = vld [vmem:[%s2888 + $0xb2] sm:$0xff]
        %v3324 = vsel %vm260, %v3307, 0
        %v3327 = vsel %vm260, %v3308, 0
        %v3330 = vsel %vm260, %v3309, 0
        %v3333 = vsel %vm260, %v3310, 0
        %v3336 = vsel %vm260, %v3311, 0
        %v3339 = vsel %vm260, %v3312, 0
        %v3342 = vsel %vm260, %v3313, 0
        %v3345 = vsel %vm260, %v3314, 0
        %v3348 = vsel %vm260, %v3315, 0
        %v3351 = vsel %vm260, %v3316, 0
        %v3354 = vsel %vm260, %v3317, 0
        %v3357 = vsel %vm260, %v3318, 0
        %v3360 = vsel %vm260, %v3319, 0
        %v3363 = vsel %vm260, %v3320, 0
        %v3366 = vsel %vm260, %v3321, 0
        %v3369 = vsel %vm260, %v3322, 0
        %3371 = vmatprep.subr.mxu0 0.0
        %3372 = vmatpush1.msra.mxu0 %v813
        %3373 = vmatprep.subr.mxu0 0.0
        %3374 = vmatpush1.msra.mxu0 0.0
        %3375 = vmatprep.subr.mxu0 0.0
        %3376 = vmatpush1.msra.mxu0 0.0
        %3377 = vmatprep.subr.mxu0 0.0
        %3378 = vmatpush1.msra.mxu0 0.0
        %3379 = vmatprep.subr.mxu0 0.0
        %3380 = vmatpush1.msra.mxu0 0.0
        %3381 = vmatprep.subr.mxu0 0.0
        %3382 = vmatpush1.msra.mxu0 0.0
        %3383 = vmatprep.subr.mxu0 0.0
        %3384 = vmatpush1.msra.mxu0 0.0
        %3385 = vmatprep.subr.mxu0 0.0
        %3386 = vmatpush1.msra.mxu0 0.0
        %3387 = vmatprep.subr.mxu0 0.0
        %3388 = vmatpush1.msra.mxu0 0.0
        %3389 = vmatprep.subr.mxu0 0.0
        %3390 = vmatpush1.msra.mxu0 0.0
        %3391 = vmatprep.subr.mxu0 0.0
        %3392 = vmatpush1.msra.mxu0 0.0
        %3393 = vmatprep.subr.mxu0 0.0
        %3394 = vmatpush1.msra.mxu0 0.0
        %3395 = vmatprep.subr.mxu0 0.0
        %3396 = vmatpush1.msra.mxu0 0.0
        %3397 = vmatprep.subr.mxu0 0.0
        %3398 = vmatpush1.msra.mxu0 0.0
        %3399 = vmatprep.subr.mxu0 0.0
        %3400 = vmatpush1.msra.mxu0 0.0
        %3401 = vmatprep.subr.mxu0 0.0
        %3402 = vmatpush1.msra.mxu0 0.0
        %3403 = vmatprep.subr.mxu0 0.0
        %3404 = vmatpush1.msra.mxu0 0.0
        %3405 = vmatprep.subr.mxu0 0.0
        %3406 = vmatpush1.msra.mxu0 0.0
        %3407 = vmatprep.subr.mxu0 0.0
        %3408 = vmatpush1.msra.mxu0 0.0
        %3409 = vmatprep.subr.mxu0 0.0
        %3410 = vmatpush1.msra.mxu0 0.0
        %3411 = vmatprep.subr.mxu0 0.0
        %3412 = vmatpush1.msra.mxu0 0.0
        %3413 = vmatprep.subr.mxu0 0.0
        %3414 = vmatpush1.msra.mxu0 0.0
        %3415 = vmatprep.subr.mxu0 0.0
        %3416 = vmatpush1.msra.mxu0 0.0
        %3417 = vmatprep.subr.mxu0 0.0
        %3418 = vmatpush1.msra.mxu0 0.0
        %3419 = vmatprep.subr.mxu0 0.0
        %3420 = vmatpush1.msra.mxu0 0.0
        %3421 = vmatprep.subr.mxu0 0.0
        %3422 = vmatpush1.msra.mxu0 0.0
        %3423 = vmatprep.subr.mxu0 0.0
        %3424 = vmatpush1.msra.mxu0 0.0
        %3425 = vmatprep.subr.mxu0 0.0
        %3426 = vmatpush1.msra.mxu0 0.0
        %3427 = vmatprep.subr.mxu0 0.0
        %3428 = vmatpush1.msra.mxu0 0.0
        %3429 = vmatprep.subr.mxu0 0.0
        %3430 = vmatpush1.msra.mxu0 0.0
        %3431 = vmatprep.subr.mxu0 0.0
        %3432 = vmatpush1.msra.mxu0 0.0
        %3433 = vmatprep.subr.mxu0 0.0
        %3434 = vmatpush1.msra.mxu0 0.0
        %3435 = vmatprep.mubr.f32.mxu0 0.0
        %3436 = vmatmul.mubr.f32.gmra.mrb[0].mxu0 %v3324
        %v3437 = vpop.f32.mrb[0].mxu0
        %v3438 = vadd.f32 0.0, %v3437
        %v3439 = vpop.f32.mrb[0].mxu0
        %3440 = vmatprep.mubr.f32.mxu0 0.0
        %3441 = vmatmul.mubr.f32.gmra.mrb[0].mxu0 %v3327
        %v3442 = vpop.f32.mrb[0].mxu0
        %v3443 = vadd.f32 0.0, %v3442
        %v3444 = vpop.f32.mrb[0].mxu0
        %3445 = vmatprep.mubr.f32.mxu0 0.0
        %3446 = vmatmul.mubr.f32.gmra.mrb[0].mxu0 %v3330
        %v3447 = vpop.f32.mrb[0].mxu0
        %v3448 = vadd.f32 0.0, %v3447
        %v3449 = vpop.f32.mrb[0].mxu0
        %3450 = vmatprep.mubr.f32.mxu0 0.0
        %3451 = vmatmul.mubr.f32.gmra.mrb[0].mxu0 %v3333
        %v3452 = vpop.f32.mrb[0].mxu0
        %v3453 = vadd.f32 0.0, %v3452
        %v3454 = vpop.f32.mrb[0].mxu0
        %3455 = vmatprep.mubr.f32.mxu0 0.0
        %3456 = vmatmul.mubr.f32.gmra.mrb[0].mxu0 %v3336
        %v3457 = vpop.f32.mrb[0].mxu0
        %v3458 = vadd.f32 0.0, %v3457
        %v3459 = vpop.f32.mrb[0].mxu0
        %3460 = vmatprep.mubr.f32.mxu0 0.0
        %3461 = vmatmul.mubr.f32.gmra.mrb[0].mxu0 %v3339
        %v3462 = vpop.f32.mrb[0].mxu0
        %v3463 = vadd.f32 0.0, %v3462
        %v3464 = vpop.f32.mrb[0].mxu0
        %3465 = vmatprep.mubr.f32.mxu0 0.0
        %3466 = vmatmul.mubr.f32.gmra.mrb[0].mxu0 %v3342
        %v3467 = vpop.f32.mrb[0].mxu0
        %v3468 = vadd.f32 0.0, %v3467
        %v3469 = vpop.f32.mrb[0].mxu0
        %3470 = vmatprep.mubr.f32.mxu0 0.0
        %3471 = vmatmul.mubr.f32.gmra.mrb[0].mxu0 %v3345
        %v3472 = vpop.f32.mrb[0].mxu0
        %v3473 = vadd.f32 0.0, %v3472
        %v3474 = vpop.f32.mrb[0].mxu0
        %3475 = vmatprep.mubr.f32.mxu0 0.0
        %3476 = vmatmul.mubr.f32.gmra.mrb[0].mxu0 %v3348
        %v3477 = vpop.f32.mrb[0].mxu0
        %v3478 = vadd.f32 0.0, %v3477
        %v3479 = vpop.f32.mrb[0].mxu0
        %3480 = vmatprep.mubr.f32.mxu0 0.0
        %3481 = vmatmul.mubr.f32.gmra.mrb[0].mxu0 %v3351
        %v3482 = vpop.f32.mrb[0].mxu0
        %v3483 = vadd.f32 0.0, %v3482
        %v3484 = vpop.f32.mrb[0].mxu0
        %3485 = vmatprep.mubr.f32.mxu0 0.0
        %3486 = vmatmul.mubr.f32.gmra.mrb[0].mxu0 %v3354
        %v3487 = vpop.f32.mrb[0].mxu0
        %v3488 = vadd.f32 0.0, %v3487
        %v3489 = vpop.f32.mrb[0].mxu0
        %3490 = vmatprep.mubr.f32.mxu0 0.0
        %3491 = vmatmul.mubr.f32.gmra.mrb[0].mxu0 %v3357
        %v3492 = vpop.f32.mrb[0].mxu0
        %v3493 = vadd.f32 0.0, %v3492
        %v3494 = vpop.f32.mrb[0].mxu0
        %3495 = vmatprep.mubr.f32.mxu0 0.0
        %3496 = vmatmul.mubr.f32.gmra.mrb[0].mxu0 %v3360
        %v3497 = vpop.f32.mrb[0].mxu0
        %v3498 = vadd.f32 0.0, %v3497
        %v3499 = vpop.f32.mrb[0].mxu0
        %3500 = vmatprep.mubr.f32.mxu0 0.0
        %3501 = vmatmul.mubr.f32.gmra.mrb[0].mxu0 %v3363
        %v3502 = vpop.f32.mrb[0].mxu0
        %v3503 = vadd.f32 0.0, %v3502
        %v3504 = vpop.f32.mrb[0].mxu0
        %3505 = vmatprep.mubr.f32.mxu0 0.0
        %3506 = vmatmul.mubr.f32.gmra.mrb[0].mxu0 %v3366
        %v3507 = vpop.f32.mrb[0].mxu0
        %v3508 = vadd.f32 0.0, %v3507
        %v3509 = vpop.f32.mrb[0].mxu0
        %3510 = vmatprep.mubr.f32.mxu0 0.0
        %3511 = vmatmul.mubr.f32.gmra.mrb[0].mxu0 %v3369
        %v3512 = vpop.f32.mrb[0].mxu0
        %v3513 = vadd.f32 0.0, %v3512
        %v3514 = vpop.f32.mrb[0].mxu0
        %3515 = vdwg.mxu0
        %v3516 = vadd.f32 %v3229, %v3438
        %v3517 = vadd.f32 %v3234, %v3443
        %v3518 = vadd.f32 %v3239, %v3448
        %v3519 = vadd.f32 %v3244, %v3453
        %v3520 = vadd.f32 %v3249, %v3458
        %v3521 = vadd.f32 %v3254, %v3463
        %v3522 = vadd.f32 %v3259, %v3468
        %v3523 = vadd.f32 %v3264, %v3473
        %v3524 = vadd.f32 %v3269, %v3478
        %v3525 = vadd.f32 %v3274, %v3483
        %v3526 = vadd.f32 %v3279, %v3488
        %v3527 = vadd.f32 %v3284, %v3493
        %v3528 = vadd.f32 %v3289, %v3498
        %v3529 = vadd.f32 %v3294, %v3503
        %v3530 = vadd.f32 %v3299, %v3508
        %v3531 = vadd.f32 %v3304, %v3513
        %s3532 = scalar_lea.vmem [#allocation2], 216
        %v3533 = vld [vmem:[%s3532] sm:$0xff]
        %v3534 = vld [vmem:[%s3532 + $0x8] sm:$0xff]
        %v3535 = vld [vmem:[%s3532 + $0x18] sm:$0xff]
        %v3536 = vld [vmem:[%s3532 + $0x20] sm:$0xff]
        %v3537 = vld [vmem:[%s3532 + $0x30] sm:$0xff]
        %v3538 = vld [vmem:[%s3532 + $0x38] sm:$0xff]
        %v3539 = vld [vmem:[%s3532 + $0x48] sm:$0xff]
        %v3540 = vld [vmem:[%s3532 + $0x50] sm:$0xff]
        %v3541 = vld [vmem:[%s3532 + $0x60] sm:$0xff]
        %v3542 = vld [vmem:[%s3532 + $0x68] sm:$0xff]
        %v3543 = vld [vmem:[%s3532 + $0x78] sm:$0xff]
        %v3544 = vld [vmem:[%s3532 + $0x80] sm:$0xff]
        %v3545 = vld [vmem:[%s3532 + $0x90] sm:$0xff]
        %v3546 = vld [vmem:[%s3532 + $0x98] sm:$0xff]
        %v3547 = vld [vmem:[%s3532 + $0xa8] sm:$0xff]
        %v3548 = vld [vmem:[%s3532 + $0xb0] sm:$0xff]
        %v3550 = vsel %vm260, %v3533, 0
        %v3553 = vsel %vm260, %v3534, 0
        %v3556 = vsel %vm260, %v3535, 0
        %v3559 = vsel %vm260, %v3536, 0
        %v3562 = vsel %vm260, %v3537, 0
        %v3565 = vsel %vm260, %v3538, 0
        %v3568 = vsel %vm260, %v3539, 0
        %v3571 = vsel %vm260, %v3540, 0
        %v3574 = vsel %vm260, %v3541, 0
        %v3577 = vsel %vm260, %v3542, 0
        %v3580 = vsel %vm260, %v3543, 0
        %v3583 = vsel %vm260, %v3544, 0
        %v3586 = vsel %vm260, %v3545, 0
        %v3589 = vsel %vm260, %v3546, 0
        %v3592 = vsel %vm260, %v3547, 0
        %v3595 = vsel %vm260, %v3548, 0
        %3597 = vmatprep.subr.mxu0 0.0
        %3598 = vmatpush1.msra.mxu0 %v814
        %3599 = vmatprep.subr.mxu0 0.0
        %3600 = vmatpush1.msra.mxu0 0.0
        %3601 = vmatprep.subr.mxu0 0.0
        %3602 = vmatpush1.msra.mxu0 0.0
        %3603 = vmatprep.subr.mxu0 0.0
        %3604 = vmatpush1.msra.mxu0 0.0
        %3605 = vmatprep.subr.mxu0 0.0
        %3606 = vmatpush1.msra.mxu0 0.0
        %3607 = vmatprep.subr.mxu0 0.0
        %3608 = vmatpush1.msra.mxu0 0.0
        %3609 = vmatprep.subr.mxu0 0.0
        %3610 = vmatpush1.msra.mxu0 0.0
        %3611 = vmatprep.subr.mxu0 0.0
        %3612 = vmatpush1.msra.mxu0 0.0
        %3613 = vmatprep.subr.mxu0 0.0
        %3614 = vmatpush1.msra.mxu0 0.0
        %3615 = vmatprep.subr.mxu0 0.0
        %3616 = vmatpush1.msra.mxu0 0.0
        %3617 = vmatprep.subr.mxu0 0.0
        %3618 = vmatpush1.msra.mxu0 0.0
        %3619 = vmatprep.subr.mxu0 0.0
        %3620 = vmatpush1.msra.mxu0 0.0
        %3621 = vmatprep.subr.mxu0 0.0
        %3622 = vmatpush1.msra.mxu0 0.0
        %3623 = vmatprep.subr.mxu0 0.0
        %3624 = vmatpush1.msra.mxu0 0.0
        %3625 = vmatprep.subr.mxu0 0.0
        %3626 = vmatpush1.msra.mxu0 0.0
        %3627 = vmatprep.subr.mxu0 0.0
        %3628 = vmatpush1.msra.mxu0 0.0
        %3629 = vmatprep.subr.mxu0 0.0
        %3630 = vmatpush1.msra.mxu0 0.0
        %3631 = vmatprep.subr.mxu0 0.0
        %3632 = vmatpush1.msra.mxu0 0.0
        %3633 = vmatprep.subr.mxu0 0.0
        %3634 = vmatpush1.msra.mxu0 0.0
        %3635 = vmatprep.subr.mxu0 0.0
        %3636 = vmatpush1.msra.mxu0 0.0
        %3637 = vmatprep.subr.mxu0 0.0
        %3638 = vmatpush1.msra.mxu0 0.0
        %3639 = vmatprep.subr.mxu0 0.0
        %3640 = vmatpush1.msra.mxu0 0.0
        %3641 = vmatprep.subr.mxu0 0.0
        %3642 = vmatpush1.msra.mxu0 0.0
        %3643 = vmatprep.subr.mxu0 0.0
        %3644 = vmatpush1.msra.mxu0 0.0
        %3645 = vmatprep.subr.mxu0 0.0
        %3646 = vmatpush1.msra.mxu0 0.0
        %3647 = vmatprep.subr.mxu0 0.0
        %3648 = vmatpush1.msra.mxu0 0.0
        %3649 = vmatprep.subr.mxu0 0.0
        %3650 = vmatpush1.msra.mxu0 0.0
        %3651 = vmatprep.subr.mxu0 0.0
        %3652 = vmatpush1.msra.mxu0 0.0
        %3653 = vmatprep.subr.mxu0 0.0
        %3654 = vmatpush1.msra.mxu0 0.0
        %3655 = vmatprep.subr.mxu0 0.0
        %3656 = vmatpush1.msra.mxu0 0.0
        %3657 = vmatprep.subr.mxu0 0.0
        %3658 = vmatpush1.msra.mxu0 0.0
        %3659 = vmatprep.subr.mxu0 0.0
        %3660 = vmatpush1.msra.mxu0 0.0
        %3661 = vmatprep.mubr.f32.mxu0 0.0
        %3662 = vmatmul.mubr.f32.gmra.mrb[0].mxu0 %v3550
        %v3663 = vpop.f32.mrb[0].mxu0
        %v3664 = vadd.f32 0.0, %v3663
        %v3665 = vpop.f32.mrb[0].mxu0
        %3666 = vmatprep.mubr.f32.mxu0 0.0
        %3667 = vmatmul.mubr.f32.gmra.mrb[0].mxu0 %v3553
        %v3668 = vpop.f32.mrb[0].mxu0
        %v3669 = vadd.f32 0.0, %v3668
        %v3670 = vpop.f32.mrb[0].mxu0
        %3671 = vmatprep.mubr.f32.mxu0 0.0
        %3672 = vmatmul.mubr.f32.gmra.mrb[0].mxu0 %v3556
        %v3673 = vpop.f32.mrb[0].mxu0
        %v3674 = vadd.f32 0.0, %v3673
        %v3675 = vpop.f32.mrb[0].mxu0
        %3676 = vmatprep.mubr.f32.mxu0 0.0
        %3677 = vmatmul.mubr.f32.gmra.mrb[0].mxu0 %v3559
        %v3678 = vpop.f32.mrb[0].mxu0
        %v3679 = vadd.f32 0.0, %v3678
        %v3680 = vpop.f32.mrb[0].mxu0
        %3681 = vmatprep.mubr.f32.mxu0 0.0
        %3682 = vmatmul.mubr.f32.gmra.mrb[0].mxu0 %v3562
        %v3683 = vpop.f32.mrb[0].mxu0
        %v3684 = vadd.f32 0.0, %v3683
        %v3685 = vpop.f32.mrb[0].mxu0
        %3686 = vmatprep.mubr.f32.mxu0 0.0
        %3687 = vmatmul.mubr.f32.gmra.mrb[0].mxu0 %v3565
        %v3688 = vpop.f32.mrb[0].mxu0
        %v3689 = vadd.f32 0.0, %v3688
        %v3690 = vpop.f32.mrb[0].mxu0
        %3691 = vmatprep.mubr.f32.mxu0 0.0
        %3692 = vmatmul.mubr.f32.gmra.mrb[0].mxu0 %v3568
        %v3693 = vpop.f32.mrb[0].mxu0
        %v3694 = vadd.f32 0.0, %v3693
        %v3695 = vpop.f32.mrb[0].mxu0
        %3696 = vmatprep.mubr.f32.mxu0 0.0
        %3697 = vmatmul.mubr.f32.gmra.mrb[0].mxu0 %v3571
        %v3698 = vpop.f32.mrb[0].mxu0
        %v3699 = vadd.f32 0.0, %v3698
        %v3700 = vpop.f32.mrb[0].mxu0
        %3701 = vmatprep.mubr.f32.mxu0 0.0
        %3702 = vmatmul.mubr.f32.gmra.mrb[0].mxu0 %v3574
        %v3703 = vpop.f32.mrb[0].mxu0
        %v3704 = vadd.f32 0.0, %v3703
        %v3705 = vpop.f32.mrb[0].mxu0
        %3706 = vmatprep.mubr.f32.mxu0 0.0
        %3707 = vmatmul.mubr.f32.gmra.mrb[0].mxu0 %v3577
        %v3708 = vpop.f32.mrb[0].mxu0
        %v3709 = vadd.f32 0.0, %v3708
        %v3710 = vpop.f32.mrb[0].mxu0
        %3711 = vmatprep.mubr.f32.mxu0 0.0
        %3712 = vmatmul.mubr.f32.gmra.mrb[0].mxu0 %v3580
        %v3713 = vpop.f32.mrb[0].mxu0
        %v3714 = vadd.f32 0.0, %v3713
        %v3715 = vpop.f32.mrb[0].mxu0
        %3716 = vmatprep.mubr.f32.mxu0 0.0
        %3717 = vmatmul.mubr.f32.gmra.mrb[0].mxu0 %v3583
        %v3718 = vpop.f32.mrb[0].mxu0
        %v3719 = vadd.f32 0.0, %v3718
        %v3720 = vpop.f32.mrb[0].mxu0
        %3721 = vmatprep.mubr.f32.mxu0 0.0
        %3722 = vmatmul.mubr.f32.gmra.mrb[0].mxu0 %v3586
        %v3723 = vpop.f32.mrb[0].mxu0
        %v3724 = vadd.f32 0.0, %v3723
        %v3725 = vpop.f32.mrb[0].mxu0
        %3726 = vmatprep.mubr.f32.mxu0 0.0
        %3727 = vmatmul.mubr.f32.gmra.mrb[0].mxu0 %v3589
        %v3728 = vpop.f32.mrb[0].mxu0
        %v3729 = vadd.f32 0.0, %v3728
        %v3730 = vpop.f32.mrb[0].mxu0
        %3731 = vmatprep.mubr.f32.mxu0 0.0
        %3732 = vmatmul.mubr.f32.gmra.mrb[0].mxu0 %v3592
        %v3733 = vpop.f32.mrb[0].mxu0
        %v3734 = vadd.f32 0.0, %v3733
        %v3735 = vpop.f32.mrb[0].mxu0
        %3736 = vmatprep.mubr.f32.mxu0 0.0
        %3737 = vmatmul.mubr.f32.gmra.mrb[0].mxu0 %v3595
        %v3738 = vpop.f32.mrb[0].mxu0
        %v3739 = vadd.f32 0.0, %v3738
        %v3740 = vpop.f32.mrb[0].mxu0
        %3741 = vdwg.mxu0
        %v3742 = vadd.f32 %v3516, %v3664
        %v3743 = vadd.f32 %v3517, %v3669
        %v3744 = vadd.f32 %v3518, %v3674
        %v3745 = vadd.f32 %v3519, %v3679
        %v3746 = vadd.f32 %v3520, %v3684
        %v3747 = vadd.f32 %v3521, %v3689
        %v3748 = vadd.f32 %v3522, %v3694
        %v3749 = vadd.f32 %v3523, %v3699
        %v3750 = vadd.f32 %v3524, %v3704
        %v3751 = vadd.f32 %v3525, %v3709
        %v3752 = vadd.f32 %v3526, %v3714
        %v3753 = vadd.f32 %v3527, %v3719
        %v3754 = vadd.f32 %v3528, %v3724
        %v3755 = vadd.f32 %v3529, %v3729
        %v3756 = vadd.f32 %v3530, %v3734
        %v3757 = vadd.f32 %v3531, %v3739
        %v3758 = vld [vmem:[%s3532 + $0x1] sm:$0xff]
        %v3759 = vld [vmem:[%s3532 + $0x9] sm:$0xff]
        %v3760 = vld [vmem:[%s3532 + $0x19] sm:$0xff]
        %v3761 = vld [vmem:[%s3532 + $0x21] sm:$0xff]
        %v3762 = vld [vmem:[%s3532 + $0x31] sm:$0xff]
        %v3763 = vld [vmem:[%s3532 + $0x39] sm:$0xff]
        %v3764 = vld [vmem:[%s3532 + $0x49] sm:$0xff]
        %v3765 = vld [vmem:[%s3532 + $0x51] sm:$0xff]
        %v3766 = vld [vmem:[%s3532 + $0x61] sm:$0xff]
        %v3767 = vld [vmem:[%s3532 + $0x69] sm:$0xff]
        %v3768 = vld [vmem:[%s3532 + $0x79] sm:$0xff]
        %v3769 = vld [vmem:[%s3532 + $0x81] sm:$0xff]
        %v3770 = vld [vmem:[%s3532 + $0x91] sm:$0xff]
        %v3771 = vld [vmem:[%s3532 + $0x99] sm:$0xff]
        %v3772 = vld [vmem:[%s3532 + $0xa9] sm:$0xff]
        %v3773 = vld [vmem:[%s3532 + $0xb1] sm:$0xff]
        %v3775 = vsel %vm260, %v3758, 0
        %v3778 = vsel %vm260, %v3759, 0
        %v3781 = vsel %vm260, %v3760, 0
        %v3784 = vsel %vm260, %v3761, 0
        %v3787 = vsel %vm260, %v3762, 0
        %v3790 = vsel %vm260, %v3763, 0
        %v3793 = vsel %vm260, %v3764, 0
        %v3796 = vsel %vm260, %v3765, 0
        %v3799 = vsel %vm260, %v3766, 0
        %v3802 = vsel %vm260, %v3767, 0
        %v3805 = vsel %vm260, %v3768, 0
        %v3808 = vsel %vm260, %v3769, 0
        %v3811 = vsel %vm260, %v3770, 0
        %v3814 = vsel %vm260, %v3771, 0
        %v3817 = vsel %vm260, %v3772, 0
        %v3820 = vsel %vm260, %v3773, 0
        %3822 = vmatprep.subr.mxu0 0.0
        %3823 = vmatpush1.msra.mxu0 %v815
        %3824 = vmatprep.subr.mxu0 0.0
        %3825 = vmatpush1.msra.mxu0 0.0
        %3826 = vmatprep.subr.mxu0 0.0
        %3827 = vmatpush1.msra.mxu0 0.0
        %3828 = vmatprep.subr.mxu0 0.0
        %3829 = vmatpush1.msra.mxu0 0.0
        %3830 = vmatprep.subr.mxu0 0.0
        %3831 = vmatpush1.msra.mxu0 0.0
        %3832 = vmatprep.subr.mxu0 0.0
        %3833 = vmatpush1.msra.mxu0 0.0
        %3834 = vmatprep.subr.mxu0 0.0
        %3835 = vmatpush1.msra.mxu0 0.0
        %3836 = vmatprep.subr.mxu0 0.0
        %3837 = vmatpush1.msra.mxu0 0.0
        %3838 = vmatprep.subr.mxu0 0.0
        %3839 = vmatpush1.msra.mxu0 0.0
        %3840 = vmatprep.subr.mxu0 0.0
        %3841 = vmatpush1.msra.mxu0 0.0
        %3842 = vmatprep.subr.mxu0 0.0
        %3843 = vmatpush1.msra.mxu0 0.0
        %3844 = vmatprep.subr.mxu0 0.0
        %3845 = vmatpush1.msra.mxu0 0.0
        %3846 = vmatprep.subr.mxu0 0.0
        %3847 = vmatpush1.msra.mxu0 0.0
        %3848 = vmatprep.subr.mxu0 0.0
        %3849 = vmatpush1.msra.mxu0 0.0
        %3850 = vmatprep.subr.mxu0 0.0
        %3851 = vmatpush1.msra.mxu0 0.0
        %3852 = vmatprep.subr.mxu0 0.0
        %3853 = vmatpush1.msra.mxu0 0.0
        %3854 = vmatprep.subr.mxu0 0.0
        %3855 = vmatpush1.msra.mxu0 0.0
        %3856 = vmatprep.subr.mxu0 0.0
        %3857 = vmatpush1.msra.mxu0 0.0
        %3858 = vmatprep.subr.mxu0 0.0
        %3859 = vmatpush1.msra.mxu0 0.0
        %3860 = vmatprep.subr.mxu0 0.0
        %3861 = vmatpush1.msra.mxu0 0.0
        %3862 = vmatprep.subr.mxu0 0.0
        %3863 = vmatpush1.msra.mxu0 0.0
        %3864 = vmatprep.subr.mxu0 0.0
        %3865 = vmatpush1.msra.mxu0 0.0
        %3866 = vmatprep.subr.mxu0 0.0
        %3867 = vmatpush1.msra.mxu0 0.0
        %3868 = vmatprep.subr.mxu0 0.0
        %3869 = vmatpush1.msra.mxu0 0.0
        %3870 = vmatprep.subr.mxu0 0.0
        %3871 = vmatpush1.msra.mxu0 0.0
        %3872 = vmatprep.subr.mxu0 0.0
        %3873 = vmatpush1.msra.mxu0 0.0
        %3874 = vmatprep.subr.mxu0 0.0
        %3875 = vmatpush1.msra.mxu0 0.0
        %3876 = vmatprep.subr.mxu0 0.0
        %3877 = vmatpush1.msra.mxu0 0.0
        %3878 = vmatprep.subr.mxu0 0.0
        %3879 = vmatpush1.msra.mxu0 0.0
        %3880 = vmatprep.subr.mxu0 0.0
        %3881 = vmatpush1.msra.mxu0 0.0
        %3882 = vmatprep.subr.mxu0 0.0
        %3883 = vmatpush1.msra.mxu0 0.0
        %3884 = vmatprep.subr.mxu0 0.0
        %3885 = vmatpush1.msra.mxu0 0.0
        %3886 = vmatprep.mubr.f32.mxu0 0.0
        %3887 = vmatmul.mubr.f32.gmra.mrb[0].mxu0 %v3775
        %v3888 = vpop.f32.mrb[0].mxu0
        %v3889 = vadd.f32 0.0, %v3888
        %v3890 = vpop.f32.mrb[0].mxu0
        %3891 = vmatprep.mubr.f32.mxu0 0.0
        %3892 = vmatmul.mubr.f32.gmra.mrb[0].mxu0 %v3778
        %v3893 = vpop.f32.mrb[0].mxu0
        %v3894 = vadd.f32 0.0, %v3893
        %v3895 = vpop.f32.mrb[0].mxu0
        %3896 = vmatprep.mubr.f32.mxu0 0.0
        %3897 = vmatmul.mubr.f32.gmra.mrb[0].mxu0 %v3781
        %v3898 = vpop.f32.mrb[0].mxu0
        %v3899 = vadd.f32 0.0, %v3898
        %v3900 = vpop.f32.mrb[0].mxu0
        %3901 = vmatprep.mubr.f32.mxu0 0.0
        %3902 = vmatmul.mubr.f32.gmra.mrb[0].mxu0 %v3784
        %v3903 = vpop.f32.mrb[0].mxu0
        %v3904 = vadd.f32 0.0, %v3903
        %v3905 = vpop.f32.mrb[0].mxu0
        %3906 = vmatprep.mubr.f32.mxu0 0.0
        %3907 = vmatmul.mubr.f32.gmra.mrb[0].mxu0 %v3787
        %v3908 = vpop.f32.mrb[0].mxu0
        %v3909 = vadd.f32 0.0, %v3908
        %v3910 = vpop.f32.mrb[0].mxu0
        %3911 = vmatprep.mubr.f32.mxu0 0.0
        %3912 = vmatmul.mubr.f32.gmra.mrb[0].mxu0 %v3790
        %v3913 = vpop.f32.mrb[0].mxu0
        %v3914 = vadd.f32 0.0, %v3913
        %v3915 = vpop.f32.mrb[0].mxu0
        %3916 = vmatprep.mubr.f32.mxu0 0.0
        %3917 = vmatmul.mubr.f32.gmra.mrb[0].mxu0 %v3793
        %v3918 = vpop.f32.mrb[0].mxu0
        %v3919 = vadd.f32 0.0, %v3918
        %v3920 = vpop.f32.mrb[0].mxu0
        %3921 = vmatprep.mubr.f32.mxu0 0.0
        %3922 = vmatmul.mubr.f32.gmra.mrb[0].mxu0 %v3796
        %v3923 = vpop.f32.mrb[0].mxu0
        %v3924 = vadd.f32 0.0, %v3923
        %v3925 = vpop.f32.mrb[0].mxu0
        %3926 = vmatprep.mubr.f32.mxu0 0.0
        %3927 = vmatmul.mubr.f32.gmra.mrb[0].mxu0 %v3799
        %v3928 = vpop.f32.mrb[0].mxu0
        %v3929 = vadd.f32 0.0, %v3928
        %v3930 = vpop.f32.mrb[0].mxu0
        %3931 = vmatprep.mubr.f32.mxu0 0.0
        %3932 = vmatmul.mubr.f32.gmra.mrb[0].mxu0 %v3802
        %v3933 = vpop.f32.mrb[0].mxu0
        %v3934 = vadd.f32 0.0, %v3933
        %v3935 = vpop.f32.mrb[0].mxu0
        %3936 = vmatprep.mubr.f32.mxu0 0.0
        %3937 = vmatmul.mubr.f32.gmra.mrb[0].mxu0 %v3805
        %v3938 = vpop.f32.mrb[0].mxu0
        %v3939 = vadd.f32 0.0, %v3938
        %v3940 = vpop.f32.mrb[0].mxu0
        %3941 = vmatprep.mubr.f32.mxu0 0.0
        %3942 = vmatmul.mubr.f32.gmra.mrb[0].mxu0 %v3808
        %v3943 = vpop.f32.mrb[0].mxu0
        %v3944 = vadd.f32 0.0, %v3943
        %v3945 = vpop.f32.mrb[0].mxu0
        %3946 = vmatprep.mubr.f32.mxu0 0.0
        %3947 = vmatmul.mubr.f32.gmra.mrb[0].mxu0 %v3811
        %v3948 = vpop.f32.mrb[0].mxu0
        %v3949 = vadd.f32 0.0, %v3948
        %v3950 = vpop.f32.mrb[0].mxu0
        %3951 = vmatprep.mubr.f32.mxu0 0.0
        %3952 = vmatmul.mubr.f32.gmra.mrb[0].mxu0 %v3814
        %v3953 = vpop.f32.mrb[0].mxu0
        %v3954 = vadd.f32 0.0, %v3953
        %v3955 = vpop.f32.mrb[0].mxu0
        %3956 = vmatprep.mubr.f32.mxu0 0.0
        %3957 = vmatmul.mubr.f32.gmra.mrb[0].mxu0 %v3817
        %v3958 = vpop.f32.mrb[0].mxu0
        %v3959 = vadd.f32 0.0, %v3958
        %v3960 = vpop.f32.mrb[0].mxu0
        %3961 = vmatprep.mubr.f32.mxu0 0.0
        %3962 = vmatmul.mubr.f32.gmra.mrb[0].mxu0 %v3820
        %v3963 = vpop.f32.mrb[0].mxu0
        %v3964 = vadd.f32 0.0, %v3963
        %v3965 = vpop.f32.mrb[0].mxu0
        %3966 = vdwg.mxu0
        %v3967 = vadd.f32 %v3742, %v3889
        %v3968 = vadd.f32 %v3743, %v3894
        %v3969 = vadd.f32 %v3744, %v3899
        %v3970 = vadd.f32 %v3745, %v3904
        %v3971 = vadd.f32 %v3746, %v3909
        %v3972 = vadd.f32 %v3747, %v3914
        %v3973 = vadd.f32 %v3748, %v3919
        %v3974 = vadd.f32 %v3749, %v3924
        %v3975 = vadd.f32 %v3750, %v3929
        %v3976 = vadd.f32 %v3751, %v3934
        %v3977 = vadd.f32 %v3752, %v3939
        %v3978 = vadd.f32 %v3753, %v3944
        %v3979 = vadd.f32 %v3754, %v3949
        %v3980 = vadd.f32 %v3755, %v3954
        %v3981 = vadd.f32 %v3756, %v3959
        %v3982 = vadd.f32 %v3757, %v3964
        %v3983 = vld [vmem:[%s3532 + $0x2] sm:$0xff]
        %v3984 = vld [vmem:[%s3532 + $0xa] sm:$0xff]
        %v3985 = vld [vmem:[%s3532 + $0x1a] sm:$0xff]
        %v3986 = vld [vmem:[%s3532 + $0x22] sm:$0xff]
        %v3987 = vld [vmem:[%s3532 + $0x32] sm:$0xff]
        %v3988 = vld [vmem:[%s3532 + $0x3a] sm:$0xff]
        %v3989 = vld [vmem:[%s3532 + $0x4a] sm:$0xff]
        %v3990 = vld [vmem:[%s3532 + $0x52] sm:$0xff]
        %v3991 = vld [vmem:[%s3532 + $0x62] sm:$0xff]
        %v3992 = vld [vmem:[%s3532 + $0x6a] sm:$0xff]
        %v3993 = vld [vmem:[%s3532 + $0x7a] sm:$0xff]
        %v3994 = vld [vmem:[%s3532 + $0x82] sm:$0xff]
        %v3995 = vld [vmem:[%s3532 + $0x92] sm:$0xff]
        %v3996 = vld [vmem:[%s3532 + $0x9a] sm:$0xff]
        %v3997 = vld [vmem:[%s3532 + $0xaa] sm:$0xff]
        %v3998 = vld [vmem:[%s3532 + $0xb2] sm:$0xff]
        %v4000 = vsel %vm260, %v3983, 0
        %v4003 = vsel %vm260, %v3984, 0
        %v4006 = vsel %vm260, %v3985, 0
        %v4009 = vsel %vm260, %v3986, 0
        %v4012 = vsel %vm260, %v3987, 0
        %v4015 = vsel %vm260, %v3988, 0
        %v4018 = vsel %vm260, %v3989, 0
        %v4021 = vsel %vm260, %v3990, 0
        %v4024 = vsel %vm260, %v3991, 0
        %v4027 = vsel %vm260, %v3992, 0
        %v4030 = vsel %vm260, %v3993, 0
        %v4033 = vsel %vm260, %v3994, 0
        %v4036 = vsel %vm260, %v3995, 0
        %v4039 = vsel %vm260, %v3996, 0
        %v4042 = vsel %vm260, %v3997, 0
        %v4045 = vsel %vm260, %v3998, 0
        %4047 = vmatprep.subr.mxu0 0.0
        %4048 = vmatpush1.msra.mxu0 %v816
        %4049 = vmatprep.subr.mxu0 0.0
        %4050 = vmatpush1.msra.mxu0 0.0
        %4051 = vmatprep.subr.mxu0 0.0
        %4052 = vmatpush1.msra.mxu0 0.0
        %4053 = vmatprep.subr.mxu0 0.0
        %4054 = vmatpush1.msra.mxu0 0.0
        %4055 = vmatprep.subr.mxu0 0.0
        %4056 = vmatpush1.msra.mxu0 0.0
        %4057 = vmatprep.subr.mxu0 0.0
        %4058 = vmatpush1.msra.mxu0 0.0
        %4059 = vmatprep.subr.mxu0 0.0
        %4060 = vmatpush1.msra.mxu0 0.0
        %4061 = vmatprep.subr.mxu0 0.0
        %4062 = vmatpush1.msra.mxu0 0.0
        %4063 = vmatprep.subr.mxu0 0.0
        %4064 = vmatpush1.msra.mxu0 0.0
        %4065 = vmatprep.subr.mxu0 0.0
        %4066 = vmatpush1.msra.mxu0 0.0
        %4067 = vmatprep.subr.mxu0 0.0
        %4068 = vmatpush1.msra.mxu0 0.0
        %4069 = vmatprep.subr.mxu0 0.0
        %4070 = vmatpush1.msra.mxu0 0.0
        %4071 = vmatprep.subr.mxu0 0.0
        %4072 = vmatpush1.msra.mxu0 0.0
        %4073 = vmatprep.subr.mxu0 0.0
        %4074 = vmatpush1.msra.mxu0 0.0
        %4075 = vmatprep.subr.mxu0 0.0
        %4076 = vmatpush1.msra.mxu0 0.0
        %4077 = vmatprep.subr.mxu0 0.0
        %4078 = vmatpush1.msra.mxu0 0.0
        %4079 = vmatprep.subr.mxu0 0.0
        %4080 = vmatpush1.msra.mxu0 0.0
        %4081 = vmatprep.subr.mxu0 0.0
        %4082 = vmatpush1.msra.mxu0 0.0
        %4083 = vmatprep.subr.mxu0 0.0
        %4084 = vmatpush1.msra.mxu0 0.0
        %4085 = vmatprep.subr.mxu0 0.0
        %4086 = vmatpush1.msra.mxu0 0.0
        %4087 = vmatprep.subr.mxu0 0.0
        %4088 = vmatpush1.msra.mxu0 0.0
        %4089 = vmatprep.subr.mxu0 0.0
        %4090 = vmatpush1.msra.mxu0 0.0
        %4091 = vmatprep.subr.mxu0 0.0
        %4092 = vmatpush1.msra.mxu0 0.0
        %4093 = vmatprep.subr.mxu0 0.0
        %4094 = vmatpush1.msra.mxu0 0.0
        %4095 = vmatprep.subr.mxu0 0.0
        %4096 = vmatpush1.msra.mxu0 0.0
        %4097 = vmatprep.subr.mxu0 0.0
        %4098 = vmatpush1.msra.mxu0 0.0
        %4099 = vmatprep.subr.mxu0 0.0
        %4100 = vmatpush1.msra.mxu0 0.0
        %4101 = vmatprep.subr.mxu0 0.0
        %4102 = vmatpush1.msra.mxu0 0.0
        %4103 = vmatprep.subr.mxu0 0.0
        %4104 = vmatpush1.msra.mxu0 0.0
        %4105 = vmatprep.subr.mxu0 0.0
        %4106 = vmatpush1.msra.mxu0 0.0
        %4107 = vmatprep.subr.mxu0 0.0
        %4108 = vmatpush1.msra.mxu0 0.0
        %4109 = vmatprep.subr.mxu0 0.0
        %4110 = vmatpush1.msra.mxu0 0.0
        %4111 = vmatprep.mubr.f32.mxu0 0.0
        %4112 = vmatmul.mubr.f32.gmra.mrb[0].mxu0 %v4000
        %v4113 = vpop.f32.mrb[0].mxu0
        %v4114 = vadd.f32 0.0, %v4113
        %v4115 = vpop.f32.mrb[0].mxu0
        %4116 = vmatprep.mubr.f32.mxu0 0.0
        %4117 = vmatmul.mubr.f32.gmra.mrb[0].mxu0 %v4003
        %v4118 = vpop.f32.mrb[0].mxu0
        %v4119 = vadd.f32 0.0, %v4118
        %v4120 = vpop.f32.mrb[0].mxu0
        %4121 = vmatprep.mubr.f32.mxu0 0.0
        %4122 = vmatmul.mubr.f32.gmra.mrb[0].mxu0 %v4006
        %v4123 = vpop.f32.mrb[0].mxu0
        %v4124 = vadd.f32 0.0, %v4123
        %v4125 = vpop.f32.mrb[0].mxu0
        %4126 = vmatprep.mubr.f32.mxu0 0.0
        %4127 = vmatmul.mubr.f32.gmra.mrb[0].mxu0 %v4009
        %v4128 = vpop.f32.mrb[0].mxu0
        %v4129 = vadd.f32 0.0, %v4128
        %v4130 = vpop.f32.mrb[0].mxu0
        %4131 = vmatprep.mubr.f32.mxu0 0.0
        %4132 = vmatmul.mubr.f32.gmra.mrb[0].mxu0 %v4012
        %v4133 = vpop.f32.mrb[0].mxu0
        %v4134 = vadd.f32 0.0, %v4133
        %v4135 = vpop.f32.mrb[0].mxu0
        %4136 = vmatprep.mubr.f32.mxu0 0.0
        %4137 = vmatmul.mubr.f32.gmra.mrb[0].mxu0 %v4015
        %v4138 = vpop.f32.mrb[0].mxu0
        %v4139 = vadd.f32 0.0, %v4138
        %v4140 = vpop.f32.mrb[0].mxu0
        %4141 = vmatprep.mubr.f32.mxu0 0.0
        %4142 = vmatmul.mubr.f32.gmra.mrb[0].mxu0 %v4018
        %v4143 = vpop.f32.mrb[0].mxu0
        %v4144 = vadd.f32 0.0, %v4143
        %v4145 = vpop.f32.mrb[0].mxu0
        %4146 = vmatprep.mubr.f32.mxu0 0.0
        %4147 = vmatmul.mubr.f32.gmra.mrb[0].mxu0 %v4021
        %v4148 = vpop.f32.mrb[0].mxu0
        %v4149 = vadd.f32 0.0, %v4148
        %v4150 = vpop.f32.mrb[0].mxu0
        %4151 = vmatprep.mubr.f32.mxu0 0.0
        %4152 = vmatmul.mubr.f32.gmra.mrb[0].mxu0 %v4024
        %v4153 = vpop.f32.mrb[0].mxu0
        %v4154 = vadd.f32 0.0, %v4153
        %v4155 = vpop.f32.mrb[0].mxu0
        %4156 = vmatprep.mubr.f32.mxu0 0.0
        %4157 = vmatmul.mubr.f32.gmra.mrb[0].mxu0 %v4027
        %v4158 = vpop.f32.mrb[0].mxu0
        %v4159 = vadd.f32 0.0, %v4158
        %v4160 = vpop.f32.mrb[0].mxu0
        %4161 = vmatprep.mubr.f32.mxu0 0.0
        %4162 = vmatmul.mubr.f32.gmra.mrb[0].mxu0 %v4030
        %v4163 = vpop.f32.mrb[0].mxu0
        %v4164 = vadd.f32 0.0, %v4163
        %v4165 = vpop.f32.mrb[0].mxu0
        %4166 = vmatprep.mubr.f32.mxu0 0.0
        %4167 = vmatmul.mubr.f32.gmra.mrb[0].mxu0 %v4033
        %v4168 = vpop.f32.mrb[0].mxu0
        %v4169 = vadd.f32 0.0, %v4168
        %v4170 = vpop.f32.mrb[0].mxu0
        %4171 = vmatprep.mubr.f32.mxu0 0.0
        %4172 = vmatmul.mubr.f32.gmra.mrb[0].mxu0 %v4036
        %v4173 = vpop.f32.mrb[0].mxu0
        %v4174 = vadd.f32 0.0, %v4173
        %v4175 = vpop.f32.mrb[0].mxu0
        %4176 = vmatprep.mubr.f32.mxu0 0.0
        %4177 = vmatmul.mubr.f32.gmra.mrb[0].mxu0 %v4039
        %v4178 = vpop.f32.mrb[0].mxu0
        %v4179 = vadd.f32 0.0, %v4178
        %v4180 = vpop.f32.mrb[0].mxu0
        %4181 = vmatprep.mubr.f32.mxu0 0.0
        %4182 = vmatmul.mubr.f32.gmra.mrb[0].mxu0 %v4042
        %v4183 = vpop.f32.mrb[0].mxu0
        %v4184 = vadd.f32 0.0, %v4183
        %v4185 = vpop.f32.mrb[0].mxu0
        %4186 = vmatprep.mubr.f32.mxu0 0.0
        %4187 = vmatmul.mubr.f32.gmra.mrb[0].mxu0 %v4045
        %v4188 = vpop.f32.mrb[0].mxu0
        %v4189 = vadd.f32 0.0, %v4188
        %v4190 = vpop.f32.mrb[0].mxu0
        %4191 = vdwg.mxu0
        %v4192 = vadd.f32 %v3967, %v4114
        %v4193 = vadd.f32 %v3968, %v4119
        %v4194 = vadd.f32 %v3969, %v4124
        %v4195 = vadd.f32 %v3970, %v4129
        %v4196 = vadd.f32 %v3971, %v4134
        %v4197 = vadd.f32 %v3972, %v4139
        %v4198 = vadd.f32 %v3973, %v4144
        %v4199 = vadd.f32 %v3974, %v4149
        %v4200 = vadd.f32 %v3975, %v4154
        %v4201 = vadd.f32 %v3976, %v4159
        %v4202 = vadd.f32 %v3977, %v4164
        %v4203 = vadd.f32 %v3978, %v4169
        %v4204 = vadd.f32 %v3979, %v4174
        %v4205 = vadd.f32 %v3980, %v4179
        %v4206 = vadd.f32 %v3981, %v4184
        %v4207 = vadd.f32 %v3982, %v4189
        %s4208 = scalar_lea.vmem [#allocation2], 240
        %v4209 = vld [vmem:[%s4208] sm:$0xff]
        %v4210 = vld [vmem:[%s4208 + $0x8] sm:$0xff]
        %v4211 = vld [vmem:[%s4208 + $0x18] sm:$0xff]
        %v4212 = vld [vmem:[%s4208 + $0x20] sm:$0xff]
        %v4213 = vld [vmem:[%s4208 + $0x30] sm:$0xff]
        %v4214 = vld [vmem:[%s4208 + $0x38] sm:$0xff]
        %v4215 = vld [vmem:[%s4208 + $0x48] sm:$0xff]
        %v4216 = vld [vmem:[%s4208 + $0x50] sm:$0xff]
        %v4217 = vld [vmem:[%s4208 + $0x60] sm:$0xff]
        %v4218 = vld [vmem:[%s4208 + $0x68] sm:$0xff]
        %v4219 = vld [vmem:[%s4208 + $0x78] sm:$0xff]
        %v4220 = vld [vmem:[%s4208 + $0x80] sm:$0xff]
        %v4221 = vld [vmem:[%s4208 + $0x90] sm:$0xff]
        %v4222 = vld [vmem:[%s4208 + $0x98] sm:$0xff]
        %v4223 = vld [vmem:[%s4208 + $0xa8] sm:$0xff]
        %v4224 = vld [vmem:[%s4208 + $0xb0] sm:$0xff]
        %v4226 = vsel %vm260, %v4209, 0
        %v4229 = vsel %vm260, %v4210, 0
        %v4232 = vsel %vm260, %v4211, 0
        %v4235 = vsel %vm260, %v4212, 0
        %v4238 = vsel %vm260, %v4213, 0
        %v4241 = vsel %vm260, %v4214, 0
        %v4244 = vsel %vm260, %v4215, 0
        %v4247 = vsel %vm260, %v4216, 0
        %v4250 = vsel %vm260, %v4217, 0
        %v4253 = vsel %vm260, %v4218, 0
        %v4256 = vsel %vm260, %v4219, 0
        %v4259 = vsel %vm260, %v4220, 0
        %v4262 = vsel %vm260, %v4221, 0
        %v4265 = vsel %vm260, %v4222, 0
        %v4268 = vsel %vm260, %v4223, 0
        %v4271 = vsel %vm260, %v4224, 0
        %4273 = vmatprep.subr.mxu0 0.0
        %4274 = vmatpush1.msra.mxu0 %v817
        %4275 = vmatprep.subr.mxu0 0.0
        %4276 = vmatpush1.msra.mxu0 0.0
        %4277 = vmatprep.subr.mxu0 0.0
        %4278 = vmatpush1.msra.mxu0 0.0
        %4279 = vmatprep.subr.mxu0 0.0
        %4280 = vmatpush1.msra.mxu0 0.0
        %4281 = vmatprep.subr.mxu0 0.0
        %4282 = vmatpush1.msra.mxu0 0.0
        %4283 = vmatprep.subr.mxu0 0.0
        %4284 = vmatpush1.msra.mxu0 0.0
        %4285 = vmatprep.subr.mxu0 0.0
        %4286 = vmatpush1.msra.mxu0 0.0
        %4287 = vmatprep.subr.mxu0 0.0
        %4288 = vmatpush1.msra.mxu0 0.0
        %4289 = vmatprep.subr.mxu0 0.0
        %4290 = vmatpush1.msra.mxu0 0.0
        %4291 = vmatprep.subr.mxu0 0.0
        %4292 = vmatpush1.msra.mxu0 0.0
        %4293 = vmatprep.subr.mxu0 0.0
        %4294 = vmatpush1.msra.mxu0 0.0
        %4295 = vmatprep.subr.mxu0 0.0
        %4296 = vmatpush1.msra.mxu0 0.0
        %4297 = vmatprep.subr.mxu0 0.0
        %4298 = vmatpush1.msra.mxu0 0.0
        %4299 = vmatprep.subr.mxu0 0.0
        %4300 = vmatpush1.msra.mxu0 0.0
        %4301 = vmatprep.subr.mxu0 0.0
        %4302 = vmatpush1.msra.mxu0 0.0
        %4303 = vmatprep.subr.mxu0 0.0
        %4304 = vmatpush1.msra.mxu0 0.0
        %4305 = vmatprep.subr.mxu0 0.0
        %4306 = vmatpush1.msra.mxu0 0.0
        %4307 = vmatprep.subr.mxu0 0.0
        %4308 = vmatpush1.msra.mxu0 0.0
        %4309 = vmatprep.subr.mxu0 0.0
        %4310 = vmatpush1.msra.mxu0 0.0
        %4311 = vmatprep.subr.mxu0 0.0
        %4312 = vmatpush1.msra.mxu0 0.0
        %4313 = vmatprep.subr.mxu0 0.0
        %4314 = vmatpush1.msra.mxu0 0.0
        %4315 = vmatprep.subr.mxu0 0.0
        %4316 = vmatpush1.msra.mxu0 0.0
        %4317 = vmatprep.subr.mxu0 0.0
        %4318 = vmatpush1.msra.mxu0 0.0
        %4319 = vmatprep.subr.mxu0 0.0
        %4320 = vmatpush1.msra.mxu0 0.0
        %4321 = vmatprep.subr.mxu0 0.0
        %4322 = vmatpush1.msra.mxu0 0.0
        %4323 = vmatprep.subr.mxu0 0.0
        %4324 = vmatpush1.msra.mxu0 0.0
        %4325 = vmatprep.subr.mxu0 0.0
        %4326 = vmatpush1.msra.mxu0 0.0
        %4327 = vmatprep.subr.mxu0 0.0
        %4328 = vmatpush1.msra.mxu0 0.0
        %4329 = vmatprep.subr.mxu0 0.0
        %4330 = vmatpush1.msra.mxu0 0.0
        %4331 = vmatprep.subr.mxu0 0.0
        %4332 = vmatpush1.msra.mxu0 0.0
        %4333 = vmatprep.subr.mxu0 0.0
        %4334 = vmatpush1.msra.mxu0 0.0
        %4335 = vmatprep.subr.mxu0 0.0
        %4336 = vmatpush1.msra.mxu0 0.0
        %4337 = vmatprep.mubr.f32.mxu0 0.0
        %4338 = vmatmul.mubr.f32.gmra.mrb[0].mxu0 %v4226
        %v4339 = vpop.f32.mrb[0].mxu0
        %v4340 = vadd.f32 0.0, %v4339
        %v4341 = vpop.f32.mrb[0].mxu0
        %4342 = vmatprep.mubr.f32.mxu0 0.0
        %4343 = vmatmul.mubr.f32.gmra.mrb[0].mxu0 %v4229
        %v4344 = vpop.f32.mrb[0].mxu0
        %v4345 = vadd.f32 0.0, %v4344
        %v4346 = vpop.f32.mrb[0].mxu0
        %4347 = vmatprep.mubr.f32.mxu0 0.0
        %4348 = vmatmul.mubr.f32.gmra.mrb[0].mxu0 %v4232
        %v4349 = vpop.f32.mrb[0].mxu0
        %v4350 = vadd.f32 0.0, %v4349
        %v4351 = vpop.f32.mrb[0].mxu0
        %4352 = vmatprep.mubr.f32.mxu0 0.0
        %4353 = vmatmul.mubr.f32.gmra.mrb[0].mxu0 %v4235
        %v4354 = vpop.f32.mrb[0].mxu0
        %v4355 = vadd.f32 0.0, %v4354
        %v4356 = vpop.f32.mrb[0].mxu0
        %4357 = vmatprep.mubr.f32.mxu0 0.0
        %4358 = vmatmul.mubr.f32.gmra.mrb[0].mxu0 %v4238
        %v4359 = vpop.f32.mrb[0].mxu0
        %v4360 = vadd.f32 0.0, %v4359
        %v4361 = vpop.f32.mrb[0].mxu0
        %4362 = vmatprep.mubr.f32.mxu0 0.0
        %4363 = vmatmul.mubr.f32.gmra.mrb[0].mxu0 %v4241
        %v4364 = vpop.f32.mrb[0].mxu0
        %v4365 = vadd.f32 0.0, %v4364
        %v4366 = vpop.f32.mrb[0].mxu0
        %4367 = vmatprep.mubr.f32.mxu0 0.0
        %4368 = vmatmul.mubr.f32.gmra.mrb[0].mxu0 %v4244
        %v4369 = vpop.f32.mrb[0].mxu0
        %v4370 = vadd.f32 0.0, %v4369
        %v4371 = vpop.f32.mrb[0].mxu0
        %4372 = vmatprep.mubr.f32.mxu0 0.0
        %4373 = vmatmul.mubr.f32.gmra.mrb[0].mxu0 %v4247
        %v4374 = vpop.f32.mrb[0].mxu0
        %v4375 = vadd.f32 0.0, %v4374
        %v4376 = vpop.f32.mrb[0].mxu0
        %4377 = vmatprep.mubr.f32.mxu0 0.0
        %4378 = vmatmul.mubr.f32.gmra.mrb[0].mxu0 %v4250
        %v4379 = vpop.f32.mrb[0].mxu0
        %v4380 = vadd.f32 0.0, %v4379
        %v4381 = vpop.f32.mrb[0].mxu0
        %4382 = vmatprep.mubr.f32.mxu0 0.0
        %4383 = vmatmul.mubr.f32.gmra.mrb[0].mxu0 %v4253
        %v4384 = vpop.f32.mrb[0].mxu0
        %v4385 = vadd.f32 0.0, %v4384
        %v4386 = vpop.f32.mrb[0].mxu0
        %4387 = vmatprep.mubr.f32.mxu0 0.0
        %4388 = vmatmul.mubr.f32.gmra.mrb[0].mxu0 %v4256
        %v4389 = vpop.f32.mrb[0].mxu0
        %v4390 = vadd.f32 0.0, %v4389
        %v4391 = vpop.f32.mrb[0].mxu0
        %4392 = vmatprep.mubr.f32.mxu0 0.0
        %4393 = vmatmul.mubr.f32.gmra.mrb[0].mxu0 %v4259
        %v4394 = vpop.f32.mrb[0].mxu0
        %v4395 = vadd.f32 0.0, %v4394
        %v4396 = vpop.f32.mrb[0].mxu0
        %4397 = vmatprep.mubr.f32.mxu0 0.0
        %4398 = vmatmul.mubr.f32.gmra.mrb[0].mxu0 %v4262
        %v4399 = vpop.f32.mrb[0].mxu0
        %v4400 = vadd.f32 0.0, %v4399
        %v4401 = vpop.f32.mrb[0].mxu0
        %4402 = vmatprep.mubr.f32.mxu0 0.0
        %4403 = vmatmul.mubr.f32.gmra.mrb[0].mxu0 %v4265
        %v4404 = vpop.f32.mrb[0].mxu0
        %v4405 = vadd.f32 0.0, %v4404
        %v4406 = vpop.f32.mrb[0].mxu0
        %4407 = vmatprep.mubr.f32.mxu0 0.0
        %4408 = vmatmul.mubr.f32.gmra.mrb[0].mxu0 %v4268
        %v4409 = vpop.f32.mrb[0].mxu0
        %v4410 = vadd.f32 0.0, %v4409
        %v4411 = vpop.f32.mrb[0].mxu0
        %4412 = vmatprep.mubr.f32.mxu0 0.0
        %4413 = vmatmul.mubr.f32.gmra.mrb[0].mxu0 %v4271
        %v4414 = vpop.f32.mrb[0].mxu0
        %v4415 = vadd.f32 0.0, %v4414
        %v4416 = vpop.f32.mrb[0].mxu0
        %4417 = vdwg.mxu0
        %v4418 = vadd.f32 %v4192, %v4340
        %v4419 = vadd.f32 %v4193, %v4345
        %v4420 = vadd.f32 %v4194, %v4350
        %v4421 = vadd.f32 %v4195, %v4355
        %v4422 = vadd.f32 %v4196, %v4360
        %v4423 = vadd.f32 %v4197, %v4365
        %v4424 = vadd.f32 %v4198, %v4370
        %v4425 = vadd.f32 %v4199, %v4375
        %v4426 = vadd.f32 %v4200, %v4380
        %v4427 = vadd.f32 %v4201, %v4385
        %v4428 = vadd.f32 %v4202, %v4390
        %v4429 = vadd.f32 %v4203, %v4395
        %v4430 = vadd.f32 %v4204, %v4400
        %v4431 = vadd.f32 %v4205, %v4405
        %v4432 = vadd.f32 %v4206, %v4410
        %v4433 = vadd.f32 %v4207, %v4415
        %v4434 = vld [vmem:[%s4208 + $0x1] sm:$0xff]
        %v4435 = vld [vmem:[%s4208 + $0x9] sm:$0xff]
        %v4436 = vld [vmem:[%s4208 + $0x19] sm:$0xff]
        %v4437 = vld [vmem:[%s4208 + $0x21] sm:$0xff]
        %v4438 = vld [vmem:[%s4208 + $0x31] sm:$0xff]
        %v4439 = vld [vmem:[%s4208 + $0x39] sm:$0xff]
        %v4440 = vld [vmem:[%s4208 + $0x49] sm:$0xff]
        %v4441 = vld [vmem:[%s4208 + $0x51] sm:$0xff]
        %v4442 = vld [vmem:[%s4208 + $0x61] sm:$0xff]
        %v4443 = vld [vmem:[%s4208 + $0x69] sm:$0xff]
        %v4444 = vld [vmem:[%s4208 + $0x79] sm:$0xff]
        %v4445 = vld [vmem:[%s4208 + $0x81] sm:$0xff]
        %v4446 = vld [vmem:[%s4208 + $0x91] sm:$0xff]
        %v4447 = vld [vmem:[%s4208 + $0x99] sm:$0xff]
        %v4448 = vld [vmem:[%s4208 + $0xa9] sm:$0xff]
        %v4449 = vld [vmem:[%s4208 + $0xb1] sm:$0xff]
        %v4451 = vsel %vm260, %v4434, 0
        %v4454 = vsel %vm260, %v4435, 0
        %v4457 = vsel %vm260, %v4436, 0
        %v4460 = vsel %vm260, %v4437, 0
        %v4463 = vsel %vm260, %v4438, 0
        %v4466 = vsel %vm260, %v4439, 0
        %v4469 = vsel %vm260, %v4440, 0
        %v4472 = vsel %vm260, %v4441, 0
        %v4475 = vsel %vm260, %v4442, 0
        %v4478 = vsel %vm260, %v4443, 0
        %v4481 = vsel %vm260, %v4444, 0
        %v4484 = vsel %vm260, %v4445, 0
        %v4487 = vsel %vm260, %v4446, 0
        %v4490 = vsel %vm260, %v4447, 0
        %v4493 = vsel %vm260, %v4448, 0
        %v4496 = vsel %vm260, %v4449, 0
        %4498 = vmatprep.subr.mxu0 0.0
        %4499 = vmatpush1.msra.mxu0 %v818
        %4500 = vmatprep.subr.mxu0 0.0
        %4501 = vmatpush1.msra.mxu0 0.0
        %4502 = vmatprep.subr.mxu0 0.0
        %4503 = vmatpush1.msra.mxu0 0.0
        %4504 = vmatprep.subr.mxu0 0.0
        %4505 = vmatpush1.msra.mxu0 0.0
        %4506 = vmatprep.subr.mxu0 0.0
        %4507 = vmatpush1.msra.mxu0 0.0
        %4508 = vmatprep.subr.mxu0 0.0
        %4509 = vmatpush1.msra.mxu0 0.0
        %4510 = vmatprep.subr.mxu0 0.0
        %4511 = vmatpush1.msra.mxu0 0.0
        %4512 = vmatprep.subr.mxu0 0.0
        %4513 = vmatpush1.msra.mxu0 0.0
        %4514 = vmatprep.subr.mxu0 0.0
        %4515 = vmatpush1.msra.mxu0 0.0
        %4516 = vmatprep.subr.mxu0 0.0
        %4517 = vmatpush1.msra.mxu0 0.0
        %4518 = vmatprep.subr.mxu0 0.0
        %4519 = vmatpush1.msra.mxu0 0.0
        %4520 = vmatprep.subr.mxu0 0.0
        %4521 = vmatpush1.msra.mxu0 0.0
        %4522 = vmatprep.subr.mxu0 0.0
        %4523 = vmatpush1.msra.mxu0 0.0
        %4524 = vmatprep.subr.mxu0 0.0
        %4525 = vmatpush1.msra.mxu0 0.0
        %4526 = vmatprep.subr.mxu0 0.0
        %4527 = vmatpush1.msra.mxu0 0.0
        %4528 = vmatprep.subr.mxu0 0.0
        %4529 = vmatpush1.msra.mxu0 0.0
        %4530 = vmatprep.subr.mxu0 0.0
        %4531 = vmatpush1.msra.mxu0 0.0
        %4532 = vmatprep.subr.mxu0 0.0
        %4533 = vmatpush1.msra.mxu0 0.0
        %4534 = vmatprep.subr.mxu0 0.0
        %4535 = vmatpush1.msra.mxu0 0.0
        %4536 = vmatprep.subr.mxu0 0.0
        %4537 = vmatpush1.msra.mxu0 0.0
        %4538 = vmatprep.subr.mxu0 0.0
        %4539 = vmatpush1.msra.mxu0 0.0
        %4540 = vmatprep.subr.mxu0 0.0
        %4541 = vmatpush1.msra.mxu0 0.0
        %4542 = vmatprep.subr.mxu0 0.0
        %4543 = vmatpush1.msra.mxu0 0.0
        %4544 = vmatprep.subr.mxu0 0.0
        %4545 = vmatpush1.msra.mxu0 0.0
        %4546 = vmatprep.subr.mxu0 0.0
        %4547 = vmatpush1.msra.mxu0 0.0
        %4548 = vmatprep.subr.mxu0 0.0
        %4549 = vmatpush1.msra.mxu0 0.0
        %4550 = vmatprep.subr.mxu0 0.0
        %4551 = vmatpush1.msra.mxu0 0.0
        %4552 = vmatprep.subr.mxu0 0.0
        %4553 = vmatpush1.msra.mxu0 0.0
        %4554 = vmatprep.subr.mxu0 0.0
        %4555 = vmatpush1.msra.mxu0 0.0
        %4556 = vmatprep.subr.mxu0 0.0
        %4557 = vmatpush1.msra.mxu0 0.0
        %4558 = vmatprep.subr.mxu0 0.0
        %4559 = vmatpush1.msra.mxu0 0.0
        %4560 = vmatprep.subr.mxu0 0.0
        %4561 = vmatpush1.msra.mxu0 0.0
        %4562 = vmatprep.mubr.f32.mxu0 0.0
        %4563 = vmatmul.mubr.f32.gmra.mrb[0].mxu0 %v4451
        %v4564 = vpop.f32.mrb[0].mxu0
        %v4565 = vadd.f32 0.0, %v4564
        %v4566 = vpop.f32.mrb[0].mxu0
        %4567 = vmatprep.mubr.f32.mxu0 0.0
        %4568 = vmatmul.mubr.f32.gmra.mrb[0].mxu0 %v4454
        %v4569 = vpop.f32.mrb[0].mxu0
        %v4570 = vadd.f32 0.0, %v4569
        %v4571 = vpop.f32.mrb[0].mxu0
        %4572 = vmatprep.mubr.f32.mxu0 0.0
        %4573 = vmatmul.mubr.f32.gmra.mrb[0].mxu0 %v4457
        %v4574 = vpop.f32.mrb[0].mxu0
        %v4575 = vadd.f32 0.0, %v4574
        %v4576 = vpop.f32.mrb[0].mxu0
        %4577 = vmatprep.mubr.f32.mxu0 0.0
        %4578 = vmatmul.mubr.f32.gmra.mrb[0].mxu0 %v4460
        %v4579 = vpop.f32.mrb[0].mxu0
        %v4580 = vadd.f32 0.0, %v4579
        %v4581 = vpop.f32.mrb[0].mxu0
        %4582 = vmatprep.mubr.f32.mxu0 0.0
        %4583 = vmatmul.mubr.f32.gmra.mrb[0].mxu0 %v4463
        %v4584 = vpop.f32.mrb[0].mxu0
        %v4585 = vadd.f32 0.0, %v4584
        %v4586 = vpop.f32.mrb[0].mxu0
        %4587 = vmatprep.mubr.f32.mxu0 0.0
        %4588 = vmatmul.mubr.f32.gmra.mrb[0].mxu0 %v4466
        %v4589 = vpop.f32.mrb[0].mxu0
        %v4590 = vadd.f32 0.0, %v4589
        %v4591 = vpop.f32.mrb[0].mxu0
        %4592 = vmatprep.mubr.f32.mxu0 0.0
        %4593 = vmatmul.mubr.f32.gmra.mrb[0].mxu0 %v4469
        %v4594 = vpop.f32.mrb[0].mxu0
        %v4595 = vadd.f32 0.0, %v4594
        %v4596 = vpop.f32.mrb[0].mxu0
        %4597 = vmatprep.mubr.f32.mxu0 0.0
        %4598 = vmatmul.mubr.f32.gmra.mrb[0].mxu0 %v4472
        %v4599 = vpop.f32.mrb[0].mxu0
        %v4600 = vadd.f32 0.0, %v4599
        %v4601 = vpop.f32.mrb[0].mxu0
        %4602 = vmatprep.mubr.f32.mxu0 0.0
        %4603 = vmatmul.mubr.f32.gmra.mrb[0].mxu0 %v4475
        %v4604 = vpop.f32.mrb[0].mxu0
        %v4605 = vadd.f32 0.0, %v4604
        %v4606 = vpop.f32.mrb[0].mxu0
        %4607 = vmatprep.mubr.f32.mxu0 0.0
        %4608 = vmatmul.mubr.f32.gmra.mrb[0].mxu0 %v4478
        %v4609 = vpop.f32.mrb[0].mxu0
        %v4610 = vadd.f32 0.0, %v4609
        %v4611 = vpop.f32.mrb[0].mxu0
        %4612 = vmatprep.mubr.f32.mxu0 0.0
        %4613 = vmatmul.mubr.f32.gmra.mrb[0].mxu0 %v4481
        %v4614 = vpop.f32.mrb[0].mxu0
        %v4615 = vadd.f32 0.0, %v4614
        %v4616 = vpop.f32.mrb[0].mxu0
        %4617 = vmatprep.mubr.f32.mxu0 0.0
        %4618 = vmatmul.mubr.f32.gmra.mrb[0].mxu0 %v4484
        %v4619 = vpop.f32.mrb[0].mxu0
        %v4620 = vadd.f32 0.0, %v4619
        %v4621 = vpop.f32.mrb[0].mxu0
        %4622 = vmatprep.mubr.f32.mxu0 0.0
        %4623 = vmatmul.mubr.f32.gmra.mrb[0].mxu0 %v4487
        %v4624 = vpop.f32.mrb[0].mxu0
        %v4625 = vadd.f32 0.0, %v4624
        %v4626 = vpop.f32.mrb[0].mxu0
        %4627 = vmatprep.mubr.f32.mxu0 0.0
        %4628 = vmatmul.mubr.f32.gmra.mrb[0].mxu0 %v4490
        %v4629 = vpop.f32.mrb[0].mxu0
        %v4630 = vadd.f32 0.0, %v4629
        %v4631 = vpop.f32.mrb[0].mxu0
        %4632 = vmatprep.mubr.f32.mxu0 0.0
        %4633 = vmatmul.mubr.f32.gmra.mrb[0].mxu0 %v4493
        %v4634 = vpop.f32.mrb[0].mxu0
        %v4635 = vadd.f32 0.0, %v4634
        %v4636 = vpop.f32.mrb[0].mxu0
        %4637 = vmatprep.mubr.f32.mxu0 0.0
        %4638 = vmatmul.mubr.f32.gmra.mrb[0].mxu0 %v4496
        %v4639 = vpop.f32.mrb[0].mxu0
        %v4640 = vadd.f32 0.0, %v4639
        %v4641 = vpop.f32.mrb[0].mxu0
        %4642 = vdwg.mxu0
        %v4643 = vadd.f32 %v4418, %v4565
        %v4644 = vadd.f32 %v4419, %v4570
        %v4645 = vadd.f32 %v4420, %v4575
        %v4646 = vadd.f32 %v4421, %v4580
        %v4647 = vadd.f32 %v4422, %v4585
        %v4648 = vadd.f32 %v4423, %v4590
        %v4649 = vadd.f32 %v4424, %v4595
        %v4650 = vadd.f32 %v4425, %v4600
        %v4651 = vadd.f32 %v4426, %v4605
        %v4652 = vadd.f32 %v4427, %v4610
        %v4653 = vadd.f32 %v4428, %v4615
        %v4654 = vadd.f32 %v4429, %v4620
        %v4655 = vadd.f32 %v4430, %v4625
        %v4656 = vadd.f32 %v4431, %v4630
        %v4657 = vadd.f32 %v4432, %v4635
        %v4658 = vadd.f32 %v4433, %v4640
        %v4659 = vld [vmem:[%s4208 + $0x2] sm:$0xff]
        %v4660 = vld [vmem:[%s4208 + $0xa] sm:$0xff]
        %v4661 = vld [vmem:[%s4208 + $0x1a] sm:$0xff]
        %v4662 = vld [vmem:[%s4208 + $0x22] sm:$0xff]
        %v4663 = vld [vmem:[%s4208 + $0x32] sm:$0xff]
        %v4664 = vld [vmem:[%s4208 + $0x3a] sm:$0xff]
        %v4665 = vld [vmem:[%s4208 + $0x4a] sm:$0xff]
        %v4666 = vld [vmem:[%s4208 + $0x52] sm:$0xff]
        %v4667 = vld [vmem:[%s4208 + $0x62] sm:$0xff]
        %v4668 = vld [vmem:[%s4208 + $0x6a] sm:$0xff]
        %v4669 = vld [vmem:[%s4208 + $0x7a] sm:$0xff]
        %v4670 = vld [vmem:[%s4208 + $0x82] sm:$0xff]
        %v4671 = vld [vmem:[%s4208 + $0x92] sm:$0xff]
        %v4672 = vld [vmem:[%s4208 + $0x9a] sm:$0xff]
        %v4673 = vld [vmem:[%s4208 + $0xaa] sm:$0xff]
        %v4674 = vld [vmem:[%s4208 + $0xb2] sm:$0xff]
        %v4676 = vsel %vm260, %v4659, 0
        %v4679 = vsel %vm260, %v4660, 0
        %v4682 = vsel %vm260, %v4661, 0
        %v4685 = vsel %vm260, %v4662, 0
        %v4688 = vsel %vm260, %v4663, 0
        %v4691 = vsel %vm260, %v4664, 0
        %v4694 = vsel %vm260, %v4665, 0
        %v4697 = vsel %vm260, %v4666, 0
        %v4700 = vsel %vm260, %v4667, 0
        %v4703 = vsel %vm260, %v4668, 0
        %v4706 = vsel %vm260, %v4669, 0
        %v4709 = vsel %vm260, %v4670, 0
        %v4712 = vsel %vm260, %v4671, 0
        %v4715 = vsel %vm260, %v4672, 0
        %v4718 = vsel %vm260, %v4673, 0
        %v4721 = vsel %vm260, %v4674, 0
        %4723 = vmatprep.subr.mxu0 0.0
        %4724 = vmatpush1.msra.mxu0 %v819
        %4725 = vmatprep.subr.mxu0 0.0
        %4726 = vmatpush1.msra.mxu0 0.0
        %4727 = vmatprep.subr.mxu0 0.0
        %4728 = vmatpush1.msra.mxu0 0.0
        %4729 = vmatprep.subr.mxu0 0.0
        %4730 = vmatpush1.msra.mxu0 0.0
        %4731 = vmatprep.subr.mxu0 0.0
        %4732 = vmatpush1.msra.mxu0 0.0
        %4733 = vmatprep.subr.mxu0 0.0
        %4734 = vmatpush1.msra.mxu0 0.0
        %4735 = vmatprep.subr.mxu0 0.0
        %4736 = vmatpush1.msra.mxu0 0.0
        %4737 = vmatprep.subr.mxu0 0.0
        %4738 = vmatpush1.msra.mxu0 0.0
        %4739 = vmatprep.subr.mxu0 0.0
        %4740 = vmatpush1.msra.mxu0 0.0
        %4741 = vmatprep.subr.mxu0 0.0
        %4742 = vmatpush1.msra.mxu0 0.0
        %4743 = vmatprep.subr.mxu0 0.0
        %4744 = vmatpush1.msra.mxu0 0.0
        %4745 = vmatprep.subr.mxu0 0.0
        %4746 = vmatpush1.msra.mxu0 0.0
        %4747 = vmatprep.subr.mxu0 0.0
        %4748 = vmatpush1.msra.mxu0 0.0
        %4749 = vmatprep.subr.mxu0 0.0
        %4750 = vmatpush1.msra.mxu0 0.0
        %4751 = vmatprep.subr.mxu0 0.0
        %4752 = vmatpush1.msra.mxu0 0.0
        %4753 = vmatprep.subr.mxu0 0.0
        %4754 = vmatpush1.msra.mxu0 0.0
        %4755 = vmatprep.subr.mxu0 0.0
        %4756 = vmatpush1.msra.mxu0 0.0
        %4757 = vmatprep.subr.mxu0 0.0
        %4758 = vmatpush1.msra.mxu0 0.0
        %4759 = vmatprep.subr.mxu0 0.0
        %4760 = vmatpush1.msra.mxu0 0.0
        %4761 = vmatprep.subr.mxu0 0.0
        %4762 = vmatpush1.msra.mxu0 0.0
        %4763 = vmatprep.subr.mxu0 0.0
        %4764 = vmatpush1.msra.mxu0 0.0
        %4765 = vmatprep.subr.mxu0 0.0
        %4766 = vmatpush1.msra.mxu0 0.0
        %4767 = vmatprep.subr.mxu0 0.0
        %4768 = vmatpush1.msra.mxu0 0.0
        %4769 = vmatprep.subr.mxu0 0.0
        %4770 = vmatpush1.msra.mxu0 0.0
        %4771 = vmatprep.subr.mxu0 0.0
        %4772 = vmatpush1.msra.mxu0 0.0
        %4773 = vmatprep.subr.mxu0 0.0
        %4774 = vmatpush1.msra.mxu0 0.0
        %4775 = vmatprep.subr.mxu0 0.0
        %4776 = vmatpush1.msra.mxu0 0.0
        %4777 = vmatprep.subr.mxu0 0.0
        %4778 = vmatpush1.msra.mxu0 0.0
        %4779 = vmatprep.subr.mxu0 0.0
        %4780 = vmatpush1.msra.mxu0 0.0
        %4781 = vmatprep.subr.mxu0 0.0
        %4782 = vmatpush1.msra.mxu0 0.0
        %4783 = vmatprep.subr.mxu0 0.0
        %4784 = vmatpush1.msra.mxu0 0.0
        %4785 = vmatprep.subr.mxu0 0.0
        %4786 = vmatpush1.msra.mxu0 0.0
        %4787 = vmatprep.mubr.f32.mxu0 0.0
        %4788 = vmatmul.mubr.f32.gmra.mrb[0].mxu0 %v4676
        %v4789 = vpop.f32.mrb[0].mxu0
        %v4790 = vadd.f32 0.0, %v4789
        %v4791 = vpop.f32.mrb[0].mxu0
        %4792 = vmatprep.mubr.f32.mxu0 0.0
        %4793 = vmatmul.mubr.f32.gmra.mrb[0].mxu0 %v4679
        %v4794 = vpop.f32.mrb[0].mxu0
        %v4795 = vadd.f32 0.0, %v4794
        %v4796 = vpop.f32.mrb[0].mxu0
        %4797 = vmatprep.mubr.f32.mxu0 0.0
        %4798 = vmatmul.mubr.f32.gmra.mrb[0].mxu0 %v4682
        %v4799 = vpop.f32.mrb[0].mxu0
        %v4800 = vadd.f32 0.0, %v4799
        %v4801 = vpop.f32.mrb[0].mxu0
        %4802 = vmatprep.mubr.f32.mxu0 0.0
        %4803 = vmatmul.mubr.f32.gmra.mrb[0].mxu0 %v4685
        %v4804 = vpop.f32.mrb[0].mxu0
        %v4805 = vadd.f32 0.0, %v4804
        %v4806 = vpop.f32.mrb[0].mxu0
        %4807 = vmatprep.mubr.f32.mxu0 0.0
        %4808 = vmatmul.mubr.f32.gmra.mrb[0].mxu0 %v4688
        %v4809 = vpop.f32.mrb[0].mxu0
        %v4810 = vadd.f32 0.0, %v4809
        %v4811 = vpop.f32.mrb[0].mxu0
        %4812 = vmatprep.mubr.f32.mxu0 0.0
        %4813 = vmatmul.mubr.f32.gmra.mrb[0].mxu0 %v4691
        %v4814 = vpop.f32.mrb[0].mxu0
        %v4815 = vadd.f32 0.0, %v4814
        %v4816 = vpop.f32.mrb[0].mxu0
        %4817 = vmatprep.mubr.f32.mxu0 0.0
        %4818 = vmatmul.mubr.f32.gmra.mrb[0].mxu0 %v4694
        %v4819 = vpop.f32.mrb[0].mxu0
        %v4820 = vadd.f32 0.0, %v4819
        %v4821 = vpop.f32.mrb[0].mxu0
        %4822 = vmatprep.mubr.f32.mxu0 0.0
        %4823 = vmatmul.mubr.f32.gmra.mrb[0].mxu0 %v4697
        %v4824 = vpop.f32.mrb[0].mxu0
        %v4825 = vadd.f32 0.0, %v4824
        %v4826 = vpop.f32.mrb[0].mxu0
        %4827 = vmatprep.mubr.f32.mxu0 0.0
        %4828 = vmatmul.mubr.f32.gmra.mrb[0].mxu0 %v4700
        %v4829 = vpop.f32.mrb[0].mxu0
        %v4830 = vadd.f32 0.0, %v4829
        %v4831 = vpop.f32.mrb[0].mxu0
        %4832 = vmatprep.mubr.f32.mxu0 0.0
        %4833 = vmatmul.mubr.f32.gmra.mrb[0].mxu0 %v4703
        %v4834 = vpop.f32.mrb[0].mxu0
        %v4835 = vadd.f32 0.0, %v4834
        %v4836 = vpop.f32.mrb[0].mxu0
        %4837 = vmatprep.mubr.f32.mxu0 0.0
        %4838 = vmatmul.mubr.f32.gmra.mrb[0].mxu0 %v4706
        %v4839 = vpop.f32.mrb[0].mxu0
        %v4840 = vadd.f32 0.0, %v4839
        %v4841 = vpop.f32.mrb[0].mxu0
        %4842 = vmatprep.mubr.f32.mxu0 0.0
        %4843 = vmatmul.mubr.f32.gmra.mrb[0].mxu0 %v4709
        %v4844 = vpop.f32.mrb[0].mxu0
        %v4845 = vadd.f32 0.0, %v4844
        %v4846 = vpop.f32.mrb[0].mxu0
        %4847 = vmatprep.mubr.f32.mxu0 0.0
        %4848 = vmatmul.mubr.f32.gmra.mrb[0].mxu0 %v4712
        %v4849 = vpop.f32.mrb[0].mxu0
        %v4850 = vadd.f32 0.0, %v4849
        %v4851 = vpop.f32.mrb[0].mxu0
        %4852 = vmatprep.mubr.f32.mxu0 0.0
        %4853 = vmatmul.mubr.f32.gmra.mrb[0].mxu0 %v4715
        %v4854 = vpop.f32.mrb[0].mxu0
        %v4855 = vadd.f32 0.0, %v4854
        %v4856 = vpop.f32.mrb[0].mxu0
        %4857 = vmatprep.mubr.f32.mxu0 0.0
        %4858 = vmatmul.mubr.f32.gmra.mrb[0].mxu0 %v4718
        %v4859 = vpop.f32.mrb[0].mxu0
        %v4860 = vadd.f32 0.0, %v4859
        %v4861 = vpop.f32.mrb[0].mxu0
        %4862 = vmatprep.mubr.f32.mxu0 0.0
        %4863 = vmatmul.mubr.f32.gmra.mrb[0].mxu0 %v4721
        %v4864 = vpop.f32.mrb[0].mxu0
        %v4865 = vadd.f32 0.0, %v4864
        %v4866 = vpop.f32.mrb[0].mxu0
        %4867 = vdwg.mxu0
        %v4868 = vadd.f32 %v4643, %v4790
        %v4869 = vadd.f32 %v4644, %v4795
        %v4870 = vadd.f32 %v4645, %v4800
        %v4871 = vadd.f32 %v4646, %v4805
        %v4872 = vadd.f32 %v4647, %v4810
        %v4873 = vadd.f32 %v4648, %v4815
        %v4874 = vadd.f32 %v4649, %v4820
        %v4875 = vadd.f32 %v4650, %v4825
        %v4876 = vadd.f32 %v4651, %v4830
        %v4877 = vadd.f32 %v4652, %v4835
        %v4878 = vadd.f32 %v4653, %v4840
        %v4879 = vadd.f32 %v4654, %v4845
        %v4880 = vadd.f32 %v4655, %v4850
        %v4881 = vadd.f32 %v4656, %v4855
        %v4882 = vadd.f32 %v4657, %v4860
        %v4883 = vadd.f32 %v4658, %v4865
        %v4884 = vld [vmem:[%s4] sm:$0x1]
        %v4885 = vlaneseq
        %v4886 = vshrl.u32 %v4885, 7
        %v4887 = vsub.s32 0, %v4886
        %v4888 = vrot.slane %v4884, %v4887
        %v4889 = vmul.f32 %v4868, %v4888
        %v4890 = vmul.f32 %v4869, %v4888
        %v4891 = vmul.f32 %v4870, %v4888
        %v4892 = vmul.f32 %v4871, %v4888
        %v4893 = vmul.f32 %v4872, %v4888
        %v4894 = vmul.f32 %v4873, %v4888
        %v4895 = vmul.f32 %v4874, %v4888
        %v4896 = vmul.f32 %v4875, %v4888
        %v4897 = vmul.f32 %v4876, %v4888
        %v4898 = vmul.f32 %v4877, %v4888
        %v4899 = vmul.f32 %v4878, %v4888
        %v4900 = vmul.f32 %v4879, %v4888
        %v4901 = vmul.f32 %v4880, %v4888
        %v4902 = vmul.f32 %v4881, %v4888
        %v4903 = vmul.f32 %v4882, %v4888
        %v4904 = vmul.f32 %v4883, %v4888
        %v4905 = vld [vmem:[%s4 + $0x1] sm:$0x1]
        %v4906 = vlaneseq
        %v4907 = vshrl.u32 %v4906, 7
        %v4908 = vsub.s32 0, %v4907
        %v4909 = vrot.slane %v4905, %v4908
        %v4910 = vadd.f32 %v4889, %v4909
        %v4911 = vadd.f32 %v4890, %v4909
        %v4912 = vadd.f32 %v4891, %v4909
        %v4913 = vadd.f32 %v4892, %v4909
        %v4914 = vadd.f32 %v4893, %v4909
        %v4915 = vadd.f32 %v4894, %v4909
        %v4916 = vadd.f32 %v4895, %v4909
        %v4917 = vadd.f32 %v4896, %v4909
        %v4918 = vadd.f32 %v4897, %v4909
        %v4919 = vadd.f32 %v4898, %v4909
        %v4920 = vadd.f32 %v4899, %v4909
        %v4921 = vadd.f32 %v4900, %v4909
        %v4922 = vadd.f32 %v4901, %v4909
        %v4923 = vadd.f32 %v4902, %v4909
        %v4924 = vadd.f32 %v4903, %v4909
        %v4925 = vadd.f32 %v4904, %v4909
        %v4926 = vmax.f32 %v4910, 0.0
        %v4927 = vmax.f32 %v4911, 0.0
        %v4928 = vmax.f32 %v4912, 0.0
        %v4929 = vmax.f32 %v4913, 0.0
        %v4930 = vmax.f32 %v4914, 0.0
        %v4931 = vmax.f32 %v4915, 0.0
        %v4932 = vmax.f32 %v4916, 0.0
        %v4933 = vmax.f32 %v4917, 0.0
        %v4934 = vmax.f32 %v4918, 0.0
        %v4935 = vmax.f32 %v4919, 0.0
        %v4936 = vmax.f32 %v4920, 0.0
        %v4937 = vmax.f32 %v4921, 0.0
        %v4938 = vmax.f32 %v4922, 0.0
        %v4939 = vmax.f32 %v4923, 0.0
        %v4940 = vmax.f32 %v4924, 0.0
        %v4941 = vmax.f32 %v4925, 0.0
        %s4942 = scalar_lea.vmem %s259, 128
        %4943 = vst.msk [vmem:[%s4942] sm:$0xff] %vm260, %v4926
        %4944 = vst.msk [vmem:[%s4942 + $0x8] sm:$0xff] %vm260, %v4927
        %4945 = vst.msk [vmem:[%s4942 + $0x10] sm:$0xff] %vm260, %v4928
        %4946 = vst.msk [vmem:[%s4942 + $0x18] sm:$0xff] %vm260, %v4929
        %4947 = vst.msk [vmem:[%s4942 + $0x20] sm:$0xff] %vm260, %v4930
        %4948 = vst.msk [vmem:[%s4942 + $0x28] sm:$0xff] %vm260, %v4931
        %4949 = vst.msk [vmem:[%s4942 + $0x30] sm:$0xff] %vm260, %v4932
        %4950 = vst.msk [vmem:[%s4942 + $0x38] sm:$0xff] %vm260, %v4933
        %4951 = vst.msk [vmem:[%s4942 + $0x40] sm:$0xff] %vm260, %v4934
        %4952 = vst.msk [vmem:[%s4942 + $0x48] sm:$0xff] %vm260, %v4935
        %4953 = vst.msk [vmem:[%s4942 + $0x50] sm:$0xff] %vm260, %v4936
        %4954 = vst.msk [vmem:[%s4942 + $0x58] sm:$0xff] %vm260, %v4937
        %4955 = vst.msk [vmem:[%s4942 + $0x60] sm:$0xff] %vm260, %v4938
        %4956 = vst.msk [vmem:[%s4942 + $0x68] sm:$0xff] %vm260, %v4939
        %4957 = vst.msk [vmem:[%s4942 + $0x70] sm:$0xff] %vm260, %v4940
        %4958 = vst.msk [vmem:[%s4942 + $0x78] sm:$0xff] %vm260, %v4941
        %p4959 = scmp.lt.s32.totalorder %s20, 1
        %s4960 = scalar_select %p4959, %s20, 1
        %s4961 = smul.addr %s4960, 32
        %s4962 = smul.addr %s4961, 8
        %s4963 = scalar_lea.vmem %s5, %s4962
        // Predicated region
        $region49: #{bottleneck_forward.2} parent=39 // pred_check
          %p4964 = pneg %p148
        $region50: #{bottleneck_forward.2} parent=39 // pred_check_branch
          %4966 = sbr.rel (%p4964) target = $region52
        $region51: #{bottleneck_forward.2} parent=39 // pred_region
          _
        $region52: #{bottleneck_forward.2} parent=39 // pred_fallthru
          _
      $region40: #{bottleneck_forward.2} parent=5 // pred_fallthru
        _
      %p4967 = scmp.le.s32.totalorder 2, %s15
      // Predicated region
      $region53: #{bottleneck_forward.2} parent=5 // pred_check
        %p4968 = pneg %p4967
      $region54: #{bottleneck_forward.2} parent=5 // pred_check_branch
        %4970 = sbr.rel (%p4968) target = $region56
      $region55: #{bottleneck_forward.2} parent=5 // pred_region
        %s4971 = ssub.s32 %s15, 2
        // Predicated region
        $region57: #{bottleneck_forward.2} parent=55 // pred_check
          %p4972 = pneg %p154
        $region58: #{bottleneck_forward.2} parent=55 // pred_check_branch
          %4974 = sbr.rel (%p4972) target = $region60
        $region59: #{bottleneck_forward.2} parent=55 // pred_region
          %p4975 = scmp.lt.s32.totalorder %s21, 1
          %s4976 = scalar_select %p4975, %s21, 1
          %s4977 = smul.addr %s4976, 32
          %s4978 = smul.addr %s4977, 8
          %s4979 = scalar_lea.vmem %s5, %s4978
        $region60: #{bottleneck_forward.2} parent=55 // pred_fallthru
          _
      $region56: #{bottleneck_forward.2} parent=5 // pred_fallthru
        _
    $region6: #{bottleneck_forward.2} parent=1 // loop_footer
      %s19 = sadd.s32 1, %s15
    $region7: #{bottleneck_forward.2} parent=1 // loop_footer_branch
      %14 = sbr.rel target = $region3
    $region8: #{bottleneck_forward.2} parent=1 // loop_exit
      _
    %4980 = vsyncpa [#allocation4], 1
    %s4981 = scalar_lea.sflag [#allocation4], 1
    %4982 = vsyncpa %s4981, 1
    %4983 = vsyncpa [#allocation6], 1

</llo_original>
